<compile_context>
chip_gen: v7x
topology: tpu7x:2x2x1
jax: 0.10.0
libtpu: 0.0.40
codegen_flags: <defaults>
</compile_context>

<pallas_src>
import jax
import jax.numpy as jnp
import numpy as np
from jax import lax
from jax.experimental import pallas as pl
from jax.experimental.pallas import tpu as pltpu


# ----------------------------------------------------------------------------- kernel

def _upsampling_block_kernel(right_ref, left_ref, wup_ref, bup_ref,
                             w1_ref, sb1_ref, w2_ref, sb2_ref,
                             o_ref, lpad, upad, mpad):
    """Fused UpSamplingBlock forward for one image (grid step).

    right_ref: (1, H,  W,  Cin)  bf16     left_ref: (1, 2H, 2W, Cin) bf16
    wup_ref:   (4, Cin, Cin)     bf16     bup_ref:  (1, Cin)  f32
    w1_ref:    (3, 6*Cin, Cout)  bf16     sb1_ref:  (2, Cout) f32  [scale; bias]
    w2_ref:    (3, 3*Cout, Cout) bf16     sb2_ref:  (2, Cout) f32
    o_ref:     (1, 2H, 2W, Cout) f32
    lpad/upad/mpad: VMEM scratch, zero-halo padded left / upsampled-right / conv1 output.
    """
    _, H, W, Cin = right_ref.shape
    H2, W2 = 2 * H, 2 * W
    Cout = sb1_ref.shape[1]
    cdt = lpad.dtype

    # --- zero the 1-pixel halo of the padded scratch buffers.
    # Interiors are fully overwritten below; the halo is re-zeroed every step because
    # the "parallel" grid axis may be sharded across cores (each core has its own scratch).
    def zero_halo(buf):
        c = buf.shape[-1]
        zrow = jnp.zeros((1, W2 + 2, c), buf.dtype)
        zcol = jnp.zeros((H2 + 2, 1, c), buf.dtype)
        buf[0:1, :, :] = zrow
        buf[H2 + 1:H2 + 2, :, :] = zrow
        buf[:, 0:1, :] = zcol
        buf[:, W2 + 1:W2 + 2, :] = zcol

    zero_halo(lpad)
    zero_halo(upad)
    zero_halo(mpad)

    # --- ConvTranspose2d(k=2, s=2): 4 pointwise matmuls (one per output sub-pixel),
    #     depth-to-space done in-register (no HBM round trip, no XLA transpose).
    x2d = right_ref[0].reshape(H * W, Cin)
    ys = []
    for k in range(4):                                            # k = di*2 + dj
        y = jnp.dot(x2d, wup_ref[k], preferred_element_type=jnp.float32)
        y = y + bup_ref[...]
        ys.append(y.reshape(H, W, Cin).astype(cdt))
    row0 = jnp.stack([ys[0], ys[1]], axis=2).reshape(H, W2, Cin)  # di = 0 rows
    row1 = jnp.stack([ys[2], ys[3]], axis=2).reshape(H, W2, Cin)  # di = 1 rows
    up = jnp.stack([row0, row1], axis=1).reshape(H2, W2, Cin)     # (2H, 2W, Cin)

    # --- fused torch.cat([left, right_up], dim=C): the two branches stay in separate
    #     padded scratch buffers and feed separate weight halves of conv1.
    lpad[1:H2 + 1, 1:W2 + 1, :] = left_ref[0]
    upad[1:H2 + 1, 1:W2 + 1, :] = up

    # --- conv1 3x3 + folded BN + ReLU.  Taps packed into the contraction dim:
    #     one matmul per kernel row dh with K = 6*Cin (3 dw taps of left + 3 of up).
    acc = jnp.zeros((H2 * W2, Cout), jnp.float32)
    for dh in range(3):
        slab = jnp.concatenate(
            [lpad[dh:dh + H2, 0:W2, :],
             lpad[dh:dh + H2, 1:W2 + 1, :],
             lpad[dh:dh + H2, 2:W2 + 2, :],
             upad[dh:dh + H2, 0:W2, :],
             upad[dh:dh + H2, 1:W2 + 1, :],
             upad[dh:dh + H2, 2:W2 + 2, :]],
            axis=-1).reshape(H2 * W2, 6 * Cin)
        acc += jnp.dot(slab, w1_ref[dh], preferred_element_type=jnp.float32)
    mid = jnp.maximum(acc * sb1_ref[0:1, :] + sb1_ref[1:2, :], 0.0)
    mpad[1:H2 + 1, 1:W2 + 1, :] = mid.reshape(H2, W2, Cout).astype(cdt)

    # --- conv2 3x3 + folded BN + ReLU, same tap packing (K = 3*Cout).
    acc2 = jnp.zeros((H2 * W2, Cout), jnp.float32)
    for dh in range(3):
        slab = jnp.concatenate(
            [mpad[dh:dh + H2, 0:W2, :],
             mpad[dh:dh + H2, 1:W2 + 1, :],
             mpad[dh:dh + H2, 2:W2 + 2, :]],
            axis=-1).reshape(H2 * W2, 3 * Cout)
        acc2 += jnp.dot(slab, w2_ref[dh], preferred_element_type=jnp.float32)
    out = jnp.maximum(acc2 * sb2_ref[0:1, :] + sb2_ref[1:2, :], 0.0)
    o_ref[0] = out.reshape(H2, W2, Cout).astype(o_ref.dtype)


# ----------------------------------------------------------------------------- wrapper

@jax.jit
def upsampling_block_forward(right_nchw, left_nchw, w_up, b_up, w1p, sb1, w2p, sb2):
    # NCHW -> NHWC (layout plumbing at the kernel edges only), bf16 matmul inputs.
    right = jnp.transpose(right_nchw, (0, 2, 3, 1)).astype(jnp.bfloat16)
    left = jnp.transpose(left_nchw, (0, 2, 3, 1)).astype(jnp.bfloat16)
    N, H, W, Cin = right.shape
    H2, W2 = 2 * H, 2 * W
    Cout = sb1.shape[1]

    # Note: the weight operands use constant index maps; at production scale consider
    # pipeline_mode=pl.Buffered(1) (or a one-time manual copy) to avoid double-buffering them.
    out_nhwc = pl.pallas_call(
        _upsampling_block_kernel,
        out_shape=jax.ShapeDtypeStruct((N, H2, W2, Cout), jnp.float32),
        grid=(N,),
        in_specs=[
            pl.BlockSpec((1, H, W, Cin), lambda n: (n, 0, 0, 0)),
            pl.BlockSpec((1, H2, W2, Cin), lambda n: (n, 0, 0, 0)),
            pl.BlockSpec((4, Cin, Cin), lambda n: (0, 0, 0)),
            pl.BlockSpec((1, Cin), lambda n: (0, 0)),
            pl.BlockSpec((3, 6 * Cin, Cout), lambda n: (0, 0, 0)),
            pl.BlockSpec((2, Cout), lambda n: (0, 0)),
            pl.BlockSpec((3, 3 * Cout, Cout), lambda n: (0, 0, 0)),
            pl.BlockSpec((2, Cout), lambda n: (0, 0)),
        ],
        out_specs=pl.BlockSpec((1, H2, W2, Cout), lambda n: (n, 0, 0, 0)),
        scratch_shapes=[
            pltpu.VMEM((H2 + 2, W2 + 2, Cin), jnp.bfloat16),   # padded left
            pltpu.VMEM((H2 + 2, W2 + 2, Cin), jnp.bfloat16),   # padded upsampled right
            pltpu.VMEM((H2 + 2, W2 + 2, Cout), jnp.bfloat16),  # padded conv1 output
        ],
        compiler_params=pltpu.CompilerParams(dimension_semantics=("parallel",)),
    )(right, left, w_up, b_up, w1p, sb1, w2p, sb2)

    # NHWC -> NCHW
    return jnp.transpose(out_nhwc, (0, 3, 1, 2))


# ----------------------------------------------------------------------------- params

def make_params(key, in_planes, out_planes):
    """Deterministic parameter init, PyTorch-shaped, then repacked for the fused kernel."""
    ks = jax.random.split(key, 14)
    eps = 1e-5
    Cin, Cout = in_planes, out_planes

    # ConvTranspose2d(Cin, Cin, k=2, s=2): weight (Cin, Cin, 2, 2), bias (Cin,)
    wT = 0.1 * jax.random.normal(ks[0], (Cin, Cin, 2, 2), jnp.float32)
    bT = 0.1 * jax.random.normal(ks[1], (Cin,), jnp.float32)

    def conv_bn(kw, kb, kg, kbe, km, kv, cin, cout):
        w = 0.1 * jax.random.normal(kw, (cout, cin, 3, 3), jnp.float32)   # (O, I, kh, kw)
        b = 0.1 * jax.random.normal(kb, (cout,), jnp.float32)
        gamma = 1.0 + 0.1 * jax.random.normal(kg, (cout,), jnp.float32)
        beta = 0.1 * jax.random.normal(kbe, (cout,), jnp.float32)
        mean = 0.1 * jax.random.normal(km, (cout,), jnp.float32)
        var = 1.0 + 0.5 * jnp.abs(jax.random.normal(kv, (cout,), jnp.float32))
        return dict(w=w, b=b, gamma=gamma, beta=beta, mean=mean, var=var)

    c1 = conv_bn(*ks[2:8], 2 * Cin, Cout)     # distinct keys for each param (fix key reuse)
    c2 = conv_bn(*ks[8:14], Cout, Cout)

    # --- repack for the kernel ---
    # ConvTranspose: w_up[di*2+dj, ci, co] = wT[ci, co, di, dj]
    w_up = jnp.transpose(wT, (2, 3, 0, 1)).reshape(4, Cin, Cin).astype(jnp.bfloat16)
    b_up = bT.reshape(1, Cin)                                              # f32

    def pack3(w):   # (O, I, 3, 3) -> (3, 3*I, O) with row order [dh][dw*I + i]
        o, i = w.shape[0], w.shape[1]
        return jnp.transpose(w, (2, 3, 1, 0)).reshape(3, 3 * i, o)

    def fold_bn(c):
        scale = c["gamma"] / jnp.sqrt(c["var"] + eps)
        bias = c["beta"] + (c["b"] - c["mean"]) * scale
        return jnp.stack([scale, bias], axis=0)                            # (2, Cout) f32

    w1_left = pack3(c1["w"][:, :Cin])          # taps over `left`  (first Cin input chans)
    w1_right = pack3(c1["w"][:, Cin:])         # taps over upsampled `right`
    w1p = jnp.concatenate([w1_left, w1_right], axis=1).astype(jnp.bfloat16)  # (3, 6*Cin, Cout)
    w2p = pack3(c2["w"]).astype(jnp.bfloat16)                                # (3, 3*Cout, Cout)
    sb1 = fold_bn(c1)
    sb2 = fold_bn(c2)

    torch_like = dict(wT=wT, bT=bT, c1=c1, c2=c2, eps=eps)
    packed = dict(w_up=w_up, b_up=b_up, w1p=w1p, sb1=sb1, w2p=w2p, sb2=sb2)
    return torch_like, packed


# ----------------------------------------------------------------------------- reference

def _reference_forward(right_nchw, left_nchw, p):
    """Independent pure-JAX reference (lax.conv, NHWC) of the PyTorch forward.

    Activations / conv weights are passed through bf16 to mirror the kernel's matmul
    input precision (accumulation stays f32 in both paths)."""
    q = lambda a: a.astype(jnp.bfloat16).astype(jnp.float32)
    eps = p["eps"]
    right = q(jnp.transpose(right_nchw, (0, 2, 3, 1)))
    left = q(jnp.transpose(left_nchw, (0, 2, 3, 1)))
    N, H, W, Cin = right.shape

    # ConvTranspose2d(k=2, s=2): explicit scatter formulation.
    out = jnp.zeros((N, 2 * H, 2 * W, Cin), jnp.float32)
    wT = q(p["wT"])
    for di in range(2):
        for dj in range(2):
            y = jnp.einsum("nhwc,cd->nhwd", right, wT[:, :, di, dj]) + p["bT"]
            out = out.at[:, di::2, dj::2, :].set(y)

    net = jnp.concatenate([left, out], axis=-1)

    def conv_bn_relu(x, c):
        w_hwio = q(jnp.transpose(c["w"], (2, 3, 1, 0)))
        y = lax.conv_general_dilated(
            x, w_hwio, window_strides=(1, 1), padding="SAME",
            dimension_numbers=("NHWC", "HWIO", "NHWC")) + c["b"]
        y = (y - c["mean"]) / jnp.sqrt(c["var"] + eps) * c["gamma"] + c["beta"]
        return jnp.maximum(y, 0.0)

    net = conv_bn_relu(net, p["c1"])
    net = conv_bn_relu(net, p["c2"])
    return jnp.transpose(net, (0, 3, 1, 2))


# ----------------------------------------------------------------------------- main

if __name__ == "__main__":
    key = jax.random.PRNGKey(0)
    k_right, k_left, k_params = jax.random.split(key, 3)

    N, in_planes, out_planes = 2, 4, 8
    H, W = 8, 8                      # spatial size of right_net; left_net is 2x

    right_net = jax.random.normal(k_right, (N, in_planes, H, W), jnp.float32)
    left_net = jax.random.normal(k_left, (N, in_planes, 2 * H, 2 * W), jnp.float32)

    torch_like, kp = make_params(k_params, in_planes, out_planes)

    out = upsampling_block_forward(
        right_net, left_net,
        kp["w_up"], kp["b_up"], kp["w1p"], kp["sb1"], kp["w2p"], kp["sb2"])
    out = jax.block_until_ready(out)
    assert out.shape == (N, out_planes, 2 * H, 2 * W), out.shape

    ref = jax.block_until_ready(_reference_forward(right_net, left_net, torch_like))
    np.testing.assert_allclose(np.asarray(out), np.asarray(ref), rtol=5e-2, atol=5e-2)

    print("KERNEL_OK")
</pallas_src>

<mosaic_0001>
module attributes {stable_mosaic.version = 11 : i64} {
  func.func @_upsampling_block_kernel(%arg0: i32, %arg1: memref<1x8x8x4xbf16, #tpu.memory_space<vmem>>, %arg2: memref<1x16x16x4xbf16, #tpu.memory_space<vmem>>, %arg3: memref<4x4x4xbf16, #tpu.memory_space<vmem>>, %arg4: memref<1x4xf32, #tpu.memory_space<vmem>>, %arg5: memref<3x24x8xbf16, #tpu.memory_space<vmem>>, %arg6: memref<2x8xf32, #tpu.memory_space<vmem>>, %arg7: memref<3x24x8xbf16, #tpu.memory_space<vmem>>, %arg8: memref<2x8xf32, #tpu.memory_space<vmem>>, %arg9: memref<1x16x16x8xf32, #tpu.memory_space<vmem>>, %arg10: memref<18x18x4xbf16, #tpu.memory_space<vmem>>, %arg11: memref<18x18x4xbf16, #tpu.memory_space<vmem>>, %arg12: memref<18x18x8xbf16, #tpu.memory_space<vmem>>) attributes {dimension_semantics = [#tpu.dimension_semantics<parallel>], iteration_bounds = array<i64: 2>, scalar_prefetch = 0 : i64, scratch_operands = 3 : i64, tpu.core_type = #tpu.core_type<tc>, window_params = [{transform_indices = @transform_0, window_bounds = array<i64: 1, 8, 8, 4>}, {transform_indices = @transform_1, window_bounds = array<i64: 1, 16, 16, 4>}, {pipeline_mode = #tpu.pipeline_mode<synchronous>, transform_indices = @transform_2, window_bounds = array<i64: 4, 4, 4>}, {pipeline_mode = #tpu.pipeline_mode<synchronous>, transform_indices = @transform_3, window_bounds = array<i64: 1, 4>}, {pipeline_mode = #tpu.pipeline_mode<synchronous>, transform_indices = @transform_4, window_bounds = array<i64: 3, 24, 8>}, {pipeline_mode = #tpu.pipeline_mode<synchronous>, transform_indices = @transform_5, window_bounds = array<i64: 2, 8>}, {pipeline_mode = #tpu.pipeline_mode<synchronous>, transform_indices = @transform_6, window_bounds = array<i64: 3, 24, 8>}, {pipeline_mode = #tpu.pipeline_mode<synchronous>, transform_indices = @transform_7, window_bounds = array<i64: 2, 8>}, {transform_indices = @transform_8, window_bounds = array<i64: 1, 16, 16, 8>}]} {
    %cst = arith.constant 0.000000e+00 : bf16
    %0 = vector.broadcast %cst : bf16 to vector<1x18x4xbf16>
    %cst_0 = arith.constant 0.000000e+00 : bf16
    %1 = vector.broadcast %cst_0 : bf16 to vector<18x1x4xbf16>
    %c0 = arith.constant 0 : index
    %c0_1 = arith.constant 0 : index
    %c0_2 = arith.constant 0 : index
    %2 = vector.load %arg10[%c0, %c0_1, %c0_2] : memref<18x18x4xbf16, #tpu.memory_space<vmem>>, vector<1x18x4xbf16>
    tpu.vector_store %arg10[%c0, %c0_1, %c0_2], %0 {strides = array<i32>} : memref<18x18x4xbf16, #tpu.memory_space<vmem>>, vector<1x18x4xbf16>,
    %c17 = arith.constant 17 : index
    %c0_3 = arith.constant 0 : index
    %c0_4 = arith.constant 0 : index
    %3 = vector.load %arg10[%c17, %c0_3, %c0_4] : memref<18x18x4xbf16, #tpu.memory_space<vmem>>, vector<1x18x4xbf16>
    tpu.vector_store %arg10[%c17, %c0_3, %c0_4], %0 {strides = array<i32>} : memref<18x18x4xbf16, #tpu.memory_space<vmem>>, vector<1x18x4xbf16>,
    %c0_5 = arith.constant 0 : index
    %c0_6 = arith.constant 0 : index
    %c0_7 = arith.constant 0 : index
    %4 = vector.load %arg10[%c0_5, %c0_6, %c0_7] : memref<18x18x4xbf16, #tpu.memory_space<vmem>>, vector<18x1x4xbf16>
    tpu.vector_store %arg10[%c0_5, %c0_6, %c0_7], %1 {strides = array<i32>} : memref<18x18x4xbf16, #tpu.memory_space<vmem>>, vector<18x1x4xbf16>,
    %c0_8 = arith.constant 0 : index
    %c17_9 = arith.constant 17 : index
    %c0_10 = arith.constant 0 : index
    %5 = vector.load %arg10[%c0_8, %c17_9, %c0_10] : memref<18x18x4xbf16, #tpu.memory_space<vmem>>, vector<18x1x4xbf16>
    tpu.vector_store %arg10[%c0_8, %c17_9, %c0_10], %1 {strides = array<i32>} : memref<18x18x4xbf16, #tpu.memory_space<vmem>>, vector<18x1x4xbf16>,
    %cst_11 = arith.constant 0.000000e+00 : bf16
    %6 = vector.broadcast %cst_11 : bf16 to vector<1x18x4xbf16>
    %cst_12 = arith.constant 0.000000e+00 : bf16
    %7 = vector.broadcast %cst_12 : bf16 to vector<18x1x4xbf16>
    %c0_13 = arith.constant 0 : index
    %c0_14 = arith.constant 0 : index
    %c0_15 = arith.constant 0 : index
    %8 = vector.load %arg11[%c0_13, %c0_14, %c0_15] : memref<18x18x4xbf16, #tpu.memory_space<vmem>>, vector<1x18x4xbf16>
    tpu.vector_store %arg11[%c0_13, %c0_14, %c0_15], %6 {strides = array<i32>} : memref<18x18x4xbf16, #tpu.memory_space<vmem>>, vector<1x18x4xbf16>,
    %c17_16 = arith.constant 17 : index
    %c0_17 = arith.constant 0 : index
    %c0_18 = arith.constant 0 : index
    %9 = vector.load %arg11[%c17_16, %c0_17, %c0_18] : memref<18x18x4xbf16, #tpu.memory_space<vmem>>, vector<1x18x4xbf16>
    tpu.vector_store %arg11[%c17_16, %c0_17, %c0_18], %6 {strides = array<i32>} : memref<18x18x4xbf16, #tpu.memory_space<vmem>>, vector<1x18x4xbf16>,
    %c0_19 = arith.constant 0 : index
    %c0_20 = arith.constant 0 : index
    %c0_21 = arith.constant 0 : index
    %10 = vector.load %arg11[%c0_19, %c0_20, %c0_21] : memref<18x18x4xbf16, #tpu.memory_space<vmem>>, vector<18x1x4xbf16>
    tpu.vector_store %arg11[%c0_19, %c0_20, %c0_21], %7 {strides = array<i32>} : memref<18x18x4xbf16, #tpu.memory_space<vmem>>, vector<18x1x4xbf16>,
    %c0_22 = arith.constant 0 : index
    %c17_23 = arith.constant 17 : index
    %c0_24 = arith.constant 0 : index
    %11 = vector.load %arg11[%c0_22, %c17_23, %c0_24] : memref<18x18x4xbf16, #tpu.memory_space<vmem>>, vector<18x1x4xbf16>
    tpu.vector_store %arg11[%c0_22, %c17_23, %c0_24], %7 {strides = array<i32>} : memref<18x18x4xbf16, #tpu.memory_space<vmem>>, vector<18x1x4xbf16>,
    %cst_25 = arith.constant 0.000000e+00 : bf16
    %12 = vector.broadcast %cst_25 : bf16 to vector<1x18x8xbf16>
    %cst_26 = arith.constant 0.000000e+00 : bf16
    %13 = vector.broadcast %cst_26 : bf16 to vector<18x1x8xbf16>
    %c0_27 = arith.constant 0 : index
    %c0_28 = arith.constant 0 : index
    %c0_29 = arith.constant 0 : index
    %14 = vector.load %arg12[%c0_27, %c0_28, %c0_29] : memref<18x18x8xbf16, #tpu.memory_space<vmem>>, vector<1x18x8xbf16>
    tpu.vector_store %arg12[%c0_27, %c0_28, %c0_29], %12 {strides = array<i32>} : memref<18x18x8xbf16, #tpu.memory_space<vmem>>, vector<1x18x8xbf16>,
    %c17_30 = arith.constant 17 : index
    %c0_31 = arith.constant 0 : index
    %c0_32 = arith.constant 0 : index
    %15 = vector.load %arg12[%c17_30, %c0_31, %c0_32] : memref<18x18x8xbf16, #tpu.memory_space<vmem>>, vector<1x18x8xbf16>
    tpu.vector_store %arg12[%c17_30, %c0_31, %c0_32], %12 {strides = array<i32>} : memref<18x18x8xbf16, #tpu.memory_space<vmem>>, vector<1x18x8xbf16>,
    %c0_33 = arith.constant 0 : index
    %c0_34 = arith.constant 0 : index
    %c0_35 = arith.constant 0 : index
    %16 = vector.load %arg12[%c0_33, %c0_34, %c0_35] : memref<18x18x8xbf16, #tpu.memory_space<vmem>>, vector<18x1x8xbf16>
    tpu.vector_store %arg12[%c0_33, %c0_34, %c0_35], %13 {strides = array<i32>} : memref<18x18x8xbf16, #tpu.memory_space<vmem>>, vector<18x1x8xbf16>,
    %c0_36 = arith.constant 0 : index
    %c17_37 = arith.constant 17 : index
    %c0_38 = arith.constant 0 : index
    %17 = vector.load %arg12[%c0_36, %c17_37, %c0_38] : memref<18x18x8xbf16, #tpu.memory_space<vmem>>, vector<18x1x8xbf16>
    tpu.vector_store %arg12[%c0_36, %c17_37, %c0_38], %13 {strides = array<i32>} : memref<18x18x8xbf16, #tpu.memory_space<vmem>>, vector<18x1x8xbf16>,
    %c0_39 = arith.constant 0 : index
    %c0_40 = arith.constant 0 : index
    %c0_41 = arith.constant 0 : index
    %c0_42 = arith.constant 0 : index
    %18 = vector.load %arg1[%c0_39, %c0_40, %c0_41, %c0_42] : memref<1x8x8x4xbf16, #tpu.memory_space<vmem>>, vector<1x8x8x4xbf16>
    %19 = vector.shape_cast %18 : vector<1x8x8x4xbf16> to vector<8x8x4xbf16>
    %20 = vector.shape_cast %19 : vector<8x8x4xbf16> to vector<64x4xbf16>
    %c0_43 = arith.constant 0 : index
    %c0_44 = arith.constant 0 : index
    %c0_45 = arith.constant 0 : index
    %21 = vector.load %arg3[%c0_43, %c0_44, %c0_45] : memref<4x4x4xbf16, #tpu.memory_space<vmem>>, vector<1x4x4xbf16>
    %22 = vector.shape_cast %21 : vector<1x4x4xbf16> to vector<4x4xbf16>
    %cst_46 = arith.constant dense<0.000000e+00> : vector<64x4xf32>
    %23 = tpu.matmul %20, %22, %cst_46 {dimension_numbers = #tpu.dot_dimension_numbers<[1], [0], [0], [1], [0, 0, 1, 1], [], []>} : vector<64x4xbf16>, vector<4x4xbf16>, vector<64x4xf32> -> vector<64x4xf32>
    %c0_47 = arith.constant 0 : index
    %c0_48 = arith.constant 0 : index
    %24 = vector.load %arg4[%c0_47, %c0_48] : memref<1x4xf32, #tpu.memory_space<vmem>>, vector<1x4xf32>
    %25 = vector.broadcast %24 : vector<1x4xf32> to vector<64x4xf32>
    %26 = arith.addf %23, %25 : vector<64x4xf32>
    %27 = vector.shape_cast %26 : vector<64x4xf32> to vector<8x8x4xf32>
    %28 = arith.truncf %27 : vector<8x8x4xf32> to vector<8x8x4xbf16>
    %c1 = arith.constant 1 : index
    %c0_49 = arith.constant 0 : index
    %c0_50 = arith.constant 0 : index
    %29 = vector.load %arg3[%c1, %c0_49, %c0_50] : memref<4x4x4xbf16, #tpu.memory_space<vmem>>, vector<1x4x4xbf16>
    %30 = vector.shape_cast %29 : vector<1x4x4xbf16> to vector<4x4xbf16>
    %cst_51 = arith.constant dense<0.000000e+00> : vector<64x4xf32>
    %31 = tpu.matmul %20, %30, %cst_51 {dimension_numbers = #tpu.dot_dimension_numbers<[1], [0], [0], [1], [0, 0, 1, 1], [], []>} : vector<64x4xbf16>, vector<4x4xbf16>, vector<64x4xf32> -> vector<64x4xf32>
    %c0_52 = arith.constant 0 : index
    %c0_53 = arith.constant 0 : index
    %32 = vector.load %arg4[%c0_52, %c0_53] : memref<1x4xf32, #tpu.memory_space<vmem>>, vector<1x4xf32>
    %33 = vector.broadcast %32 : vector<1x4xf32> to vector<64x4xf32>
    %34 = arith.addf %31, %33 : vector<64x4xf32>
    %35 = vector.shape_cast %34 : vector<64x4xf32> to vector<8x8x4xf32>
    %36 = arith.truncf %35 : vector<8x8x4xf32> to vector<8x8x4xbf16>
    %c2 = arith.constant 2 : index
    %c0_54 = arith.constant 0 : index
    %c0_55 = arith.constant 0 : index
    %37 = vector.load %arg3[%c2, %c0_54, %c0_55] : memref<4x4x4xbf16, #tpu.memory_space<vmem>>, vector<1x4x4xbf16>
    %38 = vector.shape_cast %37 : vector<1x4x4xbf16> to vector<4x4xbf16>
    %cst_56 = arith.constant dense<0.000000e+00> : vector<64x4xf32>
    %39 = tpu.matmul %20, %38, %cst_56 {dimension_numbers = #tpu.dot_dimension_numbers<[1], [0], [0], [1], [0, 0, 1, 1], [], []>} : vector<64x4xbf16>, vector<4x4xbf16>, vector<64x4xf32> -> vector<64x4xf32>
    %c0_57 = arith.constant 0 : index
    %c0_58 = arith.constant 0 : index
    %40 = vector.load %arg4[%c0_57, %c0_58] : memref<1x4xf32, #tpu.memory_space<vmem>>, vector<1x4xf32>
    %41 = vector.broadcast %40 : vector<1x4xf32> to vector<64x4xf32>
    %42 = arith.addf %39, %41 : vector<64x4xf32>
    %43 = vector.shape_cast %42 : vector<64x4xf32> to vector<8x8x4xf32>
    %44 = arith.truncf %43 : vector<8x8x4xf32> to vector<8x8x4xbf16>
    %c3 = arith.constant 3 : index
    %c0_59 = arith.constant 0 : index
    %c0_60 = arith.constant 0 : index
    %45 = vector.load %arg3[%c3, %c0_59, %c0_60] : memref<4x4x4xbf16, #tpu.memory_space<vmem>>, vector<1x4x4xbf16>
    %46 = vector.shape_cast %45 : vector<1x4x4xbf16> to vector<4x4xbf16>
    %cst_61 = arith.constant dense<0.000000e+00> : vector<64x4xf32>
    %47 = tpu.matmul %20, %46, %cst_61 {dimension_numbers = #tpu.dot_dimension_numbers<[1], [0], [0], [1], [0, 0, 1, 1], [], []>} : vector<64x4xbf16>, vector<4x4xbf16>, vector<64x4xf32> -> vector<64x4xf32>
    %c0_62 = arith.constant 0 : index
    %c0_63 = arith.constant 0 : index
    %48 = vector.load %arg4[%c0_62, %c0_63] : memref<1x4xf32, #tpu.memory_space<vmem>>, vector<1x4xf32>
    %49 = vector.broadcast %48 : vector<1x4xf32> to vector<64x4xf32>
    %50 = arith.addf %47, %49 : vector<64x4xf32>
    %51 = vector.shape_cast %50 : vector<64x4xf32> to vector<8x8x4xf32>
    %52 = arith.truncf %51 : vector<8x8x4xf32> to vector<8x8x4xbf16>
    %53 = vector.shape_cast %28 : vector<8x8x4xbf16> to vector<8x8x1x4xbf16>
    %54 = vector.shape_cast %36 : vector<8x8x4xbf16> to vector<8x8x1x4xbf16>
    %55 = tpu.concatenate %53, %54 in 2 : vector<8x8x1x4xbf16>, vector<8x8x1x4xbf16> -> vector<8x8x2x4xbf16>
    %56 = vector.shape_cast %55 : vector<8x8x2x4xbf16> to vector<8x16x4xbf16>
    %57 = vector.shape_cast %44 : vector<8x8x4xbf16> to vector<8x8x1x4xbf16>
    %58 = vector.shape_cast %52 : vector<8x8x4xbf16> to vector<8x8x1x4xbf16>
    %59 = tpu.concatenate %57, %58 in 2 : vector<8x8x1x4xbf16>, vector<8x8x1x4xbf16> -> vector<8x8x2x4xbf16>
    %60 = vector.shape_cast %59 : vector<8x8x2x4xbf16> to vector<8x16x4xbf16>
    %61 = vector.shape_cast %56 : vector<8x16x4xbf16> to vector<8x1x16x4xbf16>
    %62 = vector.shape_cast %60 : vector<8x16x4xbf16> to vector<8x1x16x4xbf16>
    %63 = tpu.concatenate %61, %62 in 1 : vector<8x1x16x4xbf16>, vector<8x1x16x4xbf16> -> vector<8x2x16x4xbf16>
    %64 = vector.shape_cast %63 : vector<8x2x16x4xbf16> to vector<16x16x4xbf16>
    %c0_64 = arith.constant 0 : index
    %c0_65 = arith.constant 0 : index
    %c0_66 = arith.constant 0 : index
    %c0_67 = arith.constant 0 : index
    %65 = vector.load %arg2[%c0_64, %c0_65, %c0_66, %c0_67] : memref<1x16x16x4xbf16, #tpu.memory_space<vmem>>, vector<1x16x16x4xbf16>
    %66 = vector.shape_cast %65 : vector<1x16x16x4xbf16> to vector<16x16x4xbf16>
    %c1_68 = arith.constant 1 : index
    %c1_69 = arith.constant 1 : index
    %c0_70 = arith.constant 0 : index
    %67 = vector.load %arg10[%c1_68, %c1_69, %c0_70] : memref<18x18x4xbf16, #tpu.memory_space<vmem>>, vector<16x16x4xbf16>
    tpu.vector_store %arg10[%c1_68, %c1_69, %c0_70], %66 {strides = array<i32>} : memref<18x18x4xbf16, #tpu.memory_space<vmem>>, vector<16x16x4xbf16>,
    %c1_71 = arith.constant 1 : index
    %c1_72 = arith.constant 1 : index
    %c0_73 = arith.constant 0 : index
    %68 = vector.load %arg11[%c1_71, %c1_72, %c0_73] : memref<18x18x4xbf16, #tpu.memory_space<vmem>>, vector<16x16x4xbf16>
    tpu.vector_store %arg11[%c1_71, %c1_72, %c0_73], %64 {strides = array<i32>} : memref<18x18x4xbf16, #tpu.memory_space<vmem>>, vector<16x16x4xbf16>,
    %cst_74 = arith.constant 0.000000e+00 : f32
    %69 = vector.broadcast %cst_74 : f32 to vector<256x8xf32>
    %c0_75 = arith.constant 0 : index
    %c0_76 = arith.constant 0 : index
    %c0_77 = arith.constant 0 : index
    %70 = vector.load %arg10[%c0_75, %c0_76, %c0_77] : memref<18x18x4xbf16, #tpu.memory_space<vmem>>, vector<16x16x4xbf16>
    %c0_78 = arith.constant 0 : index
    %c1_79 = arith.constant 1 : index
    %c0_80 = arith.constant 0 : index
    %71 = vector.load %arg10[%c0_78, %c1_79, %c0_80] : memref<18x18x4xbf16, #tpu.memory_space<vmem>>, vector<16x16x4xbf16>
    %c0_81 = arith.constant 0 : index
    %c2_82 = arith.constant 2 : index
    %c0_83 = arith.constant 0 : index
    %72 = vector.load %arg10[%c0_81, %c2_82, %c0_83] : memref<18x18x4xbf16, #tpu.memory_space<vmem>>, vector<16x16x4xbf16>
    %c0_84 = arith.constant 0 : index
    %c0_85 = arith.constant 0 : index
    %c0_86 = arith.constant 0 : index
    %73 = vector.load %arg11[%c0_84, %c0_85, %c0_86] : memref<18x18x4xbf16, #tpu.memory_space<vmem>>, vector<16x16x4xbf16>
    %c0_87 = arith.constant 0 : index
    %c1_88 = arith.constant 1 : index
    %c0_89 = arith.constant 0 : index
    %74 = vector.load %arg11[%c0_87, %c1_88, %c0_89] : memref<18x18x4xbf16, #tpu.memory_space<vmem>>, vector<16x16x4xbf16>
    %c0_90 = arith.constant 0 : index
    %c2_91 = arith.constant 2 : index
    %c0_92 = arith.constant 0 : index
    %75 = vector.load %arg11[%c0_90, %c2_91, %c0_92] : memref<18x18x4xbf16, #tpu.memory_space<vmem>>, vector<16x16x4xbf16>
    %76 = tpu.concatenate %70, %71, %72, %73, %74, %75 in 2 : vector<16x16x4xbf16>, vector<16x16x4xbf16>, vector<16x16x4xbf16>, vector<16x16x4xbf16>, vector<16x16x4xbf16>, vector<16x16x4xbf16> -> vector<16x16x24xbf16>
    %77 = vector.shape_cast %76 : vector<16x16x24xbf16> to vector<256x24xbf16>
    %c0_93 = arith.constant 0 : index
    %c0_94 = arith.constant 0 : index
    %c0_95 = arith.constant 0 : index
    %78 = vector.load %arg5[%c0_93, %c0_94, %c0_95] : memref<3x24x8xbf16, #tpu.memory_space<vmem>>, vector<1x24x8xbf16>
    %79 = vector.shape_cast %78 : vector<1x24x8xbf16> to vector<24x8xbf16>
    %cst_96 = arith.constant dense<0.000000e+00> : vector<256x8xf32>
    %80 = tpu.matmul %77, %79, %cst_96 {dimension_numbers = #tpu.dot_dimension_numbers<[1], [0], [0], [1], [0, 0, 1, 1], [], []>} : vector<256x24xbf16>, vector<24x8xbf16>, vector<256x8xf32> -> vector<256x8xf32>
    %81 = arith.addf %69, %80 : vector<256x8xf32>
    %c1_97 = arith.constant 1 : index
    %c0_98 = arith.constant 0 : index
    %c0_99 = arith.constant 0 : index
    %82 = vector.load %arg10[%c1_97, %c0_98, %c0_99] : memref<18x18x4xbf16, #tpu.memory_space<vmem>>, vector<16x16x4xbf16>
    %c1_100 = arith.constant 1 : index
    %c1_101 = arith.constant 1 : index
    %c0_102 = arith.constant 0 : index
    %83 = vector.load %arg10[%c1_100, %c1_101, %c0_102] : memref<18x18x4xbf16, #tpu.memory_space<vmem>>, vector<16x16x4xbf16>
    %c1_103 = arith.constant 1 : index
    %c2_104 = arith.constant 2 : index
    %c0_105 = arith.constant 0 : index
    %84 = vector.load %arg10[%c1_103, %c2_104, %c0_105] : memref<18x18x4xbf16, #tpu.memory_space<vmem>>, vector<16x16x4xbf16>
    %c1_106 = arith.constant 1 : index
    %c0_107 = arith.constant 0 : index
    %c0_108 = arith.constant 0 : index
    %85 = vector.load %arg11[%c1_106, %c0_107, %c0_108] : memref<18x18x4xbf16, #tpu.memory_space<vmem>>, vector<16x16x4xbf16>
    %c1_109 = arith.constant 1 : index
    %c1_110 = arith.constant 1 : index
    %c0_111 = arith.constant 0 : index
    %86 = vector.load %arg11[%c1_109, %c1_110, %c0_111] : memref<18x18x4xbf16, #tpu.memory_space<vmem>>, vector<16x16x4xbf16>
    %c1_112 = arith.constant 1 : index
    %c2_113 = arith.constant 2 : index
    %c0_114 = arith.constant 0 : index
    %87 = vector.load %arg11[%c1_112, %c2_113, %c0_114] : memref<18x18x4xbf16, #tpu.memory_space<vmem>>, vector<16x16x4xbf16>
    %88 = tpu.concatenate %82, %83, %84, %85, %86, %87 in 2 : vector<16x16x4xbf16>, vector<16x16x4xbf16>, vector<16x16x4xbf16>, vector<16x16x4xbf16>, vector<16x16x4xbf16>, vector<16x16x4xbf16> -> vector<16x16x24xbf16>
    %89 = vector.shape_cast %88 : vector<16x16x24xbf16> to vector<256x24xbf16>
    %c1_115 = arith.constant 1 : index
    %c0_116 = arith.constant 0 : index
    %c0_117 = arith.constant 0 : index
    %90 = vector.load %arg5[%c1_115, %c0_116, %c0_117] : memref<3x24x8xbf16, #tpu.memory_space<vmem>>, vector<1x24x8xbf16>
    %91 = vector.shape_cast %90 : vector<1x24x8xbf16> to vector<24x8xbf16>
    %cst_118 = arith.constant dense<0.000000e+00> : vector<256x8xf32>
    %92 = tpu.matmul %89, %91, %cst_118 {dimension_numbers = #tpu.dot_dimension_numbers<[1], [0], [0], [1], [0, 0, 1, 1], [], []>} : vector<256x24xbf16>, vector<24x8xbf16>, vector<256x8xf32> -> vector<256x8xf32>
    %93 = arith.addf %81, %92 : vector<256x8xf32>
    %c2_119 = arith.constant 2 : index
    %c0_120 = arith.constant 0 : index
    %c0_121 = arith.constant 0 : index
    %94 = vector.load %arg10[%c2_119, %c0_120, %c0_121] : memref<18x18x4xbf16, #tpu.memory_space<vmem>>, vector<16x16x4xbf16>
    %c2_122 = arith.constant 2 : index
    %c1_123 = arith.constant 1 : index
    %c0_124 = arith.constant 0 : index
    %95 = vector.load %arg10[%c2_122, %c1_123, %c0_124] : memref<18x18x4xbf16, #tpu.memory_space<vmem>>, vector<16x16x4xbf16>
    %c2_125 = arith.constant 2 : index
    %c2_126 = arith.constant 2 : index
    %c0_127 = arith.constant 0 : index
    %96 = vector.load %arg10[%c2_125, %c2_126, %c0_127] : memref<18x18x4xbf16, #tpu.memory_space<vmem>>, vector<16x16x4xbf16>
    %c2_128 = arith.constant 2 : index
    %c0_129 = arith.constant 0 : index
    %c0_130 = arith.constant 0 : index
    %97 = vector.load %arg11[%c2_128, %c0_129, %c0_130] : memref<18x18x4xbf16, #tpu.memory_space<vmem>>, vector<16x16x4xbf16>
    %c2_131 = arith.constant 2 : index
    %c1_132 = arith.constant 1 : index
    %c0_133 = arith.constant 0 : index
    %98 = vector.load %arg11[%c2_131, %c1_132, %c0_133] : memref<18x18x4xbf16, #tpu.memory_space<vmem>>, vector<16x16x4xbf16>
    %c2_134 = arith.constant 2 : index
    %c2_135 = arith.constant 2 : index
    %c0_136 = arith.constant 0 : index
    %99 = vector.load %arg11[%c2_134, %c2_135, %c0_136] : memref<18x18x4xbf16, #tpu.memory_space<vmem>>, vector<16x16x4xbf16>
    %100 = tpu.concatenate %94, %95, %96, %97, %98, %99 in 2 : vector<16x16x4xbf16>, vector<16x16x4xbf16>, vector<16x16x4xbf16>, vector<16x16x4xbf16>, vector<16x16x4xbf16>, vector<16x16x4xbf16> -> vector<16x16x24xbf16>
    %101 = vector.shape_cast %100 : vector<16x16x24xbf16> to vector<256x24xbf16>
    %c2_137 = arith.constant 2 : index
    %c0_138 = arith.constant 0 : index
    %c0_139 = arith.constant 0 : index
    %102 = vector.load %arg5[%c2_137, %c0_138, %c0_139] : memref<3x24x8xbf16, #tpu.memory_space<vmem>>, vector<1x24x8xbf16>
    %103 = vector.shape_cast %102 : vector<1x24x8xbf16> to vector<24x8xbf16>
    %cst_140 = arith.constant dense<0.000000e+00> : vector<256x8xf32>
    %104 = tpu.matmul %101, %103, %cst_140 {dimension_numbers = #tpu.dot_dimension_numbers<[1], [0], [0], [1], [0, 0, 1, 1], [], []>} : vector<256x24xbf16>, vector<24x8xbf16>, vector<256x8xf32> -> vector<256x8xf32>
    %105 = arith.addf %93, %104 : vector<256x8xf32>
    %c0_141 = arith.constant 0 : index
    %c0_142 = arith.constant 0 : index
    %106 = vector.load %arg6[%c0_141, %c0_142] : memref<2x8xf32, #tpu.memory_space<vmem>>, vector<1x8xf32>
    %107 = vector.broadcast %106 : vector<1x8xf32> to vector<256x8xf32>
    %108 = arith.mulf %105, %107 : vector<256x8xf32>
    %c1_143 = arith.constant 1 : index
    %c0_144 = arith.constant 0 : index
    %109 = vector.load %arg6[%c1_143, %c0_144] : memref<2x8xf32, #tpu.memory_space<vmem>>, vector<1x8xf32>
    %110 = vector.broadcast %109 : vector<1x8xf32> to vector<256x8xf32>
    %111 = arith.addf %108, %110 : vector<256x8xf32>
    %cst_145 = arith.constant 0.000000e+00 : f32
    %112 = vector.broadcast %cst_145 : f32 to vector<256x8xf32>
    %113 = arith.maximumf %111, %112 : vector<256x8xf32>
    %114 = vector.shape_cast %113 : vector<256x8xf32> to vector<16x16x8xf32>
    %115 = arith.truncf %114 : vector<16x16x8xf32> to vector<16x16x8xbf16>
    %c1_146 = arith.constant 1 : index
    %c1_147 = arith.constant 1 : index
    %c0_148 = arith.constant 0 : index
    %116 = vector.load %arg12[%c1_146, %c1_147, %c0_148] : memref<18x18x8xbf16, #tpu.memory_space<vmem>>, vector<16x16x8xbf16>
    tpu.vector_store %arg12[%c1_146, %c1_147, %c0_148], %115 {strides = array<i32>} : memref<18x18x8xbf16, #tpu.memory_space<vmem>>, vector<16x16x8xbf16>,
    %cst_149 = arith.constant 0.000000e+00 : f32
    %117 = vector.broadcast %cst_149 : f32 to vector<256x8xf32>
    %c0_150 = arith.constant 0 : index
    %c0_151 = arith.constant 0 : index
    %c0_152 = arith.constant 0 : index
    %118 = vector.load %arg12[%c0_150, %c0_151, %c0_152] : memref<18x18x8xbf16, #tpu.memory_space<vmem>>, vector<16x16x8xbf16>
    %c0_153 = arith.constant 0 : index
    %c1_154 = arith.constant 1 : index
    %c0_155 = arith.constant 0 : index
    %119 = vector.load %arg12[%c0_153, %c1_154, %c0_155] : memref<18x18x8xbf16, #tpu.memory_space<vmem>>, vector<16x16x8xbf16>
    %c0_156 = arith.constant 0 : index
    %c2_157 = arith.constant 2 : index
    %c0_158 = arith.constant 0 : index
    %120 = vector.load %arg12[%c0_156, %c2_157, %c0_158] : memref<18x18x8xbf16, #tpu.memory_space<vmem>>, vector<16x16x8xbf16>
    %121 = tpu.concatenate %118, %119, %120 in 2 : vector<16x16x8xbf16>, vector<16x16x8xbf16>, vector<16x16x8xbf16> -> vector<16x16x24xbf16>
    %122 = vector.shape_cast %121 : vector<16x16x24xbf16> to vector<256x24xbf16>
    %c0_159 = arith.constant 0 : index
    %c0_160 = arith.constant 0 : index
    %c0_161 = arith.constant 0 : index
    %123 = vector.load %arg7[%c0_159, %c0_160, %c0_161] : memref<3x24x8xbf16, #tpu.memory_space<vmem>>, vector<1x24x8xbf16>
    %124 = vector.shape_cast %123 : vector<1x24x8xbf16> to vector<24x8xbf16>
    %cst_162 = arith.constant dense<0.000000e+00> : vector<256x8xf32>
    %125 = tpu.matmul %122, %124, %cst_162 {dimension_numbers = #tpu.dot_dimension_numbers<[1], [0], [0], [1], [0, 0, 1, 1], [], []>} : vector<256x24xbf16>, vector<24x8xbf16>, vector<256x8xf32> -> vector<256x8xf32>
    %126 = arith.addf %117, %125 : vector<256x8xf32>
    %c1_163 = arith.constant 1 : index
    %c0_164 = arith.constant 0 : index
    %c0_165 = arith.constant 0 : index
    %127 = vector.load %arg12[%c1_163, %c0_164, %c0_165] : memref<18x18x8xbf16, #tpu.memory_space<vmem>>, vector<16x16x8xbf16>
    %c1_166 = arith.constant 1 : index
    %c1_167 = arith.constant 1 : index
    %c0_168 = arith.constant 0 : index
    %128 = vector.load %arg12[%c1_166, %c1_167, %c0_168] : memref<18x18x8xbf16, #tpu.memory_space<vmem>>, vector<16x16x8xbf16>
    %c1_169 = arith.constant 1 : index
    %c2_170 = arith.constant 2 : index
    %c0_171 = arith.constant 0 : index
    %129 = vector.load %arg12[%c1_169, %c2_170, %c0_171] : memref<18x18x8xbf16, #tpu.memory_space<vmem>>, vector<16x16x8xbf16>
    %130 = tpu.concatenate %127, %128, %129 in 2 : vector<16x16x8xbf16>, vector<16x16x8xbf16>, vector<16x16x8xbf16> -> vector<16x16x24xbf16>
    %131 = vector.shape_cast %130 : vector<16x16x24xbf16> to vector<256x24xbf16>
    %c1_172 = arith.constant 1 : index
    %c0_173 = arith.constant 0 : index
    %c0_174 = arith.constant 0 : index
    %132 = vector.load %arg7[%c1_172, %c0_173, %c0_174] : memref<3x24x8xbf16, #tpu.memory_space<vmem>>, vector<1x24x8xbf16>
    %133 = vector.shape_cast %132 : vector<1x24x8xbf16> to vector<24x8xbf16>
    %cst_175 = arith.constant dense<0.000000e+00> : vector<256x8xf32>
    %134 = tpu.matmul %131, %133, %cst_175 {dimension_numbers = #tpu.dot_dimension_numbers<[1], [0], [0], [1], [0, 0, 1, 1], [], []>} : vector<256x24xbf16>, vector<24x8xbf16>, vector<256x8xf32> -> vector<256x8xf32>
    %135 = arith.addf %126, %134 : vector<256x8xf32>
    %c2_176 = arith.constant 2 : index
    %c0_177 = arith.constant 0 : index
    %c0_178 = arith.constant 0 : index
    %136 = vector.load %arg12[%c2_176, %c0_177, %c0_178] : memref<18x18x8xbf16, #tpu.memory_space<vmem>>, vector<16x16x8xbf16>
    %c2_179 = arith.constant 2 : index
    %c1_180 = arith.constant 1 : index
    %c0_181 = arith.constant 0 : index
    %137 = vector.load %arg12[%c2_179, %c1_180, %c0_181] : memref<18x18x8xbf16, #tpu.memory_space<vmem>>, vector<16x16x8xbf16>
    %c2_182 = arith.constant 2 : index
    %c2_183 = arith.constant 2 : index
    %c0_184 = arith.constant 0 : index
    %138 = vector.load %arg12[%c2_182, %c2_183, %c0_184] : memref<18x18x8xbf16, #tpu.memory_space<vmem>>, vector<16x16x8xbf16>
    %139 = tpu.concatenate %136, %137, %138 in 2 : vector<16x16x8xbf16>, vector<16x16x8xbf16>, vector<16x16x8xbf16> -> vector<16x16x24xbf16>
    %140 = vector.shape_cast %139 : vector<16x16x24xbf16> to vector<256x24xbf16>
    %c2_185 = arith.constant 2 : index
    %c0_186 = arith.constant 0 : index
    %c0_187 = arith.constant 0 : index
    %141 = vector.load %arg7[%c2_185, %c0_186, %c0_187] : memref<3x24x8xbf16, #tpu.memory_space<vmem>>, vector<1x24x8xbf16>
    %142 = vector.shape_cast %141 : vector<1x24x8xbf16> to vector<24x8xbf16>
    %cst_188 = arith.constant dense<0.000000e+00> : vector<256x8xf32>
    %143 = tpu.matmul %140, %142, %cst_188 {dimension_numbers = #tpu.dot_dimension_numbers<[1], [0], [0], [1], [0, 0, 1, 1], [], []>} : vector<256x24xbf16>, vector<24x8xbf16>, vector<256x8xf32> -> vector<256x8xf32>
    %144 = arith.addf %135, %143 : vector<256x8xf32>
    %c0_189 = arith.constant 0 : index
    %c0_190 = arith.constant 0 : index
    %145 = vector.load %arg8[%c0_189, %c0_190] : memref<2x8xf32, #tpu.memory_space<vmem>>, vector<1x8xf32>
    %146 = vector.broadcast %145 : vector<1x8xf32> to vector<256x8xf32>
    %147 = arith.mulf %144, %146 : vector<256x8xf32>
    %c1_191 = arith.constant 1 : index
    %c0_192 = arith.constant 0 : index
    %148 = vector.load %arg8[%c1_191, %c0_192] : memref<2x8xf32, #tpu.memory_space<vmem>>, vector<1x8xf32>
    %149 = vector.broadcast %148 : vector<1x8xf32> to vector<256x8xf32>
    %150 = arith.addf %147, %149 : vector<256x8xf32>
    %cst_193 = arith.constant 0.000000e+00 : f32
    %151 = vector.broadcast %cst_193 : f32 to vector<256x8xf32>
    %152 = arith.maximumf %150, %151 : vector<256x8xf32>
    %153 = vector.shape_cast %152 : vector<256x8xf32> to vector<16x16x8xf32>
    %c0_194 = arith.constant 0 : index
    %c0_195 = arith.constant 0 : index
    %c0_196 = arith.constant 0 : index
    %c0_197 = arith.constant 0 : index
    %154 = vector.load %arg9[%c0_194, %c0_195, %c0_196, %c0_197] : memref<1x16x16x8xf32, #tpu.memory_space<vmem>>, vector<1x16x16x8xf32>
    %155 = vector.shape_cast %154 : vector<1x16x16x8xf32> to vector<16x16x8xf32>
    %156 = vector.shape_cast %153 : vector<16x16x8xf32> to vector<1x16x16x8xf32>
    tpu.vector_store %arg9[%c0_194, %c0_195, %c0_196, %c0_197], %156 {strides = array<i32>} : memref<1x16x16x8xf32, #tpu.memory_space<vmem>>, vector<1x16x16x8xf32>,
    return
  }
  func.func @transform_0(%arg0: i32) -> (i32, i32, i32, i32) {
    %c0_i32 = arith.constant 0 : i32
    %c0_i32_0 = arith.constant 0 : i32
    %c0_i32_1 = arith.constant 0 : i32
    %c0_i32_2 = arith.constant 0 : i32
    return %arg0, %c0_i32, %c0_i32_0, %c0_i32_1 : i32, i32, i32, i32
  }
  func.func @transform_1(%arg0: i32) -> (i32, i32, i32, i32) {
    %c0_i32 = arith.constant 0 : i32
    %c0_i32_0 = arith.constant 0 : i32
    %c0_i32_1 = arith.constant 0 : i32
    %c0_i32_2 = arith.constant 0 : i32
    return %arg0, %c0_i32, %c0_i32_0, %c0_i32_1 : i32, i32, i32, i32
  }
  func.func @transform_2(%arg0: i32) -> (i32, i32, i32) {
    %c0_i32 = arith.constant 0 : i32
    %c0_i32_0 = arith.constant 0 : i32
    %c0_i32_1 = arith.constant 0 : i32
    %c0_i32_2 = arith.constant 0 : i32
    return %c0_i32, %c0_i32_0, %c0_i32_1 : i32, i32, i32
  }
  func.func @transform_3(%arg0: i32) -> (i32, i32) {
    %c0_i32 = arith.constant 0 : i32
    %c0_i32_0 = arith.constant 0 : i32
    %c0_i32_1 = arith.constant 0 : i32
    return %c0_i32, %c0_i32_0 : i32, i32
  }
  func.func @transform_4(%arg0: i32) -> (i32, i32, i32) {
    %c0_i32 = arith.constant 0 : i32
    %c0_i32_0 = arith.constant 0 : i32
    %c0_i32_1 = arith.constant 0 : i32
    %c0_i32_2 = arith.constant 0 : i32
    return %c0_i32, %c0_i32_0, %c0_i32_1 : i32, i32, i32
  }
  func.func @transform_5(%arg0: i32) -> (i32, i32) {
    %c0_i32 = arith.constant 0 : i32
    %c0_i32_0 = arith.constant 0 : i32
    %c0_i32_1 = arith.constant 0 : i32
    return %c0_i32, %c0_i32_0 : i32, i32
  }
  func.func @transform_6(%arg0: i32) -> (i32, i32, i32) {
    %c0_i32 = arith.constant 0 : i32
    %c0_i32_0 = arith.constant 0 : i32
    %c0_i32_1 = arith.constant 0 : i32
    %c0_i32_2 = arith.constant 0 : i32
    return %c0_i32, %c0_i32_0, %c0_i32_1 : i32, i32, i32
  }
  func.func @transform_7(%arg0: i32) -> (i32, i32) {
    %c0_i32 = arith.constant 0 : i32
    %c0_i32_0 = arith.constant 0 : i32
    %c0_i32_1 = arith.constant 0 : i32
    return %c0_i32, %c0_i32_0 : i32, i32
  }
  func.func @transform_8(%arg0: i32) -> (i32, i32, i32, i32) {
    %c0_i32 = arith.constant 0 : i32
    %c0_i32_0 = arith.constant 0 : i32
    %c0_i32_1 = arith.constant 0 : i32
    %c0_i32_2 = arith.constant 0 : i32
    return %arg0, %c0_i32, %c0_i32_0, %c0_i32_1 : i32, i32, i32, i32
  }
}

</mosaic_0001>

<llo_original>
// kernel: upsampling_block_forward.1
$region0: #{upsampling_block_forward.1}
  #allocation0 [shape = 'u32[]', space=smem, size = 0x4, offset = 0x4, fixed_abs, tag = 'smem constant byte address 0x4 - core index']
  #allocation1 [shape = 'u32[144,128]{1,0:T(1,128)}', space=vmem, size = 0x12000, scoped, tag = 'internal scratch']
  #allocation2 [shape = 'bf16[18,18,4]{2,1,0:T(8,128)(2,1)}', space=vmem, size = 0x1b000, scoped, tag = 'scratch operand']
  #allocation3 [shape = 'bf16[18,18,4]{2,1,0:T(8,128)(2,1)}', space=vmem, size = 0x1b000, scoped, tag = 'scratch operand']
  #allocation4 [shape = 'bf16[18,18,8]{2,1,0:T(8,128)(2,1)}', space=vmem, size = 0x1b000, scoped, tag = 'scratch operand']
  %s0 = inlined_call_operand.vmem [shape: bf16[2,8,8,4], index: 0, kind: input, shape index: {}]
  %s1 = inlined_call_operand.vmem [shape: bf16[2,16,16,4], index: 1, kind: input, shape index: {}]
  %s2 = inlined_call_operand.vmem [shape: bf16[4,4,4], index: 2, kind: input, shape index: {}]
  %s3 = inlined_call_operand.vmem [shape: f32[1,4], index: 3, kind: input, shape index: {}]
  %s4 = inlined_call_operand.vmem [shape: bf16[3,24,8], index: 4, kind: input, shape index: {}]
  %s5 = inlined_call_operand.vmem [shape: f32[2,8], index: 5, kind: input, shape index: {}]
  %s6 = inlined_call_operand.vmem [shape: bf16[3,24,8], index: 6, kind: input, shape index: {}]
  %s7 = inlined_call_operand.vmem [shape: f32[2,8], index: 7, kind: input, shape index: {}]
  %s8 = inlined_call_operand.vmem [shape: f32[2,16,16,8], index: 8, kind: output, shape index: {}]
  %s9 = sld [smem:[#allocation0]]
  $region65: #{upsampling_block_forward.1} parent=0
    _
  %s11 = ssub.s32 1, %s9
  %s12 = scalar_select 0, %s11, %s9
  loop: start=0, step=1, limit=4
  $region2: #{upsampling_block_forward.1} parent=0 // loop_pre_header
    _
  $region3: #{upsampling_block_forward.1} parent=0 // loop_header
    %s14 = sphi 0, %s18
    %p15 = scmp.ge.s32.totalorder %s14, 4
    %s24 = sphi 0, %s26
    %s27 = sphi 0, %s24
    %s28 = sphi 0, %s27
    %s44 = sphi 0, %s28
    %s50 = sphi 0, %s52
    %s53 = sphi 0, %s50
    %s54 = sphi 0, %s53
    %s70 = sphi 0, %s54
    %s74 = sphi 0, %s74
    %s76 = sphi 0, %s74
    %s77 = sphi 0, %s76
    %s91 = sphi 0, %s77
    %s95 = sphi 0, %s95
    %s97 = sphi 0, %s95
    %s98 = sphi 0, %s97
    %s112 = sphi 0, %s98
    %s116 = sphi 0, %s116
    %s118 = sphi 0, %s116
    %s119 = sphi 0, %s118
    %s133 = sphi 0, %s119
    %s137 = sphi 0, %s137
    %s139 = sphi 0, %s137
    %s140 = sphi 0, %s139
    %s154 = sphi 0, %s140
    %s158 = sphi 0, %s158
    %s160 = sphi 0, %s158
    %s161 = sphi 0, %s160
    %s175 = sphi 0, %s161
    %s179 = sphi 0, %s179
    %s181 = sphi 0, %s179
    %s182 = sphi 0, %s181
    %s196 = sphi 0, %s182
    %s202 = sphi 0, %s204
    %s205 = sphi 0, %s202
    %s206 = sphi 0, %s205
    %s222 = sphi 0, %s206
  $region4: #{upsampling_block_forward.1} parent=0 // loop_header_branch
    %17 = sbr.rel (%p15) target = $region8
  $region5: #{upsampling_block_forward.1} parent=0 // loop_body
    %s19 = ssub.s32 %s14, 1
    %s20 = ssub.s32 %s14, 2
    %s21 = sadd.s32 %s14, 1
    %s22 = ssub.s32 %s14, %s21
    %p23 = scmp.eq.s32.totalorder %s22, 0
    %s25 = sadd.s32 %s24, 1
    %s26 = scalar_select %p23, %s24, %s25
    %p29 = pneg %p23
    %p30 = scmp.eq.s32.totalorder %s14, 1
    %p31 = por %p29, %p30
    %p32 = scmp.ne.s32.totalorder %s24, %s27
    %p33 = scmp.eq.s32.totalorder %s14, 0
    %p34 = por %p32, %p33
    %p35 = scmp.ne.s32.totalorder %s24, %s27
    %p36 = scmp.eq.s32.totalorder %s19, 1
    %p37 = por %p35, %p36
    %p38 = scmp.ne.s32.totalorder %s27, %s28
    %p39 = scmp.eq.s32.totalorder %s19, 0
    %p40 = por %p38, %p39
    %p41 = scmp.ne.s32.totalorder %s27, %s28
    %p42 = scmp.eq.s32.totalorder %s20, 1
    %p43 = por %p41, %p42
    %p45 = scmp.ne.s32.totalorder %s28, %s44
    %p46 = scmp.eq.s32.totalorder %s20, 0
    %p47 = por %p45, %p46
    %s48 = ssub.s32 %s14, %s21
    %p49 = scmp.eq.s32.totalorder %s48, 0
    %s51 = sadd.s32 %s50, 1
    %s52 = scalar_select %p49, %s50, %s51
    %p55 = pneg %p49
    %p56 = scmp.eq.s32.totalorder %s14, 1
    %p57 = por %p55, %p56
    %p58 = scmp.ne.s32.totalorder %s50, %s53
    %p59 = scmp.eq.s32.totalorder %s14, 0
    %p60 = por %p58, %p59
    %p61 = scmp.ne.s32.totalorder %s50, %s53
    %p62 = scmp.eq.s32.totalorder %s19, 1
    %p63 = por %p61, %p62
    %p64 = scmp.ne.s32.totalorder %s53, %s54
    %p65 = scmp.eq.s32.totalorder %s19, 0
    %p66 = por %p64, %p65
    %p67 = scmp.ne.s32.totalorder %s53, %s54
    %p68 = scmp.eq.s32.totalorder %s20, 1
    %p69 = por %p67, %p68
    %p71 = scmp.ne.s32.totalorder %s54, %s70
    %p72 = scmp.eq.s32.totalorder %s20, 0
    %p73 = por %p71, %p72
    %s75 = sadd.s32 %s74, 1
    %p78 = scmp.eq.s32.totalorder %s14, 1
    %p79 = scmp.ne.s32.totalorder %s74, %s76
    %p80 = scmp.eq.s32.totalorder %s14, 0
    %p81 = por %p79, %p80
    %p82 = scmp.ne.s32.totalorder %s74, %s76
    %p83 = scmp.eq.s32.totalorder %s19, 1
    %p84 = por %p82, %p83
    %p85 = scmp.ne.s32.totalorder %s76, %s77
    %p86 = scmp.eq.s32.totalorder %s19, 0
    %p87 = por %p85, %p86
    %p88 = scmp.ne.s32.totalorder %s76, %s77
    %p89 = scmp.eq.s32.totalorder %s20, 1
    %p90 = por %p88, %p89
    %p92 = scmp.ne.s32.totalorder %s77, %s91
    %p93 = scmp.eq.s32.totalorder %s20, 0
    %p94 = por %p92, %p93
    %s96 = sadd.s32 %s95, 1
    %p99 = scmp.eq.s32.totalorder %s14, 1
    %p100 = scmp.ne.s32.totalorder %s95, %s97
    %p101 = scmp.eq.s32.totalorder %s14, 0
    %p102 = por %p100, %p101
    %p103 = scmp.ne.s32.totalorder %s95, %s97
    %p104 = scmp.eq.s32.totalorder %s19, 1
    %p105 = por %p103, %p104
    %p106 = scmp.ne.s32.totalorder %s97, %s98
    %p107 = scmp.eq.s32.totalorder %s19, 0
    %p108 = por %p106, %p107
    %p109 = scmp.ne.s32.totalorder %s97, %s98
    %p110 = scmp.eq.s32.totalorder %s20, 1
    %p111 = por %p109, %p110
    %p113 = scmp.ne.s32.totalorder %s98, %s112
    %p114 = scmp.eq.s32.totalorder %s20, 0
    %p115 = por %p113, %p114
    %s117 = sadd.s32 %s116, 1
    %p120 = scmp.eq.s32.totalorder %s14, 1
    %p121 = scmp.ne.s32.totalorder %s116, %s118
    %p122 = scmp.eq.s32.totalorder %s14, 0
    %p123 = por %p121, %p122
    %p124 = scmp.ne.s32.totalorder %s116, %s118
    %p125 = scmp.eq.s32.totalorder %s19, 1
    %p126 = por %p124, %p125
    %p127 = scmp.ne.s32.totalorder %s118, %s119
    %p128 = scmp.eq.s32.totalorder %s19, 0
    %p129 = por %p127, %p128
    %p130 = scmp.ne.s32.totalorder %s118, %s119
    %p131 = scmp.eq.s32.totalorder %s20, 1
    %p132 = por %p130, %p131
    %p134 = scmp.ne.s32.totalorder %s119, %s133
    %p135 = scmp.eq.s32.totalorder %s20, 0
    %p136 = por %p134, %p135
    %s138 = sadd.s32 %s137, 1
    %p141 = scmp.eq.s32.totalorder %s14, 1
    %p142 = scmp.ne.s32.totalorder %s137, %s139
    %p143 = scmp.eq.s32.totalorder %s14, 0
    %p144 = por %p142, %p143
    %p145 = scmp.ne.s32.totalorder %s137, %s139
    %p146 = scmp.eq.s32.totalorder %s19, 1
    %p147 = por %p145, %p146
    %p148 = scmp.ne.s32.totalorder %s139, %s140
    %p149 = scmp.eq.s32.totalorder %s19, 0
    %p150 = por %p148, %p149
    %p151 = scmp.ne.s32.totalorder %s139, %s140
    %p152 = scmp.eq.s32.totalorder %s20, 1
    %p153 = por %p151, %p152
    %p155 = scmp.ne.s32.totalorder %s140, %s154
    %p156 = scmp.eq.s32.totalorder %s20, 0
    %p157 = por %p155, %p156
    %s159 = sadd.s32 %s158, 1
    %p162 = scmp.eq.s32.totalorder %s14, 1
    %p163 = scmp.ne.s32.totalorder %s158, %s160
    %p164 = scmp.eq.s32.totalorder %s14, 0
    %p165 = por %p163, %p164
    %p166 = scmp.ne.s32.totalorder %s158, %s160
    %p167 = scmp.eq.s32.totalorder %s19, 1
    %p168 = por %p166, %p167
    %p169 = scmp.ne.s32.totalorder %s160, %s161
    %p170 = scmp.eq.s32.totalorder %s19, 0
    %p171 = por %p169, %p170
    %p172 = scmp.ne.s32.totalorder %s160, %s161
    %p173 = scmp.eq.s32.totalorder %s20, 1
    %p174 = por %p172, %p173
    %p176 = scmp.ne.s32.totalorder %s161, %s175
    %p177 = scmp.eq.s32.totalorder %s20, 0
    %p178 = por %p176, %p177
    %s180 = sadd.s32 %s179, 1
    %p183 = scmp.eq.s32.totalorder %s14, 1
    %p184 = scmp.ne.s32.totalorder %s179, %s181
    %p185 = scmp.eq.s32.totalorder %s14, 0
    %p186 = por %p184, %p185
    %p187 = scmp.ne.s32.totalorder %s179, %s181
    %p188 = scmp.eq.s32.totalorder %s19, 1
    %p189 = por %p187, %p188
    %p190 = scmp.ne.s32.totalorder %s181, %s182
    %p191 = scmp.eq.s32.totalorder %s19, 0
    %p192 = por %p190, %p191
    %p193 = scmp.ne.s32.totalorder %s181, %s182
    %p194 = scmp.eq.s32.totalorder %s20, 1
    %p195 = por %p193, %p194
    %p197 = scmp.ne.s32.totalorder %s182, %s196
    %p198 = scmp.eq.s32.totalorder %s20, 0
    %p199 = por %p197, %p198
    %s200 = ssub.s32 %s14, %s21
    %p201 = scmp.eq.s32.totalorder %s200, 0
    %s203 = sadd.s32 %s202, 1
    %s204 = scalar_select %p201, %s202, %s203
    %p207 = pneg %p201
    %p208 = scmp.eq.s32.totalorder %s14, 1
    %p209 = por %p207, %p208
    %p210 = scmp.ne.s32.totalorder %s202, %s205
    %p211 = scmp.eq.s32.totalorder %s14, 0
    %p212 = por %p210, %p211
    %p213 = scmp.ne.s32.totalorder %s202, %s205
    %p214 = scmp.eq.s32.totalorder %s19, 1
    %p215 = por %p213, %p214
    %p216 = scmp.ne.s32.totalorder %s205, %s206
    %p217 = scmp.eq.s32.totalorder %s19, 0
    %p218 = por %p216, %p217
    %p219 = scmp.ne.s32.totalorder %s205, %s206
    %p220 = scmp.eq.s32.totalorder %s20, 1
    %p221 = por %p219, %p220
    %p223 = scmp.ne.s32.totalorder %s206, %s222
    %p224 = scmp.eq.s32.totalorder %s20, 0
    %p225 = por %p223, %p224
    %p226 = scmp.le.s32.totalorder 1, %s14
    %p227 = scmp.lt.s32.totalorder %s14, 3
    %p228 = pnand %p226, %p227
    %p229 = pneg %p228
    // Predicated region
    $region9: #{upsampling_block_forward.1} parent=5 // pred_check
      _
    $region10: #{upsampling_block_forward.1} parent=5 // pred_check_branch
      %231 = sbr.rel (%p228) target = $region12
    $region11: #{upsampling_block_forward.1} parent=5 // pred_region
      %s232 = ssub.s32 %s14, 1
      // Predicated region
      $region13: #{upsampling_block_forward.1} parent=11 // pred_check
        %p233 = pneg %p87
      $region14: #{upsampling_block_forward.1} parent=11 // pred_check_branch
        %235 = sbr.rel (%p233) target = $region16
      $region15: #{upsampling_block_forward.1} parent=11 // pred_region
        _
      $region16: #{upsampling_block_forward.1} parent=11 // pred_fallthru
        _
      // Predicated region
      $region17: #{upsampling_block_forward.1} parent=11 // pred_check
        %p236 = pneg %p108
      $region18: #{upsampling_block_forward.1} parent=11 // pred_check_branch
        %238 = sbr.rel (%p236) target = $region20
      $region19: #{upsampling_block_forward.1} parent=11 // pred_region
        _
      $region20: #{upsampling_block_forward.1} parent=11 // pred_fallthru
        _
      // Predicated region
      $region21: #{upsampling_block_forward.1} parent=11 // pred_check
        %p239 = pneg %p129
      $region22: #{upsampling_block_forward.1} parent=11 // pred_check_branch
        %241 = sbr.rel (%p239) target = $region24
      $region23: #{upsampling_block_forward.1} parent=11 // pred_region
        _
      $region24: #{upsampling_block_forward.1} parent=11 // pred_fallthru
        _
      // Predicated region
      $region25: #{upsampling_block_forward.1} parent=11 // pred_check
        %p242 = pneg %p150
      $region26: #{upsampling_block_forward.1} parent=11 // pred_check_branch
        %244 = sbr.rel (%p242) target = $region28
      $region27: #{upsampling_block_forward.1} parent=11 // pred_region
        _
      $region28: #{upsampling_block_forward.1} parent=11 // pred_fallthru
        _
      // Predicated region
      $region29: #{upsampling_block_forward.1} parent=11 // pred_check
        %p245 = pneg %p171
      $region30: #{upsampling_block_forward.1} parent=11 // pred_check_branch
        %247 = sbr.rel (%p245) target = $region32
      $region31: #{upsampling_block_forward.1} parent=11 // pred_region
        _
      $region32: #{upsampling_block_forward.1} parent=11 // pred_fallthru
        _
      // Predicated region
      $region33: #{upsampling_block_forward.1} parent=11 // pred_check
        %p248 = pneg %p192
      $region34: #{upsampling_block_forward.1} parent=11 // pred_check_branch
        %250 = sbr.rel (%p248) target = $region36
      $region35: #{upsampling_block_forward.1} parent=11 // pred_region
        _
      $region36: #{upsampling_block_forward.1} parent=11 // pred_fallthru
        _
    $region12: #{upsampling_block_forward.1} parent=5 // pred_fallthru
      _
    %p251 = scmp.lt.s32.totalorder %s14, 2
    // Predicated region
    $region37: #{upsampling_block_forward.1} parent=5 // pred_check
      %p252 = pneg %p251
    $region38: #{upsampling_block_forward.1} parent=5 // pred_check_branch
      %254 = sbr.rel (%p252) target = $region40
    $region39: #{upsampling_block_forward.1} parent=5 // pred_region
      // Predicated region
      $region41: #{upsampling_block_forward.1} parent=39 // pred_check
        %p255 = pneg %p34
      $region42: #{upsampling_block_forward.1} parent=39 // pred_check_branch
        %257 = sbr.rel (%p255) target = $region44
      $region43: #{upsampling_block_forward.1} parent=39 // pred_region
        %p258 = scmp.lt.s32.totalorder %s14, 1
        %s259 = scalar_select %p258, %s14, 1
        %s260 = smul.addr %s259, 8
        %s261 = smul.addr %s260, 4
        %s262 = scalar_lea.vmem %s0, %s261
      $region44: #{upsampling_block_forward.1} parent=39 // pred_fallthru
        _
      // Predicated region
      $region45: #{upsampling_block_forward.1} parent=39 // pred_check
        %p263 = pneg %p60
      $region46: #{upsampling_block_forward.1} parent=39 // pred_check_branch
        %265 = sbr.rel (%p263) target = $region48
      $region47: #{upsampling_block_forward.1} parent=39 // pred_region
        %p266 = scmp.lt.s32.totalorder %s14, 1
        %s267 = scalar_select %p266, %s14, 1
        %s268 = smul.addr %s267, 32
        %s269 = smul.addr %s268, 4
        %s270 = scalar_lea.vmem %s1, %s269
      $region48: #{upsampling_block_forward.1} parent=39 // pred_fallthru
        _
    $region40: #{upsampling_block_forward.1} parent=5 // pred_fallthru
      _
    %p271 = scmp.le.s32.totalorder 1, %s14
    %p272 = scmp.lt.s32.totalorder %s14, 3
    %p273 = pnand %p271, %p272
    %p274 = pneg %p273
    // Predicated region
    $region49: #{upsampling_block_forward.1} parent=5 // pred_check
      _
    $region50: #{upsampling_block_forward.1} parent=5 // pred_check_branch
      %276 = sbr.rel (%p273) target = $region52
    $region51: #{upsampling_block_forward.1} parent=5 // pred_region
      %s277 = ssub.s32 %s14, 1
      %p278 = scmp.lt.s32.totalorder %s19, 1
      %s279 = scalar_select %p278, %s19, 1
      %s280 = smul.addr %s279, 8
      %s281 = smul.addr %s280, 4
      %s282 = scalar_lea.vmem %s0, %s281
      %p283 = pneg %p40
      %p284 = pneg %p37
      %p285 = scmp.lt.s32.totalorder %s19, 1
      %s286 = scalar_select %p285, %s19, 1
      %s287 = smul.addr %s286, 32
      %s288 = smul.addr %s287, 4
      %s289 = scalar_lea.vmem %s1, %s288
      %p290 = pneg %p66
      %p291 = pneg %p63
      %p292 = pneg %p87
      %p293 = pneg %p84
      %p294 = pneg %p108
      %p295 = pneg %p105
      %p296 = pneg %p129
      %p297 = pneg %p126
      %p298 = pneg %p150
      %p299 = pneg %p147
      %p300 = pneg %p171
      %p301 = pneg %p168
      %p302 = pneg %p192
      %p303 = pneg %p189
      %p304 = pneg %p218
      %p305 = pneg %p215
      %p306 = scmp.lt.s32.totalorder %s19, 1
      %s307 = scalar_select %p306, %s19, 1
      %s308 = smul.addr %s307, 32
      %s309 = smul.addr %s308, 8
      %s310 = scalar_lea.vmem %s8, %s309
      %p311 = scmp.lt.s32.totalorder %s19, 1
      %s312 = scalar_select %p311, %s19, 1
      %s313 = smul.addr %s312, 8
      %s314 = smul.addr %s313, 4
      %s315 = scalar_lea.vmem %s0, %s314
      %p316 = scmp.lt.s32.totalorder %s19, 1
      %s317 = scalar_select %p316, %s19, 1
      %s318 = smul.addr %s317, 32
      %s319 = smul.addr %s318, 4
      %s320 = scalar_lea.vmem %s1, %s319
      %p321 = scmp.lt.s32.totalorder %s19, 1
      %s322 = scalar_select %p321, %s19, 1
      %s323 = smul.addr %s322, 32
      %s324 = smul.addr %s323, 8
      %s325 = scalar_lea.vmem %s8, %s324
      %vm327 = vcmask 27648
      %328 = vst.msk [vmem:[#allocation2] sm:$0xf] %vm327, 0
      %329 = vst.msk [vmem:[#allocation2 + $0x4] sm:$0xf] %vm327, 0
      %vm330 = vcmask 24576
      %331 = vst.msk [vmem:[#allocation2 + $0x8] sm:$0x1] %vm330, 0
      %s332 = scalar_lea.vmem [#allocation2], 204
      %333 = vst.msk [vmem:[%s332] sm:$0xf] %vm327, 0
      %334 = vst.msk [vmem:[%s332 + $0x4] sm:$0xf] %vm327, 0
      %335 = vst.msk [vmem:[%s332 + $0x8] sm:$0x1] %vm330, 0
      %vm336 = vcmask 24576
      %vm337 = vsmask.f32 256
      %vm338 = vmand %vm336, %vm337
      %v339 = vld [vmem:[#allocation2] sm:$0x1]
      %v340 = vsel %vm338, 0, %v339
      %341 = vst [vmem:[#allocation2] sm:$0x1] %v340
      %v342 = vld [vmem:[#allocation2 + $0xc] sm:$0x1]
      %v343 = vsel %vm338, 0, %v342
      %344 = vst [vmem:[#allocation2 + $0xc] sm:$0x1] %v343
      %v345 = vld [vmem:[#allocation2 + $0x18] sm:$0x1]
      %v346 = vsel %vm338, 0, %v345
      %347 = vst [vmem:[#allocation2 + $0x18] sm:$0x1] %v346
      %v348 = vld [vmem:[#allocation2 + $0x24] sm:$0x1]
      %v349 = vsel %vm338, 0, %v348
      %350 = vst [vmem:[#allocation2 + $0x24] sm:$0x1] %v349
      %v351 = vld [vmem:[#allocation2 + $0x30] sm:$0x1]
      %v352 = vsel %vm338, 0, %v351
      %353 = vst [vmem:[#allocation2 + $0x30] sm:$0x1] %v352
      %v354 = vld [vmem:[#allocation2 + $0x3c] sm:$0x1]
      %v355 = vsel %vm338, 0, %v354
      %356 = vst [vmem:[#allocation2 + $0x3c] sm:$0x1] %v355
      %v357 = vld [vmem:[#allocation2 + $0x48] sm:$0x1]
      %v358 = vsel %vm338, 0, %v357
      %359 = vst [vmem:[#allocation2 + $0x48] sm:$0x1] %v358
      %v360 = vld [vmem:[#allocation2 + $0x54] sm:$0x1]
      %v361 = vsel %vm338, 0, %v360
      %362 = vst [vmem:[#allocation2 + $0x54] sm:$0x1] %v361
      %v363 = vld [vmem:[#allocation2 + $0x60] sm:$0x1]
      %v364 = vsel %vm338, 0, %v363
      %365 = vst [vmem:[#allocation2 + $0x60] sm:$0x1] %v364
      %v366 = vld [vmem:[#allocation2 + $0x6c] sm:$0x1]
      %v367 = vsel %vm338, 0, %v366
      %368 = vst [vmem:[#allocation2 + $0x6c] sm:$0x1] %v367
      %v369 = vld [vmem:[#allocation2 + $0x78] sm:$0x1]
      %v370 = vsel %vm338, 0, %v369
      %371 = vst [vmem:[#allocation2 + $0x78] sm:$0x1] %v370
      %v372 = vld [vmem:[#allocation2 + $0x84] sm:$0x1]
      %v373 = vsel %vm338, 0, %v372
      %374 = vst [vmem:[#allocation2 + $0x84] sm:$0x1] %v373
      %v375 = vld [vmem:[#allocation2 + $0x90] sm:$0x1]
      %v376 = vsel %vm338, 0, %v375
      %377 = vst [vmem:[#allocation2 + $0x90] sm:$0x1] %v376
      %v378 = vld [vmem:[#allocation2 + $0x9c] sm:$0x1]
      %v379 = vsel %vm338, 0, %v378
      %380 = vst [vmem:[#allocation2 + $0x9c] sm:$0x1] %v379
      %v381 = vld [vmem:[#allocation2 + $0xa8] sm:$0x1]
      %v382 = vsel %vm338, 0, %v381
      %383 = vst [vmem:[#allocation2 + $0xa8] sm:$0x1] %v382
      %v384 = vld [vmem:[#allocation2 + $0xb4] sm:$0x1]
      %v385 = vsel %vm338, 0, %v384
      %386 = vst [vmem:[#allocation2 + $0xb4] sm:$0x1] %v385
      %v387 = vld [vmem:[#allocation2 + $0xc0] sm:$0x1]
      %v388 = vsel %vm338, 0, %v387
      %389 = vst [vmem:[#allocation2 + $0xc0] sm:$0x1] %v388
      %v390 = vld [vmem:[#allocation2 + $0xcc] sm:$0x1]
      %v391 = vsel %vm338, 0, %v390
      %392 = vst [vmem:[#allocation2 + $0xcc] sm:$0x1] %v391
      %vm393 = vsmask.f32 7938
      %vm394 = vmand %vm336, %vm393
      %v395 = vld [vmem:[#allocation2 + $0x8] sm:$0x1]
      %v396 = vsel %vm394, 0, %v395
      %397 = vst [vmem:[#allocation2 + $0x8] sm:$0x1] %v396
      %v398 = vld [vmem:[#allocation2 + $0x14] sm:$0x1]
      %v399 = vsel %vm394, 0, %v398
      %400 = vst [vmem:[#allocation2 + $0x14] sm:$0x1] %v399
      %v401 = vld [vmem:[#allocation2 + $0x20] sm:$0x1]
      %v402 = vsel %vm394, 0, %v401
      %403 = vst [vmem:[#allocation2 + $0x20] sm:$0x1] %v402
      %v404 = vld [vmem:[#allocation2 + $0x2c] sm:$0x1]
      %v405 = vsel %vm394, 0, %v404
      %406 = vst [vmem:[#allocation2 + $0x2c] sm:$0x1] %v405
      %v407 = vld [vmem:[#allocation2 + $0x38] sm:$0x1]
      %v408 = vsel %vm394, 0, %v407
      %409 = vst [vmem:[#allocation2 + $0x38] sm:$0x1] %v408
      %v410 = vld [vmem:[#allocation2 + $0x44] sm:$0x1]
      %v411 = vsel %vm394, 0, %v410
      %412 = vst [vmem:[#allocation2 + $0x44] sm:$0x1] %v411
      %v413 = vld [vmem:[#allocation2 + $0x50] sm:$0x1]
      %v414 = vsel %vm394, 0, %v413
      %415 = vst [vmem:[#allocation2 + $0x50] sm:$0x1] %v414
      %v416 = vld [vmem:[#allocation2 + $0x5c] sm:$0x1]
      %v417 = vsel %vm394, 0, %v416
      %418 = vst [vmem:[#allocation2 + $0x5c] sm:$0x1] %v417
      %v419 = vld [vmem:[#allocation2 + $0x68] sm:$0x1]
      %v420 = vsel %vm394, 0, %v419
      %421 = vst [vmem:[#allocation2 + $0x68] sm:$0x1] %v420
      %v422 = vld [vmem:[#allocation2 + $0x74] sm:$0x1]
      %v423 = vsel %vm394, 0, %v422
      %424 = vst [vmem:[#allocation2 + $0x74] sm:$0x1] %v423
      %v425 = vld [vmem:[#allocation2 + $0x80] sm:$0x1]
      %v426 = vsel %vm394, 0, %v425
      %427 = vst [vmem:[#allocation2 + $0x80] sm:$0x1] %v426
      %v428 = vld [vmem:[#allocation2 + $0x8c] sm:$0x1]
      %v429 = vsel %vm394, 0, %v428
      %430 = vst [vmem:[#allocation2 + $0x8c] sm:$0x1] %v429
      %v431 = vld [vmem:[#allocation2 + $0x98] sm:$0x1]
      %v432 = vsel %vm394, 0, %v431
      %433 = vst [vmem:[#allocation2 + $0x98] sm:$0x1] %v432
      %v434 = vld [vmem:[#allocation2 + $0xa4] sm:$0x1]
      %v435 = vsel %vm394, 0, %v434
      %436 = vst [vmem:[#allocation2 + $0xa4] sm:$0x1] %v435
      %v437 = vld [vmem:[#allocation2 + $0xb0] sm:$0x1]
      %v438 = vsel %vm394, 0, %v437
      %439 = vst [vmem:[#allocation2 + $0xb0] sm:$0x1] %v438
      %v440 = vld [vmem:[#allocation2 + $0xbc] sm:$0x1]
      %v441 = vsel %vm394, 0, %v440
      %442 = vst [vmem:[#allocation2 + $0xbc] sm:$0x1] %v441
      %v443 = vld [vmem:[#allocation2 + $0xc8] sm:$0x1]
      %v444 = vsel %vm394, 0, %v443
      %445 = vst [vmem:[#allocation2 + $0xc8] sm:$0x1] %v444
      %v446 = vld [vmem:[#allocation2 + $0xd4] sm:$0x1]
      %v447 = vsel %vm394, 0, %v446
      %448 = vst [vmem:[#allocation2 + $0xd4] sm:$0x1] %v447
      %449 = vst.msk [vmem:[#allocation3] sm:$0xf] %vm327, 0
      %450 = vst.msk [vmem:[#allocation3 + $0x4] sm:$0xf] %vm327, 0
      %451 = vst.msk [vmem:[#allocation3 + $0x8] sm:$0x1] %vm330, 0
      %s452 = scalar_lea.vmem [#allocation3], 204
      %453 = vst.msk [vmem:[%s452] sm:$0xf] %vm327, 0
      %454 = vst.msk [vmem:[%s452 + $0x4] sm:$0xf] %vm327, 0
      %455 = vst.msk [vmem:[%s452 + $0x8] sm:$0x1] %vm330, 0
      %v456 = vld [vmem:[#allocation3] sm:$0x1]
      %v457 = vsel %vm338, 0, %v456
      %458 = vst [vmem:[#allocation3] sm:$0x1] %v457
      %v459 = vld [vmem:[#allocation3 + $0xc] sm:$0x1]
      %v460 = vsel %vm338, 0, %v459
      %461 = vst [vmem:[#allocation3 + $0xc] sm:$0x1] %v460
      %v462 = vld [vmem:[#allocation3 + $0x18] sm:$0x1]
      %v463 = vsel %vm338, 0, %v462
      %464 = vst [vmem:[#allocation3 + $0x18] sm:$0x1] %v463
      %v465 = vld [vmem:[#allocation3 + $0x24] sm:$0x1]
      %v466 = vsel %vm338, 0, %v465
      %467 = vst [vmem:[#allocation3 + $0x24] sm:$0x1] %v466
      %v468 = vld [vmem:[#allocation3 + $0x30] sm:$0x1]
      %v469 = vsel %vm338, 0, %v468
      %470 = vst [vmem:[#allocation3 + $0x30] sm:$0x1] %v469
      %v471 = vld [vmem:[#allocation3 + $0x3c] sm:$0x1]
      %v472 = vsel %vm338, 0, %v471
      %473 = vst [vmem:[#allocation3 + $0x3c] sm:$0x1] %v472
      %v474 = vld [vmem:[#allocation3 + $0x48] sm:$0x1]
      %v475 = vsel %vm338, 0, %v474
      %476 = vst [vmem:[#allocation3 + $0x48] sm:$0x1] %v475
      %v477 = vld [vmem:[#allocation3 + $0x54] sm:$0x1]
      %v478 = vsel %vm338, 0, %v477
      %479 = vst [vmem:[#allocation3 + $0x54] sm:$0x1] %v478
      %v480 = vld [vmem:[#allocation3 + $0x60] sm:$0x1]
      %v481 = vsel %vm338, 0, %v480
      %482 = vst [vmem:[#allocation3 + $0x60] sm:$0x1] %v481
      %v483 = vld [vmem:[#allocation3 + $0x6c] sm:$0x1]
      %v484 = vsel %vm338, 0, %v483
      %485 = vst [vmem:[#allocation3 + $0x6c] sm:$0x1] %v484
      %v486 = vld [vmem:[#allocation3 + $0x78] sm:$0x1]
      %v487 = vsel %vm338, 0, %v486
      %488 = vst [vmem:[#allocation3 + $0x78] sm:$0x1] %v487
      %v489 = vld [vmem:[#allocation3 + $0x84] sm:$0x1]
      %v490 = vsel %vm338, 0, %v489
      %491 = vst [vmem:[#allocation3 + $0x84] sm:$0x1] %v490
      %v492 = vld [vmem:[#allocation3 + $0x90] sm:$0x1]
      %v493 = vsel %vm338, 0, %v492
      %494 = vst [vmem:[#allocation3 + $0x90] sm:$0x1] %v493
      %v495 = vld [vmem:[#allocation3 + $0x9c] sm:$0x1]
      %v496 = vsel %vm338, 0, %v495
      %497 = vst [vmem:[#allocation3 + $0x9c] sm:$0x1] %v496
      %v498 = vld [vmem:[#allocation3 + $0xa8] sm:$0x1]
      %v499 = vsel %vm338, 0, %v498
      %500 = vst [vmem:[#allocation3 + $0xa8] sm:$0x1] %v499
      %v501 = vld [vmem:[#allocation3 + $0xb4] sm:$0x1]
      %v502 = vsel %vm338, 0, %v501
      %503 = vst [vmem:[#allocation3 + $0xb4] sm:$0x1] %v502
      %v504 = vld [vmem:[#allocation3 + $0xc0] sm:$0x1]
      %v505 = vsel %vm338, 0, %v504
      %506 = vst [vmem:[#allocation3 + $0xc0] sm:$0x1] %v505
      %v507 = vld [vmem:[#allocation3 + $0xcc] sm:$0x1]
      %v508 = vsel %vm338, 0, %v507
      %509 = vst [vmem:[#allocation3 + $0xcc] sm:$0x1] %v508
      %v510 = vld [vmem:[#allocation3 + $0x8] sm:$0x1]
      %v511 = vsel %vm394, 0, %v510
      %512 = vst [vmem:[#allocation3 + $0x8] sm:$0x1] %v511
      %v513 = vld [vmem:[#allocation3 + $0x14] sm:$0x1]
      %v514 = vsel %vm394, 0, %v513
      %515 = vst [vmem:[#allocation3 + $0x14] sm:$0x1] %v514
      %v516 = vld [vmem:[#allocation3 + $0x20] sm:$0x1]
      %v517 = vsel %vm394, 0, %v516
      %518 = vst [vmem:[#allocation3 + $0x20] sm:$0x1] %v517
      %v519 = vld [vmem:[#allocation3 + $0x2c] sm:$0x1]
      %v520 = vsel %vm394, 0, %v519
      %521 = vst [vmem:[#allocation3 + $0x2c] sm:$0x1] %v520
      %v522 = vld [vmem:[#allocation3 + $0x38] sm:$0x1]
      %v523 = vsel %vm394, 0, %v522
      %524 = vst [vmem:[#allocation3 + $0x38] sm:$0x1] %v523
      %v525 = vld [vmem:[#allocation3 + $0x44] sm:$0x1]
      %v526 = vsel %vm394, 0, %v525
      %527 = vst [vmem:[#allocation3 + $0x44] sm:$0x1] %v526
      %v528 = vld [vmem:[#allocation3 + $0x50] sm:$0x1]
      %v529 = vsel %vm394, 0, %v528
      %530 = vst [vmem:[#allocation3 + $0x50] sm:$0x1] %v529
      %v531 = vld [vmem:[#allocation3 + $0x5c] sm:$0x1]
      %v532 = vsel %vm394, 0, %v531
      %533 = vst [vmem:[#allocation3 + $0x5c] sm:$0x1] %v532
      %v534 = vld [vmem:[#allocation3 + $0x68] sm:$0x1]
      %v535 = vsel %vm394, 0, %v534
      %536 = vst [vmem:[#allocation3 + $0x68] sm:$0x1] %v535
      %v537 = vld [vmem:[#allocation3 + $0x74] sm:$0x1]
      %v538 = vsel %vm394, 0, %v537
      %539 = vst [vmem:[#allocation3 + $0x74] sm:$0x1] %v538
      %v540 = vld [vmem:[#allocation3 + $0x80] sm:$0x1]
      %v541 = vsel %vm394, 0, %v540
      %542 = vst [vmem:[#allocation3 + $0x80] sm:$0x1] %v541
      %v543 = vld [vmem:[#allocation3 + $0x8c] sm:$0x1]
      %v544 = vsel %vm394, 0, %v543
      %545 = vst [vmem:[#allocation3 + $0x8c] sm:$0x1] %v544
      %v546 = vld [vmem:[#allocation3 + $0x98] sm:$0x1]
      %v547 = vsel %vm394, 0, %v546
      %548 = vst [vmem:[#allocation3 + $0x98] sm:$0x1] %v547
      %v549 = vld [vmem:[#allocation3 + $0xa4] sm:$0x1]
      %v550 = vsel %vm394, 0, %v549
      %551 = vst [vmem:[#allocation3 + $0xa4] sm:$0x1] %v550
      %v552 = vld [vmem:[#allocation3 + $0xb0] sm:$0x1]
      %v553 = vsel %vm394, 0, %v552
      %554 = vst [vmem:[#allocation3 + $0xb0] sm:$0x1] %v553
      %v555 = vld [vmem:[#allocation3 + $0xbc] sm:$0x1]
      %v556 = vsel %vm394, 0, %v555
      %557 = vst [vmem:[#allocation3 + $0xbc] sm:$0x1] %v556
      %v558 = vld [vmem:[#allocation3 + $0xc8] sm:$0x1]
      %v559 = vsel %vm394, 0, %v558
      %560 = vst [vmem:[#allocation3 + $0xc8] sm:$0x1] %v559
      %v561 = vld [vmem:[#allocation3 + $0xd4] sm:$0x1]
      %v562 = vsel %vm394, 0, %v561
      %563 = vst [vmem:[#allocation3 + $0xd4] sm:$0x1] %v562
      %vm564 = vcmask 60416
      %565 = vst.msk [vmem:[#allocation4] sm:$0xf] %vm564, 0
      %566 = vst.msk [vmem:[#allocation4 + $0x4] sm:$0xf] %vm564, 0
      %vm567 = vcmask 57344
      %568 = vst.msk [vmem:[#allocation4 + $0x8] sm:$0x1] %vm567, 0
      %s569 = scalar_lea.vmem [#allocation4], 204
      %570 = vst.msk [vmem:[%s569] sm:$0xf] %vm564, 0
      %571 = vst.msk [vmem:[%s569 + $0x4] sm:$0xf] %vm564, 0
      %572 = vst.msk [vmem:[%s569 + $0x8] sm:$0x1] %vm567, 0
      %vm573 = vcmask 57344
      %vm574 = vmand %vm573, %vm337
      %v575 = vld [vmem:[#allocation4] sm:$0x1]
      %v576 = vsel %vm574, 0, %v575
      %577 = vst [vmem:[#allocation4] sm:$0x1] %v576
      %v578 = vld [vmem:[#allocation4 + $0xc] sm:$0x1]
      %v579 = vsel %vm574, 0, %v578
      %580 = vst [vmem:[#allocation4 + $0xc] sm:$0x1] %v579
      %v581 = vld [vmem:[#allocation4 + $0x18] sm:$0x1]
      %v582 = vsel %vm574, 0, %v581
      %583 = vst [vmem:[#allocation4 + $0x18] sm:$0x1] %v582
      %v584 = vld [vmem:[#allocation4 + $0x24] sm:$0x1]
      %v585 = vsel %vm574, 0, %v584
      %586 = vst [vmem:[#allocation4 + $0x24] sm:$0x1] %v585
      %v587 = vld [vmem:[#allocation4 + $0x30] sm:$0x1]
      %v588 = vsel %vm574, 0, %v587
      %589 = vst [vmem:[#allocation4 + $0x30] sm:$0x1] %v588
      %v590 = vld [vmem:[#allocation4 + $0x3c] sm:$0x1]
      %v591 = vsel %vm574, 0, %v590
      %592 = vst [vmem:[#allocation4 + $0x3c] sm:$0x1] %v591
      %v593 = vld [vmem:[#allocation4 + $0x48] sm:$0x1]
      %v594 = vsel %vm574, 0, %v593
      %595 = vst [vmem:[#allocation4 + $0x48] sm:$0x1] %v594
      %v596 = vld [vmem:[#allocation4 + $0x54] sm:$0x1]
      %v597 = vsel %vm574, 0, %v596
      %598 = vst [vmem:[#allocation4 + $0x54] sm:$0x1] %v597
      %v599 = vld [vmem:[#allocation4 + $0x60] sm:$0x1]
      %v600 = vsel %vm574, 0, %v599
      %601 = vst [vmem:[#allocation4 + $0x60] sm:$0x1] %v600
      %v602 = vld [vmem:[#allocation4 + $0x6c] sm:$0x1]
      %v603 = vsel %vm574, 0, %v602
      %604 = vst [vmem:[#allocation4 + $0x6c] sm:$0x1] %v603
      %v605 = vld [vmem:[#allocation4 + $0x78] sm:$0x1]
      %v606 = vsel %vm574, 0, %v605
      %607 = vst [vmem:[#allocation4 + $0x78] sm:$0x1] %v606
      %v608 = vld [vmem:[#allocation4 + $0x84] sm:$0x1]
      %v609 = vsel %vm574, 0, %v608
      %610 = vst [vmem:[#allocation4 + $0x84] sm:$0x1] %v609
      %v611 = vld [vmem:[#allocation4 + $0x90] sm:$0x1]
      %v612 = vsel %vm574, 0, %v611
      %613 = vst [vmem:[#allocation4 + $0x90] sm:$0x1] %v612
      %v614 = vld [vmem:[#allocation4 + $0x9c] sm:$0x1]
      %v615 = vsel %vm574, 0, %v614
      %616 = vst [vmem:[#allocation4 + $0x9c] sm:$0x1] %v615
      %v617 = vld [vmem:[#allocation4 + $0xa8] sm:$0x1]
      %v618 = vsel %vm574, 0, %v617
      %619 = vst [vmem:[#allocation4 + $0xa8] sm:$0x1] %v618
      %v620 = vld [vmem:[#allocation4 + $0xb4] sm:$0x1]
      %v621 = vsel %vm574, 0, %v620
      %622 = vst [vmem:[#allocation4 + $0xb4] sm:$0x1] %v621
      %v623 = vld [vmem:[#allocation4 + $0xc0] sm:$0x1]
      %v624 = vsel %vm574, 0, %v623
      %625 = vst [vmem:[#allocation4 + $0xc0] sm:$0x1] %v624
      %v626 = vld [vmem:[#allocation4 + $0xcc] sm:$0x1]
      %v627 = vsel %vm574, 0, %v626
      %628 = vst [vmem:[#allocation4 + $0xcc] sm:$0x1] %v627
      %vm629 = vmand %vm573, %vm393
      %v630 = vld [vmem:[#allocation4 + $0x8] sm:$0x1]
      %v631 = vsel %vm629, 0, %v630
      %632 = vst [vmem:[#allocation4 + $0x8] sm:$0x1] %v631
      %v633 = vld [vmem:[#allocation4 + $0x14] sm:$0x1]
      %v634 = vsel %vm629, 0, %v633
      %635 = vst [vmem:[#allocation4 + $0x14] sm:$0x1] %v634
      %v636 = vld [vmem:[#allocation4 + $0x20] sm:$0x1]
      %v637 = vsel %vm629, 0, %v636
      %638 = vst [vmem:[#allocation4 + $0x20] sm:$0x1] %v637
      %v639 = vld [vmem:[#allocation4 + $0x2c] sm:$0x1]
      %v640 = vsel %vm629, 0, %v639
      %641 = vst [vmem:[#allocation4 + $0x2c] sm:$0x1] %v640
      %v642 = vld [vmem:[#allocation4 + $0x38] sm:$0x1]
      %v643 = vsel %vm629, 0, %v642
      %644 = vst [vmem:[#allocation4 + $0x38] sm:$0x1] %v643
      %v645 = vld [vmem:[#allocation4 + $0x44] sm:$0x1]
      %v646 = vsel %vm629, 0, %v645
      %647 = vst [vmem:[#allocation4 + $0x44] sm:$0x1] %v646
      %v648 = vld [vmem:[#allocation4 + $0x50] sm:$0x1]
      %v649 = vsel %vm629, 0, %v648
      %650 = vst [vmem:[#allocation4 + $0x50] sm:$0x1] %v649
      %v651 = vld [vmem:[#allocation4 + $0x5c] sm:$0x1]
      %v652 = vsel %vm629, 0, %v651
      %653 = vst [vmem:[#allocation4 + $0x5c] sm:$0x1] %v652
      %v654 = vld [vmem:[#allocation4 + $0x68] sm:$0x1]
      %v655 = vsel %vm629, 0, %v654
      %656 = vst [vmem:[#allocation4 + $0x68] sm:$0x1] %v655
      %v657 = vld [vmem:[#allocation4 + $0x74] sm:$0x1]
      %v658 = vsel %vm629, 0, %v657
      %659 = vst [vmem:[#allocation4 + $0x74] sm:$0x1] %v658
      %v660 = vld [vmem:[#allocation4 + $0x80] sm:$0x1]
      %v661 = vsel %vm629, 0, %v660
      %662 = vst [vmem:[#allocation4 + $0x80] sm:$0x1] %v661
      %v663 = vld [vmem:[#allocation4 + $0x8c] sm:$0x1]
      %v664 = vsel %vm629, 0, %v663
      %665 = vst [vmem:[#allocation4 + $0x8c] sm:$0x1] %v664
      %v666 = vld [vmem:[#allocation4 + $0x98] sm:$0x1]
      %v667 = vsel %vm629, 0, %v666
      %668 = vst [vmem:[#allocation4 + $0x98] sm:$0x1] %v667
      %v669 = vld [vmem:[#allocation4 + $0xa4] sm:$0x1]
      %v670 = vsel %vm629, 0, %v669
      %671 = vst [vmem:[#allocation4 + $0xa4] sm:$0x1] %v670
      %v672 = vld [vmem:[#allocation4 + $0xb0] sm:$0x1]
      %v673 = vsel %vm629, 0, %v672
      %674 = vst [vmem:[#allocation4 + $0xb0] sm:$0x1] %v673
      %v675 = vld [vmem:[#allocation4 + $0xbc] sm:$0x1]
      %v676 = vsel %vm629, 0, %v675
      %677 = vst [vmem:[#allocation4 + $0xbc] sm:$0x1] %v676
      %v678 = vld [vmem:[#allocation4 + $0xc8] sm:$0x1]
      %v679 = vsel %vm629, 0, %v678
      %680 = vst [vmem:[#allocation4 + $0xc8] sm:$0x1] %v679
      %v681 = vld [vmem:[#allocation4 + $0xd4] sm:$0x1]
      %v682 = vsel %vm629, 0, %v681
      %683 = vst [vmem:[#allocation4 + $0xd4] sm:$0x1] %v682
      %v684 = vld [vmem:[%s315] sm:$0xf]
      %v685 = vld [vmem:[%s315 + $0x4] sm:$0xf]
      %v686 = vld [vmem:[%s315 + $0x8] sm:$0xf]
      %v687 = vld [vmem:[%s315 + $0xc] sm:$0xf]
      %v688 = vld [vmem:[%s315 + $0x10] sm:$0xf]
      %v689 = vld [vmem:[%s315 + $0x14] sm:$0xf]
      %v690 = vld [vmem:[%s315 + $0x18] sm:$0xf]
      %v691 = vld [vmem:[%s315 + $0x1c] sm:$0xf]
      %v692 = vld [vmem:[%s2] sm:$0x3]
      %v693 = vld [vmem:[%s3] sm:$0x1]
      %v695 = vlaneseq
      %v696 = vshrl.u32 %v695, 7
      %v697 = vsub.s32 0, %v696
      %v698 = vrot.slane %v693, %v697
      %v708 = vunpack.c.l.b16 %v684
      %v709 = vunpack.c.l.b16 %v685
      %v710 = vunpack.c.l.b16 %v686
      %v711 = vunpack.c.l.b16 %v687
      %v712 = vunpack.c.l.b16 %v688
      %v713 = vunpack.c.l.b16 %v689
      %v714 = vunpack.c.l.b16 %v690
      %v715 = vunpack.c.l.b16 %v691
      %v716 = vpack.c.b16 %v709, %v708
      %v717 = vpack.c.b16 %v711, %v710
      %v718 = vpack.c.b16 %v713, %v712
      %v719 = vpack.c.b16 %v715, %v714
      %vm720 = vcmask 31744
      %v722 = vsel %vm720, %v716, 0
      %v725 = vsel %vm720, %v717, 0
      %v728 = vsel %vm720, %v718, 0
      %v731 = vsel %vm720, %v719, 0
      %vm733 = vcmask 1041408
      %v735 = vsel %vm733, %v692, 0
      %737 = vmatprep.subr.bf16.mxu0 0
      %738 = vmatpush1.bf16.msra.mxu0 %v735
      %739 = vmatprep.subr.bf16.mxu0 0
      %740 = vmatpush1.bf16.msra.mxu0 0
      %741 = vmatprep.subr.bf16.mxu0 0
      %742 = vmatpush1.bf16.msra.mxu0 0
      %743 = vmatprep.subr.bf16.mxu0 0
      %744 = vmatpush1.bf16.msra.mxu0 0
      %745 = vmatprep.subr.bf16.mxu0 0
      %746 = vmatpush1.bf16.msra.mxu0 0
      %747 = vmatprep.subr.bf16.mxu0 0
      %748 = vmatpush1.bf16.msra.mxu0 0
      %749 = vmatprep.subr.bf16.mxu0 0
      %750 = vmatpush1.bf16.msra.mxu0 0
      %751 = vmatprep.subr.bf16.mxu0 0
      %752 = vmatpush1.bf16.msra.mxu0 0
      %753 = vmatprep.subr.bf16.mxu0 0
      %754 = vmatpush1.bf16.msra.mxu0 0
      %755 = vmatprep.subr.bf16.mxu0 0
      %756 = vmatpush1.bf16.msra.mxu0 0
      %757 = vmatprep.subr.bf16.mxu0 0
      %758 = vmatpush1.bf16.msra.mxu0 0
      %759 = vmatprep.subr.bf16.mxu0 0
      %760 = vmatpush1.bf16.msra.mxu0 0
      %761 = vmatprep.subr.bf16.mxu0 0
      %762 = vmatpush1.bf16.msra.mxu0 0
      %763 = vmatprep.subr.bf16.mxu0 0
      %764 = vmatpush1.bf16.msra.mxu0 0
      %765 = vmatprep.subr.bf16.mxu0 0
      %766 = vmatpush1.bf16.msra.mxu0 0
      %767 = vmatprep.subr.bf16.mxu0 0
      %768 = vmatpush1.bf16.msra.mxu0 0
      %769 = vmatprep.mubr.bf16.mxu0 0
      %770 = vmatmul.mubr.bf16.gmra.mrb[0].mxu0 %v722
      %v771 = vpop.f32.mrb[0].mxu0
      %v772 = vadd.f32 %v698, %v771
      %v773 = vpop.f32.mrb[0].mxu0
      %v774 = vpop.f32.mrb[0].mxu0
      %v775 = vadd.f32 %v698, %v774
      %v776 = vpop.f32.mrb[0].mxu0
      %777 = vmatprep.mubr.bf16.mxu0 0
      %778 = vmatmul.mubr.bf16.gmra.mrb[0].mxu0 %v725
      %v779 = vpop.f32.mrb[0].mxu0
      %v780 = vadd.f32 %v698, %v779
      %v781 = vpop.f32.mrb[0].mxu0
      %v782 = vpop.f32.mrb[0].mxu0
      %v783 = vadd.f32 %v698, %v782
      %v784 = vpop.f32.mrb[0].mxu0
      %785 = vmatprep.mubr.bf16.mxu0 0
      %786 = vmatmul.mubr.bf16.gmra.mrb[0].mxu0 %v728
      %v787 = vpop.f32.mrb[0].mxu0
      %v788 = vadd.f32 %v698, %v787
      %v789 = vpop.f32.mrb[0].mxu0
      %v790 = vpop.f32.mrb[0].mxu0
      %v791 = vadd.f32 %v698, %v790
      %v792 = vpop.f32.mrb[0].mxu0
      %793 = vmatprep.mubr.bf16.mxu0 0
      %794 = vmatmul.mubr.bf16.gmra.mrb[0].mxu0 %v731
      %v795 = vpop.f32.mrb[0].mxu0
      %v796 = vadd.f32 %v698, %v795
      %v797 = vpop.f32.mrb[0].mxu0
      %v798 = vpop.f32.mrb[0].mxu0
      %v799 = vadd.f32 %v698, %v798
      %v800 = vpop.f32.mrb[0].mxu0
      %801 = vdwg.mxu0
      %v802 = vpack.c.bf16 %v772, %v772
      %v803 = vpack.c.bf16 %v775, %v775
      %v804 = vpack.c.bf16 %v780, %v780
      %v805 = vpack.c.bf16 %v783, %v783
      %v806 = vpack.c.bf16 %v788, %v788
      %v807 = vpack.c.bf16 %v791, %v791
      %v808 = vpack.c.bf16 %v796, %v796
      %v809 = vpack.c.bf16 %v799, %v799
      %s810 = scalar_lea.vmem %s2, 2
      %v811 = vld [vmem:[%s810] sm:$0x3]
      %v813 = vsel %vm733, %v811, 0
      %815 = vmatprep.subr.bf16.mxu0 0
      %816 = vmatpush1.bf16.msra.mxu0 %v813
      %817 = vmatprep.subr.bf16.mxu0 0
      %818 = vmatpush1.bf16.msra.mxu0 0
      %819 = vmatprep.subr.bf16.mxu0 0
      %820 = vmatpush1.bf16.msra.mxu0 0
      %821 = vmatprep.subr.bf16.mxu0 0
      %822 = vmatpush1.bf16.msra.mxu0 0
      %823 = vmatprep.subr.bf16.mxu0 0
      %824 = vmatpush1.bf16.msra.mxu0 0
      %825 = vmatprep.subr.bf16.mxu0 0
      %826 = vmatpush1.bf16.msra.mxu0 0
      %827 = vmatprep.subr.bf16.mxu0 0
      %828 = vmatpush1.bf16.msra.mxu0 0
      %829 = vmatprep.subr.bf16.mxu0 0
      %830 = vmatpush1.bf16.msra.mxu0 0
      %831 = vmatprep.subr.bf16.mxu0 0
      %832 = vmatpush1.bf16.msra.mxu0 0
      %833 = vmatprep.subr.bf16.mxu0 0
      %834 = vmatpush1.bf16.msra.mxu0 0
      %835 = vmatprep.subr.bf16.mxu0 0
      %836 = vmatpush1.bf16.msra.mxu0 0
      %837 = vmatprep.subr.bf16.mxu0 0
      %838 = vmatpush1.bf16.msra.mxu0 0
      %839 = vmatprep.subr.bf16.mxu0 0
      %840 = vmatpush1.bf16.msra.mxu0 0
      %841 = vmatprep.subr.bf16.mxu0 0
      %842 = vmatpush1.bf16.msra.mxu0 0
      %843 = vmatprep.subr.bf16.mxu0 0
      %844 = vmatpush1.bf16.msra.mxu0 0
      %845 = vmatprep.subr.bf16.mxu0 0
      %846 = vmatpush1.bf16.msra.mxu0 0
      %847 = vmatprep.mubr.bf16.mxu0 0
      %848 = vmatmul.mubr.bf16.gmra.mrb[0].mxu0 %v722
      %v849 = vpop.f32.mrb[0].mxu0
      %v850 = vadd.f32 %v698, %v849
      %v851 = vpop.f32.mrb[0].mxu0
      %v852 = vpop.f32.mrb[0].mxu0
      %v853 = vadd.f32 %v698, %v852
      %v854 = vpop.f32.mrb[0].mxu0
      %855 = vmatprep.mubr.bf16.mxu0 0
      %856 = vmatmul.mubr.bf16.gmra.mrb[0].mxu0 %v725
      %v857 = vpop.f32.mrb[0].mxu0
      %v858 = vadd.f32 %v698, %v857
      %v859 = vpop.f32.mrb[0].mxu0
      %v860 = vpop.f32.mrb[0].mxu0
      %v861 = vadd.f32 %v698, %v860
      %v862 = vpop.f32.mrb[0].mxu0
      %863 = vmatprep.mubr.bf16.mxu0 0
      %864 = vmatmul.mubr.bf16.gmra.mrb[0].mxu0 %v728
      %v865 = vpop.f32.mrb[0].mxu0
      %v866 = vadd.f32 %v698, %v865
      %v867 = vpop.f32.mrb[0].mxu0
      %v868 = vpop.f32.mrb[0].mxu0
      %v869 = vadd.f32 %v698, %v868
      %v870 = vpop.f32.mrb[0].mxu0
      %871 = vmatprep.mubr.bf16.mxu0 0
      %872 = vmatmul.mubr.bf16.gmra.mrb[0].mxu0 %v731
      %v873 = vpop.f32.mrb[0].mxu0
      %v874 = vadd.f32 %v698, %v873
      %v875 = vpop.f32.mrb[0].mxu0
      %v876 = vpop.f32.mrb[0].mxu0
      %v877 = vadd.f32 %v698, %v876
      %v878 = vpop.f32.mrb[0].mxu0
      %879 = vdwg.mxu0
      %v880 = vpack.c.bf16 %v850, %v850
      %v881 = vpack.c.bf16 %v853, %v853
      %v882 = vpack.c.bf16 %v858, %v858
      %v883 = vpack.c.bf16 %v861, %v861
      %v884 = vpack.c.bf16 %v866, %v866
      %v885 = vpack.c.bf16 %v869, %v869
      %v886 = vpack.c.bf16 %v874, %v874
      %v887 = vpack.c.bf16 %v877, %v877
      %s888 = scalar_lea.vmem %s2, 4
      %v889 = vld [vmem:[%s888] sm:$0x3]
      %v891 = vsel %vm733, %v889, 0
      %893 = vmatprep.subr.bf16.mxu0 0
      %894 = vmatpush1.bf16.msra.mxu0 %v891
      %895 = vmatprep.subr.bf16.mxu0 0
      %896 = vmatpush1.bf16.msra.mxu0 0
      %897 = vmatprep.subr.bf16.mxu0 0
      %898 = vmatpush1.bf16.msra.mxu0 0
      %899 = vmatprep.subr.bf16.mxu0 0
      %900 = vmatpush1.bf16.msra.mxu0 0
      %901 = vmatprep.subr.bf16.mxu0 0
      %902 = vmatpush1.bf16.msra.mxu0 0
      %903 = vmatprep.subr.bf16.mxu0 0
      %904 = vmatpush1.bf16.msra.mxu0 0
      %905 = vmatprep.subr.bf16.mxu0 0
      %906 = vmatpush1.bf16.msra.mxu0 0
      %907 = vmatprep.subr.bf16.mxu0 0
      %908 = vmatpush1.bf16.msra.mxu0 0
      %909 = vmatprep.subr.bf16.mxu0 0
      %910 = vmatpush1.bf16.msra.mxu0 0
      %911 = vmatprep.subr.bf16.mxu0 0
      %912 = vmatpush1.bf16.msra.mxu0 0
      %913 = vmatprep.subr.bf16.mxu0 0
      %914 = vmatpush1.bf16.msra.mxu0 0
      %915 = vmatprep.subr.bf16.mxu0 0
      %916 = vmatpush1.bf16.msra.mxu0 0
      %917 = vmatprep.subr.bf16.mxu0 0
      %918 = vmatpush1.bf16.msra.mxu0 0
      %919 = vmatprep.subr.bf16.mxu0 0
      %920 = vmatpush1.bf16.msra.mxu0 0
      %921 = vmatprep.subr.bf16.mxu0 0
      %922 = vmatpush1.bf16.msra.mxu0 0
      %923 = vmatprep.subr.bf16.mxu0 0
      %924 = vmatpush1.bf16.msra.mxu0 0
      %925 = vmatprep.mubr.bf16.mxu0 0
      %926 = vmatmul.mubr.bf16.gmra.mrb[0].mxu0 %v722
      %v927 = vpop.f32.mrb[0].mxu0
      %v928 = vadd.f32 %v698, %v927
      %v929 = vpop.f32.mrb[0].mxu0
      %v930 = vpop.f32.mrb[0].mxu0
      %v931 = vadd.f32 %v698, %v930
      %v932 = vpop.f32.mrb[0].mxu0
      %933 = vmatprep.mubr.bf16.mxu0 0
      %934 = vmatmul.mubr.bf16.gmra.mrb[0].mxu0 %v725
      %v935 = vpop.f32.mrb[0].mxu0
      %v936 = vadd.f32 %v698, %v935
      %v937 = vpop.f32.mrb[0].mxu0
      %v938 = vpop.f32.mrb[0].mxu0
      %v939 = vadd.f32 %v698, %v938
      %v940 = vpop.f32.mrb[0].mxu0
      %941 = vmatprep.mubr.bf16.mxu0 0
      %942 = vmatmul.mubr.bf16.gmra.mrb[0].mxu0 %v728
      %v943 = vpop.f32.mrb[0].mxu0
      %v944 = vadd.f32 %v698, %v943
      %v945 = vpop.f32.mrb[0].mxu0
      %v946 = vpop.f32.mrb[0].mxu0
      %v947 = vadd.f32 %v698, %v946
      %v948 = vpop.f32.mrb[0].mxu0
      %949 = vmatprep.mubr.bf16.mxu0 0
      %950 = vmatmul.mubr.bf16.gmra.mrb[0].mxu0 %v731
      %v951 = vpop.f32.mrb[0].mxu0
      %v952 = vadd.f32 %v698, %v951
      %v953 = vpop.f32.mrb[0].mxu0
      %v954 = vpop.f32.mrb[0].mxu0
      %v955 = vadd.f32 %v698, %v954
      %v956 = vpop.f32.mrb[0].mxu0
      %957 = vdwg.mxu0
      %v958 = vpack.c.bf16 %v928, %v928
      %v959 = vpack.c.bf16 %v931, %v931
      %v960 = vpack.c.bf16 %v936, %v936
      %v961 = vpack.c.bf16 %v939, %v939
      %v962 = vpack.c.bf16 %v944, %v944
      %v963 = vpack.c.bf16 %v947, %v947
      %v964 = vpack.c.bf16 %v952, %v952
      %v965 = vpack.c.bf16 %v955, %v955
      %s966 = scalar_lea.vmem %s2, 6
      %v967 = vld [vmem:[%s966] sm:$0x3]
      %v969 = vsel %vm733, %v967, 0
      %971 = vmatprep.subr.bf16.mxu0 0
      %972 = vmatpush1.bf16.msra.mxu0 %v969
      %973 = vmatprep.subr.bf16.mxu0 0
      %974 = vmatpush1.bf16.msra.mxu0 0
      %975 = vmatprep.subr.bf16.mxu0 0
      %976 = vmatpush1.bf16.msra.mxu0 0
      %977 = vmatprep.subr.bf16.mxu0 0
      %978 = vmatpush1.bf16.msra.mxu0 0
      %979 = vmatprep.subr.bf16.mxu0 0
      %980 = vmatpush1.bf16.msra.mxu0 0
      %981 = vmatprep.subr.bf16.mxu0 0
      %982 = vmatpush1.bf16.msra.mxu0 0
      %983 = vmatprep.subr.bf16.mxu0 0
      %984 = vmatpush1.bf16.msra.mxu0 0
      %985 = vmatprep.subr.bf16.mxu0 0
      %986 = vmatpush1.bf16.msra.mxu0 0
      %987 = vmatprep.subr.bf16.mxu0 0
      %988 = vmatpush1.bf16.msra.mxu0 0
      %989 = vmatprep.subr.bf16.mxu0 0
      %990 = vmatpush1.bf16.msra.mxu0 0
      %991 = vmatprep.subr.bf16.mxu0 0
      %992 = vmatpush1.bf16.msra.mxu0 0
      %993 = vmatprep.subr.bf16.mxu0 0
      %994 = vmatpush1.bf16.msra.mxu0 0
      %995 = vmatprep.subr.bf16.mxu0 0
      %996 = vmatpush1.bf16.msra.mxu0 0
      %997 = vmatprep.subr.bf16.mxu0 0
      %998 = vmatpush1.bf16.msra.mxu0 0
      %999 = vmatprep.subr.bf16.mxu0 0
      %1000 = vmatpush1.bf16.msra.mxu0 0
      %1001 = vmatprep.subr.bf16.mxu0 0
      %1002 = vmatpush1.bf16.msra.mxu0 0
      %1003 = vmatprep.mubr.bf16.mxu0 0
      %1004 = vmatmul.mubr.bf16.gmra.mrb[0].mxu0 %v722
      %v1005 = vpop.f32.mrb[0].mxu0
      %v1006 = vadd.f32 %v698, %v1005
      %v1007 = vpop.f32.mrb[0].mxu0
      %v1008 = vpop.f32.mrb[0].mxu0
      %v1009 = vadd.f32 %v698, %v1008
      %v1010 = vpop.f32.mrb[0].mxu0
      %1011 = vmatprep.mubr.bf16.mxu0 0
      %1012 = vmatmul.mubr.bf16.gmra.mrb[0].mxu0 %v725
      %v1013 = vpop.f32.mrb[0].mxu0
      %v1014 = vadd.f32 %v698, %v1013
      %v1015 = vpop.f32.mrb[0].mxu0
      %v1016 = vpop.f32.mrb[0].mxu0
      %v1017 = vadd.f32 %v698, %v1016
      %v1018 = vpop.f32.mrb[0].mxu0
      %1019 = vmatprep.mubr.bf16.mxu0 0
      %1020 = vmatmul.mubr.bf16.gmra.mrb[0].mxu0 %v728
      %v1021 = vpop.f32.mrb[0].mxu0
      %v1022 = vadd.f32 %v698, %v1021
      %v1023 = vpop.f32.mrb[0].mxu0
      %v1024 = vpop.f32.mrb[0].mxu0
      %v1025 = vadd.f32 %v698, %v1024
      %v1026 = vpop.f32.mrb[0].mxu0
      %1027 = vmatprep.mubr.bf16.mxu0 0
      %1028 = vmatmul.mubr.bf16.gmra.mrb[0].mxu0 %v731
      %v1029 = vpop.f32.mrb[0].mxu0
      %v1030 = vadd.f32 %v698, %v1029
      %v1031 = vpop.f32.mrb[0].mxu0
      %v1032 = vpop.f32.mrb[0].mxu0
      %v1033 = vadd.f32 %v698, %v1032
      %v1034 = vpop.f32.mrb[0].mxu0
      %1035 = vdwg.mxu0
      %v1036 = vpack.c.bf16 %v1006, %v1006
      %v1037 = vpack.c.bf16 %v1009, %v1009
      %v1038 = vpack.c.bf16 %v1014, %v1014
      %v1039 = vpack.c.bf16 %v1017, %v1017
      %v1040 = vpack.c.bf16 %v1022, %v1022
      %v1041 = vpack.c.bf16 %v1025, %v1025
      %v1042 = vpack.c.bf16 %v1030, %v1030
      %v1043 = vpack.c.bf16 %v1033, %v1033
      %v1053 = vunpack.c.l.s4 1966171168
      %v1054 = vunpack.c.0.s8 %v1053
      %v1055 = vlaneseq
      %v1056 = vshrl.u32 %v1055, 7
      %v1057 = vsub.s32 %v1054, %v1056
      %v1058 = vrot.slane %v802, %v1057
      %v1059 = vcombine.high %v1058, %v1058
      %v1061 = vunpack.c.l.s4 1966171168
      %v1062 = vunpack.c.0.s8 %v1061
      %v1063 = vlaneseq
      %v1064 = vshrl.u32 %v1063, 7
      %v1065 = vsub.s32 %v1062, %v1064
      %v1066 = vrot.slane %v1058, %v1065
      %v1068 = vunpack.c.l.s4 1966171168
      %v1069 = vunpack.c.0.s8 %v1068
      %v1070 = vlaneseq
      %v1071 = vshrl.u32 %v1070, 7
      %v1072 = vsub.s32 %v1069, %v1071
      %v1073 = vrot.slane %v1059, %v1072
      %v1074 = vcombine.high %v1066, %v1066
      %v1075 = vcombine.high %v1073, %v1073
      %v1077 = vunpack.c.l.s4 1966171168
      %v1078 = vunpack.c.0.s8 %v1077
      %v1079 = vlaneseq
      %v1080 = vshrl.u32 %v1079, 7
      %v1081 = vsub.s32 %v1078, %v1080
      %v1082 = vrot.slane %v803, %v1081
      %v1083 = vcombine.high %v1082, %v1082
      %v1085 = vunpack.c.l.s4 1966171168
      %v1086 = vunpack.c.0.s8 %v1085
      %v1087 = vlaneseq
      %v1088 = vshrl.u32 %v1087, 7
      %v1089 = vsub.s32 %v1086, %v1088
      %v1090 = vrot.slane %v1082, %v1089
      %v1092 = vunpack.c.l.s4 1966171168
      %v1093 = vunpack.c.0.s8 %v1092
      %v1094 = vlaneseq
      %v1095 = vshrl.u32 %v1094, 7
      %v1096 = vsub.s32 %v1093, %v1095
      %v1097 = vrot.slane %v1083, %v1096
      %v1098 = vcombine.high %v1090, %v1090
      %v1099 = vcombine.high %v1097, %v1097
      %v1101 = vunpack.c.l.s4 1966171168
      %v1102 = vunpack.c.0.s8 %v1101
      %v1103 = vlaneseq
      %v1104 = vshrl.u32 %v1103, 7
      %v1105 = vsub.s32 %v1102, %v1104
      %v1106 = vrot.slane %v804, %v1105
      %v1107 = vcombine.high %v1106, %v1106
      %v1109 = vunpack.c.l.s4 1966171168
      %v1110 = vunpack.c.0.s8 %v1109
      %v1111 = vlaneseq
      %v1112 = vshrl.u32 %v1111, 7
      %v1113 = vsub.s32 %v1110, %v1112
      %v1114 = vrot.slane %v1106, %v1113
      %v1116 = vunpack.c.l.s4 1966171168
      %v1117 = vunpack.c.0.s8 %v1116
      %v1118 = vlaneseq
      %v1119 = vshrl.u32 %v1118, 7
      %v1120 = vsub.s32 %v1117, %v1119
      %v1121 = vrot.slane %v1107, %v1120
      %v1122 = vcombine.high %v1114, %v1114
      %v1123 = vcombine.high %v1121, %v1121
      %v1125 = vunpack.c.l.s4 1966171168
      %v1126 = vunpack.c.0.s8 %v1125
      %v1127 = vlaneseq
      %v1128 = vshrl.u32 %v1127, 7
      %v1129 = vsub.s32 %v1126, %v1128
      %v1130 = vrot.slane %v805, %v1129
      %v1131 = vcombine.high %v1130, %v1130
      %v1133 = vunpack.c.l.s4 1966171168
      %v1134 = vunpack.c.0.s8 %v1133
      %v1135 = vlaneseq
      %v1136 = vshrl.u32 %v1135, 7
      %v1137 = vsub.s32 %v1134, %v1136
      %v1138 = vrot.slane %v1130, %v1137
      %v1140 = vunpack.c.l.s4 1966171168
      %v1141 = vunpack.c.0.s8 %v1140
      %v1142 = vlaneseq
      %v1143 = vshrl.u32 %v1142, 7
      %v1144 = vsub.s32 %v1141, %v1143
      %v1145 = vrot.slane %v1131, %v1144
      %v1146 = vcombine.high %v1138, %v1138
      %v1147 = vcombine.high %v1145, %v1145
      %v1149 = vunpack.c.l.s4 1966171168
      %v1150 = vunpack.c.0.s8 %v1149
      %v1151 = vlaneseq
      %v1152 = vshrl.u32 %v1151, 7
      %v1153 = vsub.s32 %v1150, %v1152
      %v1154 = vrot.slane %v806, %v1153
      %v1155 = vcombine.high %v1154, %v1154
      %v1157 = vunpack.c.l.s4 1966171168
      %v1158 = vunpack.c.0.s8 %v1157
      %v1159 = vlaneseq
      %v1160 = vshrl.u32 %v1159, 7
      %v1161 = vsub.s32 %v1158, %v1160
      %v1162 = vrot.slane %v1154, %v1161
      %v1164 = vunpack.c.l.s4 1966171168
      %v1165 = vunpack.c.0.s8 %v1164
      %v1166 = vlaneseq
      %v1167 = vshrl.u32 %v1166, 7
      %v1168 = vsub.s32 %v1165, %v1167
      %v1169 = vrot.slane %v1155, %v1168
      %v1170 = vcombine.high %v1162, %v1162
      %v1171 = vcombine.high %v1169, %v1169
      %v1173 = vunpack.c.l.s4 1966171168
      %v1174 = vunpack.c.0.s8 %v1173
      %v1175 = vlaneseq
      %v1176 = vshrl.u32 %v1175, 7
      %v1177 = vsub.s32 %v1174, %v1176
      %v1178 = vrot.slane %v807, %v1177
      %v1179 = vcombine.high %v1178, %v1178
      %v1181 = vunpack.c.l.s4 1966171168
      %v1182 = vunpack.c.0.s8 %v1181
      %v1183 = vlaneseq
      %v1184 = vshrl.u32 %v1183, 7
      %v1185 = vsub.s32 %v1182, %v1184
      %v1186 = vrot.slane %v1178, %v1185
      %v1188 = vunpack.c.l.s4 1966171168
      %v1189 = vunpack.c.0.s8 %v1188
      %v1190 = vlaneseq
      %v1191 = vshrl.u32 %v1190, 7
      %v1192 = vsub.s32 %v1189, %v1191
      %v1193 = vrot.slane %v1179, %v1192
      %v1194 = vcombine.high %v1186, %v1186
      %v1195 = vcombine.high %v1193, %v1193
      %v1197 = vunpack.c.l.s4 1966171168
      %v1198 = vunpack.c.0.s8 %v1197
      %v1199 = vlaneseq
      %v1200 = vshrl.u32 %v1199, 7
      %v1201 = vsub.s32 %v1198, %v1200
      %v1202 = vrot.slane %v808, %v1201
      %v1203 = vcombine.high %v1202, %v1202
      %v1205 = vunpack.c.l.s4 1966171168
      %v1206 = vunpack.c.0.s8 %v1205
      %v1207 = vlaneseq
      %v1208 = vshrl.u32 %v1207, 7
      %v1209 = vsub.s32 %v1206, %v1208
      %v1210 = vrot.slane %v1202, %v1209
      %v1212 = vunpack.c.l.s4 1966171168
      %v1213 = vunpack.c.0.s8 %v1212
      %v1214 = vlaneseq
      %v1215 = vshrl.u32 %v1214, 7
      %v1216 = vsub.s32 %v1213, %v1215
      %v1217 = vrot.slane %v1203, %v1216
      %v1218 = vcombine.high %v1210, %v1210
      %v1219 = vcombine.high %v1217, %v1217
      %v1221 = vunpack.c.l.s4 1966171168
      %v1222 = vunpack.c.0.s8 %v1221
      %v1223 = vlaneseq
      %v1224 = vshrl.u32 %v1223, 7
      %v1225 = vsub.s32 %v1222, %v1224
      %v1226 = vrot.slane %v809, %v1225
      %v1227 = vcombine.high %v1226, %v1226
      %v1229 = vunpack.c.l.s4 1966171168
      %v1230 = vunpack.c.0.s8 %v1229
      %v1231 = vlaneseq
      %v1232 = vshrl.u32 %v1231, 7
      %v1233 = vsub.s32 %v1230, %v1232
      %v1234 = vrot.slane %v1226, %v1233
      %v1236 = vunpack.c.l.s4 1966171168
      %v1237 = vunpack.c.0.s8 %v1236
      %v1238 = vlaneseq
      %v1239 = vshrl.u32 %v1238, 7
      %v1240 = vsub.s32 %v1237, %v1239
      %v1241 = vrot.slane %v1227, %v1240
      %v1242 = vcombine.high %v1234, %v1234
      %v1243 = vcombine.high %v1241, %v1241
      %v1244 = vunpack.i.l.s16 %v1066
      %v1245 = vunpack.i.h.s16 %v1066
      %v1246 = vunpack.i.l.s16 %v1073
      %v1247 = vunpack.i.h.s16 %v1073
      %v1248 = vunpack.i.l.s16 %v1074
      %v1249 = vunpack.i.h.s16 %v1074
      %v1250 = vunpack.i.l.s16 %v1075
      %v1251 = vunpack.i.h.s16 %v1075
      %v1252 = vunpack.i.l.s16 %v1090
      %v1253 = vunpack.i.h.s16 %v1090
      %v1254 = vunpack.i.l.s16 %v1097
      %v1255 = vunpack.i.h.s16 %v1097
      %v1256 = vunpack.i.l.s16 %v1098
      %v1257 = vunpack.i.h.s16 %v1098
      %v1258 = vunpack.i.l.s16 %v1099
      %v1259 = vunpack.i.h.s16 %v1099
      %v1260 = vunpack.i.l.s16 %v1114
      %v1261 = vunpack.i.h.s16 %v1114
      %v1262 = vunpack.i.l.s16 %v1121
      %v1263 = vunpack.i.h.s16 %v1121
      %v1264 = vunpack.i.l.s16 %v1122
      %v1265 = vunpack.i.h.s16 %v1122
      %v1266 = vunpack.i.l.s16 %v1123
      %v1267 = vunpack.i.h.s16 %v1123
      %v1268 = vunpack.i.l.s16 %v1138
      %v1269 = vunpack.i.h.s16 %v1138
      %v1270 = vunpack.i.l.s16 %v1145
      %v1271 = vunpack.i.h.s16 %v1145
      %v1272 = vunpack.i.l.s16 %v1146
      %v1273 = vunpack.i.h.s16 %v1146
      %v1274 = vunpack.i.l.s16 %v1147
      %v1275 = vunpack.i.h.s16 %v1147
      %v1276 = vunpack.i.l.s16 %v1162
      %v1277 = vunpack.i.h.s16 %v1162
      %v1278 = vunpack.i.l.s16 %v1169
      %v1279 = vunpack.i.h.s16 %v1169
      %v1280 = vunpack.i.l.s16 %v1170
      %v1281 = vunpack.i.h.s16 %v1170
      %v1282 = vunpack.i.l.s16 %v1171
      %v1283 = vunpack.i.h.s16 %v1171
      %v1284 = vunpack.i.l.s16 %v1186
      %v1285 = vunpack.i.h.s16 %v1186
      %v1286 = vunpack.i.l.s16 %v1193
      %v1287 = vunpack.i.h.s16 %v1193
      %v1288 = vunpack.i.l.s16 %v1194
      %v1289 = vunpack.i.h.s16 %v1194
      %v1290 = vunpack.i.l.s16 %v1195
      %v1291 = vunpack.i.h.s16 %v1195
      %v1292 = vunpack.i.l.s16 %v1210
      %v1293 = vunpack.i.h.s16 %v1210
      %v1294 = vunpack.i.l.s16 %v1217
      %v1295 = vunpack.i.h.s16 %v1217
      %v1296 = vunpack.i.l.s16 %v1218
      %v1297 = vunpack.i.h.s16 %v1218
      %v1298 = vunpack.i.l.s16 %v1219
      %v1299 = vunpack.i.h.s16 %v1219
      %v1300 = vunpack.i.l.s16 %v1234
      %v1301 = vunpack.i.h.s16 %v1234
      %v1302 = vunpack.i.l.s16 %v1241
      %v1303 = vunpack.i.h.s16 %v1241
      %v1304 = vunpack.i.l.s16 %v1242
      %v1305 = vunpack.i.h.s16 %v1242
      %v1306 = vunpack.i.l.s16 %v1243
      %v1307 = vunpack.i.h.s16 %v1243
      %v1317 = vunpack.c.l.s4 1966171168
      %v1318 = vunpack.c.0.s8 %v1317
      %v1319 = vlaneseq
      %v1320 = vshrl.u32 %v1319, 7
      %v1321 = vsub.s32 %v1318, %v1320
      %v1322 = vrot.slane %v880, %v1321
      %v1323 = vcombine.high %v1322, %v1322
      %v1325 = vunpack.c.l.s4 1966171168
      %v1326 = vunpack.c.0.s8 %v1325
      %v1327 = vlaneseq
      %v1328 = vshrl.u32 %v1327, 7
      %v1329 = vsub.s32 %v1326, %v1328
      %v1330 = vrot.slane %v1322, %v1329
      %v1332 = vunpack.c.l.s4 1966171168
      %v1333 = vunpack.c.0.s8 %v1332
      %v1334 = vlaneseq
      %v1335 = vshrl.u32 %v1334, 7
      %v1336 = vsub.s32 %v1333, %v1335
      %v1337 = vrot.slane %v1323, %v1336
      %v1338 = vcombine.high %v1330, %v1330
      %v1339 = vcombine.high %v1337, %v1337
      %v1341 = vunpack.c.l.s4 1966171168
      %v1342 = vunpack.c.0.s8 %v1341
      %v1343 = vlaneseq
      %v1344 = vshrl.u32 %v1343, 7
      %v1345 = vsub.s32 %v1342, %v1344
      %v1346 = vrot.slane %v881, %v1345
      %v1347 = vcombine.high %v1346, %v1346
      %v1349 = vunpack.c.l.s4 1966171168
      %v1350 = vunpack.c.0.s8 %v1349
      %v1351 = vlaneseq
      %v1352 = vshrl.u32 %v1351, 7
      %v1353 = vsub.s32 %v1350, %v1352
      %v1354 = vrot.slane %v1346, %v1353
      %v1356 = vunpack.c.l.s4 1966171168
      %v1357 = vunpack.c.0.s8 %v1356
      %v1358 = vlaneseq
      %v1359 = vshrl.u32 %v1358, 7
      %v1360 = vsub.s32 %v1357, %v1359
      %v1361 = vrot.slane %v1347, %v1360
      %v1362 = vcombine.high %v1354, %v1354
      %v1363 = vcombine.high %v1361, %v1361
      %v1365 = vunpack.c.l.s4 1966171168
      %v1366 = vunpack.c.0.s8 %v1365
      %v1367 = vlaneseq
      %v1368 = vshrl.u32 %v1367, 7
      %v1369 = vsub.s32 %v1366, %v1368
      %v1370 = vrot.slane %v882, %v1369
      %v1371 = vcombine.high %v1370, %v1370
      %v1373 = vunpack.c.l.s4 1966171168
      %v1374 = vunpack.c.0.s8 %v1373
      %v1375 = vlaneseq
      %v1376 = vshrl.u32 %v1375, 7
      %v1377 = vsub.s32 %v1374, %v1376
      %v1378 = vrot.slane %v1370, %v1377
      %v1380 = vunpack.c.l.s4 1966171168
      %v1381 = vunpack.c.0.s8 %v1380
      %v1382 = vlaneseq
      %v1383 = vshrl.u32 %v1382, 7
      %v1384 = vsub.s32 %v1381, %v1383
      %v1385 = vrot.slane %v1371, %v1384
      %v1386 = vcombine.high %v1378, %v1378
      %v1387 = vcombine.high %v1385, %v1385
      %v1389 = vunpack.c.l.s4 1966171168
      %v1390 = vunpack.c.0.s8 %v1389
      %v1391 = vlaneseq
      %v1392 = vshrl.u32 %v1391, 7
      %v1393 = vsub.s32 %v1390, %v1392
      %v1394 = vrot.slane %v883, %v1393
      %v1395 = vcombine.high %v1394, %v1394
      %v1397 = vunpack.c.l.s4 1966171168
      %v1398 = vunpack.c.0.s8 %v1397
      %v1399 = vlaneseq
      %v1400 = vshrl.u32 %v1399, 7
      %v1401 = vsub.s32 %v1398, %v1400
      %v1402 = vrot.slane %v1394, %v1401
      %v1404 = vunpack.c.l.s4 1966171168
      %v1405 = vunpack.c.0.s8 %v1404
      %v1406 = vlaneseq
      %v1407 = vshrl.u32 %v1406, 7
      %v1408 = vsub.s32 %v1405, %v1407
      %v1409 = vrot.slane %v1395, %v1408
      %v1410 = vcombine.high %v1402, %v1402
      %v1411 = vcombine.high %v1409, %v1409
      %v1413 = vunpack.c.l.s4 1966171168
      %v1414 = vunpack.c.0.s8 %v1413
      %v1415 = vlaneseq
      %v1416 = vshrl.u32 %v1415, 7
      %v1417 = vsub.s32 %v1414, %v1416
      %v1418 = vrot.slane %v884, %v1417
      %v1419 = vcombine.high %v1418, %v1418
      %v1421 = vunpack.c.l.s4 1966171168
      %v1422 = vunpack.c.0.s8 %v1421
      %v1423 = vlaneseq
      %v1424 = vshrl.u32 %v1423, 7
      %v1425 = vsub.s32 %v1422, %v1424
      %v1426 = vrot.slane %v1418, %v1425
      %v1428 = vunpack.c.l.s4 1966171168
      %v1429 = vunpack.c.0.s8 %v1428
      %v1430 = vlaneseq
      %v1431 = vshrl.u32 %v1430, 7
      %v1432 = vsub.s32 %v1429, %v1431
      %v1433 = vrot.slane %v1419, %v1432
      %v1434 = vcombine.high %v1426, %v1426
      %v1435 = vcombine.high %v1433, %v1433
      %v1437 = vunpack.c.l.s4 1966171168
      %v1438 = vunpack.c.0.s8 %v1437
      %v1439 = vlaneseq
      %v1440 = vshrl.u32 %v1439, 7
      %v1441 = vsub.s32 %v1438, %v1440
      %v1442 = vrot.slane %v885, %v1441
      %v1443 = vcombine.high %v1442, %v1442
      %v1445 = vunpack.c.l.s4 1966171168
      %v1446 = vunpack.c.0.s8 %v1445
      %v1447 = vlaneseq
      %v1448 = vshrl.u32 %v1447, 7
      %v1449 = vsub.s32 %v1446, %v1448
      %v1450 = vrot.slane %v1442, %v1449
      %v1452 = vunpack.c.l.s4 1966171168
      %v1453 = vunpack.c.0.s8 %v1452
      %v1454 = vlaneseq
      %v1455 = vshrl.u32 %v1454, 7
      %v1456 = vsub.s32 %v1453, %v1455
      %v1457 = vrot.slane %v1443, %v1456
      %v1458 = vcombine.high %v1450, %v1450
      %v1459 = vcombine.high %v1457, %v1457
      %v1461 = vunpack.c.l.s4 1966171168
      %v1462 = vunpack.c.0.s8 %v1461
      %v1463 = vlaneseq
      %v1464 = vshrl.u32 %v1463, 7
      %v1465 = vsub.s32 %v1462, %v1464
      %v1466 = vrot.slane %v886, %v1465
      %v1467 = vcombine.high %v1466, %v1466
      %v1469 = vunpack.c.l.s4 1966171168
      %v1470 = vunpack.c.0.s8 %v1469
      %v1471 = vlaneseq
      %v1472 = vshrl.u32 %v1471, 7
      %v1473 = vsub.s32 %v1470, %v1472
      %v1474 = vrot.slane %v1466, %v1473
      %v1476 = vunpack.c.l.s4 1966171168
      %v1477 = vunpack.c.0.s8 %v1476
      %v1478 = vlaneseq
      %v1479 = vshrl.u32 %v1478, 7
      %v1480 = vsub.s32 %v1477, %v1479
      %v1481 = vrot.slane %v1467, %v1480
      %v1482 = vcombine.high %v1474, %v1474
      %v1483 = vcombine.high %v1481, %v1481
      %v1485 = vunpack.c.l.s4 1966171168
      %v1486 = vunpack.c.0.s8 %v1485
      %v1487 = vlaneseq
      %v1488 = vshrl.u32 %v1487, 7
      %v1489 = vsub.s32 %v1486, %v1488
      %v1490 = vrot.slane %v887, %v1489
      %v1491 = vcombine.high %v1490, %v1490
      %v1493 = vunpack.c.l.s4 1966171168
      %v1494 = vunpack.c.0.s8 %v1493
      %v1495 = vlaneseq
      %v1496 = vshrl.u32 %v1495, 7
      %v1497 = vsub.s32 %v1494, %v1496
      %v1498 = vrot.slane %v1490, %v1497
      %v1500 = vunpack.c.l.s4 1966171168
      %v1501 = vunpack.c.0.s8 %v1500
      %v1502 = vlaneseq
      %v1503 = vshrl.u32 %v1502, 7
      %v1504 = vsub.s32 %v1501, %v1503
      %v1505 = vrot.slane %v1491, %v1504
      %v1506 = vcombine.high %v1498, %v1498
      %v1507 = vcombine.high %v1505, %v1505
      %v1508 = vunpack.i.l.s16 %v1330
      %v1509 = vunpack.i.h.s16 %v1330
      %v1510 = vunpack.i.l.s16 %v1337
      %v1511 = vunpack.i.h.s16 %v1337
      %v1512 = vunpack.i.l.s16 %v1338
      %v1513 = vunpack.i.h.s16 %v1338
      %v1514 = vunpack.i.l.s16 %v1339
      %v1515 = vunpack.i.h.s16 %v1339
      %v1516 = vunpack.i.l.s16 %v1354
      %v1517 = vunpack.i.h.s16 %v1354
      %v1518 = vunpack.i.l.s16 %v1361
      %v1519 = vunpack.i.h.s16 %v1361
      %v1520 = vunpack.i.l.s16 %v1362
      %v1521 = vunpack.i.h.s16 %v1362
      %v1522 = vunpack.i.l.s16 %v1363
      %v1523 = vunpack.i.h.s16 %v1363
      %v1524 = vunpack.i.l.s16 %v1378
      %v1525 = vunpack.i.h.s16 %v1378
      %v1526 = vunpack.i.l.s16 %v1385
      %v1527 = vunpack.i.h.s16 %v1385
      %v1528 = vunpack.i.l.s16 %v1386
      %v1529 = vunpack.i.h.s16 %v1386
      %v1530 = vunpack.i.l.s16 %v1387
      %v1531 = vunpack.i.h.s16 %v1387
      %v1532 = vunpack.i.l.s16 %v1402
      %v1533 = vunpack.i.h.s16 %v1402
      %v1534 = vunpack.i.l.s16 %v1409
      %v1535 = vunpack.i.h.s16 %v1409
      %v1536 = vunpack.i.l.s16 %v1410
      %v1537 = vunpack.i.h.s16 %v1410
      %v1538 = vunpack.i.l.s16 %v1411
      %v1539 = vunpack.i.h.s16 %v1411
      %v1540 = vunpack.i.l.s16 %v1426
      %v1541 = vunpack.i.h.s16 %v1426
      %v1542 = vunpack.i.l.s16 %v1433
      %v1543 = vunpack.i.h.s16 %v1433
      %v1544 = vunpack.i.l.s16 %v1434
      %v1545 = vunpack.i.h.s16 %v1434
      %v1546 = vunpack.i.l.s16 %v1435
      %v1547 = vunpack.i.h.s16 %v1435
      %v1548 = vunpack.i.l.s16 %v1450
      %v1549 = vunpack.i.h.s16 %v1450
      %v1550 = vunpack.i.l.s16 %v1457
      %v1551 = vunpack.i.h.s16 %v1457
      %v1552 = vunpack.i.l.s16 %v1458
      %v1553 = vunpack.i.h.s16 %v1458
      %v1554 = vunpack.i.l.s16 %v1459
      %v1555 = vunpack.i.h.s16 %v1459
      %v1556 = vunpack.i.l.s16 %v1474
      %v1557 = vunpack.i.h.s16 %v1474
      %v1558 = vunpack.i.l.s16 %v1481
      %v1559 = vunpack.i.h.s16 %v1481
      %v1560 = vunpack.i.l.s16 %v1482
      %v1561 = vunpack.i.h.s16 %v1482
      %v1562 = vunpack.i.l.s16 %v1483
      %v1563 = vunpack.i.h.s16 %v1483
      %v1564 = vunpack.i.l.s16 %v1498
      %v1565 = vunpack.i.h.s16 %v1498
      %v1566 = vunpack.i.l.s16 %v1505
      %v1567 = vunpack.i.h.s16 %v1505
      %v1568 = vunpack.i.l.s16 %v1506
      %v1569 = vunpack.i.h.s16 %v1506
      %v1570 = vunpack.i.l.s16 %v1507
      %v1571 = vunpack.i.h.s16 %v1507
      %v1572 = vpack.i.b16 %v1244, %v1244
      %v1573 = vpack.i.b16 %v1245, %v1245
      %v1574 = vpack.i.b16 %v1246, %v1246
      %v1575 = vpack.i.b16 %v1247, %v1247
      %v1576 = vpack.i.b16 %v1248, %v1248
      %v1577 = vpack.i.b16 %v1249, %v1249
      %v1578 = vpack.i.b16 %v1250, %v1250
      %v1579 = vpack.i.b16 %v1251, %v1251
      %v1580 = vpack.i.b16 %v1252, %v1252
      %v1581 = vpack.i.b16 %v1253, %v1253
      %v1582 = vpack.i.b16 %v1254, %v1254
      %v1583 = vpack.i.b16 %v1255, %v1255
      %v1584 = vpack.i.b16 %v1256, %v1256
      %v1585 = vpack.i.b16 %v1257, %v1257
      %v1586 = vpack.i.b16 %v1258, %v1258
      %v1587 = vpack.i.b16 %v1259, %v1259
      %v1588 = vpack.i.b16 %v1260, %v1260
      %v1589 = vpack.i.b16 %v1261, %v1261
      %v1590 = vpack.i.b16 %v1262, %v1262
      %v1591 = vpack.i.b16 %v1263, %v1263
      %v1592 = vpack.i.b16 %v1264, %v1264
      %v1593 = vpack.i.b16 %v1265, %v1265
      %v1594 = vpack.i.b16 %v1266, %v1266
      %v1595 = vpack.i.b16 %v1267, %v1267
      %v1596 = vpack.i.b16 %v1268, %v1268
      %v1597 = vpack.i.b16 %v1269, %v1269
      %v1598 = vpack.i.b16 %v1270, %v1270
      %v1599 = vpack.i.b16 %v1271, %v1271
      %v1600 = vpack.i.b16 %v1272, %v1272
      %v1601 = vpack.i.b16 %v1273, %v1273
      %v1602 = vpack.i.b16 %v1274, %v1274
      %v1603 = vpack.i.b16 %v1275, %v1275
      %v1604 = vpack.i.b16 %v1276, %v1276
      %v1605 = vpack.i.b16 %v1277, %v1277
      %v1606 = vpack.i.b16 %v1278, %v1278
      %v1607 = vpack.i.b16 %v1279, %v1279
      %v1608 = vpack.i.b16 %v1280, %v1280
      %v1609 = vpack.i.b16 %v1281, %v1281
      %v1610 = vpack.i.b16 %v1282, %v1282
      %v1611 = vpack.i.b16 %v1283, %v1283
      %v1612 = vpack.i.b16 %v1284, %v1284
      %v1613 = vpack.i.b16 %v1285, %v1285
      %v1614 = vpack.i.b16 %v1286, %v1286
      %v1615 = vpack.i.b16 %v1287, %v1287
      %v1616 = vpack.i.b16 %v1288, %v1288
      %v1617 = vpack.i.b16 %v1289, %v1289
      %v1618 = vpack.i.b16 %v1290, %v1290
      %v1619 = vpack.i.b16 %v1291, %v1291
      %v1620 = vpack.i.b16 %v1292, %v1292
      %v1621 = vpack.i.b16 %v1293, %v1293
      %v1622 = vpack.i.b16 %v1294, %v1294
      %v1623 = vpack.i.b16 %v1295, %v1295
      %v1624 = vpack.i.b16 %v1296, %v1296
      %v1625 = vpack.i.b16 %v1297, %v1297
      %v1626 = vpack.i.b16 %v1298, %v1298
      %v1627 = vpack.i.b16 %v1299, %v1299
      %v1628 = vpack.i.b16 %v1300, %v1300
      %v1629 = vpack.i.b16 %v1301, %v1301
      %v1630 = vpack.i.b16 %v1302, %v1302
      %v1631 = vpack.i.b16 %v1303, %v1303
      %v1632 = vpack.i.b16 %v1304, %v1304
      %v1633 = vpack.i.b16 %v1305, %v1305
      %v1634 = vpack.i.b16 %v1306, %v1306
      %v1635 = vpack.i.b16 %v1307, %v1307
      %v1636 = vlaneseq
      %v1637 = vshrl.u32 %v1636, 7
      %v1638 = vsub.s32 0, %v1637
      %v1639 = vrot.slane %v1572, %v1638
      %v1640 = vlaneseq
      %v1641 = vshrl.u32 %v1640, 7
      %v1642 = vsub.s32 0, %v1641
      %v1643 = vrot.slane %v1573, %v1642
      %v1644 = vlaneseq
      %v1645 = vshrl.u32 %v1644, 7
      %v1646 = vsub.s32 0, %v1645
      %v1647 = vrot.slane %v1574, %v1646
      %v1648 = vlaneseq
      %v1649 = vshrl.u32 %v1648, 7
      %v1650 = vsub.s32 0, %v1649
      %v1651 = vrot.slane %v1575, %v1650
      %v1652 = vlaneseq
      %v1653 = vshrl.u32 %v1652, 7
      %v1654 = vsub.s32 0, %v1653
      %v1655 = vrot.slane %v1576, %v1654
      %v1656 = vlaneseq
      %v1657 = vshrl.u32 %v1656, 7
      %v1658 = vsub.s32 0, %v1657
      %v1659 = vrot.slane %v1577, %v1658
      %v1660 = vlaneseq
      %v1661 = vshrl.u32 %v1660, 7
      %v1662 = vsub.s32 0, %v1661
      %v1663 = vrot.slane %v1578, %v1662
      %v1664 = vlaneseq
      %v1665 = vshrl.u32 %v1664, 7
      %v1666 = vsub.s32 0, %v1665
      %v1667 = vrot.slane %v1579, %v1666
      %v1668 = vlaneseq
      %v1669 = vshrl.u32 %v1668, 7
      %v1670 = vsub.s32 0, %v1669
      %v1671 = vrot.slane %v1580, %v1670
      %v1672 = vlaneseq
      %v1673 = vshrl.u32 %v1672, 7
      %v1674 = vsub.s32 0, %v1673
      %v1675 = vrot.slane %v1581, %v1674
      %v1676 = vlaneseq
      %v1677 = vshrl.u32 %v1676, 7
      %v1678 = vsub.s32 0, %v1677
      %v1679 = vrot.slane %v1582, %v1678
      %v1680 = vlaneseq
      %v1681 = vshrl.u32 %v1680, 7
      %v1682 = vsub.s32 0, %v1681
      %v1683 = vrot.slane %v1583, %v1682
      %v1684 = vlaneseq
      %v1685 = vshrl.u32 %v1684, 7
      %v1686 = vsub.s32 0, %v1685
      %v1687 = vrot.slane %v1584, %v1686
      %v1688 = vlaneseq
      %v1689 = vshrl.u32 %v1688, 7
      %v1690 = vsub.s32 0, %v1689
      %v1691 = vrot.slane %v1585, %v1690
      %v1692 = vlaneseq
      %v1693 = vshrl.u32 %v1692, 7
      %v1694 = vsub.s32 0, %v1693
      %v1695 = vrot.slane %v1586, %v1694
      %v1696 = vlaneseq
      %v1697 = vshrl.u32 %v1696, 7
      %v1698 = vsub.s32 0, %v1697
      %v1699 = vrot.slane %v1587, %v1698
      %v1700 = vlaneseq
      %v1701 = vshrl.u32 %v1700, 7
      %v1702 = vsub.s32 0, %v1701
      %v1703 = vrot.slane %v1588, %v1702
      %v1704 = vlaneseq
      %v1705 = vshrl.u32 %v1704, 7
      %v1706 = vsub.s32 0, %v1705
      %v1707 = vrot.slane %v1589, %v1706
      %v1708 = vlaneseq
      %v1709 = vshrl.u32 %v1708, 7
      %v1710 = vsub.s32 0, %v1709
      %v1711 = vrot.slane %v1590, %v1710
      %v1712 = vlaneseq
      %v1713 = vshrl.u32 %v1712, 7
      %v1714 = vsub.s32 0, %v1713
      %v1715 = vrot.slane %v1591, %v1714
      %v1716 = vlaneseq
      %v1717 = vshrl.u32 %v1716, 7
      %v1718 = vsub.s32 0, %v1717
      %v1719 = vrot.slane %v1592, %v1718
      %v1720 = vlaneseq
      %v1721 = vshrl.u32 %v1720, 7
      %v1722 = vsub.s32 0, %v1721
      %v1723 = vrot.slane %v1593, %v1722
      %v1724 = vlaneseq
      %v1725 = vshrl.u32 %v1724, 7
      %v1726 = vsub.s32 0, %v1725
      %v1727 = vrot.slane %v1594, %v1726
      %v1728 = vlaneseq
      %v1729 = vshrl.u32 %v1728, 7
      %v1730 = vsub.s32 0, %v1729
      %v1731 = vrot.slane %v1595, %v1730
      %v1732 = vlaneseq
      %v1733 = vshrl.u32 %v1732, 7
      %v1734 = vsub.s32 0, %v1733
      %v1735 = vrot.slane %v1596, %v1734
      %v1736 = vlaneseq
      %v1737 = vshrl.u32 %v1736, 7
      %v1738 = vsub.s32 0, %v1737
      %v1739 = vrot.slane %v1597, %v1738
      %v1740 = vlaneseq
      %v1741 = vshrl.u32 %v1740, 7
      %v1742 = vsub.s32 0, %v1741
      %v1743 = vrot.slane %v1598, %v1742
      %v1744 = vlaneseq
      %v1745 = vshrl.u32 %v1744, 7
      %v1746 = vsub.s32 0, %v1745
      %v1747 = vrot.slane %v1599, %v1746
      %v1748 = vlaneseq
      %v1749 = vshrl.u32 %v1748, 7
      %v1750 = vsub.s32 0, %v1749
      %v1751 = vrot.slane %v1600, %v1750
      %v1752 = vlaneseq
      %v1753 = vshrl.u32 %v1752, 7
      %v1754 = vsub.s32 0, %v1753
      %v1755 = vrot.slane %v1601, %v1754
      %v1756 = vlaneseq
      %v1757 = vshrl.u32 %v1756, 7
      %v1758 = vsub.s32 0, %v1757
      %v1759 = vrot.slane %v1602, %v1758
      %v1760 = vlaneseq
      %v1761 = vshrl.u32 %v1760, 7
      %v1762 = vsub.s32 0, %v1761
      %v1763 = vrot.slane %v1603, %v1762
      %v1764 = vlaneseq
      %v1765 = vshrl.u32 %v1764, 7
      %v1766 = vsub.s32 0, %v1765
      %v1767 = vrot.slane %v1604, %v1766
      %v1768 = vlaneseq
      %v1769 = vshrl.u32 %v1768, 7
      %v1770 = vsub.s32 0, %v1769
      %v1771 = vrot.slane %v1605, %v1770
      %v1772 = vlaneseq
      %v1773 = vshrl.u32 %v1772, 7
      %v1774 = vsub.s32 0, %v1773
      %v1775 = vrot.slane %v1606, %v1774
      %v1776 = vlaneseq
      %v1777 = vshrl.u32 %v1776, 7
      %v1778 = vsub.s32 0, %v1777
      %v1779 = vrot.slane %v1607, %v1778
      %v1780 = vlaneseq
      %v1781 = vshrl.u32 %v1780, 7
      %v1782 = vsub.s32 0, %v1781
      %v1783 = vrot.slane %v1608, %v1782
      %v1784 = vlaneseq
      %v1785 = vshrl.u32 %v1784, 7
      %v1786 = vsub.s32 0, %v1785
      %v1787 = vrot.slane %v1609, %v1786
      %v1788 = vlaneseq
      %v1789 = vshrl.u32 %v1788, 7
      %v1790 = vsub.s32 0, %v1789
      %v1791 = vrot.slane %v1610, %v1790
      %v1792 = vlaneseq
      %v1793 = vshrl.u32 %v1792, 7
      %v1794 = vsub.s32 0, %v1793
      %v1795 = vrot.slane %v1611, %v1794
      %v1796 = vlaneseq
      %v1797 = vshrl.u32 %v1796, 7
      %v1798 = vsub.s32 0, %v1797
      %v1799 = vrot.slane %v1612, %v1798
      %v1800 = vlaneseq
      %v1801 = vshrl.u32 %v1800, 7
      %v1802 = vsub.s32 0, %v1801
      %v1803 = vrot.slane %v1613, %v1802
      %v1804 = vlaneseq
      %v1805 = vshrl.u32 %v1804, 7
      %v1806 = vsub.s32 0, %v1805
      %v1807 = vrot.slane %v1614, %v1806
      %v1808 = vlaneseq
      %v1809 = vshrl.u32 %v1808, 7
      %v1810 = vsub.s32 0, %v1809
      %v1811 = vrot.slane %v1615, %v1810
      %v1812 = vlaneseq
      %v1813 = vshrl.u32 %v1812, 7
      %v1814 = vsub.s32 0, %v1813
      %v1815 = vrot.slane %v1616, %v1814
      %v1816 = vlaneseq
      %v1817 = vshrl.u32 %v1816, 7
      %v1818 = vsub.s32 0, %v1817
      %v1819 = vrot.slane %v1617, %v1818
      %v1820 = vlaneseq
      %v1821 = vshrl.u32 %v1820, 7
      %v1822 = vsub.s32 0, %v1821
      %v1823 = vrot.slane %v1618, %v1822
      %v1824 = vlaneseq
      %v1825 = vshrl.u32 %v1824, 7
      %v1826 = vsub.s32 0, %v1825
      %v1827 = vrot.slane %v1619, %v1826
      %v1828 = vlaneseq
      %v1829 = vshrl.u32 %v1828, 7
      %v1830 = vsub.s32 0, %v1829
      %v1831 = vrot.slane %v1620, %v1830
      %v1832 = vlaneseq
      %v1833 = vshrl.u32 %v1832, 7
      %v1834 = vsub.s32 0, %v1833
      %v1835 = vrot.slane %v1621, %v1834
      %v1836 = vlaneseq
      %v1837 = vshrl.u32 %v1836, 7
      %v1838 = vsub.s32 0, %v1837
      %v1839 = vrot.slane %v1622, %v1838
      %v1840 = vlaneseq
      %v1841 = vshrl.u32 %v1840, 7
      %v1842 = vsub.s32 0, %v1841
      %v1843 = vrot.slane %v1623, %v1842
      %v1844 = vlaneseq
      %v1845 = vshrl.u32 %v1844, 7
      %v1846 = vsub.s32 0, %v1845
      %v1847 = vrot.slane %v1624, %v1846
      %v1848 = vlaneseq
      %v1849 = vshrl.u32 %v1848, 7
      %v1850 = vsub.s32 0, %v1849
      %v1851 = vrot.slane %v1625, %v1850
      %v1852 = vlaneseq
      %v1853 = vshrl.u32 %v1852, 7
      %v1854 = vsub.s32 0, %v1853
      %v1855 = vrot.slane %v1626, %v1854
      %v1856 = vlaneseq
      %v1857 = vshrl.u32 %v1856, 7
      %v1858 = vsub.s32 0, %v1857
      %v1859 = vrot.slane %v1627, %v1858
      %v1860 = vlaneseq
      %v1861 = vshrl.u32 %v1860, 7
      %v1862 = vsub.s32 0, %v1861
      %v1863 = vrot.slane %v1628, %v1862
      %v1864 = vlaneseq
      %v1865 = vshrl.u32 %v1864, 7
      %v1866 = vsub.s32 0, %v1865
      %v1867 = vrot.slane %v1629, %v1866
      %v1868 = vlaneseq
      %v1869 = vshrl.u32 %v1868, 7
      %v1870 = vsub.s32 0, %v1869
      %v1871 = vrot.slane %v1630, %v1870
      %v1872 = vlaneseq
      %v1873 = vshrl.u32 %v1872, 7
      %v1874 = vsub.s32 0, %v1873
      %v1875 = vrot.slane %v1631, %v1874
      %v1876 = vlaneseq
      %v1877 = vshrl.u32 %v1876, 7
      %v1878 = vsub.s32 0, %v1877
      %v1879 = vrot.slane %v1632, %v1878
      %v1880 = vlaneseq
      %v1881 = vshrl.u32 %v1880, 7
      %v1882 = vsub.s32 0, %v1881
      %v1883 = vrot.slane %v1633, %v1882
      %v1884 = vlaneseq
      %v1885 = vshrl.u32 %v1884, 7
      %v1886 = vsub.s32 0, %v1885
      %v1887 = vrot.slane %v1634, %v1886
      %v1888 = vlaneseq
      %v1889 = vshrl.u32 %v1888, 7
      %v1890 = vsub.s32 0, %v1889
      %v1891 = vrot.slane %v1635, %v1890
      %v1956 = vpack.i.b16 %v1508, %v1508
      %v1957 = vpack.i.b16 %v1509, %v1509
      %v1958 = vpack.i.b16 %v1510, %v1510
      %v1959 = vpack.i.b16 %v1511, %v1511
      %v1960 = vpack.i.b16 %v1512, %v1512
      %v1961 = vpack.i.b16 %v1513, %v1513
      %v1962 = vpack.i.b16 %v1514, %v1514
      %v1963 = vpack.i.b16 %v1515, %v1515
      %v1964 = vpack.i.b16 %v1516, %v1516
      %v1965 = vpack.i.b16 %v1517, %v1517
      %v1966 = vpack.i.b16 %v1518, %v1518
      %v1967 = vpack.i.b16 %v1519, %v1519
      %v1968 = vpack.i.b16 %v1520, %v1520
      %v1969 = vpack.i.b16 %v1521, %v1521
      %v1970 = vpack.i.b16 %v1522, %v1522
      %v1971 = vpack.i.b16 %v1523, %v1523
      %v1972 = vpack.i.b16 %v1524, %v1524
      %v1973 = vpack.i.b16 %v1525, %v1525
      %v1974 = vpack.i.b16 %v1526, %v1526
      %v1975 = vpack.i.b16 %v1527, %v1527
      %v1976 = vpack.i.b16 %v1528, %v1528
      %v1977 = vpack.i.b16 %v1529, %v1529
      %v1978 = vpack.i.b16 %v1530, %v1530
      %v1979 = vpack.i.b16 %v1531, %v1531
      %v1980 = vpack.i.b16 %v1532, %v1532
      %v1981 = vpack.i.b16 %v1533, %v1533
      %v1982 = vpack.i.b16 %v1534, %v1534
      %v1983 = vpack.i.b16 %v1535, %v1535
      %v1984 = vpack.i.b16 %v1536, %v1536
      %v1985 = vpack.i.b16 %v1537, %v1537
      %v1986 = vpack.i.b16 %v1538, %v1538
      %v1987 = vpack.i.b16 %v1539, %v1539
      %v1988 = vpack.i.b16 %v1540, %v1540
      %v1989 = vpack.i.b16 %v1541, %v1541
      %v1990 = vpack.i.b16 %v1542, %v1542
      %v1991 = vpack.i.b16 %v1543, %v1543
      %v1992 = vpack.i.b16 %v1544, %v1544
      %v1993 = vpack.i.b16 %v1545, %v1545
      %v1994 = vpack.i.b16 %v1546, %v1546
      %v1995 = vpack.i.b16 %v1547, %v1547
      %v1996 = vpack.i.b16 %v1548, %v1548
      %v1997 = vpack.i.b16 %v1549, %v1549
      %v1998 = vpack.i.b16 %v1550, %v1550
      %v1999 = vpack.i.b16 %v1551, %v1551
      %v2000 = vpack.i.b16 %v1552, %v1552
      %v2001 = vpack.i.b16 %v1553, %v1553
      %v2002 = vpack.i.b16 %v1554, %v1554
      %v2003 = vpack.i.b16 %v1555, %v1555
      %v2004 = vpack.i.b16 %v1556, %v1556
      %v2005 = vpack.i.b16 %v1557, %v1557
      %v2006 = vpack.i.b16 %v1558, %v1558
      %v2007 = vpack.i.b16 %v1559, %v1559
      %v2008 = vpack.i.b16 %v1560, %v1560
      %v2009 = vpack.i.b16 %v1561, %v1561
      %v2010 = vpack.i.b16 %v1562, %v1562
      %v2011 = vpack.i.b16 %v1563, %v1563
      %v2012 = vpack.i.b16 %v1564, %v1564
      %v2013 = vpack.i.b16 %v1565, %v1565
      %v2014 = vpack.i.b16 %v1566, %v1566
      %v2015 = vpack.i.b16 %v1567, %v1567
      %v2016 = vpack.i.b16 %v1568, %v1568
      %v2017 = vpack.i.b16 %v1569, %v1569
      %v2018 = vpack.i.b16 %v1570, %v1570
      %v2019 = vpack.i.b16 %v1571, %v1571
      %v2020 = vlaneseq
      %v2021 = vshrl.u32 %v2020, 7
      %v2022 = vsub.s32 0, %v2021
      %v2023 = vrot.slane %v1956, %v2022
      %v2024 = vlaneseq
      %v2025 = vshrl.u32 %v2024, 7
      %v2026 = vsub.s32 0, %v2025
      %v2027 = vrot.slane %v1957, %v2026
      %v2028 = vlaneseq
      %v2029 = vshrl.u32 %v2028, 7
      %v2030 = vsub.s32 0, %v2029
      %v2031 = vrot.slane %v1958, %v2030
      %v2032 = vlaneseq
      %v2033 = vshrl.u32 %v2032, 7
      %v2034 = vsub.s32 0, %v2033
      %v2035 = vrot.slane %v1959, %v2034
      %v2036 = vlaneseq
      %v2037 = vshrl.u32 %v2036, 7
      %v2038 = vsub.s32 0, %v2037
      %v2039 = vrot.slane %v1960, %v2038
      %v2040 = vlaneseq
      %v2041 = vshrl.u32 %v2040, 7
      %v2042 = vsub.s32 0, %v2041
      %v2043 = vrot.slane %v1961, %v2042
      %v2044 = vlaneseq
      %v2045 = vshrl.u32 %v2044, 7
      %v2046 = vsub.s32 0, %v2045
      %v2047 = vrot.slane %v1962, %v2046
      %v2048 = vlaneseq
      %v2049 = vshrl.u32 %v2048, 7
      %v2050 = vsub.s32 0, %v2049
      %v2051 = vrot.slane %v1963, %v2050
      %v2052 = vlaneseq
      %v2053 = vshrl.u32 %v2052, 7
      %v2054 = vsub.s32 0, %v2053
      %v2055 = vrot.slane %v1964, %v2054
      %v2056 = vlaneseq
      %v2057 = vshrl.u32 %v2056, 7
      %v2058 = vsub.s32 0, %v2057
      %v2059 = vrot.slane %v1965, %v2058
      %v2060 = vlaneseq
      %v2061 = vshrl.u32 %v2060, 7
      %v2062 = vsub.s32 0, %v2061
      %v2063 = vrot.slane %v1966, %v2062
      %v2064 = vlaneseq
      %v2065 = vshrl.u32 %v2064, 7
      %v2066 = vsub.s32 0, %v2065
      %v2067 = vrot.slane %v1967, %v2066
      %v2068 = vlaneseq
      %v2069 = vshrl.u32 %v2068, 7
      %v2070 = vsub.s32 0, %v2069
      %v2071 = vrot.slane %v1968, %v2070
      %v2072 = vlaneseq
      %v2073 = vshrl.u32 %v2072, 7
      %v2074 = vsub.s32 0, %v2073
      %v2075 = vrot.slane %v1969, %v2074
      %v2076 = vlaneseq
      %v2077 = vshrl.u32 %v2076, 7
      %v2078 = vsub.s32 0, %v2077
      %v2079 = vrot.slane %v1970, %v2078
      %v2080 = vlaneseq
      %v2081 = vshrl.u32 %v2080, 7
      %v2082 = vsub.s32 0, %v2081
      %v2083 = vrot.slane %v1971, %v2082
      %v2084 = vlaneseq
      %v2085 = vshrl.u32 %v2084, 7
      %v2086 = vsub.s32 0, %v2085
      %v2087 = vrot.slane %v1972, %v2086
      %v2088 = vlaneseq
      %v2089 = vshrl.u32 %v2088, 7
      %v2090 = vsub.s32 0, %v2089
      %v2091 = vrot.slane %v1973, %v2090
      %v2092 = vlaneseq
      %v2093 = vshrl.u32 %v2092, 7
      %v2094 = vsub.s32 0, %v2093
      %v2095 = vrot.slane %v1974, %v2094
      %v2096 = vlaneseq
      %v2097 = vshrl.u32 %v2096, 7
      %v2098 = vsub.s32 0, %v2097
      %v2099 = vrot.slane %v1975, %v2098
      %v2100 = vlaneseq
      %v2101 = vshrl.u32 %v2100, 7
      %v2102 = vsub.s32 0, %v2101
      %v2103 = vrot.slane %v1976, %v2102
      %v2104 = vlaneseq
      %v2105 = vshrl.u32 %v2104, 7
      %v2106 = vsub.s32 0, %v2105
      %v2107 = vrot.slane %v1977, %v2106
      %v2108 = vlaneseq
      %v2109 = vshrl.u32 %v2108, 7
      %v2110 = vsub.s32 0, %v2109
      %v2111 = vrot.slane %v1978, %v2110
      %v2112 = vlaneseq
      %v2113 = vshrl.u32 %v2112, 7
      %v2114 = vsub.s32 0, %v2113
      %v2115 = vrot.slane %v1979, %v2114
      %v2116 = vlaneseq
      %v2117 = vshrl.u32 %v2116, 7
      %v2118 = vsub.s32 0, %v2117
      %v2119 = vrot.slane %v1980, %v2118
      %v2120 = vlaneseq
      %v2121 = vshrl.u32 %v2120, 7
      %v2122 = vsub.s32 0, %v2121
      %v2123 = vrot.slane %v1981, %v2122
      %v2124 = vlaneseq
      %v2125 = vshrl.u32 %v2124, 7
      %v2126 = vsub.s32 0, %v2125
      %v2127 = vrot.slane %v1982, %v2126
      %v2128 = vlaneseq
      %v2129 = vshrl.u32 %v2128, 7
      %v2130 = vsub.s32 0, %v2129
      %v2131 = vrot.slane %v1983, %v2130
      %v2132 = vlaneseq
      %v2133 = vshrl.u32 %v2132, 7
      %v2134 = vsub.s32 0, %v2133
      %v2135 = vrot.slane %v1984, %v2134
      %v2136 = vlaneseq
      %v2137 = vshrl.u32 %v2136, 7
      %v2138 = vsub.s32 0, %v2137
      %v2139 = vrot.slane %v1985, %v2138
      %v2140 = vlaneseq
      %v2141 = vshrl.u32 %v2140, 7
      %v2142 = vsub.s32 0, %v2141
      %v2143 = vrot.slane %v1986, %v2142
      %v2144 = vlaneseq
      %v2145 = vshrl.u32 %v2144, 7
      %v2146 = vsub.s32 0, %v2145
      %v2147 = vrot.slane %v1987, %v2146
      %v2148 = vlaneseq
      %v2149 = vshrl.u32 %v2148, 7
      %v2150 = vsub.s32 0, %v2149
      %v2151 = vrot.slane %v1988, %v2150
      %v2152 = vlaneseq
      %v2153 = vshrl.u32 %v2152, 7
      %v2154 = vsub.s32 0, %v2153
      %v2155 = vrot.slane %v1989, %v2154
      %v2156 = vlaneseq
      %v2157 = vshrl.u32 %v2156, 7
      %v2158 = vsub.s32 0, %v2157
      %v2159 = vrot.slane %v1990, %v2158
      %v2160 = vlaneseq
      %v2161 = vshrl.u32 %v2160, 7
      %v2162 = vsub.s32 0, %v2161
      %v2163 = vrot.slane %v1991, %v2162
      %v2164 = vlaneseq
      %v2165 = vshrl.u32 %v2164, 7
      %v2166 = vsub.s32 0, %v2165
      %v2167 = vrot.slane %v1992, %v2166
      %v2168 = vlaneseq
      %v2169 = vshrl.u32 %v2168, 7
      %v2170 = vsub.s32 0, %v2169
      %v2171 = vrot.slane %v1993, %v2170
      %v2172 = vlaneseq
      %v2173 = vshrl.u32 %v2172, 7
      %v2174 = vsub.s32 0, %v2173
      %v2175 = vrot.slane %v1994, %v2174
      %v2176 = vlaneseq
      %v2177 = vshrl.u32 %v2176, 7
      %v2178 = vsub.s32 0, %v2177
      %v2179 = vrot.slane %v1995, %v2178
      %v2180 = vlaneseq
      %v2181 = vshrl.u32 %v2180, 7
      %v2182 = vsub.s32 0, %v2181
      %v2183 = vrot.slane %v1996, %v2182
      %v2184 = vlaneseq
      %v2185 = vshrl.u32 %v2184, 7
      %v2186 = vsub.s32 0, %v2185
      %v2187 = vrot.slane %v1997, %v2186
      %v2188 = vlaneseq
      %v2189 = vshrl.u32 %v2188, 7
      %v2190 = vsub.s32 0, %v2189
      %v2191 = vrot.slane %v1998, %v2190
      %v2192 = vlaneseq
      %v2193 = vshrl.u32 %v2192, 7
      %v2194 = vsub.s32 0, %v2193
      %v2195 = vrot.slane %v1999, %v2194
      %v2196 = vlaneseq
      %v2197 = vshrl.u32 %v2196, 7
      %v2198 = vsub.s32 0, %v2197
      %v2199 = vrot.slane %v2000, %v2198
      %v2200 = vlaneseq
      %v2201 = vshrl.u32 %v2200, 7
      %v2202 = vsub.s32 0, %v2201
      %v2203 = vrot.slane %v2001, %v2202
      %v2204 = vlaneseq
      %v2205 = vshrl.u32 %v2204, 7
      %v2206 = vsub.s32 0, %v2205
      %v2207 = vrot.slane %v2002, %v2206
      %v2208 = vlaneseq
      %v2209 = vshrl.u32 %v2208, 7
      %v2210 = vsub.s32 0, %v2209
      %v2211 = vrot.slane %v2003, %v2210
      %v2212 = vlaneseq
      %v2213 = vshrl.u32 %v2212, 7
      %v2214 = vsub.s32 0, %v2213
      %v2215 = vrot.slane %v2004, %v2214
      %v2216 = vlaneseq
      %v2217 = vshrl.u32 %v2216, 7
      %v2218 = vsub.s32 0, %v2217
      %v2219 = vrot.slane %v2005, %v2218
      %v2220 = vlaneseq
      %v2221 = vshrl.u32 %v2220, 7
      %v2222 = vsub.s32 0, %v2221
      %v2223 = vrot.slane %v2006, %v2222
      %v2224 = vlaneseq
      %v2225 = vshrl.u32 %v2224, 7
      %v2226 = vsub.s32 0, %v2225
      %v2227 = vrot.slane %v2007, %v2226
      %v2228 = vlaneseq
      %v2229 = vshrl.u32 %v2228, 7
      %v2230 = vsub.s32 0, %v2229
      %v2231 = vrot.slane %v2008, %v2230
      %v2232 = vlaneseq
      %v2233 = vshrl.u32 %v2232, 7
      %v2234 = vsub.s32 0, %v2233
      %v2235 = vrot.slane %v2009, %v2234
      %v2236 = vlaneseq
      %v2237 = vshrl.u32 %v2236, 7
      %v2238 = vsub.s32 0, %v2237
      %v2239 = vrot.slane %v2010, %v2238
      %v2240 = vlaneseq
      %v2241 = vshrl.u32 %v2240, 7
      %v2242 = vsub.s32 0, %v2241
      %v2243 = vrot.slane %v2011, %v2242
      %v2244 = vlaneseq
      %v2245 = vshrl.u32 %v2244, 7
      %v2246 = vsub.s32 0, %v2245
      %v2247 = vrot.slane %v2012, %v2246
      %v2248 = vlaneseq
      %v2249 = vshrl.u32 %v2248, 7
      %v2250 = vsub.s32 0, %v2249
      %v2251 = vrot.slane %v2013, %v2250
      %v2252 = vlaneseq
      %v2253 = vshrl.u32 %v2252, 7
      %v2254 = vsub.s32 0, %v2253
      %v2255 = vrot.slane %v2014, %v2254
      %v2256 = vlaneseq
      %v2257 = vshrl.u32 %v2256, 7
      %v2258 = vsub.s32 0, %v2257
      %v2259 = vrot.slane %v2015, %v2258
      %v2260 = vlaneseq
      %v2261 = vshrl.u32 %v2260, 7
      %v2262 = vsub.s32 0, %v2261
      %v2263 = vrot.slane %v2016, %v2262
      %v2264 = vlaneseq
      %v2265 = vshrl.u32 %v2264, 7
      %v2266 = vsub.s32 0, %v2265
      %v2267 = vrot.slane %v2017, %v2266
      %v2268 = vlaneseq
      %v2269 = vshrl.u32 %v2268, 7
      %v2270 = vsub.s32 0, %v2269
      %v2271 = vrot.slane %v2018, %v2270
      %v2272 = vlaneseq
      %v2273 = vshrl.u32 %v2272, 7
      %v2274 = vsub.s32 0, %v2273
      %v2275 = vrot.slane %v2019, %v2274
      %vm2340 = vcmask 1040384
      %vm2341 = vmand %vm2340, %vm337
      %v2342 = vsel %vm2341, %v1639, %v2023
      %v2343 = vsel %vm2341, %v1643, %v2027
      %v2344 = vsel %vm2341, %v1647, %v2031
      %v2345 = vsel %vm2341, %v1651, %v2035
      %v2346 = vsel %vm2341, %v1655, %v2039
      %v2347 = vsel %vm2341, %v1659, %v2043
      %v2348 = vsel %vm2341, %v1663, %v2047
      %v2349 = vsel %vm2341, %v1667, %v2051
      %v2350 = vsel %vm2341, %v1671, %v2055
      %v2351 = vsel %vm2341, %v1675, %v2059
      %v2352 = vsel %vm2341, %v1679, %v2063
      %v2353 = vsel %vm2341, %v1683, %v2067
      %v2354 = vsel %vm2341, %v1687, %v2071
      %v2355 = vsel %vm2341, %v1691, %v2075
      %v2356 = vsel %vm2341, %v1695, %v2079
      %v2357 = vsel %vm2341, %v1699, %v2083
      %v2358 = vsel %vm2341, %v1703, %v2087
      %v2359 = vsel %vm2341, %v1707, %v2091
      %v2360 = vsel %vm2341, %v1711, %v2095
      %v2361 = vsel %vm2341, %v1715, %v2099
      %v2362 = vsel %vm2341, %v1719, %v2103
      %v2363 = vsel %vm2341, %v1723, %v2107
      %v2364 = vsel %vm2341, %v1727, %v2111
      %v2365 = vsel %vm2341, %v1731, %v2115
      %v2366 = vsel %vm2341, %v1735, %v2119
      %v2367 = vsel %vm2341, %v1739, %v2123
      %v2368 = vsel %vm2341, %v1743, %v2127
      %v2369 = vsel %vm2341, %v1747, %v2131
      %v2370 = vsel %vm2341, %v1751, %v2135
      %v2371 = vsel %vm2341, %v1755, %v2139
      %v2372 = vsel %vm2341, %v1759, %v2143
      %v2373 = vsel %vm2341, %v1763, %v2147
      %v2374 = vsel %vm2341, %v1767, %v2151
      %v2375 = vsel %vm2341, %v1771, %v2155
      %v2376 = vsel %vm2341, %v1775, %v2159
      %v2377 = vsel %vm2341, %v1779, %v2163
      %v2378 = vsel %vm2341, %v1783, %v2167
      %v2379 = vsel %vm2341, %v1787, %v2171
      %v2380 = vsel %vm2341, %v1791, %v2175
      %v2381 = vsel %vm2341, %v1795, %v2179
      %v2382 = vsel %vm2341, %v1799, %v2183
      %v2383 = vsel %vm2341, %v1803, %v2187
      %v2384 = vsel %vm2341, %v1807, %v2191
      %v2385 = vsel %vm2341, %v1811, %v2195
      %v2386 = vsel %vm2341, %v1815, %v2199
      %v2387 = vsel %vm2341, %v1819, %v2203
      %v2388 = vsel %vm2341, %v1823, %v2207
      %v2389 = vsel %vm2341, %v1827, %v2211
      %v2390 = vsel %vm2341, %v1831, %v2215
      %v2391 = vsel %vm2341, %v1835, %v2219
      %v2392 = vsel %vm2341, %v1839, %v2223
      %v2393 = vsel %vm2341, %v1843, %v2227
      %v2394 = vsel %vm2341, %v1847, %v2231
      %v2395 = vsel %vm2341, %v1851, %v2235
      %v2396 = vsel %vm2341, %v1855, %v2239
      %v2397 = vsel %vm2341, %v1859, %v2243
      %v2398 = vsel %vm2341, %v1863, %v2247
      %v2399 = vsel %vm2341, %v1867, %v2251
      %v2400 = vsel %vm2341, %v1871, %v2255
      %v2401 = vsel %vm2341, %v1875, %v2259
      %v2402 = vsel %vm2341, %v1879, %v2263
      %v2403 = vsel %vm2341, %v1883, %v2267
      %v2404 = vsel %vm2341, %v1887, %v2271
      %v2405 = vsel %vm2341, %v1891, %v2275
      %v2415 = vunpack.c.l.s4 1966171168
      %v2416 = vunpack.c.0.s8 %v2415
      %v2417 = vlaneseq
      %v2418 = vshrl.u32 %v2417, 7
      %v2419 = vsub.s32 %v2416, %v2418
      %v2420 = vrot.slane %v958, %v2419
      %v2421 = vcombine.high %v2420, %v2420
      %v2423 = vunpack.c.l.s4 1966171168
      %v2424 = vunpack.c.0.s8 %v2423
      %v2425 = vlaneseq
      %v2426 = vshrl.u32 %v2425, 7
      %v2427 = vsub.s32 %v2424, %v2426
      %v2428 = vrot.slane %v2420, %v2427
      %v2430 = vunpack.c.l.s4 1966171168
      %v2431 = vunpack.c.0.s8 %v2430
      %v2432 = vlaneseq
      %v2433 = vshrl.u32 %v2432, 7
      %v2434 = vsub.s32 %v2431, %v2433
      %v2435 = vrot.slane %v2421, %v2434
      %v2436 = vcombine.high %v2428, %v2428
      %v2437 = vcombine.high %v2435, %v2435
      %v2439 = vunpack.c.l.s4 1966171168
      %v2440 = vunpack.c.0.s8 %v2439
      %v2441 = vlaneseq
      %v2442 = vshrl.u32 %v2441, 7
      %v2443 = vsub.s32 %v2440, %v2442
      %v2444 = vrot.slane %v959, %v2443
      %v2445 = vcombine.high %v2444, %v2444
      %v2447 = vunpack.c.l.s4 1966171168
      %v2448 = vunpack.c.0.s8 %v2447
      %v2449 = vlaneseq
      %v2450 = vshrl.u32 %v2449, 7
      %v2451 = vsub.s32 %v2448, %v2450
      %v2452 = vrot.slane %v2444, %v2451
      %v2454 = vunpack.c.l.s4 1966171168
      %v2455 = vunpack.c.0.s8 %v2454
      %v2456 = vlaneseq
      %v2457 = vshrl.u32 %v2456, 7
      %v2458 = vsub.s32 %v2455, %v2457
      %v2459 = vrot.slane %v2445, %v2458
      %v2460 = vcombine.high %v2452, %v2452
      %v2461 = vcombine.high %v2459, %v2459
      %v2463 = vunpack.c.l.s4 1966171168
      %v2464 = vunpack.c.0.s8 %v2463
      %v2465 = vlaneseq
      %v2466 = vshrl.u32 %v2465, 7
      %v2467 = vsub.s32 %v2464, %v2466
      %v2468 = vrot.slane %v960, %v2467
      %v2469 = vcombine.high %v2468, %v2468
      %v2471 = vunpack.c.l.s4 1966171168
      %v2472 = vunpack.c.0.s8 %v2471
      %v2473 = vlaneseq
      %v2474 = vshrl.u32 %v2473, 7
      %v2475 = vsub.s32 %v2472, %v2474
      %v2476 = vrot.slane %v2468, %v2475
      %v2478 = vunpack.c.l.s4 1966171168
      %v2479 = vunpack.c.0.s8 %v2478
      %v2480 = vlaneseq
      %v2481 = vshrl.u32 %v2480, 7
      %v2482 = vsub.s32 %v2479, %v2481
      %v2483 = vrot.slane %v2469, %v2482
      %v2484 = vcombine.high %v2476, %v2476
      %v2485 = vcombine.high %v2483, %v2483
      %v2487 = vunpack.c.l.s4 1966171168
      %v2488 = vunpack.c.0.s8 %v2487
      %v2489 = vlaneseq
      %v2490 = vshrl.u32 %v2489, 7
      %v2491 = vsub.s32 %v2488, %v2490
      %v2492 = vrot.slane %v961, %v2491
      %v2493 = vcombine.high %v2492, %v2492
      %v2495 = vunpack.c.l.s4 1966171168
      %v2496 = vunpack.c.0.s8 %v2495
      %v2497 = vlaneseq
      %v2498 = vshrl.u32 %v2497, 7
      %v2499 = vsub.s32 %v2496, %v2498
      %v2500 = vrot.slane %v2492, %v2499
      %v2502 = vunpack.c.l.s4 1966171168
      %v2503 = vunpack.c.0.s8 %v2502
      %v2504 = vlaneseq
      %v2505 = vshrl.u32 %v2504, 7
      %v2506 = vsub.s32 %v2503, %v2505
      %v2507 = vrot.slane %v2493, %v2506
      %v2508 = vcombine.high %v2500, %v2500
      %v2509 = vcombine.high %v2507, %v2507
      %v2511 = vunpack.c.l.s4 1966171168
      %v2512 = vunpack.c.0.s8 %v2511
      %v2513 = vlaneseq
      %v2514 = vshrl.u32 %v2513, 7
      %v2515 = vsub.s32 %v2512, %v2514
      %v2516 = vrot.slane %v962, %v2515
      %v2517 = vcombine.high %v2516, %v2516
      %v2519 = vunpack.c.l.s4 1966171168
      %v2520 = vunpack.c.0.s8 %v2519
      %v2521 = vlaneseq
      %v2522 = vshrl.u32 %v2521, 7
      %v2523 = vsub.s32 %v2520, %v2522
      %v2524 = vrot.slane %v2516, %v2523
      %v2526 = vunpack.c.l.s4 1966171168
      %v2527 = vunpack.c.0.s8 %v2526
      %v2528 = vlaneseq
      %v2529 = vshrl.u32 %v2528, 7
      %v2530 = vsub.s32 %v2527, %v2529
      %v2531 = vrot.slane %v2517, %v2530
      %v2532 = vcombine.high %v2524, %v2524
      %v2533 = vcombine.high %v2531, %v2531
      %v2535 = vunpack.c.l.s4 1966171168
      %v2536 = vunpack.c.0.s8 %v2535
      %v2537 = vlaneseq
      %v2538 = vshrl.u32 %v2537, 7
      %v2539 = vsub.s32 %v2536, %v2538
      %v2540 = vrot.slane %v963, %v2539
      %v2541 = vcombine.high %v2540, %v2540
      %v2543 = vunpack.c.l.s4 1966171168
      %v2544 = vunpack.c.0.s8 %v2543
      %v2545 = vlaneseq
      %v2546 = vshrl.u32 %v2545, 7
      %v2547 = vsub.s32 %v2544, %v2546
      %v2548 = vrot.slane %v2540, %v2547
      %v2550 = vunpack.c.l.s4 1966171168
      %v2551 = vunpack.c.0.s8 %v2550
      %v2552 = vlaneseq
      %v2553 = vshrl.u32 %v2552, 7
      %v2554 = vsub.s32 %v2551, %v2553
      %v2555 = vrot.slane %v2541, %v2554
      %v2556 = vcombine.high %v2548, %v2548
      %v2557 = vcombine.high %v2555, %v2555
      %v2559 = vunpack.c.l.s4 1966171168
      %v2560 = vunpack.c.0.s8 %v2559
      %v2561 = vlaneseq
      %v2562 = vshrl.u32 %v2561, 7
      %v2563 = vsub.s32 %v2560, %v2562
      %v2564 = vrot.slane %v964, %v2563
      %v2565 = vcombine.high %v2564, %v2564
      %v2567 = vunpack.c.l.s4 1966171168
      %v2568 = vunpack.c.0.s8 %v2567
      %v2569 = vlaneseq
      %v2570 = vshrl.u32 %v2569, 7
      %v2571 = vsub.s32 %v2568, %v2570
      %v2572 = vrot.slane %v2564, %v2571
      %v2574 = vunpack.c.l.s4 1966171168
      %v2575 = vunpack.c.0.s8 %v2574
      %v2576 = vlaneseq
      %v2577 = vshrl.u32 %v2576, 7
      %v2578 = vsub.s32 %v2575, %v2577
      %v2579 = vrot.slane %v2565, %v2578
      %v2580 = vcombine.high %v2572, %v2572
      %v2581 = vcombine.high %v2579, %v2579
      %v2583 = vunpack.c.l.s4 1966171168
      %v2584 = vunpack.c.0.s8 %v2583
      %v2585 = vlaneseq
      %v2586 = vshrl.u32 %v2585, 7
      %v2587 = vsub.s32 %v2584, %v2586
      %v2588 = vrot.slane %v965, %v2587
      %v2589 = vcombine.high %v2588, %v2588
      %v2591 = vunpack.c.l.s4 1966171168
      %v2592 = vunpack.c.0.s8 %v2591
      %v2593 = vlaneseq
      %v2594 = vshrl.u32 %v2593, 7
      %v2595 = vsub.s32 %v2592, %v2594
      %v2596 = vrot.slane %v2588, %v2595
      %v2598 = vunpack.c.l.s4 1966171168
      %v2599 = vunpack.c.0.s8 %v2598
      %v2600 = vlaneseq
      %v2601 = vshrl.u32 %v2600, 7
      %v2602 = vsub.s32 %v2599, %v2601
      %v2603 = vrot.slane %v2589, %v2602
      %v2604 = vcombine.high %v2596, %v2596
      %v2605 = vcombine.high %v2603, %v2603
      %v2606 = vunpack.i.l.s16 %v2428
      %v2607 = vunpack.i.h.s16 %v2428
      %v2608 = vunpack.i.l.s16 %v2435
      %v2609 = vunpack.i.h.s16 %v2435
      %v2610 = vunpack.i.l.s16 %v2436
      %v2611 = vunpack.i.h.s16 %v2436
      %v2612 = vunpack.i.l.s16 %v2437
      %v2613 = vunpack.i.h.s16 %v2437
      %v2614 = vunpack.i.l.s16 %v2452
      %v2615 = vunpack.i.h.s16 %v2452
      %v2616 = vunpack.i.l.s16 %v2459
      %v2617 = vunpack.i.h.s16 %v2459
      %v2618 = vunpack.i.l.s16 %v2460
      %v2619 = vunpack.i.h.s16 %v2460
      %v2620 = vunpack.i.l.s16 %v2461
      %v2621 = vunpack.i.h.s16 %v2461
      %v2622 = vunpack.i.l.s16 %v2476
      %v2623 = vunpack.i.h.s16 %v2476
      %v2624 = vunpack.i.l.s16 %v2483
      %v2625 = vunpack.i.h.s16 %v2483
      %v2626 = vunpack.i.l.s16 %v2484
      %v2627 = vunpack.i.h.s16 %v2484
      %v2628 = vunpack.i.l.s16 %v2485
      %v2629 = vunpack.i.h.s16 %v2485
      %v2630 = vunpack.i.l.s16 %v2500
      %v2631 = vunpack.i.h.s16 %v2500
      %v2632 = vunpack.i.l.s16 %v2507
      %v2633 = vunpack.i.h.s16 %v2507
      %v2634 = vunpack.i.l.s16 %v2508
      %v2635 = vunpack.i.h.s16 %v2508
      %v2636 = vunpack.i.l.s16 %v2509
      %v2637 = vunpack.i.h.s16 %v2509
      %v2638 = vunpack.i.l.s16 %v2524
      %v2639 = vunpack.i.h.s16 %v2524
      %v2640 = vunpack.i.l.s16 %v2531
      %v2641 = vunpack.i.h.s16 %v2531
      %v2642 = vunpack.i.l.s16 %v2532
      %v2643 = vunpack.i.h.s16 %v2532
      %v2644 = vunpack.i.l.s16 %v2533
      %v2645 = vunpack.i.h.s16 %v2533
      %v2646 = vunpack.i.l.s16 %v2548
      %v2647 = vunpack.i.h.s16 %v2548
      %v2648 = vunpack.i.l.s16 %v2555
      %v2649 = vunpack.i.h.s16 %v2555
      %v2650 = vunpack.i.l.s16 %v2556
      %v2651 = vunpack.i.h.s16 %v2556
      %v2652 = vunpack.i.l.s16 %v2557
      %v2653 = vunpack.i.h.s16 %v2557
      %v2654 = vunpack.i.l.s16 %v2572
      %v2655 = vunpack.i.h.s16 %v2572
      %v2656 = vunpack.i.l.s16 %v2579
      %v2657 = vunpack.i.h.s16 %v2579
      %v2658 = vunpack.i.l.s16 %v2580
      %v2659 = vunpack.i.h.s16 %v2580
      %v2660 = vunpack.i.l.s16 %v2581
      %v2661 = vunpack.i.h.s16 %v2581
      %v2662 = vunpack.i.l.s16 %v2596
      %v2663 = vunpack.i.h.s16 %v2596
      %v2664 = vunpack.i.l.s16 %v2603
      %v2665 = vunpack.i.h.s16 %v2603
      %v2666 = vunpack.i.l.s16 %v2604
      %v2667 = vunpack.i.h.s16 %v2604
      %v2668 = vunpack.i.l.s16 %v2605
      %v2669 = vunpack.i.h.s16 %v2605
      %v2679 = vunpack.c.l.s4 1966171168
      %v2680 = vunpack.c.0.s8 %v2679
      %v2681 = vlaneseq
      %v2682 = vshrl.u32 %v2681, 7
      %v2683 = vsub.s32 %v2680, %v2682
      %v2684 = vrot.slane %v1036, %v2683
      %v2685 = vcombine.high %v2684, %v2684
      %v2687 = vunpack.c.l.s4 1966171168
      %v2688 = vunpack.c.0.s8 %v2687
      %v2689 = vlaneseq
      %v2690 = vshrl.u32 %v2689, 7
      %v2691 = vsub.s32 %v2688, %v2690
      %v2692 = vrot.slane %v2684, %v2691
      %v2694 = vunpack.c.l.s4 1966171168
      %v2695 = vunpack.c.0.s8 %v2694
      %v2696 = vlaneseq
      %v2697 = vshrl.u32 %v2696, 7
      %v2698 = vsub.s32 %v2695, %v2697
      %v2699 = vrot.slane %v2685, %v2698
      %v2700 = vcombine.high %v2692, %v2692
      %v2701 = vcombine.high %v2699, %v2699
      %v2703 = vunpack.c.l.s4 1966171168
      %v2704 = vunpack.c.0.s8 %v2703
      %v2705 = vlaneseq
      %v2706 = vshrl.u32 %v2705, 7
      %v2707 = vsub.s32 %v2704, %v2706
      %v2708 = vrot.slane %v1037, %v2707
      %v2709 = vcombine.high %v2708, %v2708
      %v2711 = vunpack.c.l.s4 1966171168
      %v2712 = vunpack.c.0.s8 %v2711
      %v2713 = vlaneseq
      %v2714 = vshrl.u32 %v2713, 7
      %v2715 = vsub.s32 %v2712, %v2714
      %v2716 = vrot.slane %v2708, %v2715
      %v2718 = vunpack.c.l.s4 1966171168
      %v2719 = vunpack.c.0.s8 %v2718
      %v2720 = vlaneseq
      %v2721 = vshrl.u32 %v2720, 7
      %v2722 = vsub.s32 %v2719, %v2721
      %v2723 = vrot.slane %v2709, %v2722
      %v2724 = vcombine.high %v2716, %v2716
      %v2725 = vcombine.high %v2723, %v2723
      %v2727 = vunpack.c.l.s4 1966171168
      %v2728 = vunpack.c.0.s8 %v2727
      %v2729 = vlaneseq
      %v2730 = vshrl.u32 %v2729, 7
      %v2731 = vsub.s32 %v2728, %v2730
      %v2732 = vrot.slane %v1038, %v2731
      %v2733 = vcombine.high %v2732, %v2732
      %v2735 = vunpack.c.l.s4 1966171168
      %v2736 = vunpack.c.0.s8 %v2735
      %v2737 = vlaneseq
      %v2738 = vshrl.u32 %v2737, 7
      %v2739 = vsub.s32 %v2736, %v2738
      %v2740 = vrot.slane %v2732, %v2739
      %v2742 = vunpack.c.l.s4 1966171168
      %v2743 = vunpack.c.0.s8 %v2742
      %v2744 = vlaneseq
      %v2745 = vshrl.u32 %v2744, 7
      %v2746 = vsub.s32 %v2743, %v2745
      %v2747 = vrot.slane %v2733, %v2746
      %v2748 = vcombine.high %v2740, %v2740
      %v2749 = vcombine.high %v2747, %v2747
      %v2751 = vunpack.c.l.s4 1966171168
      %v2752 = vunpack.c.0.s8 %v2751
      %v2753 = vlaneseq
      %v2754 = vshrl.u32 %v2753, 7
      %v2755 = vsub.s32 %v2752, %v2754
      %v2756 = vrot.slane %v1039, %v2755
      %v2757 = vcombine.high %v2756, %v2756
      %v2759 = vunpack.c.l.s4 1966171168
      %v2760 = vunpack.c.0.s8 %v2759
      %v2761 = vlaneseq
      %v2762 = vshrl.u32 %v2761, 7
      %v2763 = vsub.s32 %v2760, %v2762
      %v2764 = vrot.slane %v2756, %v2763
      %v2766 = vunpack.c.l.s4 1966171168
      %v2767 = vunpack.c.0.s8 %v2766
      %v2768 = vlaneseq
      %v2769 = vshrl.u32 %v2768, 7
      %v2770 = vsub.s32 %v2767, %v2769
      %v2771 = vrot.slane %v2757, %v2770
      %v2772 = vcombine.high %v2764, %v2764
      %v2773 = vcombine.high %v2771, %v2771
      %v2775 = vunpack.c.l.s4 1966171168
      %v2776 = vunpack.c.0.s8 %v2775
      %v2777 = vlaneseq
      %v2778 = vshrl.u32 %v2777, 7
      %v2779 = vsub.s32 %v2776, %v2778
      %v2780 = vrot.slane %v1040, %v2779
      %v2781 = vcombine.high %v2780, %v2780
      %v2783 = vunpack.c.l.s4 1966171168
      %v2784 = vunpack.c.0.s8 %v2783
      %v2785 = vlaneseq
      %v2786 = vshrl.u32 %v2785, 7
      %v2787 = vsub.s32 %v2784, %v2786
      %v2788 = vrot.slane %v2780, %v2787
      %v2790 = vunpack.c.l.s4 1966171168
      %v2791 = vunpack.c.0.s8 %v2790
      %v2792 = vlaneseq
      %v2793 = vshrl.u32 %v2792, 7
      %v2794 = vsub.s32 %v2791, %v2793
      %v2795 = vrot.slane %v2781, %v2794
      %v2796 = vcombine.high %v2788, %v2788
      %v2797 = vcombine.high %v2795, %v2795
      %v2799 = vunpack.c.l.s4 1966171168
      %v2800 = vunpack.c.0.s8 %v2799
      %v2801 = vlaneseq
      %v2802 = vshrl.u32 %v2801, 7
      %v2803 = vsub.s32 %v2800, %v2802
      %v2804 = vrot.slane %v1041, %v2803
      %v2805 = vcombine.high %v2804, %v2804
      %v2807 = vunpack.c.l.s4 1966171168
      %v2808 = vunpack.c.0.s8 %v2807
      %v2809 = vlaneseq
      %v2810 = vshrl.u32 %v2809, 7
      %v2811 = vsub.s32 %v2808, %v2810
      %v2812 = vrot.slane %v2804, %v2811
      %v2814 = vunpack.c.l.s4 1966171168
      %v2815 = vunpack.c.0.s8 %v2814
      %v2816 = vlaneseq
      %v2817 = vshrl.u32 %v2816, 7
      %v2818 = vsub.s32 %v2815, %v2817
      %v2819 = vrot.slane %v2805, %v2818
      %v2820 = vcombine.high %v2812, %v2812
      %v2821 = vcombine.high %v2819, %v2819
      %v2823 = vunpack.c.l.s4 1966171168
      %v2824 = vunpack.c.0.s8 %v2823
      %v2825 = vlaneseq
      %v2826 = vshrl.u32 %v2825, 7
      %v2827 = vsub.s32 %v2824, %v2826
      %v2828 = vrot.slane %v1042, %v2827
      %v2829 = vcombine.high %v2828, %v2828
      %v2831 = vunpack.c.l.s4 1966171168
      %v2832 = vunpack.c.0.s8 %v2831
      %v2833 = vlaneseq
      %v2834 = vshrl.u32 %v2833, 7
      %v2835 = vsub.s32 %v2832, %v2834
      %v2836 = vrot.slane %v2828, %v2835
      %v2838 = vunpack.c.l.s4 1966171168
      %v2839 = vunpack.c.0.s8 %v2838
      %v2840 = vlaneseq
      %v2841 = vshrl.u32 %v2840, 7
      %v2842 = vsub.s32 %v2839, %v2841
      %v2843 = vrot.slane %v2829, %v2842
      %v2844 = vcombine.high %v2836, %v2836
      %v2845 = vcombine.high %v2843, %v2843
      %v2847 = vunpack.c.l.s4 1966171168
      %v2848 = vunpack.c.0.s8 %v2847
      %v2849 = vlaneseq
      %v2850 = vshrl.u32 %v2849, 7
      %v2851 = vsub.s32 %v2848, %v2850
      %v2852 = vrot.slane %v1043, %v2851
      %v2853 = vcombine.high %v2852, %v2852
      %v2855 = vunpack.c.l.s4 1966171168
      %v2856 = vunpack.c.0.s8 %v2855
      %v2857 = vlaneseq
      %v2858 = vshrl.u32 %v2857, 7
      %v2859 = vsub.s32 %v2856, %v2858
      %v2860 = vrot.slane %v2852, %v2859
      %v2862 = vunpack.c.l.s4 1966171168
      %v2863 = vunpack.c.0.s8 %v2862
      %v2864 = vlaneseq
      %v2865 = vshrl.u32 %v2864, 7
      %v2866 = vsub.s32 %v2863, %v2865
      %v2867 = vrot.slane %v2853, %v2866
      %v2868 = vcombine.high %v2860, %v2860
      %v2869 = vcombine.high %v2867, %v2867
      %v2870 = vunpack.i.l.s16 %v2692
      %v2871 = vunpack.i.h.s16 %v2692
      %v2872 = vunpack.i.l.s16 %v2699
      %v2873 = vunpack.i.h.s16 %v2699
      %v2874 = vunpack.i.l.s16 %v2700
      %v2875 = vunpack.i.h.s16 %v2700
      %v2876 = vunpack.i.l.s16 %v2701
      %v2877 = vunpack.i.h.s16 %v2701
      %v2878 = vunpack.i.l.s16 %v2716
      %v2879 = vunpack.i.h.s16 %v2716
      %v2880 = vunpack.i.l.s16 %v2723
      %v2881 = vunpack.i.h.s16 %v2723
      %v2882 = vunpack.i.l.s16 %v2724
      %v2883 = vunpack.i.h.s16 %v2724
      %v2884 = vunpack.i.l.s16 %v2725
      %v2885 = vunpack.i.h.s16 %v2725
      %v2886 = vunpack.i.l.s16 %v2740
      %v2887 = vunpack.i.h.s16 %v2740
      %v2888 = vunpack.i.l.s16 %v2747
      %v2889 = vunpack.i.h.s16 %v2747
      %v2890 = vunpack.i.l.s16 %v2748
      %v2891 = vunpack.i.h.s16 %v2748
      %v2892 = vunpack.i.l.s16 %v2749
      %v2893 = vunpack.i.h.s16 %v2749
      %v2894 = vunpack.i.l.s16 %v2764
      %v2895 = vunpack.i.h.s16 %v2764
      %v2896 = vunpack.i.l.s16 %v2771
      %v2897 = vunpack.i.h.s16 %v2771
      %v2898 = vunpack.i.l.s16 %v2772
      %v2899 = vunpack.i.h.s16 %v2772
      %v2900 = vunpack.i.l.s16 %v2773
      %v2901 = vunpack.i.h.s16 %v2773
      %v2902 = vunpack.i.l.s16 %v2788
      %v2903 = vunpack.i.h.s16 %v2788
      %v2904 = vunpack.i.l.s16 %v2795
      %v2905 = vunpack.i.h.s16 %v2795
      %v2906 = vunpack.i.l.s16 %v2796
      %v2907 = vunpack.i.h.s16 %v2796
      %v2908 = vunpack.i.l.s16 %v2797
      %v2909 = vunpack.i.h.s16 %v2797
      %v2910 = vunpack.i.l.s16 %v2812
      %v2911 = vunpack.i.h.s16 %v2812
      %v2912 = vunpack.i.l.s16 %v2819
      %v2913 = vunpack.i.h.s16 %v2819
      %v2914 = vunpack.i.l.s16 %v2820
      %v2915 = vunpack.i.h.s16 %v2820
      %v2916 = vunpack.i.l.s16 %v2821
      %v2917 = vunpack.i.h.s16 %v2821
      %v2918 = vunpack.i.l.s16 %v2836
      %v2919 = vunpack.i.h.s16 %v2836
      %v2920 = vunpack.i.l.s16 %v2843
      %v2921 = vunpack.i.h.s16 %v2843
      %v2922 = vunpack.i.l.s16 %v2844
      %v2923 = vunpack.i.h.s16 %v2844
      %v2924 = vunpack.i.l.s16 %v2845
      %v2925 = vunpack.i.h.s16 %v2845
      %v2926 = vunpack.i.l.s16 %v2860
      %v2927 = vunpack.i.h.s16 %v2860
      %v2928 = vunpack.i.l.s16 %v2867
      %v2929 = vunpack.i.h.s16 %v2867
      %v2930 = vunpack.i.l.s16 %v2868
      %v2931 = vunpack.i.h.s16 %v2868
      %v2932 = vunpack.i.l.s16 %v2869
      %v2933 = vunpack.i.h.s16 %v2869
      %v2934 = vpack.i.b16 %v2606, %v2606
      %v2935 = vpack.i.b16 %v2607, %v2607
      %v2936 = vpack.i.b16 %v2608, %v2608
      %v2937 = vpack.i.b16 %v2609, %v2609
      %v2938 = vpack.i.b16 %v2610, %v2610
      %v2939 = vpack.i.b16 %v2611, %v2611
      %v2940 = vpack.i.b16 %v2612, %v2612
      %v2941 = vpack.i.b16 %v2613, %v2613
      %v2942 = vpack.i.b16 %v2614, %v2614
      %v2943 = vpack.i.b16 %v2615, %v2615
      %v2944 = vpack.i.b16 %v2616, %v2616
      %v2945 = vpack.i.b16 %v2617, %v2617
      %v2946 = vpack.i.b16 %v2618, %v2618
      %v2947 = vpack.i.b16 %v2619, %v2619
      %v2948 = vpack.i.b16 %v2620, %v2620
      %v2949 = vpack.i.b16 %v2621, %v2621
      %v2950 = vpack.i.b16 %v2622, %v2622
      %v2951 = vpack.i.b16 %v2623, %v2623
      %v2952 = vpack.i.b16 %v2624, %v2624
      %v2953 = vpack.i.b16 %v2625, %v2625
      %v2954 = vpack.i.b16 %v2626, %v2626
      %v2955 = vpack.i.b16 %v2627, %v2627
      %v2956 = vpack.i.b16 %v2628, %v2628
      %v2957 = vpack.i.b16 %v2629, %v2629
      %v2958 = vpack.i.b16 %v2630, %v2630
      %v2959 = vpack.i.b16 %v2631, %v2631
      %v2960 = vpack.i.b16 %v2632, %v2632
      %v2961 = vpack.i.b16 %v2633, %v2633
      %v2962 = vpack.i.b16 %v2634, %v2634
      %v2963 = vpack.i.b16 %v2635, %v2635
      %v2964 = vpack.i.b16 %v2636, %v2636
      %v2965 = vpack.i.b16 %v2637, %v2637
      %v2966 = vpack.i.b16 %v2638, %v2638
      %v2967 = vpack.i.b16 %v2639, %v2639
      %v2968 = vpack.i.b16 %v2640, %v2640
      %v2969 = vpack.i.b16 %v2641, %v2641
      %v2970 = vpack.i.b16 %v2642, %v2642
      %v2971 = vpack.i.b16 %v2643, %v2643
      %v2972 = vpack.i.b16 %v2644, %v2644
      %v2973 = vpack.i.b16 %v2645, %v2645
      %v2974 = vpack.i.b16 %v2646, %v2646
      %v2975 = vpack.i.b16 %v2647, %v2647
      %v2976 = vpack.i.b16 %v2648, %v2648
      %v2977 = vpack.i.b16 %v2649, %v2649
      %v2978 = vpack.i.b16 %v2650, %v2650
      %v2979 = vpack.i.b16 %v2651, %v2651
      %v2980 = vpack.i.b16 %v2652, %v2652
      %v2981 = vpack.i.b16 %v2653, %v2653
      %v2982 = vpack.i.b16 %v2654, %v2654
      %v2983 = vpack.i.b16 %v2655, %v2655
      %v2984 = vpack.i.b16 %v2656, %v2656
      %v2985 = vpack.i.b16 %v2657, %v2657
      %v2986 = vpack.i.b16 %v2658, %v2658
      %v2987 = vpack.i.b16 %v2659, %v2659
      %v2988 = vpack.i.b16 %v2660, %v2660
      %v2989 = vpack.i.b16 %v2661, %v2661
      %v2990 = vpack.i.b16 %v2662, %v2662
      %v2991 = vpack.i.b16 %v2663, %v2663
      %v2992 = vpack.i.b16 %v2664, %v2664
      %v2993 = vpack.i.b16 %v2665, %v2665
      %v2994 = vpack.i.b16 %v2666, %v2666
      %v2995 = vpack.i.b16 %v2667, %v2667
      %v2996 = vpack.i.b16 %v2668, %v2668
      %v2997 = vpack.i.b16 %v2669, %v2669
      %v2998 = vlaneseq
      %v2999 = vshrl.u32 %v2998, 7
      %v3000 = vsub.s32 0, %v2999
      %v3001 = vrot.slane %v2934, %v3000
      %v3002 = vlaneseq
      %v3003 = vshrl.u32 %v3002, 7
      %v3004 = vsub.s32 0, %v3003
      %v3005 = vrot.slane %v2935, %v3004
      %v3006 = vlaneseq
      %v3007 = vshrl.u32 %v3006, 7
      %v3008 = vsub.s32 0, %v3007
      %v3009 = vrot.slane %v2936, %v3008
      %v3010 = vlaneseq
      %v3011 = vshrl.u32 %v3010, 7
      %v3012 = vsub.s32 0, %v3011
      %v3013 = vrot.slane %v2937, %v3012
      %v3014 = vlaneseq
      %v3015 = vshrl.u32 %v3014, 7
      %v3016 = vsub.s32 0, %v3015
      %v3017 = vrot.slane %v2938, %v3016
      %v3018 = vlaneseq
      %v3019 = vshrl.u32 %v3018, 7
      %v3020 = vsub.s32 0, %v3019
      %v3021 = vrot.slane %v2939, %v3020
      %v3022 = vlaneseq
      %v3023 = vshrl.u32 %v3022, 7
      %v3024 = vsub.s32 0, %v3023
      %v3025 = vrot.slane %v2940, %v3024
      %v3026 = vlaneseq
      %v3027 = vshrl.u32 %v3026, 7
      %v3028 = vsub.s32 0, %v3027
      %v3029 = vrot.slane %v2941, %v3028
      %v3030 = vlaneseq
      %v3031 = vshrl.u32 %v3030, 7
      %v3032 = vsub.s32 0, %v3031
      %v3033 = vrot.slane %v2942, %v3032
      %v3034 = vlaneseq
      %v3035 = vshrl.u32 %v3034, 7
      %v3036 = vsub.s32 0, %v3035
      %v3037 = vrot.slane %v2943, %v3036
      %v3038 = vlaneseq
      %v3039 = vshrl.u32 %v3038, 7
      %v3040 = vsub.s32 0, %v3039
      %v3041 = vrot.slane %v2944, %v3040
      %v3042 = vlaneseq
      %v3043 = vshrl.u32 %v3042, 7
      %v3044 = vsub.s32 0, %v3043
      %v3045 = vrot.slane %v2945, %v3044
      %v3046 = vlaneseq
      %v3047 = vshrl.u32 %v3046, 7
      %v3048 = vsub.s32 0, %v3047
      %v3049 = vrot.slane %v2946, %v3048
      %v3050 = vlaneseq
      %v3051 = vshrl.u32 %v3050, 7
      %v3052 = vsub.s32 0, %v3051
      %v3053 = vrot.slane %v2947, %v3052
      %v3054 = vlaneseq
      %v3055 = vshrl.u32 %v3054, 7
      %v3056 = vsub.s32 0, %v3055
      %v3057 = vrot.slane %v2948, %v3056
      %v3058 = vlaneseq
      %v3059 = vshrl.u32 %v3058, 7
      %v3060 = vsub.s32 0, %v3059
      %v3061 = vrot.slane %v2949, %v3060
      %v3062 = vlaneseq
      %v3063 = vshrl.u32 %v3062, 7
      %v3064 = vsub.s32 0, %v3063
      %v3065 = vrot.slane %v2950, %v3064
      %v3066 = vlaneseq
      %v3067 = vshrl.u32 %v3066, 7
      %v3068 = vsub.s32 0, %v3067
      %v3069 = vrot.slane %v2951, %v3068
      %v3070 = vlaneseq
      %v3071 = vshrl.u32 %v3070, 7
      %v3072 = vsub.s32 0, %v3071
      %v3073 = vrot.slane %v2952, %v3072
      %v3074 = vlaneseq
      %v3075 = vshrl.u32 %v3074, 7
      %v3076 = vsub.s32 0, %v3075
      %v3077 = vrot.slane %v2953, %v3076
      %v3078 = vlaneseq
      %v3079 = vshrl.u32 %v3078, 7
      %v3080 = vsub.s32 0, %v3079
      %v3081 = vrot.slane %v2954, %v3080
      %v3082 = vlaneseq
      %v3083 = vshrl.u32 %v3082, 7
      %v3084 = vsub.s32 0, %v3083
      %v3085 = vrot.slane %v2955, %v3084
      %v3086 = vlaneseq
      %v3087 = vshrl.u32 %v3086, 7
      %v3088 = vsub.s32 0, %v3087
      %v3089 = vrot.slane %v2956, %v3088
      %v3090 = vlaneseq
      %v3091 = vshrl.u32 %v3090, 7
      %v3092 = vsub.s32 0, %v3091
      %v3093 = vrot.slane %v2957, %v3092
      %v3094 = vlaneseq
      %v3095 = vshrl.u32 %v3094, 7
      %v3096 = vsub.s32 0, %v3095
      %v3097 = vrot.slane %v2958, %v3096
      %v3098 = vlaneseq
      %v3099 = vshrl.u32 %v3098, 7
      %v3100 = vsub.s32 0, %v3099
      %v3101 = vrot.slane %v2959, %v3100
      %v3102 = vlaneseq
      %v3103 = vshrl.u32 %v3102, 7
      %v3104 = vsub.s32 0, %v3103
      %v3105 = vrot.slane %v2960, %v3104
      %v3106 = vlaneseq
      %v3107 = vshrl.u32 %v3106, 7
      %v3108 = vsub.s32 0, %v3107
      %v3109 = vrot.slane %v2961, %v3108
      %v3110 = vlaneseq
      %v3111 = vshrl.u32 %v3110, 7
      %v3112 = vsub.s32 0, %v3111
      %v3113 = vrot.slane %v2962, %v3112
      %v3114 = vlaneseq
      %v3115 = vshrl.u32 %v3114, 7
      %v3116 = vsub.s32 0, %v3115
      %v3117 = vrot.slane %v2963, %v3116
      %v3118 = vlaneseq
      %v3119 = vshrl.u32 %v3118, 7
      %v3120 = vsub.s32 0, %v3119
      %v3121 = vrot.slane %v2964, %v3120
      %v3122 = vlaneseq
      %v3123 = vshrl.u32 %v3122, 7
      %v3124 = vsub.s32 0, %v3123
      %v3125 = vrot.slane %v2965, %v3124
      %v3126 = vlaneseq
      %v3127 = vshrl.u32 %v3126, 7
      %v3128 = vsub.s32 0, %v3127
      %v3129 = vrot.slane %v2966, %v3128
      %v3130 = vlaneseq
      %v3131 = vshrl.u32 %v3130, 7
      %v3132 = vsub.s32 0, %v3131
      %v3133 = vrot.slane %v2967, %v3132
      %v3134 = vlaneseq
      %v3135 = vshrl.u32 %v3134, 7
      %v3136 = vsub.s32 0, %v3135
      %v3137 = vrot.slane %v2968, %v3136
      %v3138 = vlaneseq
      %v3139 = vshrl.u32 %v3138, 7
      %v3140 = vsub.s32 0, %v3139
      %v3141 = vrot.slane %v2969, %v3140
      %v3142 = vlaneseq
      %v3143 = vshrl.u32 %v3142, 7
      %v3144 = vsub.s32 0, %v3143
      %v3145 = vrot.slane %v2970, %v3144
      %v3146 = vlaneseq
      %v3147 = vshrl.u32 %v3146, 7
      %v3148 = vsub.s32 0, %v3147
      %v3149 = vrot.slane %v2971, %v3148
      %v3150 = vlaneseq
      %v3151 = vshrl.u32 %v3150, 7
      %v3152 = vsub.s32 0, %v3151
      %v3153 = vrot.slane %v2972, %v3152
      %v3154 = vlaneseq
      %v3155 = vshrl.u32 %v3154, 7
      %v3156 = vsub.s32 0, %v3155
      %v3157 = vrot.slane %v2973, %v3156
      %v3158 = vlaneseq
      %v3159 = vshrl.u32 %v3158, 7
      %v3160 = vsub.s32 0, %v3159
      %v3161 = vrot.slane %v2974, %v3160
      %v3162 = vlaneseq
      %v3163 = vshrl.u32 %v3162, 7
      %v3164 = vsub.s32 0, %v3163
      %v3165 = vrot.slane %v2975, %v3164
      %v3166 = vlaneseq
      %v3167 = vshrl.u32 %v3166, 7
      %v3168 = vsub.s32 0, %v3167
      %v3169 = vrot.slane %v2976, %v3168
      %v3170 = vlaneseq
      %v3171 = vshrl.u32 %v3170, 7
      %v3172 = vsub.s32 0, %v3171
      %v3173 = vrot.slane %v2977, %v3172
      %v3174 = vlaneseq
      %v3175 = vshrl.u32 %v3174, 7
      %v3176 = vsub.s32 0, %v3175
      %v3177 = vrot.slane %v2978, %v3176
      %v3178 = vlaneseq
      %v3179 = vshrl.u32 %v3178, 7
      %v3180 = vsub.s32 0, %v3179
      %v3181 = vrot.slane %v2979, %v3180
      %v3182 = vlaneseq
      %v3183 = vshrl.u32 %v3182, 7
      %v3184 = vsub.s32 0, %v3183
      %v3185 = vrot.slane %v2980, %v3184
      %v3186 = vlaneseq
      %v3187 = vshrl.u32 %v3186, 7
      %v3188 = vsub.s32 0, %v3187
      %v3189 = vrot.slane %v2981, %v3188
      %v3190 = vlaneseq
      %v3191 = vshrl.u32 %v3190, 7
      %v3192 = vsub.s32 0, %v3191
      %v3193 = vrot.slane %v2982, %v3192
      %v3194 = vlaneseq
      %v3195 = vshrl.u32 %v3194, 7
      %v3196 = vsub.s32 0, %v3195
      %v3197 = vrot.slane %v2983, %v3196
      %v3198 = vlaneseq
      %v3199 = vshrl.u32 %v3198, 7
      %v3200 = vsub.s32 0, %v3199
      %v3201 = vrot.slane %v2984, %v3200
      %v3202 = vlaneseq
      %v3203 = vshrl.u32 %v3202, 7
      %v3204 = vsub.s32 0, %v3203
      %v3205 = vrot.slane %v2985, %v3204
      %v3206 = vlaneseq
      %v3207 = vshrl.u32 %v3206, 7
      %v3208 = vsub.s32 0, %v3207
      %v3209 = vrot.slane %v2986, %v3208
      %v3210 = vlaneseq
      %v3211 = vshrl.u32 %v3210, 7
      %v3212 = vsub.s32 0, %v3211
      %v3213 = vrot.slane %v2987, %v3212
      %v3214 = vlaneseq
      %v3215 = vshrl.u32 %v3214, 7
      %v3216 = vsub.s32 0, %v3215
      %v3217 = vrot.slane %v2988, %v3216
      %v3218 = vlaneseq
      %v3219 = vshrl.u32 %v3218, 7
      %v3220 = vsub.s32 0, %v3219
      %v3221 = vrot.slane %v2989, %v3220
      %v3222 = vlaneseq
      %v3223 = vshrl.u32 %v3222, 7
      %v3224 = vsub.s32 0, %v3223
      %v3225 = vrot.slane %v2990, %v3224
      %v3226 = vlaneseq
      %v3227 = vshrl.u32 %v3226, 7
      %v3228 = vsub.s32 0, %v3227
      %v3229 = vrot.slane %v2991, %v3228
      %v3230 = vlaneseq
      %v3231 = vshrl.u32 %v3230, 7
      %v3232 = vsub.s32 0, %v3231
      %v3233 = vrot.slane %v2992, %v3232
      %v3234 = vlaneseq
      %v3235 = vshrl.u32 %v3234, 7
      %v3236 = vsub.s32 0, %v3235
      %v3237 = vrot.slane %v2993, %v3236
      %v3238 = vlaneseq
      %v3239 = vshrl.u32 %v3238, 7
      %v3240 = vsub.s32 0, %v3239
      %v3241 = vrot.slane %v2994, %v3240
      %v3242 = vlaneseq
      %v3243 = vshrl.u32 %v3242, 7
      %v3244 = vsub.s32 0, %v3243
      %v3245 = vrot.slane %v2995, %v3244
      %v3246 = vlaneseq
      %v3247 = vshrl.u32 %v3246, 7
      %v3248 = vsub.s32 0, %v3247
      %v3249 = vrot.slane %v2996, %v3248
      %v3250 = vlaneseq
      %v3251 = vshrl.u32 %v3250, 7
      %v3252 = vsub.s32 0, %v3251
      %v3253 = vrot.slane %v2997, %v3252
      %v3318 = vpack.i.b16 %v2870, %v2870
      %v3319 = vpack.i.b16 %v2871, %v2871
      %v3320 = vpack.i.b16 %v2872, %v2872
      %v3321 = vpack.i.b16 %v2873, %v2873
      %v3322 = vpack.i.b16 %v2874, %v2874
      %v3323 = vpack.i.b16 %v2875, %v2875
      %v3324 = vpack.i.b16 %v2876, %v2876
      %v3325 = vpack.i.b16 %v2877, %v2877
      %v3326 = vpack.i.b16 %v2878, %v2878
      %v3327 = vpack.i.b16 %v2879, %v2879
      %v3328 = vpack.i.b16 %v2880, %v2880
      %v3329 = vpack.i.b16 %v2881, %v2881
      %v3330 = vpack.i.b16 %v2882, %v2882
      %v3331 = vpack.i.b16 %v2883, %v2883
      %v3332 = vpack.i.b16 %v2884, %v2884
      %v3333 = vpack.i.b16 %v2885, %v2885
      %v3334 = vpack.i.b16 %v2886, %v2886
      %v3335 = vpack.i.b16 %v2887, %v2887
      %v3336 = vpack.i.b16 %v2888, %v2888
      %v3337 = vpack.i.b16 %v2889, %v2889
      %v3338 = vpack.i.b16 %v2890, %v2890
      %v3339 = vpack.i.b16 %v2891, %v2891
      %v3340 = vpack.i.b16 %v2892, %v2892
      %v3341 = vpack.i.b16 %v2893, %v2893
      %v3342 = vpack.i.b16 %v2894, %v2894
      %v3343 = vpack.i.b16 %v2895, %v2895
      %v3344 = vpack.i.b16 %v2896, %v2896
      %v3345 = vpack.i.b16 %v2897, %v2897
      %v3346 = vpack.i.b16 %v2898, %v2898
      %v3347 = vpack.i.b16 %v2899, %v2899
      %v3348 = vpack.i.b16 %v2900, %v2900
      %v3349 = vpack.i.b16 %v2901, %v2901
      %v3350 = vpack.i.b16 %v2902, %v2902
      %v3351 = vpack.i.b16 %v2903, %v2903
      %v3352 = vpack.i.b16 %v2904, %v2904
      %v3353 = vpack.i.b16 %v2905, %v2905
      %v3354 = vpack.i.b16 %v2906, %v2906
      %v3355 = vpack.i.b16 %v2907, %v2907
      %v3356 = vpack.i.b16 %v2908, %v2908
      %v3357 = vpack.i.b16 %v2909, %v2909
      %v3358 = vpack.i.b16 %v2910, %v2910
      %v3359 = vpack.i.b16 %v2911, %v2911
      %v3360 = vpack.i.b16 %v2912, %v2912
      %v3361 = vpack.i.b16 %v2913, %v2913
      %v3362 = vpack.i.b16 %v2914, %v2914
      %v3363 = vpack.i.b16 %v2915, %v2915
      %v3364 = vpack.i.b16 %v2916, %v2916
      %v3365 = vpack.i.b16 %v2917, %v2917
      %v3366 = vpack.i.b16 %v2918, %v2918
      %v3367 = vpack.i.b16 %v2919, %v2919
      %v3368 = vpack.i.b16 %v2920, %v2920
      %v3369 = vpack.i.b16 %v2921, %v2921
      %v3370 = vpack.i.b16 %v2922, %v2922
      %v3371 = vpack.i.b16 %v2923, %v2923
      %v3372 = vpack.i.b16 %v2924, %v2924
      %v3373 = vpack.i.b16 %v2925, %v2925
      %v3374 = vpack.i.b16 %v2926, %v2926
      %v3375 = vpack.i.b16 %v2927, %v2927
      %v3376 = vpack.i.b16 %v2928, %v2928
      %v3377 = vpack.i.b16 %v2929, %v2929
      %v3378 = vpack.i.b16 %v2930, %v2930
      %v3379 = vpack.i.b16 %v2931, %v2931
      %v3380 = vpack.i.b16 %v2932, %v2932
      %v3381 = vpack.i.b16 %v2933, %v2933
      %v3382 = vlaneseq
      %v3383 = vshrl.u32 %v3382, 7
      %v3384 = vsub.s32 0, %v3383
      %v3385 = vrot.slane %v3318, %v3384
      %v3386 = vlaneseq
      %v3387 = vshrl.u32 %v3386, 7
      %v3388 = vsub.s32 0, %v3387
      %v3389 = vrot.slane %v3319, %v3388
      %v3390 = vlaneseq
      %v3391 = vshrl.u32 %v3390, 7
      %v3392 = vsub.s32 0, %v3391
      %v3393 = vrot.slane %v3320, %v3392
      %v3394 = vlaneseq
      %v3395 = vshrl.u32 %v3394, 7
      %v3396 = vsub.s32 0, %v3395
      %v3397 = vrot.slane %v3321, %v3396
      %v3398 = vlaneseq
      %v3399 = vshrl.u32 %v3398, 7
      %v3400 = vsub.s32 0, %v3399
      %v3401 = vrot.slane %v3322, %v3400
      %v3402 = vlaneseq
      %v3403 = vshrl.u32 %v3402, 7
      %v3404 = vsub.s32 0, %v3403
      %v3405 = vrot.slane %v3323, %v3404
      %v3406 = vlaneseq
      %v3407 = vshrl.u32 %v3406, 7
      %v3408 = vsub.s32 0, %v3407
      %v3409 = vrot.slane %v3324, %v3408
      %v3410 = vlaneseq
      %v3411 = vshrl.u32 %v3410, 7
      %v3412 = vsub.s32 0, %v3411
      %v3413 = vrot.slane %v3325, %v3412
      %v3414 = vlaneseq
      %v3415 = vshrl.u32 %v3414, 7
      %v3416 = vsub.s32 0, %v3415
      %v3417 = vrot.slane %v3326, %v3416
      %v3418 = vlaneseq
      %v3419 = vshrl.u32 %v3418, 7
      %v3420 = vsub.s32 0, %v3419
      %v3421 = vrot.slane %v3327, %v3420
      %v3422 = vlaneseq
      %v3423 = vshrl.u32 %v3422, 7
      %v3424 = vsub.s32 0, %v3423
      %v3425 = vrot.slane %v3328, %v3424
      %v3426 = vlaneseq
      %v3427 = vshrl.u32 %v3426, 7
      %v3428 = vsub.s32 0, %v3427
      %v3429 = vrot.slane %v3329, %v3428
      %v3430 = vlaneseq
      %v3431 = vshrl.u32 %v3430, 7
      %v3432 = vsub.s32 0, %v3431
      %v3433 = vrot.slane %v3330, %v3432
      %v3434 = vlaneseq
      %v3435 = vshrl.u32 %v3434, 7
      %v3436 = vsub.s32 0, %v3435
      %v3437 = vrot.slane %v3331, %v3436
      %v3438 = vlaneseq
      %v3439 = vshrl.u32 %v3438, 7
      %v3440 = vsub.s32 0, %v3439
      %v3441 = vrot.slane %v3332, %v3440
      %v3442 = vlaneseq
      %v3443 = vshrl.u32 %v3442, 7
      %v3444 = vsub.s32 0, %v3443
      %v3445 = vrot.slane %v3333, %v3444
      %v3446 = vlaneseq
      %v3447 = vshrl.u32 %v3446, 7
      %v3448 = vsub.s32 0, %v3447
      %v3449 = vrot.slane %v3334, %v3448
      %v3450 = vlaneseq
      %v3451 = vshrl.u32 %v3450, 7
      %v3452 = vsub.s32 0, %v3451
      %v3453 = vrot.slane %v3335, %v3452
      %v3454 = vlaneseq
      %v3455 = vshrl.u32 %v3454, 7
      %v3456 = vsub.s32 0, %v3455
      %v3457 = vrot.slane %v3336, %v3456
      %v3458 = vlaneseq
      %v3459 = vshrl.u32 %v3458, 7
      %v3460 = vsub.s32 0, %v3459
      %v3461 = vrot.slane %v3337, %v3460
      %v3462 = vlaneseq
      %v3463 = vshrl.u32 %v3462, 7
      %v3464 = vsub.s32 0, %v3463
      %v3465 = vrot.slane %v3338, %v3464
      %v3466 = vlaneseq
      %v3467 = vshrl.u32 %v3466, 7
      %v3468 = vsub.s32 0, %v3467
      %v3469 = vrot.slane %v3339, %v3468
      %v3470 = vlaneseq
      %v3471 = vshrl.u32 %v3470, 7
      %v3472 = vsub.s32 0, %v3471
      %v3473 = vrot.slane %v3340, %v3472
      %v3474 = vlaneseq
      %v3475 = vshrl.u32 %v3474, 7
      %v3476 = vsub.s32 0, %v3475
      %v3477 = vrot.slane %v3341, %v3476
      %v3478 = vlaneseq
      %v3479 = vshrl.u32 %v3478, 7
      %v3480 = vsub.s32 0, %v3479
      %v3481 = vrot.slane %v3342, %v3480
      %v3482 = vlaneseq
      %v3483 = vshrl.u32 %v3482, 7
      %v3484 = vsub.s32 0, %v3483
      %v3485 = vrot.slane %v3343, %v3484
      %v3486 = vlaneseq
      %v3487 = vshrl.u32 %v3486, 7
      %v3488 = vsub.s32 0, %v3487
      %v3489 = vrot.slane %v3344, %v3488
      %v3490 = vlaneseq
      %v3491 = vshrl.u32 %v3490, 7
      %v3492 = vsub.s32 0, %v3491
      %v3493 = vrot.slane %v3345, %v3492
      %v3494 = vlaneseq
      %v3495 = vshrl.u32 %v3494, 7
      %v3496 = vsub.s32 0, %v3495
      %v3497 = vrot.slane %v3346, %v3496
      %v3498 = vlaneseq
      %v3499 = vshrl.u32 %v3498, 7
      %v3500 = vsub.s32 0, %v3499
      %v3501 = vrot.slane %v3347, %v3500
      %v3502 = vlaneseq
      %v3503 = vshrl.u32 %v3502, 7
      %v3504 = vsub.s32 0, %v3503
      %v3505 = vrot.slane %v3348, %v3504
      %v3506 = vlaneseq
      %v3507 = vshrl.u32 %v3506, 7
      %v3508 = vsub.s32 0, %v3507
      %v3509 = vrot.slane %v3349, %v3508
      %v3510 = vlaneseq
      %v3511 = vshrl.u32 %v3510, 7
      %v3512 = vsub.s32 0, %v3511
      %v3513 = vrot.slane %v3350, %v3512
      %v3514 = vlaneseq
      %v3515 = vshrl.u32 %v3514, 7
      %v3516 = vsub.s32 0, %v3515
      %v3517 = vrot.slane %v3351, %v3516
      %v3518 = vlaneseq
      %v3519 = vshrl.u32 %v3518, 7
      %v3520 = vsub.s32 0, %v3519
      %v3521 = vrot.slane %v3352, %v3520
      %v3522 = vlaneseq
      %v3523 = vshrl.u32 %v3522, 7
      %v3524 = vsub.s32 0, %v3523
      %v3525 = vrot.slane %v3353, %v3524
      %v3526 = vlaneseq
      %v3527 = vshrl.u32 %v3526, 7
      %v3528 = vsub.s32 0, %v3527
      %v3529 = vrot.slane %v3354, %v3528
      %v3530 = vlaneseq
      %v3531 = vshrl.u32 %v3530, 7
      %v3532 = vsub.s32 0, %v3531
      %v3533 = vrot.slane %v3355, %v3532
      %v3534 = vlaneseq
      %v3535 = vshrl.u32 %v3534, 7
      %v3536 = vsub.s32 0, %v3535
      %v3537 = vrot.slane %v3356, %v3536
      %v3538 = vlaneseq
      %v3539 = vshrl.u32 %v3538, 7
      %v3540 = vsub.s32 0, %v3539
      %v3541 = vrot.slane %v3357, %v3540
      %v3542 = vlaneseq
      %v3543 = vshrl.u32 %v3542, 7
      %v3544 = vsub.s32 0, %v3543
      %v3545 = vrot.slane %v3358, %v3544
      %v3546 = vlaneseq
      %v3547 = vshrl.u32 %v3546, 7
      %v3548 = vsub.s32 0, %v3547
      %v3549 = vrot.slane %v3359, %v3548
      %v3550 = vlaneseq
      %v3551 = vshrl.u32 %v3550, 7
      %v3552 = vsub.s32 0, %v3551
      %v3553 = vrot.slane %v3360, %v3552
      %v3554 = vlaneseq
      %v3555 = vshrl.u32 %v3554, 7
      %v3556 = vsub.s32 0, %v3555
      %v3557 = vrot.slane %v3361, %v3556
      %v3558 = vlaneseq
      %v3559 = vshrl.u32 %v3558, 7
      %v3560 = vsub.s32 0, %v3559
      %v3561 = vrot.slane %v3362, %v3560
      %v3562 = vlaneseq
      %v3563 = vshrl.u32 %v3562, 7
      %v3564 = vsub.s32 0, %v3563
      %v3565 = vrot.slane %v3363, %v3564
      %v3566 = vlaneseq
      %v3567 = vshrl.u32 %v3566, 7
      %v3568 = vsub.s32 0, %v3567
      %v3569 = vrot.slane %v3364, %v3568
      %v3570 = vlaneseq
      %v3571 = vshrl.u32 %v3570, 7
      %v3572 = vsub.s32 0, %v3571
      %v3573 = vrot.slane %v3365, %v3572
      %v3574 = vlaneseq
      %v3575 = vshrl.u32 %v3574, 7
      %v3576 = vsub.s32 0, %v3575
      %v3577 = vrot.slane %v3366, %v3576
      %v3578 = vlaneseq
      %v3579 = vshrl.u32 %v3578, 7
      %v3580 = vsub.s32 0, %v3579
      %v3581 = vrot.slane %v3367, %v3580
      %v3582 = vlaneseq
      %v3583 = vshrl.u32 %v3582, 7
      %v3584 = vsub.s32 0, %v3583
      %v3585 = vrot.slane %v3368, %v3584
      %v3586 = vlaneseq
      %v3587 = vshrl.u32 %v3586, 7
      %v3588 = vsub.s32 0, %v3587
      %v3589 = vrot.slane %v3369, %v3588
      %v3590 = vlaneseq
      %v3591 = vshrl.u32 %v3590, 7
      %v3592 = vsub.s32 0, %v3591
      %v3593 = vrot.slane %v3370, %v3592
      %v3594 = vlaneseq
      %v3595 = vshrl.u32 %v3594, 7
      %v3596 = vsub.s32 0, %v3595
      %v3597 = vrot.slane %v3371, %v3596
      %v3598 = vlaneseq
      %v3599 = vshrl.u32 %v3598, 7
      %v3600 = vsub.s32 0, %v3599
      %v3601 = vrot.slane %v3372, %v3600
      %v3602 = vlaneseq
      %v3603 = vshrl.u32 %v3602, 7
      %v3604 = vsub.s32 0, %v3603
      %v3605 = vrot.slane %v3373, %v3604
      %v3606 = vlaneseq
      %v3607 = vshrl.u32 %v3606, 7
      %v3608 = vsub.s32 0, %v3607
      %v3609 = vrot.slane %v3374, %v3608
      %v3610 = vlaneseq
      %v3611 = vshrl.u32 %v3610, 7
      %v3612 = vsub.s32 0, %v3611
      %v3613 = vrot.slane %v3375, %v3612
      %v3614 = vlaneseq
      %v3615 = vshrl.u32 %v3614, 7
      %v3616 = vsub.s32 0, %v3615
      %v3617 = vrot.slane %v3376, %v3616
      %v3618 = vlaneseq
      %v3619 = vshrl.u32 %v3618, 7
      %v3620 = vsub.s32 0, %v3619
      %v3621 = vrot.slane %v3377, %v3620
      %v3622 = vlaneseq
      %v3623 = vshrl.u32 %v3622, 7
      %v3624 = vsub.s32 0, %v3623
      %v3625 = vrot.slane %v3378, %v3624
      %v3626 = vlaneseq
      %v3627 = vshrl.u32 %v3626, 7
      %v3628 = vsub.s32 0, %v3627
      %v3629 = vrot.slane %v3379, %v3628
      %v3630 = vlaneseq
      %v3631 = vshrl.u32 %v3630, 7
      %v3632 = vsub.s32 0, %v3631
      %v3633 = vrot.slane %v3380, %v3632
      %v3634 = vlaneseq
      %v3635 = vshrl.u32 %v3634, 7
      %v3636 = vsub.s32 0, %v3635
      %v3637 = vrot.slane %v3381, %v3636
      %v3702 = vsel %vm2341, %v3001, %v3385
      %v3703 = vsel %vm2341, %v3005, %v3389
      %v3704 = vsel %vm2341, %v3009, %v3393
      %v3705 = vsel %vm2341, %v3013, %v3397
      %v3706 = vsel %vm2341, %v3017, %v3401
      %v3707 = vsel %vm2341, %v3021, %v3405
      %v3708 = vsel %vm2341, %v3025, %v3409
      %v3709 = vsel %vm2341, %v3029, %v3413
      %v3710 = vsel %vm2341, %v3033, %v3417
      %v3711 = vsel %vm2341, %v3037, %v3421
      %v3712 = vsel %vm2341, %v3041, %v3425
      %v3713 = vsel %vm2341, %v3045, %v3429
      %v3714 = vsel %vm2341, %v3049, %v3433
      %v3715 = vsel %vm2341, %v3053, %v3437
      %v3716 = vsel %vm2341, %v3057, %v3441
      %v3717 = vsel %vm2341, %v3061, %v3445
      %v3718 = vsel %vm2341, %v3065, %v3449
      %v3719 = vsel %vm2341, %v3069, %v3453
      %v3720 = vsel %vm2341, %v3073, %v3457
      %v3721 = vsel %vm2341, %v3077, %v3461
      %v3722 = vsel %vm2341, %v3081, %v3465
      %v3723 = vsel %vm2341, %v3085, %v3469
      %v3724 = vsel %vm2341, %v3089, %v3473
      %v3725 = vsel %vm2341, %v3093, %v3477
      %v3726 = vsel %vm2341, %v3097, %v3481
      %v3727 = vsel %vm2341, %v3101, %v3485
      %v3728 = vsel %vm2341, %v3105, %v3489
      %v3729 = vsel %vm2341, %v3109, %v3493
      %v3730 = vsel %vm2341, %v3113, %v3497
      %v3731 = vsel %vm2341, %v3117, %v3501
      %v3732 = vsel %vm2341, %v3121, %v3505
      %v3733 = vsel %vm2341, %v3125, %v3509
      %v3734 = vsel %vm2341, %v3129, %v3513
      %v3735 = vsel %vm2341, %v3133, %v3517
      %v3736 = vsel %vm2341, %v3137, %v3521
      %v3737 = vsel %vm2341, %v3141, %v3525
      %v3738 = vsel %vm2341, %v3145, %v3529
      %v3739 = vsel %vm2341, %v3149, %v3533
      %v3740 = vsel %vm2341, %v3153, %v3537
      %v3741 = vsel %vm2341, %v3157, %v3541
      %v3742 = vsel %vm2341, %v3161, %v3545
      %v3743 = vsel %vm2341, %v3165, %v3549
      %v3744 = vsel %vm2341, %v3169, %v3553
      %v3745 = vsel %vm2341, %v3173, %v3557
      %v3746 = vsel %vm2341, %v3177, %v3561
      %v3747 = vsel %vm2341, %v3181, %v3565
      %v3748 = vsel %vm2341, %v3185, %v3569
      %v3749 = vsel %vm2341, %v3189, %v3573
      %v3750 = vsel %vm2341, %v3193, %v3577
      %v3751 = vsel %vm2341, %v3197, %v3581
      %v3752 = vsel %vm2341, %v3201, %v3585
      %v3753 = vsel %vm2341, %v3205, %v3589
      %v3754 = vsel %vm2341, %v3209, %v3593
      %v3755 = vsel %vm2341, %v3213, %v3597
      %v3756 = vsel %vm2341, %v3217, %v3601
      %v3757 = vsel %vm2341, %v3221, %v3605
      %v3758 = vsel %vm2341, %v3225, %v3609
      %v3759 = vsel %vm2341, %v3229, %v3613
      %v3760 = vsel %vm2341, %v3233, %v3617
      %v3761 = vsel %vm2341, %v3237, %v3621
      %v3762 = vsel %vm2341, %v3241, %v3625
      %v3763 = vsel %vm2341, %v3245, %v3629
      %v3764 = vsel %vm2341, %v3249, %v3633
      %v3765 = vsel %vm2341, %v3253, %v3637
      %v3766 = vld [vmem:[%s320] sm:$0xf]
      %v3767 = vld [vmem:[%s320 + $0x4] sm:$0xf]
      %v3768 = vld [vmem:[%s320 + $0x8] sm:$0xf]
      %v3769 = vld [vmem:[%s320 + $0xc] sm:$0xf]
      %v3770 = vld [vmem:[%s320 + $0x10] sm:$0xf]
      %v3771 = vld [vmem:[%s320 + $0x14] sm:$0xf]
      %v3772 = vld [vmem:[%s320 + $0x18] sm:$0xf]
      %v3773 = vld [vmem:[%s320 + $0x1c] sm:$0xf]
      %v3774 = vld [vmem:[%s320 + $0x20] sm:$0xf]
      %v3775 = vld [vmem:[%s320 + $0x24] sm:$0xf]
      %v3776 = vld [vmem:[%s320 + $0x28] sm:$0xf]
      %v3777 = vld [vmem:[%s320 + $0x2c] sm:$0xf]
      %v3778 = vld [vmem:[%s320 + $0x30] sm:$0xf]
      %v3779 = vld [vmem:[%s320 + $0x34] sm:$0xf]
      %v3780 = vld [vmem:[%s320 + $0x38] sm:$0xf]
      %v3781 = vld [vmem:[%s320 + $0x3c] sm:$0xf]
      %v3782 = vld [vmem:[%s320 + $0x40] sm:$0xf]
      %v3783 = vld [vmem:[%s320 + $0x44] sm:$0xf]
      %v3784 = vld [vmem:[%s320 + $0x48] sm:$0xf]
      %v3785 = vld [vmem:[%s320 + $0x4c] sm:$0xf]
      %v3786 = vld [vmem:[%s320 + $0x50] sm:$0xf]
      %v3787 = vld [vmem:[%s320 + $0x54] sm:$0xf]
      %v3788 = vld [vmem:[%s320 + $0x58] sm:$0xf]
      %v3789 = vld [vmem:[%s320 + $0x5c] sm:$0xf]
      %v3790 = vld [vmem:[%s320 + $0x60] sm:$0xf]
      %v3791 = vld [vmem:[%s320 + $0x64] sm:$0xf]
      %v3792 = vld [vmem:[%s320 + $0x68] sm:$0xf]
      %v3793 = vld [vmem:[%s320 + $0x6c] sm:$0xf]
      %v3794 = vld [vmem:[%s320 + $0x70] sm:$0xf]
      %v3795 = vld [vmem:[%s320 + $0x74] sm:$0xf]
      %v3796 = vld [vmem:[%s320 + $0x78] sm:$0xf]
      %v3797 = vld [vmem:[%s320 + $0x7c] sm:$0xf]
      %vm3798 = vsmask.f32 4368
      %vm3799 = vmor %vm337, %vm3798
      %v3801 = vshrl.u32 %v3766, 16
      %v3803 = vrot.slane %v3801, 7
      %v3804 = vshll.u32 %v3766, 16
      %v3806 = vor.u32 %v3803, %v3804
      %v3807 = vrot.slane %v3803, 4
      %v3809 = vshrl.u32 %v3767, 16
      %v3811 = vrot.slane %v3809, 7
      %v3812 = vshll.u32 %v3767, 16
      %v3814 = vor.u32 %v3811, %v3812
      %v3815 = vsel %vm3799, %v3807, %v3814
      %v3816 = vrot.slane %v3811, 4
      %v3818 = vshrl.u32 %v3768, 16
      %v3820 = vrot.slane %v3818, 7
      %v3821 = vshll.u32 %v3768, 16
      %v3823 = vor.u32 %v3820, %v3821
      %v3824 = vrot.slane %v3820, 4
      %v3826 = vshrl.u32 %v3769, 16
      %v3828 = vrot.slane %v3826, 7
      %v3829 = vshll.u32 %v3769, 16
      %v3831 = vor.u32 %v3828, %v3829
      %v3832 = vsel %vm3799, %v3824, %v3831
      %v3833 = vrot.slane %v3828, 4
      %v3835 = vshrl.u32 %v3770, 16
      %v3837 = vrot.slane %v3835, 7
      %v3838 = vshll.u32 %v3770, 16
      %v3840 = vor.u32 %v3837, %v3838
      %v3841 = vrot.slane %v3837, 4
      %v3843 = vshrl.u32 %v3771, 16
      %v3845 = vrot.slane %v3843, 7
      %v3846 = vshll.u32 %v3771, 16
      %v3848 = vor.u32 %v3845, %v3846
      %v3849 = vsel %vm3799, %v3841, %v3848
      %v3850 = vrot.slane %v3845, 4
      %v3852 = vshrl.u32 %v3772, 16
      %v3854 = vrot.slane %v3852, 7
      %v3855 = vshll.u32 %v3772, 16
      %v3857 = vor.u32 %v3854, %v3855
      %v3858 = vrot.slane %v3854, 4
      %v3860 = vshrl.u32 %v3773, 16
      %v3862 = vrot.slane %v3860, 7
      %v3863 = vshll.u32 %v3773, 16
      %v3865 = vor.u32 %v3862, %v3863
      %v3866 = vsel %vm3799, %v3858, %v3865
      %v3867 = vrot.slane %v3862, 4
      %v3869 = vshrl.u32 %v3774, 16
      %v3871 = vrot.slane %v3869, 7
      %v3872 = vshll.u32 %v3774, 16
      %v3874 = vor.u32 %v3871, %v3872
      %v3875 = vrot.slane %v3871, 4
      %v3877 = vshrl.u32 %v3775, 16
      %v3879 = vrot.slane %v3877, 7
      %v3880 = vshll.u32 %v3775, 16
      %v3882 = vor.u32 %v3879, %v3880
      %v3883 = vsel %vm3799, %v3875, %v3882
      %v3884 = vrot.slane %v3879, 4
      %v3886 = vshrl.u32 %v3776, 16
      %v3888 = vrot.slane %v3886, 7
      %v3889 = vshll.u32 %v3776, 16
      %v3891 = vor.u32 %v3888, %v3889
      %v3892 = vrot.slane %v3888, 4
      %v3894 = vshrl.u32 %v3777, 16
      %v3896 = vrot.slane %v3894, 7
      %v3897 = vshll.u32 %v3777, 16
      %v3899 = vor.u32 %v3896, %v3897
      %v3900 = vsel %vm3799, %v3892, %v3899
      %v3901 = vrot.slane %v3896, 4
      %v3903 = vshrl.u32 %v3778, 16
      %v3905 = vrot.slane %v3903, 7
      %v3906 = vshll.u32 %v3778, 16
      %v3908 = vor.u32 %v3905, %v3906
      %v3909 = vrot.slane %v3905, 4
      %v3911 = vshrl.u32 %v3779, 16
      %v3913 = vrot.slane %v3911, 7
      %v3914 = vshll.u32 %v3779, 16
      %v3916 = vor.u32 %v3913, %v3914
      %v3917 = vsel %vm3799, %v3909, %v3916
      %v3918 = vrot.slane %v3913, 4
      %v3920 = vshrl.u32 %v3780, 16
      %v3922 = vrot.slane %v3920, 7
      %v3923 = vshll.u32 %v3780, 16
      %v3925 = vor.u32 %v3922, %v3923
      %v3926 = vrot.slane %v3922, 4
      %v3928 = vshrl.u32 %v3781, 16
      %v3930 = vrot.slane %v3928, 7
      %v3931 = vshll.u32 %v3781, 16
      %v3933 = vor.u32 %v3930, %v3931
      %v3934 = vsel %vm3799, %v3926, %v3933
      %v3935 = vrot.slane %v3930, 4
      %v3937 = vshrl.u32 %v3782, 16
      %v3939 = vrot.slane %v3937, 7
      %v3940 = vshll.u32 %v3782, 16
      %v3942 = vor.u32 %v3939, %v3940
      %v3943 = vrot.slane %v3939, 4
      %v3945 = vshrl.u32 %v3783, 16
      %v3947 = vrot.slane %v3945, 7
      %v3948 = vshll.u32 %v3783, 16
      %v3950 = vor.u32 %v3947, %v3948
      %v3951 = vsel %vm3799, %v3943, %v3950
      %v3952 = vrot.slane %v3947, 4
      %v3954 = vshrl.u32 %v3784, 16
      %v3956 = vrot.slane %v3954, 7
      %v3957 = vshll.u32 %v3784, 16
      %v3959 = vor.u32 %v3956, %v3957
      %v3960 = vrot.slane %v3956, 4
      %v3962 = vshrl.u32 %v3785, 16
      %v3964 = vrot.slane %v3962, 7
      %v3965 = vshll.u32 %v3785, 16
      %v3967 = vor.u32 %v3964, %v3965
      %v3968 = vsel %vm3799, %v3960, %v3967
      %v3969 = vrot.slane %v3964, 4
      %v3971 = vshrl.u32 %v3786, 16
      %v3973 = vrot.slane %v3971, 7
      %v3974 = vshll.u32 %v3786, 16
      %v3976 = vor.u32 %v3973, %v3974
      %v3977 = vrot.slane %v3973, 4
      %v3979 = vshrl.u32 %v3787, 16
      %v3981 = vrot.slane %v3979, 7
      %v3982 = vshll.u32 %v3787, 16
      %v3984 = vor.u32 %v3981, %v3982
      %v3985 = vsel %vm3799, %v3977, %v3984
      %v3986 = vrot.slane %v3981, 4
      %v3988 = vshrl.u32 %v3788, 16
      %v3990 = vrot.slane %v3988, 7
      %v3991 = vshll.u32 %v3788, 16
      %v3993 = vor.u32 %v3990, %v3991
      %v3994 = vrot.slane %v3990, 4
      %v3996 = vshrl.u32 %v3789, 16
      %v3998 = vrot.slane %v3996, 7
      %v3999 = vshll.u32 %v3789, 16
      %v4001 = vor.u32 %v3998, %v3999
      %v4002 = vsel %vm3799, %v3994, %v4001
      %v4003 = vrot.slane %v3998, 4
      %v4005 = vshrl.u32 %v3790, 16
      %v4007 = vrot.slane %v4005, 7
      %v4008 = vshll.u32 %v3790, 16
      %v4010 = vor.u32 %v4007, %v4008
      %v4011 = vrot.slane %v4007, 4
      %v4013 = vshrl.u32 %v3791, 16
      %v4015 = vrot.slane %v4013, 7
      %v4016 = vshll.u32 %v3791, 16
      %v4018 = vor.u32 %v4015, %v4016
      %v4019 = vsel %vm3799, %v4011, %v4018
      %v4020 = vrot.slane %v4015, 4
      %v4022 = vshrl.u32 %v3792, 16
      %v4024 = vrot.slane %v4022, 7
      %v4025 = vshll.u32 %v3792, 16
      %v4027 = vor.u32 %v4024, %v4025
      %v4028 = vrot.slane %v4024, 4
      %v4030 = vshrl.u32 %v3793, 16
      %v4032 = vrot.slane %v4030, 7
      %v4033 = vshll.u32 %v3793, 16
      %v4035 = vor.u32 %v4032, %v4033
      %v4036 = vsel %vm3799, %v4028, %v4035
      %v4037 = vrot.slane %v4032, 4
      %v4039 = vshrl.u32 %v3794, 16
      %v4041 = vrot.slane %v4039, 7
      %v4042 = vshll.u32 %v3794, 16
      %v4044 = vor.u32 %v4041, %v4042
      %v4045 = vrot.slane %v4041, 4
      %v4047 = vshrl.u32 %v3795, 16
      %v4049 = vrot.slane %v4047, 7
      %v4050 = vshll.u32 %v3795, 16
      %v4052 = vor.u32 %v4049, %v4050
      %v4053 = vsel %vm3799, %v4045, %v4052
      %v4054 = vrot.slane %v4049, 4
      %v4056 = vshrl.u32 %v3796, 16
      %v4058 = vrot.slane %v4056, 7
      %v4059 = vshll.u32 %v3796, 16
      %v4061 = vor.u32 %v4058, %v4059
      %v4062 = vrot.slane %v4058, 4
      %v4064 = vshrl.u32 %v3797, 16
      %v4066 = vrot.slane %v4064, 7
      %v4067 = vshll.u32 %v3797, 16
      %v4069 = vor.u32 %v4066, %v4067
      %v4070 = vsel %vm3799, %v4062, %v4069
      %v4071 = vrot.slane %v4066, 4
      %s4120 = scalar_lea.vmem [#allocation2], 12
      %vm4121 = vcmask 27648
      %vm4122 = vmand %vm4121, %vm393
      %v4123 = vld [vmem:[%s4120] sm:$0xf]
      %v4124 = vsel %vm4122, %v3806, %v4123
      %4125 = vst [vmem:[%s4120] sm:$0xf] %v4124
      %4126 = vst.msk [vmem:[%s4120 + $0x4] sm:$0xf] %vm327, %v3815
      %v4127 = vld [vmem:[%s4120 + $0x8] sm:$0x1]
      %v4128 = vsel %vm338, %v3816, %v4127
      %4129 = vst [vmem:[%s4120 + $0x8] sm:$0x1] %v4128
      %v4130 = vld [vmem:[%s4120 + $0xc] sm:$0xf]
      %v4131 = vsel %vm4122, %v3823, %v4130
      %4132 = vst [vmem:[%s4120 + $0xc] sm:$0xf] %v4131
      %4133 = vst.msk [vmem:[%s4120 + $0x10] sm:$0xf] %vm327, %v3832
      %v4134 = vld [vmem:[%s4120 + $0x14] sm:$0x1]
      %v4135 = vsel %vm338, %v3833, %v4134
      %4136 = vst [vmem:[%s4120 + $0x14] sm:$0x1] %v4135
      %v4137 = vld [vmem:[%s4120 + $0x18] sm:$0xf]
      %v4138 = vsel %vm4122, %v3840, %v4137
      %4139 = vst [vmem:[%s4120 + $0x18] sm:$0xf] %v4138
      %4140 = vst.msk [vmem:[%s4120 + $0x1c] sm:$0xf] %vm327, %v3849
      %v4141 = vld [vmem:[%s4120 + $0x20] sm:$0x1]
      %v4142 = vsel %vm338, %v3850, %v4141
      %4143 = vst [vmem:[%s4120 + $0x20] sm:$0x1] %v4142
      %v4144 = vld [vmem:[%s4120 + $0x24] sm:$0xf]
      %v4145 = vsel %vm4122, %v3857, %v4144
      %4146 = vst [vmem:[%s4120 + $0x24] sm:$0xf] %v4145
      %4147 = vst.msk [vmem:[%s4120 + $0x28] sm:$0xf] %vm327, %v3866
      %v4148 = vld [vmem:[%s4120 + $0x2c] sm:$0x1]
      %v4149 = vsel %vm338, %v3867, %v4148
      %4150 = vst [vmem:[%s4120 + $0x2c] sm:$0x1] %v4149
      %v4151 = vld [vmem:[%s4120 + $0x30] sm:$0xf]
      %v4152 = vsel %vm4122, %v3874, %v4151
      %4153 = vst [vmem:[%s4120 + $0x30] sm:$0xf] %v4152
      %4154 = vst.msk [vmem:[%s4120 + $0x34] sm:$0xf] %vm327, %v3883
      %v4155 = vld [vmem:[%s4120 + $0x38] sm:$0x1]
      %v4156 = vsel %vm338, %v3884, %v4155
      %4157 = vst [vmem:[%s4120 + $0x38] sm:$0x1] %v4156
      %v4158 = vld [vmem:[%s4120 + $0x3c] sm:$0xf]
      %v4159 = vsel %vm4122, %v3891, %v4158
      %4160 = vst [vmem:[%s4120 + $0x3c] sm:$0xf] %v4159
      %4161 = vst.msk [vmem:[%s4120 + $0x40] sm:$0xf] %vm327, %v3900
      %v4162 = vld [vmem:[%s4120 + $0x44] sm:$0x1]
      %v4163 = vsel %vm338, %v3901, %v4162
      %4164 = vst [vmem:[%s4120 + $0x44] sm:$0x1] %v4163
      %v4165 = vld [vmem:[%s4120 + $0x48] sm:$0xf]
      %v4166 = vsel %vm4122, %v3908, %v4165
      %4167 = vst [vmem:[%s4120 + $0x48] sm:$0xf] %v4166
      %4168 = vst.msk [vmem:[%s4120 + $0x4c] sm:$0xf] %vm327, %v3917
      %v4169 = vld [vmem:[%s4120 + $0x50] sm:$0x1]
      %v4170 = vsel %vm338, %v3918, %v4169
      %4171 = vst [vmem:[%s4120 + $0x50] sm:$0x1] %v4170
      %v4172 = vld [vmem:[%s4120 + $0x54] sm:$0xf]
      %v4173 = vsel %vm4122, %v3925, %v4172
      %4174 = vst [vmem:[%s4120 + $0x54] sm:$0xf] %v4173
      %4175 = vst.msk [vmem:[%s4120 + $0x58] sm:$0xf] %vm327, %v3934
      %v4176 = vld [vmem:[%s4120 + $0x5c] sm:$0x1]
      %v4177 = vsel %vm338, %v3935, %v4176
      %4178 = vst [vmem:[%s4120 + $0x5c] sm:$0x1] %v4177
      %v4179 = vld [vmem:[%s4120 + $0x60] sm:$0xf]
      %v4180 = vsel %vm4122, %v3942, %v4179
      %4181 = vst [vmem:[%s4120 + $0x60] sm:$0xf] %v4180
      %4182 = vst.msk [vmem:[%s4120 + $0x64] sm:$0xf] %vm327, %v3951
      %v4183 = vld [vmem:[%s4120 + $0x68] sm:$0x1]
      %v4184 = vsel %vm338, %v3952, %v4183
      %4185 = vst [vmem:[%s4120 + $0x68] sm:$0x1] %v4184
      %v4186 = vld [vmem:[%s4120 + $0x6c] sm:$0xf]
      %v4187 = vsel %vm4122, %v3959, %v4186
      %4188 = vst [vmem:[%s4120 + $0x6c] sm:$0xf] %v4187
      %4189 = vst.msk [vmem:[%s4120 + $0x70] sm:$0xf] %vm327, %v3968
      %v4190 = vld [vmem:[%s4120 + $0x74] sm:$0x1]
      %v4191 = vsel %vm338, %v3969, %v4190
      %4192 = vst [vmem:[%s4120 + $0x74] sm:$0x1] %v4191
      %v4193 = vld [vmem:[%s4120 + $0x78] sm:$0xf]
      %v4194 = vsel %vm4122, %v3976, %v4193
      %4195 = vst [vmem:[%s4120 + $0x78] sm:$0xf] %v4194
      %4196 = vst.msk [vmem:[%s4120 + $0x7c] sm:$0xf] %vm327, %v3985
      %v4197 = vld [vmem:[%s4120 + $0x80] sm:$0x1]
      %v4198 = vsel %vm338, %v3986, %v4197
      %4199 = vst [vmem:[%s4120 + $0x80] sm:$0x1] %v4198
      %v4200 = vld [vmem:[%s4120 + $0x84] sm:$0xf]
      %v4201 = vsel %vm4122, %v3993, %v4200
      %4202 = vst [vmem:[%s4120 + $0x84] sm:$0xf] %v4201
      %4203 = vst.msk [vmem:[%s4120 + $0x88] sm:$0xf] %vm327, %v4002
      %v4204 = vld [vmem:[%s4120 + $0x8c] sm:$0x1]
      %v4205 = vsel %vm338, %v4003, %v4204
      %4206 = vst [vmem:[%s4120 + $0x8c] sm:$0x1] %v4205
      %v4207 = vld [vmem:[%s4120 + $0x90] sm:$0xf]
      %v4208 = vsel %vm4122, %v4010, %v4207
      %4209 = vst [vmem:[%s4120 + $0x90] sm:$0xf] %v4208
      %4210 = vst.msk [vmem:[%s4120 + $0x94] sm:$0xf] %vm327, %v4019
      %v4211 = vld [vmem:[%s4120 + $0x98] sm:$0x1]
      %v4212 = vsel %vm338, %v4020, %v4211
      %4213 = vst [vmem:[%s4120 + $0x98] sm:$0x1] %v4212
      %v4214 = vld [vmem:[%s4120 + $0x9c] sm:$0xf]
      %v4215 = vsel %vm4122, %v4027, %v4214
      %4216 = vst [vmem:[%s4120 + $0x9c] sm:$0xf] %v4215
      %4217 = vst.msk [vmem:[%s4120 + $0xa0] sm:$0xf] %vm327, %v4036
      %v4218 = vld [vmem:[%s4120 + $0xa4] sm:$0x1]
      %v4219 = vsel %vm338, %v4037, %v4218
      %4220 = vst [vmem:[%s4120 + $0xa4] sm:$0x1] %v4219
      %v4221 = vld [vmem:[%s4120 + $0xa8] sm:$0xf]
      %v4222 = vsel %vm4122, %v4044, %v4221
      %4223 = vst [vmem:[%s4120 + $0xa8] sm:$0xf] %v4222
      %4224 = vst.msk [vmem:[%s4120 + $0xac] sm:$0xf] %vm327, %v4053
      %v4225 = vld [vmem:[%s4120 + $0xb0] sm:$0x1]
      %v4226 = vsel %vm338, %v4054, %v4225
      %4227 = vst [vmem:[%s4120 + $0xb0] sm:$0x1] %v4226
      %v4228 = vld [vmem:[%s4120 + $0xb4] sm:$0xf]
      %v4229 = vsel %vm4122, %v4061, %v4228
      %4230 = vst [vmem:[%s4120 + $0xb4] sm:$0xf] %v4229
      %4231 = vst.msk [vmem:[%s4120 + $0xb8] sm:$0xf] %vm327, %v4070
      %v4232 = vld [vmem:[%s4120 + $0xbc] sm:$0x1]
      %v4233 = vsel %vm338, %v4071, %v4232
      %4234 = vst [vmem:[%s4120 + $0xbc] sm:$0x1] %v4233
      %v4363 = vcombine.low %v2342, %v2344
      %v4364 = vcombine.low %v2343, %v2345
      %v4366 = vunpack.c.l.s4 1935823168
      %v4367 = vunpack.c.0.s8 %v4366
      %v4368 = vlaneseq
      %v4369 = vshrl.u32 %v4368, 7
      %v4370 = vsub.s32 %v4367, %v4369
      %v4371 = vrot.slane %v4363, %v4370
      %v4373 = vunpack.c.l.s4 1935823168
      %v4374 = vunpack.c.0.s8 %v4373
      %v4375 = vlaneseq
      %v4376 = vshrl.u32 %v4375, 7
      %v4377 = vsub.s32 %v4374, %v4376
      %v4378 = vrot.slane %v4364, %v4377
      %v4379 = vcombine.low %v4371, %v4378
      %v4381 = vunpack.c.l.s4 1935823168
      %v4382 = vunpack.c.0.s8 %v4381
      %v4383 = vlaneseq
      %v4384 = vshrl.u32 %v4383, 7
      %v4385 = vsub.s32 %v4382, %v4384
      %v4386 = vrot.slane %v4379, %v4385
      %v4387 = vcombine.low %v2346, %v2348
      %v4388 = vcombine.low %v2347, %v2349
      %v4390 = vunpack.c.l.s4 1935823168
      %v4391 = vunpack.c.0.s8 %v4390
      %v4392 = vlaneseq
      %v4393 = vshrl.u32 %v4392, 7
      %v4394 = vsub.s32 %v4391, %v4393
      %v4395 = vrot.slane %v4387, %v4394
      %v4397 = vunpack.c.l.s4 1935823168
      %v4398 = vunpack.c.0.s8 %v4397
      %v4399 = vlaneseq
      %v4400 = vshrl.u32 %v4399, 7
      %v4401 = vsub.s32 %v4398, %v4400
      %v4402 = vrot.slane %v4388, %v4401
      %v4403 = vcombine.low %v4395, %v4402
      %v4405 = vunpack.c.l.s4 1935823168
      %v4406 = vunpack.c.0.s8 %v4405
      %v4407 = vlaneseq
      %v4408 = vshrl.u32 %v4407, 7
      %v4409 = vsub.s32 %v4406, %v4408
      %v4410 = vrot.slane %v4403, %v4409
      %v4411 = vcombine.low %v3702, %v3704
      %v4412 = vcombine.low %v3703, %v3705
      %v4414 = vunpack.c.l.s4 1935823168
      %v4415 = vunpack.c.0.s8 %v4414
      %v4416 = vlaneseq
      %v4417 = vshrl.u32 %v4416, 7
      %v4418 = vsub.s32 %v4415, %v4417
      %v4419 = vrot.slane %v4411, %v4418
      %v4421 = vunpack.c.l.s4 1935823168
      %v4422 = vunpack.c.0.s8 %v4421
      %v4423 = vlaneseq
      %v4424 = vshrl.u32 %v4423, 7
      %v4425 = vsub.s32 %v4422, %v4424
      %v4426 = vrot.slane %v4412, %v4425
      %v4427 = vcombine.low %v4419, %v4426
      %v4429 = vunpack.c.l.s4 1935823168
      %v4430 = vunpack.c.0.s8 %v4429
      %v4431 = vlaneseq
      %v4432 = vshrl.u32 %v4431, 7
      %v4433 = vsub.s32 %v4430, %v4432
      %v4434 = vrot.slane %v4427, %v4433
      %v4435 = vcombine.low %v3706, %v3708
      %v4436 = vcombine.low %v3707, %v3709
      %v4438 = vunpack.c.l.s4 1935823168
      %v4439 = vunpack.c.0.s8 %v4438
      %v4440 = vlaneseq
      %v4441 = vshrl.u32 %v4440, 7
      %v4442 = vsub.s32 %v4439, %v4441
      %v4443 = vrot.slane %v4435, %v4442
      %v4445 = vunpack.c.l.s4 1935823168
      %v4446 = vunpack.c.0.s8 %v4445
      %v4447 = vlaneseq
      %v4448 = vshrl.u32 %v4447, 7
      %v4449 = vsub.s32 %v4446, %v4448
      %v4450 = vrot.slane %v4436, %v4449
      %v4451 = vcombine.low %v4443, %v4450
      %v4453 = vunpack.c.l.s4 1935823168
      %v4454 = vunpack.c.0.s8 %v4453
      %v4455 = vlaneseq
      %v4456 = vshrl.u32 %v4455, 7
      %v4457 = vsub.s32 %v4454, %v4456
      %v4458 = vrot.slane %v4451, %v4457
      %v4459 = vcombine.low %v2350, %v2352
      %v4460 = vcombine.low %v2351, %v2353
      %v4462 = vunpack.c.l.s4 1935823168
      %v4463 = vunpack.c.0.s8 %v4462
      %v4464 = vlaneseq
      %v4465 = vshrl.u32 %v4464, 7
      %v4466 = vsub.s32 %v4463, %v4465
      %v4467 = vrot.slane %v4459, %v4466
      %v4469 = vunpack.c.l.s4 1935823168
      %v4470 = vunpack.c.0.s8 %v4469
      %v4471 = vlaneseq
      %v4472 = vshrl.u32 %v4471, 7
      %v4473 = vsub.s32 %v4470, %v4472
      %v4474 = vrot.slane %v4460, %v4473
      %v4475 = vcombine.low %v4467, %v4474
      %v4477 = vunpack.c.l.s4 1935823168
      %v4478 = vunpack.c.0.s8 %v4477
      %v4479 = vlaneseq
      %v4480 = vshrl.u32 %v4479, 7
      %v4481 = vsub.s32 %v4478, %v4480
      %v4482 = vrot.slane %v4475, %v4481
      %v4483 = vcombine.low %v2354, %v2356
      %v4484 = vcombine.low %v2355, %v2357
      %v4486 = vunpack.c.l.s4 1935823168
      %v4487 = vunpack.c.0.s8 %v4486
      %v4488 = vlaneseq
      %v4489 = vshrl.u32 %v4488, 7
      %v4490 = vsub.s32 %v4487, %v4489
      %v4491 = vrot.slane %v4483, %v4490
      %v4493 = vunpack.c.l.s4 1935823168
      %v4494 = vunpack.c.0.s8 %v4493
      %v4495 = vlaneseq
      %v4496 = vshrl.u32 %v4495, 7
      %v4497 = vsub.s32 %v4494, %v4496
      %v4498 = vrot.slane %v4484, %v4497
      %v4499 = vcombine.low %v4491, %v4498
      %v4501 = vunpack.c.l.s4 1935823168
      %v4502 = vunpack.c.0.s8 %v4501
      %v4503 = vlaneseq
      %v4504 = vshrl.u32 %v4503, 7
      %v4505 = vsub.s32 %v4502, %v4504
      %v4506 = vrot.slane %v4499, %v4505
      %v4507 = vcombine.low %v3710, %v3712
      %v4508 = vcombine.low %v3711, %v3713
      %v4510 = vunpack.c.l.s4 1935823168
      %v4511 = vunpack.c.0.s8 %v4510
      %v4512 = vlaneseq
      %v4513 = vshrl.u32 %v4512, 7
      %v4514 = vsub.s32 %v4511, %v4513
      %v4515 = vrot.slane %v4507, %v4514
      %v4517 = vunpack.c.l.s4 1935823168
      %v4518 = vunpack.c.0.s8 %v4517
      %v4519 = vlaneseq
      %v4520 = vshrl.u32 %v4519, 7
      %v4521 = vsub.s32 %v4518, %v4520
      %v4522 = vrot.slane %v4508, %v4521
      %v4523 = vcombine.low %v4515, %v4522
      %v4525 = vunpack.c.l.s4 1935823168
      %v4526 = vunpack.c.0.s8 %v4525
      %v4527 = vlaneseq
      %v4528 = vshrl.u32 %v4527, 7
      %v4529 = vsub.s32 %v4526, %v4528
      %v4530 = vrot.slane %v4523, %v4529
      %v4531 = vcombine.low %v3714, %v3716
      %v4532 = vcombine.low %v3715, %v3717
      %v4534 = vunpack.c.l.s4 1935823168
      %v4535 = vunpack.c.0.s8 %v4534
      %v4536 = vlaneseq
      %v4537 = vshrl.u32 %v4536, 7
      %v4538 = vsub.s32 %v4535, %v4537
      %v4539 = vrot.slane %v4531, %v4538
      %v4541 = vunpack.c.l.s4 1935823168
      %v4542 = vunpack.c.0.s8 %v4541
      %v4543 = vlaneseq
      %v4544 = vshrl.u32 %v4543, 7
      %v4545 = vsub.s32 %v4542, %v4544
      %v4546 = vrot.slane %v4532, %v4545
      %v4547 = vcombine.low %v4539, %v4546
      %v4549 = vunpack.c.l.s4 1935823168
      %v4550 = vunpack.c.0.s8 %v4549
      %v4551 = vlaneseq
      %v4552 = vshrl.u32 %v4551, 7
      %v4553 = vsub.s32 %v4550, %v4552
      %v4554 = vrot.slane %v4547, %v4553
      %v4555 = vcombine.low %v2358, %v2360
      %v4556 = vcombine.low %v2359, %v2361
      %v4558 = vunpack.c.l.s4 1935823168
      %v4559 = vunpack.c.0.s8 %v4558
      %v4560 = vlaneseq
      %v4561 = vshrl.u32 %v4560, 7
      %v4562 = vsub.s32 %v4559, %v4561
      %v4563 = vrot.slane %v4555, %v4562
      %v4565 = vunpack.c.l.s4 1935823168
      %v4566 = vunpack.c.0.s8 %v4565
      %v4567 = vlaneseq
      %v4568 = vshrl.u32 %v4567, 7
      %v4569 = vsub.s32 %v4566, %v4568
      %v4570 = vrot.slane %v4556, %v4569
      %v4571 = vcombine.low %v4563, %v4570
      %v4573 = vunpack.c.l.s4 1935823168
      %v4574 = vunpack.c.0.s8 %v4573
      %v4575 = vlaneseq
      %v4576 = vshrl.u32 %v4575, 7
      %v4577 = vsub.s32 %v4574, %v4576
      %v4578 = vrot.slane %v4571, %v4577
      %v4579 = vcombine.low %v2362, %v2364
      %v4580 = vcombine.low %v2363, %v2365
      %v4582 = vunpack.c.l.s4 1935823168
      %v4583 = vunpack.c.0.s8 %v4582
      %v4584 = vlaneseq
      %v4585 = vshrl.u32 %v4584, 7
      %v4586 = vsub.s32 %v4583, %v4585
      %v4587 = vrot.slane %v4579, %v4586
      %v4589 = vunpack.c.l.s4 1935823168
      %v4590 = vunpack.c.0.s8 %v4589
      %v4591 = vlaneseq
      %v4592 = vshrl.u32 %v4591, 7
      %v4593 = vsub.s32 %v4590, %v4592
      %v4594 = vrot.slane %v4580, %v4593
      %v4595 = vcombine.low %v4587, %v4594
      %v4597 = vunpack.c.l.s4 1935823168
      %v4598 = vunpack.c.0.s8 %v4597
      %v4599 = vlaneseq
      %v4600 = vshrl.u32 %v4599, 7
      %v4601 = vsub.s32 %v4598, %v4600
      %v4602 = vrot.slane %v4595, %v4601
      %v4603 = vcombine.low %v3718, %v3720
      %v4604 = vcombine.low %v3719, %v3721
      %v4606 = vunpack.c.l.s4 1935823168
      %v4607 = vunpack.c.0.s8 %v4606
      %v4608 = vlaneseq
      %v4609 = vshrl.u32 %v4608, 7
      %v4610 = vsub.s32 %v4607, %v4609
      %v4611 = vrot.slane %v4603, %v4610
      %v4613 = vunpack.c.l.s4 1935823168
      %v4614 = vunpack.c.0.s8 %v4613
      %v4615 = vlaneseq
      %v4616 = vshrl.u32 %v4615, 7
      %v4617 = vsub.s32 %v4614, %v4616
      %v4618 = vrot.slane %v4604, %v4617
      %v4619 = vcombine.low %v4611, %v4618
      %v4621 = vunpack.c.l.s4 1935823168
      %v4622 = vunpack.c.0.s8 %v4621
      %v4623 = vlaneseq
      %v4624 = vshrl.u32 %v4623, 7
      %v4625 = vsub.s32 %v4622, %v4624
      %v4626 = vrot.slane %v4619, %v4625
      %v4627 = vcombine.low %v3722, %v3724
      %v4628 = vcombine.low %v3723, %v3725
      %v4630 = vunpack.c.l.s4 1935823168
      %v4631 = vunpack.c.0.s8 %v4630
      %v4632 = vlaneseq
      %v4633 = vshrl.u32 %v4632, 7
      %v4634 = vsub.s32 %v4631, %v4633
      %v4635 = vrot.slane %v4627, %v4634
      %v4637 = vunpack.c.l.s4 1935823168
      %v4638 = vunpack.c.0.s8 %v4637
      %v4639 = vlaneseq
      %v4640 = vshrl.u32 %v4639, 7
      %v4641 = vsub.s32 %v4638, %v4640
      %v4642 = vrot.slane %v4628, %v4641
      %v4643 = vcombine.low %v4635, %v4642
      %v4645 = vunpack.c.l.s4 1935823168
      %v4646 = vunpack.c.0.s8 %v4645
      %v4647 = vlaneseq
      %v4648 = vshrl.u32 %v4647, 7
      %v4649 = vsub.s32 %v4646, %v4648
      %v4650 = vrot.slane %v4643, %v4649
      %v4651 = vcombine.low %v2366, %v2368
      %v4652 = vcombine.low %v2367, %v2369
      %v4654 = vunpack.c.l.s4 1935823168
      %v4655 = vunpack.c.0.s8 %v4654
      %v4656 = vlaneseq
      %v4657 = vshrl.u32 %v4656, 7
      %v4658 = vsub.s32 %v4655, %v4657
      %v4659 = vrot.slane %v4651, %v4658
      %v4661 = vunpack.c.l.s4 1935823168
      %v4662 = vunpack.c.0.s8 %v4661
      %v4663 = vlaneseq
      %v4664 = vshrl.u32 %v4663, 7
      %v4665 = vsub.s32 %v4662, %v4664
      %v4666 = vrot.slane %v4652, %v4665
      %v4667 = vcombine.low %v4659, %v4666
      %v4669 = vunpack.c.l.s4 1935823168
      %v4670 = vunpack.c.0.s8 %v4669
      %v4671 = vlaneseq
      %v4672 = vshrl.u32 %v4671, 7
      %v4673 = vsub.s32 %v4670, %v4672
      %v4674 = vrot.slane %v4667, %v4673
      %v4675 = vcombine.low %v2370, %v2372
      %v4676 = vcombine.low %v2371, %v2373
      %v4678 = vunpack.c.l.s4 1935823168
      %v4679 = vunpack.c.0.s8 %v4678
      %v4680 = vlaneseq
      %v4681 = vshrl.u32 %v4680, 7
      %v4682 = vsub.s32 %v4679, %v4681
      %v4683 = vrot.slane %v4675, %v4682
      %v4685 = vunpack.c.l.s4 1935823168
      %v4686 = vunpack.c.0.s8 %v4685
      %v4687 = vlaneseq
      %v4688 = vshrl.u32 %v4687, 7
      %v4689 = vsub.s32 %v4686, %v4688
      %v4690 = vrot.slane %v4676, %v4689
      %v4691 = vcombine.low %v4683, %v4690
      %v4693 = vunpack.c.l.s4 1935823168
      %v4694 = vunpack.c.0.s8 %v4693
      %v4695 = vlaneseq
      %v4696 = vshrl.u32 %v4695, 7
      %v4697 = vsub.s32 %v4694, %v4696
      %v4698 = vrot.slane %v4691, %v4697
      %v4699 = vcombine.low %v3726, %v3728
      %v4700 = vcombine.low %v3727, %v3729
      %v4702 = vunpack.c.l.s4 1935823168
      %v4703 = vunpack.c.0.s8 %v4702
      %v4704 = vlaneseq
      %v4705 = vshrl.u32 %v4704, 7
      %v4706 = vsub.s32 %v4703, %v4705
      %v4707 = vrot.slane %v4699, %v4706
      %v4709 = vunpack.c.l.s4 1935823168
      %v4710 = vunpack.c.0.s8 %v4709
      %v4711 = vlaneseq
      %v4712 = vshrl.u32 %v4711, 7
      %v4713 = vsub.s32 %v4710, %v4712
      %v4714 = vrot.slane %v4700, %v4713
      %v4715 = vcombine.low %v4707, %v4714
      %v4717 = vunpack.c.l.s4 1935823168
      %v4718 = vunpack.c.0.s8 %v4717
      %v4719 = vlaneseq
      %v4720 = vshrl.u32 %v4719, 7
      %v4721 = vsub.s32 %v4718, %v4720
      %v4722 = vrot.slane %v4715, %v4721
      %v4723 = vcombine.low %v3730, %v3732
      %v4724 = vcombine.low %v3731, %v3733
      %v4726 = vunpack.c.l.s4 1935823168
      %v4727 = vunpack.c.0.s8 %v4726
      %v4728 = vlaneseq
      %v4729 = vshrl.u32 %v4728, 7
      %v4730 = vsub.s32 %v4727, %v4729
      %v4731 = vrot.slane %v4723, %v4730
      %v4733 = vunpack.c.l.s4 1935823168
      %v4734 = vunpack.c.0.s8 %v4733
      %v4735 = vlaneseq
      %v4736 = vshrl.u32 %v4735, 7
      %v4737 = vsub.s32 %v4734, %v4736
      %v4738 = vrot.slane %v4724, %v4737
      %v4739 = vcombine.low %v4731, %v4738
      %v4741 = vunpack.c.l.s4 1935823168
      %v4742 = vunpack.c.0.s8 %v4741
      %v4743 = vlaneseq
      %v4744 = vshrl.u32 %v4743, 7
      %v4745 = vsub.s32 %v4742, %v4744
      %v4746 = vrot.slane %v4739, %v4745
      %v4747 = vcombine.low %v2374, %v2376
      %v4748 = vcombine.low %v2375, %v2377
      %v4750 = vunpack.c.l.s4 1935823168
      %v4751 = vunpack.c.0.s8 %v4750
      %v4752 = vlaneseq
      %v4753 = vshrl.u32 %v4752, 7
      %v4754 = vsub.s32 %v4751, %v4753
      %v4755 = vrot.slane %v4747, %v4754
      %v4757 = vunpack.c.l.s4 1935823168
      %v4758 = vunpack.c.0.s8 %v4757
      %v4759 = vlaneseq
      %v4760 = vshrl.u32 %v4759, 7
      %v4761 = vsub.s32 %v4758, %v4760
      %v4762 = vrot.slane %v4748, %v4761
      %v4763 = vcombine.low %v4755, %v4762
      %v4765 = vunpack.c.l.s4 1935823168
      %v4766 = vunpack.c.0.s8 %v4765
      %v4767 = vlaneseq
      %v4768 = vshrl.u32 %v4767, 7
      %v4769 = vsub.s32 %v4766, %v4768
      %v4770 = vrot.slane %v4763, %v4769
      %v4771 = vcombine.low %v2378, %v2380
      %v4772 = vcombine.low %v2379, %v2381
      %v4774 = vunpack.c.l.s4 1935823168
      %v4775 = vunpack.c.0.s8 %v4774
      %v4776 = vlaneseq
      %v4777 = vshrl.u32 %v4776, 7
      %v4778 = vsub.s32 %v4775, %v4777
      %v4779 = vrot.slane %v4771, %v4778
      %v4781 = vunpack.c.l.s4 1935823168
      %v4782 = vunpack.c.0.s8 %v4781
      %v4783 = vlaneseq
      %v4784 = vshrl.u32 %v4783, 7
      %v4785 = vsub.s32 %v4782, %v4784
      %v4786 = vrot.slane %v4772, %v4785
      %v4787 = vcombine.low %v4779, %v4786
      %v4789 = vunpack.c.l.s4 1935823168
      %v4790 = vunpack.c.0.s8 %v4789
      %v4791 = vlaneseq
      %v4792 = vshrl.u32 %v4791, 7
      %v4793 = vsub.s32 %v4790, %v4792
      %v4794 = vrot.slane %v4787, %v4793
      %v4795 = vcombine.low %v3734, %v3736
      %v4796 = vcombine.low %v3735, %v3737
      %v4798 = vunpack.c.l.s4 1935823168
      %v4799 = vunpack.c.0.s8 %v4798
      %v4800 = vlaneseq
      %v4801 = vshrl.u32 %v4800, 7
      %v4802 = vsub.s32 %v4799, %v4801
      %v4803 = vrot.slane %v4795, %v4802
      %v4805 = vunpack.c.l.s4 1935823168
      %v4806 = vunpack.c.0.s8 %v4805
      %v4807 = vlaneseq
      %v4808 = vshrl.u32 %v4807, 7
      %v4809 = vsub.s32 %v4806, %v4808
      %v4810 = vrot.slane %v4796, %v4809
      %v4811 = vcombine.low %v4803, %v4810
      %v4813 = vunpack.c.l.s4 1935823168
      %v4814 = vunpack.c.0.s8 %v4813
      %v4815 = vlaneseq
      %v4816 = vshrl.u32 %v4815, 7
      %v4817 = vsub.s32 %v4814, %v4816
      %v4818 = vrot.slane %v4811, %v4817
      %v4819 = vcombine.low %v3738, %v3740
      %v4820 = vcombine.low %v3739, %v3741
      %v4822 = vunpack.c.l.s4 1935823168
      %v4823 = vunpack.c.0.s8 %v4822
      %v4824 = vlaneseq
      %v4825 = vshrl.u32 %v4824, 7
      %v4826 = vsub.s32 %v4823, %v4825
      %v4827 = vrot.slane %v4819, %v4826
      %v4829 = vunpack.c.l.s4 1935823168
      %v4830 = vunpack.c.0.s8 %v4829
      %v4831 = vlaneseq
      %v4832 = vshrl.u32 %v4831, 7
      %v4833 = vsub.s32 %v4830, %v4832
      %v4834 = vrot.slane %v4820, %v4833
      %v4835 = vcombine.low %v4827, %v4834
      %v4837 = vunpack.c.l.s4 1935823168
      %v4838 = vunpack.c.0.s8 %v4837
      %v4839 = vlaneseq
      %v4840 = vshrl.u32 %v4839, 7
      %v4841 = vsub.s32 %v4838, %v4840
      %v4842 = vrot.slane %v4835, %v4841
      %v4843 = vcombine.low %v2382, %v2384
      %v4844 = vcombine.low %v2383, %v2385
      %v4846 = vunpack.c.l.s4 1935823168
      %v4847 = vunpack.c.0.s8 %v4846
      %v4848 = vlaneseq
      %v4849 = vshrl.u32 %v4848, 7
      %v4850 = vsub.s32 %v4847, %v4849
      %v4851 = vrot.slane %v4843, %v4850
      %v4853 = vunpack.c.l.s4 1935823168
      %v4854 = vunpack.c.0.s8 %v4853
      %v4855 = vlaneseq
      %v4856 = vshrl.u32 %v4855, 7
      %v4857 = vsub.s32 %v4854, %v4856
      %v4858 = vrot.slane %v4844, %v4857
      %v4859 = vcombine.low %v4851, %v4858
      %v4861 = vunpack.c.l.s4 1935823168
      %v4862 = vunpack.c.0.s8 %v4861
      %v4863 = vlaneseq
      %v4864 = vshrl.u32 %v4863, 7
      %v4865 = vsub.s32 %v4862, %v4864
      %v4866 = vrot.slane %v4859, %v4865
      %v4867 = vcombine.low %v2386, %v2388
      %v4868 = vcombine.low %v2387, %v2389
      %v4870 = vunpack.c.l.s4 1935823168
      %v4871 = vunpack.c.0.s8 %v4870
      %v4872 = vlaneseq
      %v4873 = vshrl.u32 %v4872, 7
      %v4874 = vsub.s32 %v4871, %v4873
      %v4875 = vrot.slane %v4867, %v4874
      %v4877 = vunpack.c.l.s4 1935823168
      %v4878 = vunpack.c.0.s8 %v4877
      %v4879 = vlaneseq
      %v4880 = vshrl.u32 %v4879, 7
      %v4881 = vsub.s32 %v4878, %v4880
      %v4882 = vrot.slane %v4868, %v4881
      %v4883 = vcombine.low %v4875, %v4882
      %v4885 = vunpack.c.l.s4 1935823168
      %v4886 = vunpack.c.0.s8 %v4885
      %v4887 = vlaneseq
      %v4888 = vshrl.u32 %v4887, 7
      %v4889 = vsub.s32 %v4886, %v4888
      %v4890 = vrot.slane %v4883, %v4889
      %v4891 = vcombine.low %v3742, %v3744
      %v4892 = vcombine.low %v3743, %v3745
      %v4894 = vunpack.c.l.s4 1935823168
      %v4895 = vunpack.c.0.s8 %v4894
      %v4896 = vlaneseq
      %v4897 = vshrl.u32 %v4896, 7
      %v4898 = vsub.s32 %v4895, %v4897
      %v4899 = vrot.slane %v4891, %v4898
      %v4901 = vunpack.c.l.s4 1935823168
      %v4902 = vunpack.c.0.s8 %v4901
      %v4903 = vlaneseq
      %v4904 = vshrl.u32 %v4903, 7
      %v4905 = vsub.s32 %v4902, %v4904
      %v4906 = vrot.slane %v4892, %v4905
      %v4907 = vcombine.low %v4899, %v4906
      %v4909 = vunpack.c.l.s4 1935823168
      %v4910 = vunpack.c.0.s8 %v4909
      %v4911 = vlaneseq
      %v4912 = vshrl.u32 %v4911, 7
      %v4913 = vsub.s32 %v4910, %v4912
      %v4914 = vrot.slane %v4907, %v4913
      %v4915 = vcombine.low %v3746, %v3748
      %v4916 = vcombine.low %v3747, %v3749
      %v4918 = vunpack.c.l.s4 1935823168
      %v4919 = vunpack.c.0.s8 %v4918
      %v4920 = vlaneseq
      %v4921 = vshrl.u32 %v4920, 7
      %v4922 = vsub.s32 %v4919, %v4921
      %v4923 = vrot.slane %v4915, %v4922
      %v4925 = vunpack.c.l.s4 1935823168
      %v4926 = vunpack.c.0.s8 %v4925
      %v4927 = vlaneseq
      %v4928 = vshrl.u32 %v4927, 7
      %v4929 = vsub.s32 %v4926, %v4928
      %v4930 = vrot.slane %v4916, %v4929
      %v4931 = vcombine.low %v4923, %v4930
      %v4933 = vunpack.c.l.s4 1935823168
      %v4934 = vunpack.c.0.s8 %v4933
      %v4935 = vlaneseq
      %v4936 = vshrl.u32 %v4935, 7
      %v4937 = vsub.s32 %v4934, %v4936
      %v4938 = vrot.slane %v4931, %v4937
      %v4939 = vcombine.low %v2390, %v2392
      %v4940 = vcombine.low %v2391, %v2393
      %v4942 = vunpack.c.l.s4 1935823168
      %v4943 = vunpack.c.0.s8 %v4942
      %v4944 = vlaneseq
      %v4945 = vshrl.u32 %v4944, 7
      %v4946 = vsub.s32 %v4943, %v4945
      %v4947 = vrot.slane %v4939, %v4946
      %v4949 = vunpack.c.l.s4 1935823168
      %v4950 = vunpack.c.0.s8 %v4949
      %v4951 = vlaneseq
      %v4952 = vshrl.u32 %v4951, 7
      %v4953 = vsub.s32 %v4950, %v4952
      %v4954 = vrot.slane %v4940, %v4953
      %v4955 = vcombine.low %v4947, %v4954
      %v4957 = vunpack.c.l.s4 1935823168
      %v4958 = vunpack.c.0.s8 %v4957
      %v4959 = vlaneseq
      %v4960 = vshrl.u32 %v4959, 7
      %v4961 = vsub.s32 %v4958, %v4960
      %v4962 = vrot.slane %v4955, %v4961
      %v4963 = vcombine.low %v2394, %v2396
      %v4964 = vcombine.low %v2395, %v2397
      %v4966 = vunpack.c.l.s4 1935823168
      %v4967 = vunpack.c.0.s8 %v4966
      %v4968 = vlaneseq
      %v4969 = vshrl.u32 %v4968, 7
      %v4970 = vsub.s32 %v4967, %v4969
      %v4971 = vrot.slane %v4963, %v4970
      %v4973 = vunpack.c.l.s4 1935823168
      %v4974 = vunpack.c.0.s8 %v4973
      %v4975 = vlaneseq
      %v4976 = vshrl.u32 %v4975, 7
      %v4977 = vsub.s32 %v4974, %v4976
      %v4978 = vrot.slane %v4964, %v4977
      %v4979 = vcombine.low %v4971, %v4978
      %v4981 = vunpack.c.l.s4 1935823168
      %v4982 = vunpack.c.0.s8 %v4981
      %v4983 = vlaneseq
      %v4984 = vshrl.u32 %v4983, 7
      %v4985 = vsub.s32 %v4982, %v4984
      %v4986 = vrot.slane %v4979, %v4985
      %v4987 = vcombine.low %v3750, %v3752
      %v4988 = vcombine.low %v3751, %v3753
      %v4990 = vunpack.c.l.s4 1935823168
      %v4991 = vunpack.c.0.s8 %v4990
      %v4992 = vlaneseq
      %v4993 = vshrl.u32 %v4992, 7
      %v4994 = vsub.s32 %v4991, %v4993
      %v4995 = vrot.slane %v4987, %v4994
      %v4997 = vunpack.c.l.s4 1935823168
      %v4998 = vunpack.c.0.s8 %v4997
      %v4999 = vlaneseq
      %v5000 = vshrl.u32 %v4999, 7
      %v5001 = vsub.s32 %v4998, %v5000
      %v5002 = vrot.slane %v4988, %v5001
      %v5003 = vcombine.low %v4995, %v5002
      %v5005 = vunpack.c.l.s4 1935823168
      %v5006 = vunpack.c.0.s8 %v5005
      %v5007 = vlaneseq
      %v5008 = vshrl.u32 %v5007, 7
      %v5009 = vsub.s32 %v5006, %v5008
      %v5010 = vrot.slane %v5003, %v5009
      %v5011 = vcombine.low %v3754, %v3756
      %v5012 = vcombine.low %v3755, %v3757
      %v5014 = vunpack.c.l.s4 1935823168
      %v5015 = vunpack.c.0.s8 %v5014
      %v5016 = vlaneseq
      %v5017 = vshrl.u32 %v5016, 7
      %v5018 = vsub.s32 %v5015, %v5017
      %v5019 = vrot.slane %v5011, %v5018
      %v5021 = vunpack.c.l.s4 1935823168
      %v5022 = vunpack.c.0.s8 %v5021
      %v5023 = vlaneseq
      %v5024 = vshrl.u32 %v5023, 7
      %v5025 = vsub.s32 %v5022, %v5024
      %v5026 = vrot.slane %v5012, %v5025
      %v5027 = vcombine.low %v5019, %v5026
      %v5029 = vunpack.c.l.s4 1935823168
      %v5030 = vunpack.c.0.s8 %v5029
      %v5031 = vlaneseq
      %v5032 = vshrl.u32 %v5031, 7
      %v5033 = vsub.s32 %v5030, %v5032
      %v5034 = vrot.slane %v5027, %v5033
      %v5035 = vcombine.low %v2398, %v2400
      %v5036 = vcombine.low %v2399, %v2401
      %v5038 = vunpack.c.l.s4 1935823168
      %v5039 = vunpack.c.0.s8 %v5038
      %v5040 = vlaneseq
      %v5041 = vshrl.u32 %v5040, 7
      %v5042 = vsub.s32 %v5039, %v5041
      %v5043 = vrot.slane %v5035, %v5042
      %v5045 = vunpack.c.l.s4 1935823168
      %v5046 = vunpack.c.0.s8 %v5045
      %v5047 = vlaneseq
      %v5048 = vshrl.u32 %v5047, 7
      %v5049 = vsub.s32 %v5046, %v5048
      %v5050 = vrot.slane %v5036, %v5049
      %v5051 = vcombine.low %v5043, %v5050
      %v5053 = vunpack.c.l.s4 1935823168
      %v5054 = vunpack.c.0.s8 %v5053
      %v5055 = vlaneseq
      %v5056 = vshrl.u32 %v5055, 7
      %v5057 = vsub.s32 %v5054, %v5056
      %v5058 = vrot.slane %v5051, %v5057
      %v5059 = vcombine.low %v2402, %v2404
      %v5060 = vcombine.low %v2403, %v2405
      %v5062 = vunpack.c.l.s4 1935823168
      %v5063 = vunpack.c.0.s8 %v5062
      %v5064 = vlaneseq
      %v5065 = vshrl.u32 %v5064, 7
      %v5066 = vsub.s32 %v5063, %v5065
      %v5067 = vrot.slane %v5059, %v5066
      %v5069 = vunpack.c.l.s4 1935823168
      %v5070 = vunpack.c.0.s8 %v5069
      %v5071 = vlaneseq
      %v5072 = vshrl.u32 %v5071, 7
      %v5073 = vsub.s32 %v5070, %v5072
      %v5074 = vrot.slane %v5060, %v5073
      %v5075 = vcombine.low %v5067, %v5074
      %v5077 = vunpack.c.l.s4 1935823168
      %v5078 = vunpack.c.0.s8 %v5077
      %v5079 = vlaneseq
      %v5080 = vshrl.u32 %v5079, 7
      %v5081 = vsub.s32 %v5078, %v5080
      %v5082 = vrot.slane %v5075, %v5081
      %v5083 = vcombine.low %v3758, %v3760
      %v5084 = vcombine.low %v3759, %v3761
      %v5086 = vunpack.c.l.s4 1935823168
      %v5087 = vunpack.c.0.s8 %v5086
      %v5088 = vlaneseq
      %v5089 = vshrl.u32 %v5088, 7
      %v5090 = vsub.s32 %v5087, %v5089
      %v5091 = vrot.slane %v5083, %v5090
      %v5093 = vunpack.c.l.s4 1935823168
      %v5094 = vunpack.c.0.s8 %v5093
      %v5095 = vlaneseq
      %v5096 = vshrl.u32 %v5095, 7
      %v5097 = vsub.s32 %v5094, %v5096
      %v5098 = vrot.slane %v5084, %v5097
      %v5099 = vcombine.low %v5091, %v5098
      %v5101 = vunpack.c.l.s4 1935823168
      %v5102 = vunpack.c.0.s8 %v5101
      %v5103 = vlaneseq
      %v5104 = vshrl.u32 %v5103, 7
      %v5105 = vsub.s32 %v5102, %v5104
      %v5106 = vrot.slane %v5099, %v5105
      %v5107 = vcombine.low %v3762, %v3764
      %v5108 = vcombine.low %v3763, %v3765
      %v5110 = vunpack.c.l.s4 1935823168
      %v5111 = vunpack.c.0.s8 %v5110
      %v5112 = vlaneseq
      %v5113 = vshrl.u32 %v5112, 7
      %v5114 = vsub.s32 %v5111, %v5113
      %v5115 = vrot.slane %v5107, %v5114
      %v5117 = vunpack.c.l.s4 1935823168
      %v5118 = vunpack.c.0.s8 %v5117
      %v5119 = vlaneseq
      %v5120 = vshrl.u32 %v5119, 7
      %v5121 = vsub.s32 %v5118, %v5120
      %v5122 = vrot.slane %v5108, %v5121
      %v5123 = vcombine.low %v5115, %v5122
      %v5125 = vunpack.c.l.s4 1935823168
      %v5126 = vunpack.c.0.s8 %v5125
      %v5127 = vlaneseq
      %v5128 = vshrl.u32 %v5127, 7
      %v5129 = vsub.s32 %v5126, %v5128
      %v5130 = vrot.slane %v5123, %v5129
      %v5132 = vshrl.u32 %v4386, 16
      %v5134 = vrot.slane %v5132, 7
      %v5135 = vshll.u32 %v4386, 16
      %v5137 = vor.u32 %v5134, %v5135
      %v5138 = vrot.slane %v5134, 4
      %v5140 = vshrl.u32 %v4410, 16
      %v5142 = vrot.slane %v5140, 7
      %v5143 = vshll.u32 %v4410, 16
      %v5145 = vor.u32 %v5142, %v5143
      %v5146 = vsel %vm3799, %v5138, %v5145
      %v5147 = vrot.slane %v5142, 4
      %v5149 = vshrl.u32 %v4434, 16
      %v5151 = vrot.slane %v5149, 7
      %v5152 = vshll.u32 %v4434, 16
      %v5154 = vor.u32 %v5151, %v5152
      %v5155 = vrot.slane %v5151, 4
      %v5157 = vshrl.u32 %v4458, 16
      %v5159 = vrot.slane %v5157, 7
      %v5160 = vshll.u32 %v4458, 16
      %v5162 = vor.u32 %v5159, %v5160
      %v5163 = vsel %vm3799, %v5155, %v5162
      %v5164 = vrot.slane %v5159, 4
      %v5166 = vshrl.u32 %v4482, 16
      %v5168 = vrot.slane %v5166, 7
      %v5169 = vshll.u32 %v4482, 16
      %v5171 = vor.u32 %v5168, %v5169
      %v5172 = vrot.slane %v5168, 4
      %v5174 = vshrl.u32 %v4506, 16
      %v5176 = vrot.slane %v5174, 7
      %v5177 = vshll.u32 %v4506, 16
      %v5179 = vor.u32 %v5176, %v5177
      %v5180 = vsel %vm3799, %v5172, %v5179
      %v5181 = vrot.slane %v5176, 4
      %v5183 = vshrl.u32 %v4530, 16
      %v5185 = vrot.slane %v5183, 7
      %v5186 = vshll.u32 %v4530, 16
      %v5188 = vor.u32 %v5185, %v5186
      %v5189 = vrot.slane %v5185, 4
      %v5191 = vshrl.u32 %v4554, 16
      %v5193 = vrot.slane %v5191, 7
      %v5194 = vshll.u32 %v4554, 16
      %v5196 = vor.u32 %v5193, %v5194
      %v5197 = vsel %vm3799, %v5189, %v5196
      %v5198 = vrot.slane %v5193, 4
      %v5200 = vshrl.u32 %v4578, 16
      %v5202 = vrot.slane %v5200, 7
      %v5203 = vshll.u32 %v4578, 16
      %v5205 = vor.u32 %v5202, %v5203
      %v5206 = vrot.slane %v5202, 4
      %v5208 = vshrl.u32 %v4602, 16
      %v5210 = vrot.slane %v5208, 7
      %v5211 = vshll.u32 %v4602, 16
      %v5213 = vor.u32 %v5210, %v5211
      %v5214 = vsel %vm3799, %v5206, %v5213
      %v5215 = vrot.slane %v5210, 4
      %v5217 = vshrl.u32 %v4626, 16
      %v5219 = vrot.slane %v5217, 7
      %v5220 = vshll.u32 %v4626, 16
      %v5222 = vor.u32 %v5219, %v5220
      %v5223 = vrot.slane %v5219, 4
      %v5225 = vshrl.u32 %v4650, 16
      %v5227 = vrot.slane %v5225, 7
      %v5228 = vshll.u32 %v4650, 16
      %v5230 = vor.u32 %v5227, %v5228
      %v5231 = vsel %vm3799, %v5223, %v5230
      %v5232 = vrot.slane %v5227, 4
      %v5234 = vshrl.u32 %v4674, 16
      %v5236 = vrot.slane %v5234, 7
      %v5237 = vshll.u32 %v4674, 16
      %v5239 = vor.u32 %v5236, %v5237
      %v5240 = vrot.slane %v5236, 4
      %v5242 = vshrl.u32 %v4698, 16
      %v5244 = vrot.slane %v5242, 7
      %v5245 = vshll.u32 %v4698, 16
      %v5247 = vor.u32 %v5244, %v5245
      %v5248 = vsel %vm3799, %v5240, %v5247
      %v5249 = vrot.slane %v5244, 4
      %v5251 = vshrl.u32 %v4722, 16
      %v5253 = vrot.slane %v5251, 7
      %v5254 = vshll.u32 %v4722, 16
      %v5256 = vor.u32 %v5253, %v5254
      %v5257 = vrot.slane %v5253, 4
      %v5259 = vshrl.u32 %v4746, 16
      %v5261 = vrot.slane %v5259, 7
      %v5262 = vshll.u32 %v4746, 16
      %v5264 = vor.u32 %v5261, %v5262
      %v5265 = vsel %vm3799, %v5257, %v5264
      %v5266 = vrot.slane %v5261, 4
      %v5268 = vshrl.u32 %v4770, 16
      %v5270 = vrot.slane %v5268, 7
      %v5271 = vshll.u32 %v4770, 16
      %v5273 = vor.u32 %v5270, %v5271
      %v5274 = vrot.slane %v5270, 4
      %v5276 = vshrl.u32 %v4794, 16
      %v5278 = vrot.slane %v5276, 7
      %v5279 = vshll.u32 %v4794, 16
      %v5281 = vor.u32 %v5278, %v5279
      %v5282 = vsel %vm3799, %v5274, %v5281
      %v5283 = vrot.slane %v5278, 4
      %v5285 = vshrl.u32 %v4818, 16
      %v5287 = vrot.slane %v5285, 7
      %v5288 = vshll.u32 %v4818, 16
      %v5290 = vor.u32 %v5287, %v5288
      %v5291 = vrot.slane %v5287, 4
      %v5293 = vshrl.u32 %v4842, 16
      %v5295 = vrot.slane %v5293, 7
      %v5296 = vshll.u32 %v4842, 16
      %v5298 = vor.u32 %v5295, %v5296
      %v5299 = vsel %vm3799, %v5291, %v5298
      %v5300 = vrot.slane %v5295, 4
      %v5302 = vshrl.u32 %v4866, 16
      %v5304 = vrot.slane %v5302, 7
      %v5305 = vshll.u32 %v4866, 16
      %v5307 = vor.u32 %v5304, %v5305
      %v5308 = vrot.slane %v5304, 4
      %v5310 = vshrl.u32 %v4890, 16
      %v5312 = vrot.slane %v5310, 7
      %v5313 = vshll.u32 %v4890, 16
      %v5315 = vor.u32 %v5312, %v5313
      %v5316 = vsel %vm3799, %v5308, %v5315
      %v5317 = vrot.slane %v5312, 4
      %v5319 = vshrl.u32 %v4914, 16
      %v5321 = vrot.slane %v5319, 7
      %v5322 = vshll.u32 %v4914, 16
      %v5324 = vor.u32 %v5321, %v5322
      %v5325 = vrot.slane %v5321, 4
      %v5327 = vshrl.u32 %v4938, 16
      %v5329 = vrot.slane %v5327, 7
      %v5330 = vshll.u32 %v4938, 16
      %v5332 = vor.u32 %v5329, %v5330
      %v5333 = vsel %vm3799, %v5325, %v5332
      %v5334 = vrot.slane %v5329, 4
      %v5336 = vshrl.u32 %v4962, 16
      %v5338 = vrot.slane %v5336, 7
      %v5339 = vshll.u32 %v4962, 16
      %v5341 = vor.u32 %v5338, %v5339
      %v5342 = vrot.slane %v5338, 4
      %v5344 = vshrl.u32 %v4986, 16
      %v5346 = vrot.slane %v5344, 7
      %v5347 = vshll.u32 %v4986, 16
      %v5349 = vor.u32 %v5346, %v5347
      %v5350 = vsel %vm3799, %v5342, %v5349
      %v5351 = vrot.slane %v5346, 4
      %v5353 = vshrl.u32 %v5010, 16
      %v5355 = vrot.slane %v5353, 7
      %v5356 = vshll.u32 %v5010, 16
      %v5358 = vor.u32 %v5355, %v5356
      %v5359 = vrot.slane %v5355, 4
      %v5361 = vshrl.u32 %v5034, 16
      %v5363 = vrot.slane %v5361, 7
      %v5364 = vshll.u32 %v5034, 16
      %v5366 = vor.u32 %v5363, %v5364
      %v5367 = vsel %vm3799, %v5359, %v5366
      %v5368 = vrot.slane %v5363, 4
      %v5370 = vshrl.u32 %v5058, 16
      %v5372 = vrot.slane %v5370, 7
      %v5373 = vshll.u32 %v5058, 16
      %v5375 = vor.u32 %v5372, %v5373
      %v5376 = vrot.slane %v5372, 4
      %v5378 = vshrl.u32 %v5082, 16
      %v5380 = vrot.slane %v5378, 7
      %v5381 = vshll.u32 %v5082, 16
      %v5383 = vor.u32 %v5380, %v5381
      %v5384 = vsel %vm3799, %v5376, %v5383
      %v5385 = vrot.slane %v5380, 4
      %v5387 = vshrl.u32 %v5106, 16
      %v5389 = vrot.slane %v5387, 7
      %v5390 = vshll.u32 %v5106, 16
      %v5392 = vor.u32 %v5389, %v5390
      %v5393 = vrot.slane %v5389, 4
      %v5395 = vshrl.u32 %v5130, 16
      %v5397 = vrot.slane %v5395, 7
      %v5398 = vshll.u32 %v5130, 16
      %v5400 = vor.u32 %v5397, %v5398
      %v5401 = vsel %vm3799, %v5393, %v5400
      %v5402 = vrot.slane %v5397, 4
      %s5451 = scalar_lea.vmem [#allocation3], 12
      %v5452 = vld [vmem:[%s5451] sm:$0xf]
      %v5453 = vsel %vm4122, %v5137, %v5452
      %5454 = vst [vmem:[%s5451] sm:$0xf] %v5453
      %5455 = vst.msk [vmem:[%s5451 + $0x4] sm:$0xf] %vm327, %v5146
      %v5456 = vld [vmem:[%s5451 + $0x8] sm:$0x1]
      %v5457 = vsel %vm338, %v5147, %v5456
      %5458 = vst [vmem:[%s5451 + $0x8] sm:$0x1] %v5457
      %v5459 = vld [vmem:[%s5451 + $0xc] sm:$0xf]
      %v5460 = vsel %vm4122, %v5154, %v5459
      %5461 = vst [vmem:[%s5451 + $0xc] sm:$0xf] %v5460
      %5462 = vst.msk [vmem:[%s5451 + $0x10] sm:$0xf] %vm327, %v5163
      %v5463 = vld [vmem:[%s5451 + $0x14] sm:$0x1]
      %v5464 = vsel %vm338, %v5164, %v5463
      %5465 = vst [vmem:[%s5451 + $0x14] sm:$0x1] %v5464
      %v5466 = vld [vmem:[%s5451 + $0x18] sm:$0xf]
      %v5467 = vsel %vm4122, %v5171, %v5466
      %5468 = vst [vmem:[%s5451 + $0x18] sm:$0xf] %v5467
      %5469 = vst.msk [vmem:[%s5451 + $0x1c] sm:$0xf] %vm327, %v5180
      %v5470 = vld [vmem:[%s5451 + $0x20] sm:$0x1]
      %v5471 = vsel %vm338, %v5181, %v5470
      %5472 = vst [vmem:[%s5451 + $0x20] sm:$0x1] %v5471
      %v5473 = vld [vmem:[%s5451 + $0x24] sm:$0xf]
      %v5474 = vsel %vm4122, %v5188, %v5473
      %5475 = vst [vmem:[%s5451 + $0x24] sm:$0xf] %v5474
      %5476 = vst.msk [vmem:[%s5451 + $0x28] sm:$0xf] %vm327, %v5197
      %v5477 = vld [vmem:[%s5451 + $0x2c] sm:$0x1]
      %v5478 = vsel %vm338, %v5198, %v5477
      %5479 = vst [vmem:[%s5451 + $0x2c] sm:$0x1] %v5478
      %v5480 = vld [vmem:[%s5451 + $0x30] sm:$0xf]
      %v5481 = vsel %vm4122, %v5205, %v5480
      %5482 = vst [vmem:[%s5451 + $0x30] sm:$0xf] %v5481
      %5483 = vst.msk [vmem:[%s5451 + $0x34] sm:$0xf] %vm327, %v5214
      %v5484 = vld [vmem:[%s5451 + $0x38] sm:$0x1]
      %v5485 = vsel %vm338, %v5215, %v5484
      %5486 = vst [vmem:[%s5451 + $0x38] sm:$0x1] %v5485
      %v5487 = vld [vmem:[%s5451 + $0x3c] sm:$0xf]
      %v5488 = vsel %vm4122, %v5222, %v5487
      %5489 = vst [vmem:[%s5451 + $0x3c] sm:$0xf] %v5488
      %5490 = vst.msk [vmem:[%s5451 + $0x40] sm:$0xf] %vm327, %v5231
      %v5491 = vld [vmem:[%s5451 + $0x44] sm:$0x1]
      %v5492 = vsel %vm338, %v5232, %v5491
      %5493 = vst [vmem:[%s5451 + $0x44] sm:$0x1] %v5492
      %v5494 = vld [vmem:[%s5451 + $0x48] sm:$0xf]
      %v5495 = vsel %vm4122, %v5239, %v5494
      %5496 = vst [vmem:[%s5451 + $0x48] sm:$0xf] %v5495
      %5497 = vst.msk [vmem:[%s5451 + $0x4c] sm:$0xf] %vm327, %v5248
      %v5498 = vld [vmem:[%s5451 + $0x50] sm:$0x1]
      %v5499 = vsel %vm338, %v5249, %v5498
      %5500 = vst [vmem:[%s5451 + $0x50] sm:$0x1] %v5499
      %v5501 = vld [vmem:[%s5451 + $0x54] sm:$0xf]
      %v5502 = vsel %vm4122, %v5256, %v5501
      %5503 = vst [vmem:[%s5451 + $0x54] sm:$0xf] %v5502
      %5504 = vst.msk [vmem:[%s5451 + $0x58] sm:$0xf] %vm327, %v5265
      %v5505 = vld [vmem:[%s5451 + $0x5c] sm:$0x1]
      %v5506 = vsel %vm338, %v5266, %v5505
      %5507 = vst [vmem:[%s5451 + $0x5c] sm:$0x1] %v5506
      %v5508 = vld [vmem:[%s5451 + $0x60] sm:$0xf]
      %v5509 = vsel %vm4122, %v5273, %v5508
      %5510 = vst [vmem:[%s5451 + $0x60] sm:$0xf] %v5509
      %5511 = vst.msk [vmem:[%s5451 + $0x64] sm:$0xf] %vm327, %v5282
      %v5512 = vld [vmem:[%s5451 + $0x68] sm:$0x1]
      %v5513 = vsel %vm338, %v5283, %v5512
      %5514 = vst [vmem:[%s5451 + $0x68] sm:$0x1] %v5513
      %v5515 = vld [vmem:[%s5451 + $0x6c] sm:$0xf]
      %v5516 = vsel %vm4122, %v5290, %v5515
      %5517 = vst [vmem:[%s5451 + $0x6c] sm:$0xf] %v5516
      %5518 = vst.msk [vmem:[%s5451 + $0x70] sm:$0xf] %vm327, %v5299
      %v5519 = vld [vmem:[%s5451 + $0x74] sm:$0x1]
      %v5520 = vsel %vm338, %v5300, %v5519
      %5521 = vst [vmem:[%s5451 + $0x74] sm:$0x1] %v5520
      %v5522 = vld [vmem:[%s5451 + $0x78] sm:$0xf]
      %v5523 = vsel %vm4122, %v5307, %v5522
      %5524 = vst [vmem:[%s5451 + $0x78] sm:$0xf] %v5523
      %5525 = vst.msk [vmem:[%s5451 + $0x7c] sm:$0xf] %vm327, %v5316
      %v5526 = vld [vmem:[%s5451 + $0x80] sm:$0x1]
      %v5527 = vsel %vm338, %v5317, %v5526
      %5528 = vst [vmem:[%s5451 + $0x80] sm:$0x1] %v5527
      %v5529 = vld [vmem:[%s5451 + $0x84] sm:$0xf]
      %v5530 = vsel %vm4122, %v5324, %v5529
      %5531 = vst [vmem:[%s5451 + $0x84] sm:$0xf] %v5530
      %5532 = vst.msk [vmem:[%s5451 + $0x88] sm:$0xf] %vm327, %v5333
      %v5533 = vld [vmem:[%s5451 + $0x8c] sm:$0x1]
      %v5534 = vsel %vm338, %v5334, %v5533
      %5535 = vst [vmem:[%s5451 + $0x8c] sm:$0x1] %v5534
      %v5536 = vld [vmem:[%s5451 + $0x90] sm:$0xf]
      %v5537 = vsel %vm4122, %v5341, %v5536
      %5538 = vst [vmem:[%s5451 + $0x90] sm:$0xf] %v5537
      %5539 = vst.msk [vmem:[%s5451 + $0x94] sm:$0xf] %vm327, %v5350
      %v5540 = vld [vmem:[%s5451 + $0x98] sm:$0x1]
      %v5541 = vsel %vm338, %v5351, %v5540
      %5542 = vst [vmem:[%s5451 + $0x98] sm:$0x1] %v5541
      %v5543 = vld [vmem:[%s5451 + $0x9c] sm:$0xf]
      %v5544 = vsel %vm4122, %v5358, %v5543
      %5545 = vst [vmem:[%s5451 + $0x9c] sm:$0xf] %v5544
      %5546 = vst.msk [vmem:[%s5451 + $0xa0] sm:$0xf] %vm327, %v5367
      %v5547 = vld [vmem:[%s5451 + $0xa4] sm:$0x1]
      %v5548 = vsel %vm338, %v5368, %v5547
      %5549 = vst [vmem:[%s5451 + $0xa4] sm:$0x1] %v5548
      %v5550 = vld [vmem:[%s5451 + $0xa8] sm:$0xf]
      %v5551 = vsel %vm4122, %v5375, %v5550
      %5552 = vst [vmem:[%s5451 + $0xa8] sm:$0xf] %v5551
      %5553 = vst.msk [vmem:[%s5451 + $0xac] sm:$0xf] %vm327, %v5384
      %v5554 = vld [vmem:[%s5451 + $0xb0] sm:$0x1]
      %v5555 = vsel %vm338, %v5385, %v5554
      %5556 = vst [vmem:[%s5451 + $0xb0] sm:$0x1] %v5555
      %v5557 = vld [vmem:[%s5451 + $0xb4] sm:$0xf]
      %v5558 = vsel %vm4122, %v5392, %v5557
      %5559 = vst [vmem:[%s5451 + $0xb4] sm:$0xf] %v5558
      %5560 = vst.msk [vmem:[%s5451 + $0xb8] sm:$0xf] %vm327, %v5401
      %v5561 = vld [vmem:[%s5451 + $0xbc] sm:$0x1]
      %v5562 = vsel %vm338, %v5402, %v5561
      %5563 = vst [vmem:[%s5451 + $0xbc] sm:$0x1] %v5562
      %v5564 = vld [vmem:[#allocation2] sm:$0xf]
      %v5565 = vld [vmem:[#allocation2 + $0x4] sm:$0xf]
      %v5566 = vld [vmem:[#allocation2 + $0xc] sm:$0xf]
      %v5567 = vld [vmem:[#allocation2 + $0x10] sm:$0xf]
      %v5568 = vld [vmem:[#allocation2 + $0x18] sm:$0xf]
      %v5569 = vld [vmem:[#allocation2 + $0x1c] sm:$0xf]
      %v5570 = vld [vmem:[#allocation2 + $0x24] sm:$0xf]
      %v5571 = vld [vmem:[#allocation2 + $0x28] sm:$0xf]
      %v5572 = vld [vmem:[#allocation2 + $0x30] sm:$0xf]
      %v5573 = vld [vmem:[#allocation2 + $0x34] sm:$0xf]
      %v5574 = vld [vmem:[#allocation2 + $0x3c] sm:$0xf]
      %v5575 = vld [vmem:[#allocation2 + $0x40] sm:$0xf]
      %v5576 = vld [vmem:[#allocation2 + $0x48] sm:$0xf]
      %v5577 = vld [vmem:[#allocation2 + $0x4c] sm:$0xf]
      %v5578 = vld [vmem:[#allocation2 + $0x54] sm:$0xf]
      %v5579 = vld [vmem:[#allocation2 + $0x58] sm:$0xf]
      %v5580 = vld [vmem:[#allocation2 + $0x60] sm:$0xf]
      %v5581 = vld [vmem:[#allocation2 + $0x64] sm:$0xf]
      %v5582 = vld [vmem:[#allocation2 + $0x6c] sm:$0xf]
      %v5583 = vld [vmem:[#allocation2 + $0x70] sm:$0xf]
      %v5584 = vld [vmem:[#allocation2 + $0x78] sm:$0xf]
      %v5585 = vld [vmem:[#allocation2 + $0x7c] sm:$0xf]
      %v5586 = vld [vmem:[#allocation2 + $0x84] sm:$0xf]
      %v5587 = vld [vmem:[#allocation2 + $0x88] sm:$0xf]
      %v5588 = vld [vmem:[#allocation2 + $0x90] sm:$0xf]
      %v5589 = vld [vmem:[#allocation2 + $0x94] sm:$0xf]
      %v5590 = vld [vmem:[#allocation2 + $0x9c] sm:$0xf]
      %v5591 = vld [vmem:[#allocation2 + $0xa0] sm:$0xf]
      %v5592 = vld [vmem:[#allocation2 + $0xa8] sm:$0xf]
      %v5593 = vld [vmem:[#allocation2 + $0xac] sm:$0xf]
      %v5594 = vld [vmem:[#allocation2 + $0xb4] sm:$0xf]
      %v5595 = vld [vmem:[#allocation2 + $0xb8] sm:$0xf]
      %v5596 = vld [vmem:[#allocation2 + $0x8] sm:$0x1]
      %v5597 = vld [vmem:[#allocation2 + $0x14] sm:$0x1]
      %v5598 = vld [vmem:[#allocation2 + $0x20] sm:$0x1]
      %v5599 = vld [vmem:[#allocation2 + $0x2c] sm:$0x1]
      %v5600 = vld [vmem:[#allocation2 + $0x38] sm:$0x1]
      %v5601 = vld [vmem:[#allocation2 + $0x44] sm:$0x1]
      %v5602 = vld [vmem:[#allocation2 + $0x50] sm:$0x1]
      %v5603 = vld [vmem:[#allocation2 + $0x5c] sm:$0x1]
      %v5604 = vld [vmem:[#allocation2 + $0x68] sm:$0x1]
      %v5605 = vld [vmem:[#allocation2 + $0x74] sm:$0x1]
      %v5606 = vld [vmem:[#allocation2 + $0x80] sm:$0x1]
      %v5607 = vld [vmem:[#allocation2 + $0x8c] sm:$0x1]
      %v5608 = vld [vmem:[#allocation2 + $0x98] sm:$0x1]
      %v5609 = vld [vmem:[#allocation2 + $0xa4] sm:$0x1]
      %v5610 = vld [vmem:[#allocation2 + $0xb0] sm:$0x1]
      %v5611 = vld [vmem:[#allocation2 + $0xbc] sm:$0x1]
      %v5612 = vld [vmem:[#allocation2] sm:$0xe]
      %v5613 = vld [vmem:[#allocation2 + $0xc] sm:$0xe]
      %v5614 = vld [vmem:[#allocation2 + $0x18] sm:$0xe]
      %v5615 = vld [vmem:[#allocation2 + $0x24] sm:$0xe]
      %v5616 = vld [vmem:[#allocation2 + $0x30] sm:$0xe]
      %v5617 = vld [vmem:[#allocation2 + $0x3c] sm:$0xe]
      %v5618 = vld [vmem:[#allocation2 + $0x48] sm:$0xe]
      %v5619 = vld [vmem:[#allocation2 + $0x54] sm:$0xe]
      %v5620 = vld [vmem:[#allocation2 + $0x60] sm:$0xe]
      %v5621 = vld [vmem:[#allocation2 + $0x6c] sm:$0xe]
      %v5622 = vld [vmem:[#allocation2 + $0x78] sm:$0xe]
      %v5623 = vld [vmem:[#allocation2 + $0x84] sm:$0xe]
      %v5624 = vld [vmem:[#allocation2 + $0x90] sm:$0xe]
      %v5625 = vld [vmem:[#allocation2 + $0x9c] sm:$0xe]
      %v5626 = vld [vmem:[#allocation2 + $0xa8] sm:$0xe]
      %v5627 = vld [vmem:[#allocation2 + $0xb4] sm:$0xe]
      %v5628 = vld [vmem:[#allocation3] sm:$0xf]
      %v5629 = vld [vmem:[#allocation3 + $0x4] sm:$0xf]
      %v5630 = vld [vmem:[#allocation3 + $0xc] sm:$0xf]
      %v5631 = vld [vmem:[#allocation3 + $0x10] sm:$0xf]
      %v5632 = vld [vmem:[#allocation3 + $0x18] sm:$0xf]
      %v5633 = vld [vmem:[#allocation3 + $0x1c] sm:$0xf]
      %v5634 = vld [vmem:[#allocation3 + $0x24] sm:$0xf]
      %v5635 = vld [vmem:[#allocation3 + $0x28] sm:$0xf]
      %v5636 = vld [vmem:[#allocation3 + $0x30] sm:$0xf]
      %v5637 = vld [vmem:[#allocation3 + $0x34] sm:$0xf]
      %v5638 = vld [vmem:[#allocation3 + $0x3c] sm:$0xf]
      %v5639 = vld [vmem:[#allocation3 + $0x40] sm:$0xf]
      %v5640 = vld [vmem:[#allocation3 + $0x48] sm:$0xf]
      %v5641 = vld [vmem:[#allocation3 + $0x4c] sm:$0xf]
      %v5642 = vld [vmem:[#allocation3 + $0x54] sm:$0xf]
      %v5643 = vld [vmem:[#allocation3 + $0x58] sm:$0xf]
      %v5644 = vld [vmem:[#allocation3 + $0x60] sm:$0xf]
      %v5645 = vld [vmem:[#allocation3 + $0x64] sm:$0xf]
      %v5646 = vld [vmem:[#allocation3 + $0x6c] sm:$0xf]
      %v5647 = vld [vmem:[#allocation3 + $0x70] sm:$0xf]
      %v5648 = vld [vmem:[#allocation3 + $0x78] sm:$0xf]
      %v5649 = vld [vmem:[#allocation3 + $0x7c] sm:$0xf]
      %v5650 = vld [vmem:[#allocation3 + $0x84] sm:$0xf]
      %v5651 = vld [vmem:[#allocation3 + $0x88] sm:$0xf]
      %v5652 = vld [vmem:[#allocation3 + $0x90] sm:$0xf]
      %v5653 = vld [vmem:[#allocation3 + $0x94] sm:$0xf]
      %v5654 = vld [vmem:[#allocation3 + $0x9c] sm:$0xf]
      %v5655 = vld [vmem:[#allocation3 + $0xa0] sm:$0xf]
      %v5656 = vld [vmem:[#allocation3 + $0xa8] sm:$0xf]
      %v5657 = vld [vmem:[#allocation3 + $0xac] sm:$0xf]
      %v5658 = vld [vmem:[#allocation3 + $0xb4] sm:$0xf]
      %v5659 = vld [vmem:[#allocation3 + $0xb8] sm:$0xf]
      %v5660 = vld [vmem:[#allocation3 + $0x8] sm:$0x1]
      %v5661 = vld [vmem:[#allocation3 + $0x14] sm:$0x1]
      %v5662 = vld [vmem:[#allocation3 + $0x20] sm:$0x1]
      %v5663 = vld [vmem:[#allocation3 + $0x2c] sm:$0x1]
      %v5664 = vld [vmem:[#allocation3 + $0x38] sm:$0x1]
      %v5665 = vld [vmem:[#allocation3 + $0x44] sm:$0x1]
      %v5666 = vld [vmem:[#allocation3 + $0x50] sm:$0x1]
      %v5667 = vld [vmem:[#allocation3 + $0x5c] sm:$0x1]
      %v5668 = vld [vmem:[#allocation3 + $0x68] sm:$0x1]
      %v5669 = vld [vmem:[#allocation3 + $0x74] sm:$0x1]
      %v5670 = vld [vmem:[#allocation3 + $0x80] sm:$0x1]
      %v5671 = vld [vmem:[#allocation3 + $0x8c] sm:$0x1]
      %v5672 = vld [vmem:[#allocation3 + $0x98] sm:$0x1]
      %v5673 = vld [vmem:[#allocation3 + $0xa4] sm:$0x1]
      %v5674 = vld [vmem:[#allocation3 + $0xb0] sm:$0x1]
      %v5675 = vld [vmem:[#allocation3 + $0xbc] sm:$0x1]
      %v5676 = vld [vmem:[#allocation3] sm:$0xe]
      %v5677 = vld [vmem:[#allocation3 + $0xc] sm:$0xe]
      %v5678 = vld [vmem:[#allocation3 + $0x18] sm:$0xe]
      %v5679 = vld [vmem:[#allocation3 + $0x24] sm:$0xe]
      %v5680 = vld [vmem:[#allocation3 + $0x30] sm:$0xe]
      %v5681 = vld [vmem:[#allocation3 + $0x3c] sm:$0xe]
      %v5682 = vld [vmem:[#allocation3 + $0x48] sm:$0xe]
      %v5683 = vld [vmem:[#allocation3 + $0x54] sm:$0xe]
      %v5684 = vld [vmem:[#allocation3 + $0x60] sm:$0xe]
      %v5685 = vld [vmem:[#allocation3 + $0x6c] sm:$0xe]
      %v5686 = vld [vmem:[#allocation3 + $0x78] sm:$0xe]
      %v5687 = vld [vmem:[#allocation3 + $0x84] sm:$0xe]
      %v5688 = vld [vmem:[#allocation3 + $0x90] sm:$0xe]
      %v5689 = vld [vmem:[#allocation3 + $0x9c] sm:$0xe]
      %v5690 = vld [vmem:[#allocation3 + $0xa8] sm:$0xe]
      %v5691 = vld [vmem:[#allocation3 + $0xb4] sm:$0xe]
      %v5724 = vunpack.c.l.b16 %v5564
      %v5725 = vunpack.c.l.b16 %v5565
      %v5726 = vunpack.c.l.b16 %v5566
      %v5727 = vunpack.c.l.b16 %v5567
      %v5728 = vunpack.c.l.b16 %v5568
      %v5729 = vunpack.c.l.b16 %v5569
      %v5730 = vunpack.c.l.b16 %v5570
      %v5731 = vunpack.c.l.b16 %v5571
      %v5732 = vunpack.c.l.b16 %v5572
      %v5733 = vunpack.c.l.b16 %v5573
      %v5734 = vunpack.c.l.b16 %v5574
      %v5735 = vunpack.c.l.b16 %v5575
      %v5736 = vunpack.c.l.b16 %v5576
      %v5737 = vunpack.c.l.b16 %v5577
      %v5738 = vunpack.c.l.b16 %v5578
      %v5739 = vunpack.c.l.b16 %v5579
      %v5740 = vunpack.c.l.b16 %v5580
      %v5741 = vunpack.c.l.b16 %v5581
      %v5742 = vunpack.c.l.b16 %v5582
      %v5743 = vunpack.c.l.b16 %v5583
      %v5744 = vunpack.c.l.b16 %v5584
      %v5745 = vunpack.c.l.b16 %v5585
      %v5746 = vunpack.c.l.b16 %v5586
      %v5747 = vunpack.c.l.b16 %v5587
      %v5748 = vunpack.c.l.b16 %v5588
      %v5749 = vunpack.c.l.b16 %v5589
      %v5750 = vunpack.c.l.b16 %v5590
      %v5751 = vunpack.c.l.b16 %v5591
      %v5752 = vunpack.c.l.b16 %v5592
      %v5753 = vunpack.c.l.b16 %v5593
      %v5754 = vunpack.c.l.b16 %v5594
      %v5755 = vunpack.c.l.b16 %v5595
      %v5756 = vpack.c.b16 %v5725, %v5724
      %v5757 = vpack.c.b16 %v5727, %v5726
      %v5758 = vpack.c.b16 %v5729, %v5728
      %v5759 = vpack.c.b16 %v5731, %v5730
      %v5760 = vpack.c.b16 %v5733, %v5732
      %v5761 = vpack.c.b16 %v5735, %v5734
      %v5762 = vpack.c.b16 %v5737, %v5736
      %v5763 = vpack.c.b16 %v5739, %v5738
      %v5764 = vpack.c.b16 %v5741, %v5740
      %v5765 = vpack.c.b16 %v5743, %v5742
      %v5766 = vpack.c.b16 %v5745, %v5744
      %v5767 = vpack.c.b16 %v5747, %v5746
      %v5768 = vpack.c.b16 %v5749, %v5748
      %v5769 = vpack.c.b16 %v5751, %v5750
      %v5770 = vpack.c.b16 %v5753, %v5752
      %v5771 = vpack.c.b16 %v5755, %v5754
      %v5788 = vunpack.c.l.b16 %v5596
      %v5789 = vunpack.c.l.b16 %v5597
      %v5790 = vunpack.c.l.b16 %v5598
      %v5791 = vunpack.c.l.b16 %v5599
      %v5792 = vunpack.c.l.b16 %v5600
      %v5793 = vunpack.c.l.b16 %v5601
      %v5794 = vunpack.c.l.b16 %v5602
      %v5795 = vunpack.c.l.b16 %v5603
      %v5796 = vunpack.c.l.b16 %v5604
      %v5797 = vunpack.c.l.b16 %v5605
      %v5798 = vunpack.c.l.b16 %v5606
      %v5799 = vunpack.c.l.b16 %v5607
      %v5800 = vunpack.c.l.b16 %v5608
      %v5801 = vunpack.c.l.b16 %v5609
      %v5802 = vunpack.c.l.b16 %v5610
      %v5803 = vunpack.c.l.b16 %v5611
      %v5804 = vpack.c.b16 %v5788, %v5788
      %v5805 = vpack.c.b16 %v5789, %v5789
      %v5806 = vpack.c.b16 %v5790, %v5790
      %v5807 = vpack.c.b16 %v5791, %v5791
      %v5808 = vpack.c.b16 %v5792, %v5792
      %v5809 = vpack.c.b16 %v5793, %v5793
      %v5810 = vpack.c.b16 %v5794, %v5794
      %v5811 = vpack.c.b16 %v5795, %v5795
      %v5812 = vpack.c.b16 %v5796, %v5796
      %v5813 = vpack.c.b16 %v5797, %v5797
      %v5814 = vpack.c.b16 %v5798, %v5798
      %v5815 = vpack.c.b16 %v5799, %v5799
      %v5816 = vpack.c.b16 %v5800, %v5800
      %v5817 = vpack.c.b16 %v5801, %v5801
      %v5818 = vpack.c.b16 %v5802, %v5802
      %v5819 = vpack.c.b16 %v5803, %v5803
      %vm5820 = vsmask.f32 7424
      %v5822 = vshrl.u32 %v5756, 16
      %v5824 = vshll.u32 %v5756, 16
      %v5826 = vrot.slane %v5824, 1
      %v5827 = vor.u32 %v5822, %v5826
      %v5829 = vshll.u32 %v5804, 16
      %v5831 = vrot.slane %v5829, 1
      %v5832 = vsel %vm5820, %v5827, %v5831
      %v5834 = vshrl.u32 %v5757, 16
      %v5836 = vshll.u32 %v5757, 16
      %v5838 = vrot.slane %v5836, 1
      %v5839 = vor.u32 %v5834, %v5838
      %v5841 = vshll.u32 %v5805, 16
      %v5843 = vrot.slane %v5841, 1
      %v5844 = vsel %vm5820, %v5839, %v5843
      %v5846 = vshrl.u32 %v5758, 16
      %v5848 = vshll.u32 %v5758, 16
      %v5850 = vrot.slane %v5848, 1
      %v5851 = vor.u32 %v5846, %v5850
      %v5853 = vshll.u32 %v5806, 16
      %v5855 = vrot.slane %v5853, 1
      %v5856 = vsel %vm5820, %v5851, %v5855
      %v5858 = vshrl.u32 %v5759, 16
      %v5860 = vshll.u32 %v5759, 16
      %v5862 = vrot.slane %v5860, 1
      %v5863 = vor.u32 %v5858, %v5862
      %v5865 = vshll.u32 %v5807, 16
      %v5867 = vrot.slane %v5865, 1
      %v5868 = vsel %vm5820, %v5863, %v5867
      %v5870 = vshrl.u32 %v5760, 16
      %v5872 = vshll.u32 %v5760, 16
      %v5874 = vrot.slane %v5872, 1
      %v5875 = vor.u32 %v5870, %v5874
      %v5877 = vshll.u32 %v5808, 16
      %v5879 = vrot.slane %v5877, 1
      %v5880 = vsel %vm5820, %v5875, %v5879
      %v5882 = vshrl.u32 %v5761, 16
      %v5884 = vshll.u32 %v5761, 16
      %v5886 = vrot.slane %v5884, 1
      %v5887 = vor.u32 %v5882, %v5886
      %v5889 = vshll.u32 %v5809, 16
      %v5891 = vrot.slane %v5889, 1
      %v5892 = vsel %vm5820, %v5887, %v5891
      %v5894 = vshrl.u32 %v5762, 16
      %v5896 = vshll.u32 %v5762, 16
      %v5898 = vrot.slane %v5896, 1
      %v5899 = vor.u32 %v5894, %v5898
      %v5901 = vshll.u32 %v5810, 16
      %v5903 = vrot.slane %v5901, 1
      %v5904 = vsel %vm5820, %v5899, %v5903
      %v5906 = vshrl.u32 %v5763, 16
      %v5908 = vshll.u32 %v5763, 16
      %v5910 = vrot.slane %v5908, 1
      %v5911 = vor.u32 %v5906, %v5910
      %v5913 = vshll.u32 %v5811, 16
      %v5915 = vrot.slane %v5913, 1
      %v5916 = vsel %vm5820, %v5911, %v5915
      %v5918 = vshrl.u32 %v5764, 16
      %v5920 = vshll.u32 %v5764, 16
      %v5922 = vrot.slane %v5920, 1
      %v5923 = vor.u32 %v5918, %v5922
      %v5925 = vshll.u32 %v5812, 16
      %v5927 = vrot.slane %v5925, 1
      %v5928 = vsel %vm5820, %v5923, %v5927
      %v5930 = vshrl.u32 %v5765, 16
      %v5932 = vshll.u32 %v5765, 16
      %v5934 = vrot.slane %v5932, 1
      %v5935 = vor.u32 %v5930, %v5934
      %v5937 = vshll.u32 %v5813, 16
      %v5939 = vrot.slane %v5937, 1
      %v5940 = vsel %vm5820, %v5935, %v5939
      %v5942 = vshrl.u32 %v5766, 16
      %v5944 = vshll.u32 %v5766, 16
      %v5946 = vrot.slane %v5944, 1
      %v5947 = vor.u32 %v5942, %v5946
      %v5949 = vshll.u32 %v5814, 16
      %v5951 = vrot.slane %v5949, 1
      %v5952 = vsel %vm5820, %v5947, %v5951
      %v5954 = vshrl.u32 %v5767, 16
      %v5956 = vshll.u32 %v5767, 16
      %v5958 = vrot.slane %v5956, 1
      %v5959 = vor.u32 %v5954, %v5958
      %v5961 = vshll.u32 %v5815, 16
      %v5963 = vrot.slane %v5961, 1
      %v5964 = vsel %vm5820, %v5959, %v5963
      %v5966 = vshrl.u32 %v5768, 16
      %v5968 = vshll.u32 %v5768, 16
      %v5970 = vrot.slane %v5968, 1
      %v5971 = vor.u32 %v5966, %v5970
      %v5973 = vshll.u32 %v5816, 16
      %v5975 = vrot.slane %v5973, 1
      %v5976 = vsel %vm5820, %v5971, %v5975
      %v5978 = vshrl.u32 %v5769, 16
      %v5980 = vshll.u32 %v5769, 16
      %v5982 = vrot.slane %v5980, 1
      %v5983 = vor.u32 %v5978, %v5982
      %v5985 = vshll.u32 %v5817, 16
      %v5987 = vrot.slane %v5985, 1
      %v5988 = vsel %vm5820, %v5983, %v5987
      %v5990 = vshrl.u32 %v5770, 16
      %v5992 = vshll.u32 %v5770, 16
      %v5994 = vrot.slane %v5992, 1
      %v5995 = vor.u32 %v5990, %v5994
      %v5997 = vshll.u32 %v5818, 16
      %v5999 = vrot.slane %v5997, 1
      %v6000 = vsel %vm5820, %v5995, %v5999
      %v6002 = vshrl.u32 %v5771, 16
      %v6004 = vshll.u32 %v5771, 16
      %v6006 = vrot.slane %v6004, 1
      %v6007 = vor.u32 %v6002, %v6006
      %v6009 = vshll.u32 %v5819, 16
      %v6011 = vrot.slane %v6009, 1
      %v6012 = vsel %vm5820, %v6007, %v6011
      %6013 = vrot.lane.b32.xlu0 %v5832, 4
      %v6014 = vpop.permute.xlu0 %6013
      %6015 = vrot.lane.b32.xlu0 %v5844, 4
      %v6016 = vpop.permute.xlu0 %6015
      %6017 = vrot.lane.b32.xlu0 %v5856, 4
      %v6018 = vpop.permute.xlu0 %6017
      %6019 = vrot.lane.b32.xlu0 %v5868, 4
      %v6020 = vpop.permute.xlu0 %6019
      %6021 = vrot.lane.b32.xlu0 %v5880, 4
      %v6022 = vpop.permute.xlu0 %6021
      %6023 = vrot.lane.b32.xlu0 %v5892, 4
      %v6024 = vpop.permute.xlu0 %6023
      %6025 = vrot.lane.b32.xlu0 %v5904, 4
      %v6026 = vpop.permute.xlu0 %6025
      %6027 = vrot.lane.b32.xlu0 %v5916, 4
      %v6028 = vpop.permute.xlu0 %6027
      %6029 = vrot.lane.b32.xlu0 %v5928, 4
      %v6030 = vpop.permute.xlu0 %6029
      %6031 = vrot.lane.b32.xlu0 %v5940, 4
      %v6032 = vpop.permute.xlu0 %6031
      %6033 = vrot.lane.b32.xlu0 %v5952, 4
      %v6034 = vpop.permute.xlu0 %6033
      %6035 = vrot.lane.b32.xlu0 %v5964, 4
      %v6036 = vpop.permute.xlu0 %6035
      %6037 = vrot.lane.b32.xlu0 %v5976, 4
      %v6038 = vpop.permute.xlu0 %6037
      %6039 = vrot.lane.b32.xlu0 %v5988, 4
      %v6040 = vpop.permute.xlu0 %6039
      %6041 = vrot.lane.b32.xlu0 %v6000, 4
      %v6042 = vpop.permute.xlu0 %6041
      %6043 = vrot.lane.b32.xlu0 %v6012, 4
      %v6044 = vpop.permute.xlu0 %6043
      %v6061 = vunpack.c.l.b16 %v5612
      %v6062 = vunpack.c.l.b16 %v5613
      %v6063 = vunpack.c.l.b16 %v5614
      %v6064 = vunpack.c.l.b16 %v5615
      %v6065 = vunpack.c.l.b16 %v5616
      %v6066 = vunpack.c.l.b16 %v5617
      %v6067 = vunpack.c.l.b16 %v5618
      %v6068 = vunpack.c.l.b16 %v5619
      %v6069 = vunpack.c.l.b16 %v5620
      %v6070 = vunpack.c.l.b16 %v5621
      %v6071 = vunpack.c.l.b16 %v5622
      %v6072 = vunpack.c.l.b16 %v5623
      %v6073 = vunpack.c.l.b16 %v5624
      %v6074 = vunpack.c.l.b16 %v5625
      %v6075 = vunpack.c.l.b16 %v5626
      %v6076 = vunpack.c.l.b16 %v5627
      %v6077 = vpack.c.b16 %v5725, %v6061
      %v6078 = vpack.c.b16 %v5727, %v6062
      %v6079 = vpack.c.b16 %v5729, %v6063
      %v6080 = vpack.c.b16 %v5731, %v6064
      %v6081 = vpack.c.b16 %v5733, %v6065
      %v6082 = vpack.c.b16 %v5735, %v6066
      %v6083 = vpack.c.b16 %v5737, %v6067
      %v6084 = vpack.c.b16 %v5739, %v6068
      %v6085 = vpack.c.b16 %v5741, %v6069
      %v6086 = vpack.c.b16 %v5743, %v6070
      %v6087 = vpack.c.b16 %v5745, %v6071
      %v6088 = vpack.c.b16 %v5747, %v6072
      %v6089 = vpack.c.b16 %v5749, %v6073
      %v6090 = vpack.c.b16 %v5751, %v6074
      %v6091 = vpack.c.b16 %v5753, %v6075
      %v6092 = vpack.c.b16 %v5755, %v6076
      %vm6093 = vcmask 1046528
      %v6094 = vrot.slane %v6077, 1
      %v6095 = vrot.slane %v5804, 1
      %v6096 = vsel %vm6093, %v6094, %v6095
      %v6097 = vrot.slane %v6078, 1
      %v6098 = vrot.slane %v5805, 1
      %v6099 = vsel %vm6093, %v6097, %v6098
      %v6100 = vrot.slane %v6079, 1
      %v6101 = vrot.slane %v5806, 1
      %v6102 = vsel %vm6093, %v6100, %v6101
      %v6103 = vrot.slane %v6080, 1
      %v6104 = vrot.slane %v5807, 1
      %v6105 = vsel %vm6093, %v6103, %v6104
      %v6106 = vrot.slane %v6081, 1
      %v6107 = vrot.slane %v5808, 1
      %v6108 = vsel %vm6093, %v6106, %v6107
      %v6109 = vrot.slane %v6082, 1
      %v6110 = vrot.slane %v5809, 1
      %v6111 = vsel %vm6093, %v6109, %v6110
      %v6112 = vrot.slane %v6083, 1
      %v6113 = vrot.slane %v5810, 1
      %v6114 = vsel %vm6093, %v6112, %v6113
      %v6115 = vrot.slane %v6084, 1
      %v6116 = vrot.slane %v5811, 1
      %v6117 = vsel %vm6093, %v6115, %v6116
      %v6118 = vrot.slane %v6085, 1
      %v6119 = vrot.slane %v5812, 1
      %v6120 = vsel %vm6093, %v6118, %v6119
      %v6121 = vrot.slane %v6086, 1
      %v6122 = vrot.slane %v5813, 1
      %v6123 = vsel %vm6093, %v6121, %v6122
      %v6124 = vrot.slane %v6087, 1
      %v6125 = vrot.slane %v5814, 1
      %v6126 = vsel %vm6093, %v6124, %v6125
      %v6127 = vrot.slane %v6088, 1
      %v6128 = vrot.slane %v5815, 1
      %v6129 = vsel %vm6093, %v6127, %v6128
      %v6130 = vrot.slane %v6089, 1
      %v6131 = vrot.slane %v5816, 1
      %v6132 = vsel %vm6093, %v6130, %v6131
      %v6133 = vrot.slane %v6090, 1
      %v6134 = vrot.slane %v5817, 1
      %v6135 = vsel %vm6093, %v6133, %v6134
      %v6136 = vrot.slane %v6091, 1
      %v6137 = vrot.slane %v5818, 1
      %v6138 = vsel %vm6093, %v6136, %v6137
      %v6139 = vrot.slane %v6092, 1
      %v6140 = vrot.slane %v5819, 1
      %v6141 = vsel %vm6093, %v6139, %v6140
      %6142 = vrot.lane.b32.xlu0 %v6096, 8
      %v6143 = vpop.permute.xlu0 %6142
      %6144 = vrot.lane.b32.xlu0 %v6099, 8
      %v6145 = vpop.permute.xlu0 %6144
      %6146 = vrot.lane.b32.xlu0 %v6102, 8
      %v6147 = vpop.permute.xlu0 %6146
      %6148 = vrot.lane.b32.xlu0 %v6105, 8
      %v6149 = vpop.permute.xlu0 %6148
      %6150 = vrot.lane.b32.xlu0 %v6108, 8
      %v6151 = vpop.permute.xlu0 %6150
      %6152 = vrot.lane.b32.xlu0 %v6111, 8
      %v6153 = vpop.permute.xlu0 %6152
      %6154 = vrot.lane.b32.xlu0 %v6114, 8
      %v6155 = vpop.permute.xlu0 %6154
      %6156 = vrot.lane.b32.xlu0 %v6117, 8
      %v6157 = vpop.permute.xlu0 %6156
      %6158 = vrot.lane.b32.xlu0 %v6120, 8
      %v6159 = vpop.permute.xlu0 %6158
      %6160 = vrot.lane.b32.xlu0 %v6123, 8
      %v6161 = vpop.permute.xlu0 %6160
      %6162 = vrot.lane.b32.xlu0 %v6126, 8
      %v6163 = vpop.permute.xlu0 %6162
      %6164 = vrot.lane.b32.xlu0 %v6129, 8
      %v6165 = vpop.permute.xlu0 %6164
      %6166 = vrot.lane.b32.xlu0 %v6132, 8
      %v6167 = vpop.permute.xlu0 %6166
      %6168 = vrot.lane.b32.xlu0 %v6135, 8
      %v6169 = vpop.permute.xlu0 %6168
      %6170 = vrot.lane.b32.xlu0 %v6138, 8
      %v6171 = vpop.permute.xlu0 %6170
      %6172 = vrot.lane.b32.xlu0 %v6141, 8
      %v6173 = vpop.permute.xlu0 %6172
      %v6206 = vunpack.c.l.b16 %v5628
      %v6207 = vunpack.c.l.b16 %v5629
      %v6208 = vunpack.c.l.b16 %v5630
      %v6209 = vunpack.c.l.b16 %v5631
      %v6210 = vunpack.c.l.b16 %v5632
      %v6211 = vunpack.c.l.b16 %v5633
      %v6212 = vunpack.c.l.b16 %v5634
      %v6213 = vunpack.c.l.b16 %v5635
      %v6214 = vunpack.c.l.b16 %v5636
      %v6215 = vunpack.c.l.b16 %v5637
      %v6216 = vunpack.c.l.b16 %v5638
      %v6217 = vunpack.c.l.b16 %v5639
      %v6218 = vunpack.c.l.b16 %v5640
      %v6219 = vunpack.c.l.b16 %v5641
      %v6220 = vunpack.c.l.b16 %v5642
      %v6221 = vunpack.c.l.b16 %v5643
      %v6222 = vunpack.c.l.b16 %v5644
      %v6223 = vunpack.c.l.b16 %v5645
      %v6224 = vunpack.c.l.b16 %v5646
      %v6225 = vunpack.c.l.b16 %v5647
      %v6226 = vunpack.c.l.b16 %v5648
      %v6227 = vunpack.c.l.b16 %v5649
      %v6228 = vunpack.c.l.b16 %v5650
      %v6229 = vunpack.c.l.b16 %v5651
      %v6230 = vunpack.c.l.b16 %v5652
      %v6231 = vunpack.c.l.b16 %v5653
      %v6232 = vunpack.c.l.b16 %v5654
      %v6233 = vunpack.c.l.b16 %v5655
      %v6234 = vunpack.c.l.b16 %v5656
      %v6235 = vunpack.c.l.b16 %v5657
      %v6236 = vunpack.c.l.b16 %v5658
      %v6237 = vunpack.c.l.b16 %v5659
      %v6238 = vpack.c.b16 %v6207, %v6206
      %v6239 = vpack.c.b16 %v6209, %v6208
      %v6240 = vpack.c.b16 %v6211, %v6210
      %v6241 = vpack.c.b16 %v6213, %v6212
      %v6242 = vpack.c.b16 %v6215, %v6214
      %v6243 = vpack.c.b16 %v6217, %v6216
      %v6244 = vpack.c.b16 %v6219, %v6218
      %v6245 = vpack.c.b16 %v6221, %v6220
      %v6246 = vpack.c.b16 %v6223, %v6222
      %v6247 = vpack.c.b16 %v6225, %v6224
      %v6248 = vpack.c.b16 %v6227, %v6226
      %v6249 = vpack.c.b16 %v6229, %v6228
      %v6250 = vpack.c.b16 %v6231, %v6230
      %v6251 = vpack.c.b16 %v6233, %v6232
      %v6252 = vpack.c.b16 %v6235, %v6234
      %v6253 = vpack.c.b16 %v6237, %v6236
      %6254 = vrot.lane.b32.xlu0 %v6238, 12
      %v6255 = vpop.permute.xlu0 %6254
      %6256 = vrot.lane.b32.xlu0 %v6239, 12
      %v6257 = vpop.permute.xlu0 %6256
      %6258 = vrot.lane.b32.xlu0 %v6240, 12
      %v6259 = vpop.permute.xlu0 %6258
      %6260 = vrot.lane.b32.xlu0 %v6241, 12
      %v6261 = vpop.permute.xlu0 %6260
      %6262 = vrot.lane.b32.xlu0 %v6242, 12
      %v6263 = vpop.permute.xlu0 %6262
      %6264 = vrot.lane.b32.xlu0 %v6243, 12
      %v6265 = vpop.permute.xlu0 %6264
      %6266 = vrot.lane.b32.xlu0 %v6244, 12
      %v6267 = vpop.permute.xlu0 %6266
      %6268 = vrot.lane.b32.xlu0 %v6245, 12
      %v6269 = vpop.permute.xlu0 %6268
      %6270 = vrot.lane.b32.xlu0 %v6246, 12
      %v6271 = vpop.permute.xlu0 %6270
      %6272 = vrot.lane.b32.xlu0 %v6247, 12
      %v6273 = vpop.permute.xlu0 %6272
      %6274 = vrot.lane.b32.xlu0 %v6248, 12
      %v6275 = vpop.permute.xlu0 %6274
      %6276 = vrot.lane.b32.xlu0 %v6249, 12
      %v6277 = vpop.permute.xlu0 %6276
      %6278 = vrot.lane.b32.xlu0 %v6250, 12
      %v6279 = vpop.permute.xlu0 %6278
      %6280 = vrot.lane.b32.xlu0 %v6251, 12
      %v6281 = vpop.permute.xlu0 %6280
      %6282 = vrot.lane.b32.xlu0 %v6252, 12
      %v6283 = vpop.permute.xlu0 %6282
      %6284 = vrot.lane.b32.xlu0 %v6253, 12
      %v6285 = vpop.permute.xlu0 %6284
      %v6302 = vunpack.c.l.b16 %v5660
      %v6303 = vunpack.c.l.b16 %v5661
      %v6304 = vunpack.c.l.b16 %v5662
      %v6305 = vunpack.c.l.b16 %v5663
      %v6306 = vunpack.c.l.b16 %v5664
      %v6307 = vunpack.c.l.b16 %v5665
      %v6308 = vunpack.c.l.b16 %v5666
      %v6309 = vunpack.c.l.b16 %v5667
      %v6310 = vunpack.c.l.b16 %v5668
      %v6311 = vunpack.c.l.b16 %v5669
      %v6312 = vunpack.c.l.b16 %v5670
      %v6313 = vunpack.c.l.b16 %v5671
      %v6314 = vunpack.c.l.b16 %v5672
      %v6315 = vunpack.c.l.b16 %v5673
      %v6316 = vunpack.c.l.b16 %v5674
      %v6317 = vunpack.c.l.b16 %v5675
      %v6318 = vpack.c.b16 %v6302, %v6302
      %v6319 = vpack.c.b16 %v6303, %v6303
      %v6320 = vpack.c.b16 %v6304, %v6304
      %v6321 = vpack.c.b16 %v6305, %v6305
      %v6322 = vpack.c.b16 %v6306, %v6306
      %v6323 = vpack.c.b16 %v6307, %v6307
      %v6324 = vpack.c.b16 %v6308, %v6308
      %v6325 = vpack.c.b16 %v6309, %v6309
      %v6326 = vpack.c.b16 %v6310, %v6310
      %v6327 = vpack.c.b16 %v6311, %v6311
      %v6328 = vpack.c.b16 %v6312, %v6312
      %v6329 = vpack.c.b16 %v6313, %v6313
      %v6330 = vpack.c.b16 %v6314, %v6314
      %v6331 = vpack.c.b16 %v6315, %v6315
      %v6332 = vpack.c.b16 %v6316, %v6316
      %v6333 = vpack.c.b16 %v6317, %v6317
      %v6335 = vshrl.u32 %v6238, 16
      %v6337 = vshll.u32 %v6238, 16
      %v6339 = vrot.slane %v6337, 1
      %v6340 = vor.u32 %v6335, %v6339
      %v6342 = vshll.u32 %v6318, 16
      %v6344 = vrot.slane %v6342, 1
      %v6345 = vsel %vm5820, %v6340, %v6344
      %v6347 = vshrl.u32 %v6239, 16
      %v6349 = vshll.u32 %v6239, 16
      %v6351 = vrot.slane %v6349, 1
      %v6352 = vor.u32 %v6347, %v6351
      %v6354 = vshll.u32 %v6319, 16
      %v6356 = vrot.slane %v6354, 1
      %v6357 = vsel %vm5820, %v6352, %v6356
      %v6359 = vshrl.u32 %v6240, 16
      %v6361 = vshll.u32 %v6240, 16
      %v6363 = vrot.slane %v6361, 1
      %v6364 = vor.u32 %v6359, %v6363
      %v6366 = vshll.u32 %v6320, 16
      %v6368 = vrot.slane %v6366, 1
      %v6369 = vsel %vm5820, %v6364, %v6368
      %v6371 = vshrl.u32 %v6241, 16
      %v6373 = vshll.u32 %v6241, 16
      %v6375 = vrot.slane %v6373, 1
      %v6376 = vor.u32 %v6371, %v6375
      %v6378 = vshll.u32 %v6321, 16
      %v6380 = vrot.slane %v6378, 1
      %v6381 = vsel %vm5820, %v6376, %v6380
      %v6383 = vshrl.u32 %v6242, 16
      %v6385 = vshll.u32 %v6242, 16
      %v6387 = vrot.slane %v6385, 1
      %v6388 = vor.u32 %v6383, %v6387
      %v6390 = vshll.u32 %v6322, 16
      %v6392 = vrot.slane %v6390, 1
      %v6393 = vsel %vm5820, %v6388, %v6392
      %v6395 = vshrl.u32 %v6243, 16
      %v6397 = vshll.u32 %v6243, 16
      %v6399 = vrot.slane %v6397, 1
      %v6400 = vor.u32 %v6395, %v6399
      %v6402 = vshll.u32 %v6323, 16
      %v6404 = vrot.slane %v6402, 1
      %v6405 = vsel %vm5820, %v6400, %v6404
      %v6407 = vshrl.u32 %v6244, 16
      %v6409 = vshll.u32 %v6244, 16
      %v6411 = vrot.slane %v6409, 1
      %v6412 = vor.u32 %v6407, %v6411
      %v6414 = vshll.u32 %v6324, 16
      %v6416 = vrot.slane %v6414, 1
      %v6417 = vsel %vm5820, %v6412, %v6416
      %v6419 = vshrl.u32 %v6245, 16
      %v6421 = vshll.u32 %v6245, 16
      %v6423 = vrot.slane %v6421, 1
      %v6424 = vor.u32 %v6419, %v6423
      %v6426 = vshll.u32 %v6325, 16
      %v6428 = vrot.slane %v6426, 1
      %v6429 = vsel %vm5820, %v6424, %v6428
      %v6431 = vshrl.u32 %v6246, 16
      %v6433 = vshll.u32 %v6246, 16
      %v6435 = vrot.slane %v6433, 1
      %v6436 = vor.u32 %v6431, %v6435
      %v6438 = vshll.u32 %v6326, 16
      %v6440 = vrot.slane %v6438, 1
      %v6441 = vsel %vm5820, %v6436, %v6440
      %v6443 = vshrl.u32 %v6247, 16
      %v6445 = vshll.u32 %v6247, 16
      %v6447 = vrot.slane %v6445, 1
      %v6448 = vor.u32 %v6443, %v6447
      %v6450 = vshll.u32 %v6327, 16
      %v6452 = vrot.slane %v6450, 1
      %v6453 = vsel %vm5820, %v6448, %v6452
      %v6455 = vshrl.u32 %v6248, 16
      %v6457 = vshll.u32 %v6248, 16
      %v6459 = vrot.slane %v6457, 1
      %v6460 = vor.u32 %v6455, %v6459
      %v6462 = vshll.u32 %v6328, 16
      %v6464 = vrot.slane %v6462, 1
      %v6465 = vsel %vm5820, %v6460, %v6464
      %v6467 = vshrl.u32 %v6249, 16
      %v6469 = vshll.u32 %v6249, 16
      %v6471 = vrot.slane %v6469, 1
      %v6472 = vor.u32 %v6467, %v6471
      %v6474 = vshll.u32 %v6329, 16
      %v6476 = vrot.slane %v6474, 1
      %v6477 = vsel %vm5820, %v6472, %v6476
      %v6479 = vshrl.u32 %v6250, 16
      %v6481 = vshll.u32 %v6250, 16
      %v6483 = vrot.slane %v6481, 1
      %v6484 = vor.u32 %v6479, %v6483
      %v6486 = vshll.u32 %v6330, 16
      %v6488 = vrot.slane %v6486, 1
      %v6489 = vsel %vm5820, %v6484, %v6488
      %v6491 = vshrl.u32 %v6251, 16
      %v6493 = vshll.u32 %v6251, 16
      %v6495 = vrot.slane %v6493, 1
      %v6496 = vor.u32 %v6491, %v6495
      %v6498 = vshll.u32 %v6331, 16
      %v6500 = vrot.slane %v6498, 1
      %v6501 = vsel %vm5820, %v6496, %v6500
      %v6503 = vshrl.u32 %v6252, 16
      %v6505 = vshll.u32 %v6252, 16
      %v6507 = vrot.slane %v6505, 1
      %v6508 = vor.u32 %v6503, %v6507
      %v6510 = vshll.u32 %v6332, 16
      %v6512 = vrot.slane %v6510, 1
      %v6513 = vsel %vm5820, %v6508, %v6512
      %v6515 = vshrl.u32 %v6253, 16
      %v6517 = vshll.u32 %v6253, 16
      %v6519 = vrot.slane %v6517, 1
      %v6520 = vor.u32 %v6515, %v6519
      %v6522 = vshll.u32 %v6333, 16
      %v6524 = vrot.slane %v6522, 1
      %v6525 = vsel %vm5820, %v6520, %v6524
      %6526 = vrot.lane.b32.xlu0 %v6345, 16
      %v6527 = vpop.permute.xlu0 %6526
      %6528 = vrot.lane.b32.xlu0 %v6357, 16
      %v6529 = vpop.permute.xlu0 %6528
      %6530 = vrot.lane.b32.xlu0 %v6369, 16
      %v6531 = vpop.permute.xlu0 %6530
      %6532 = vrot.lane.b32.xlu0 %v6381, 16
      %v6533 = vpop.permute.xlu0 %6532
      %6534 = vrot.lane.b32.xlu0 %v6393, 16
      %v6535 = vpop.permute.xlu0 %6534
      %6536 = vrot.lane.b32.xlu0 %v6405, 16
      %v6537 = vpop.permute.xlu0 %6536
      %6538 = vrot.lane.b32.xlu0 %v6417, 16
      %v6539 = vpop.permute.xlu0 %6538
      %6540 = vrot.lane.b32.xlu0 %v6429, 16
      %v6541 = vpop.permute.xlu0 %6540
      %6542 = vrot.lane.b32.xlu0 %v6441, 16
      %v6543 = vpop.permute.xlu0 %6542
      %6544 = vrot.lane.b32.xlu0 %v6453, 16
      %v6545 = vpop.permute.xlu0 %6544
      %6546 = vrot.lane.b32.xlu0 %v6465, 16
      %v6547 = vpop.permute.xlu0 %6546
      %6548 = vrot.lane.b32.xlu0 %v6477, 16
      %v6549 = vpop.permute.xlu0 %6548
      %6550 = vrot.lane.b32.xlu0 %v6489, 16
      %v6551 = vpop.permute.xlu0 %6550
      %6552 = vrot.lane.b32.xlu0 %v6501, 16
      %v6553 = vpop.permute.xlu0 %6552
      %6554 = vrot.lane.b32.xlu0 %v6513, 16
      %v6555 = vpop.permute.xlu0 %6554
      %6556 = vrot.lane.b32.xlu0 %v6525, 16
      %v6557 = vpop.permute.xlu0 %6556
      %v6574 = vunpack.c.l.b16 %v5676
      %v6575 = vunpack.c.l.b16 %v5677
      %v6576 = vunpack.c.l.b16 %v5678
      %v6577 = vunpack.c.l.b16 %v5679
      %v6578 = vunpack.c.l.b16 %v5680
      %v6579 = vunpack.c.l.b16 %v5681
      %v6580 = vunpack.c.l.b16 %v5682
      %v6581 = vunpack.c.l.b16 %v5683
      %v6582 = vunpack.c.l.b16 %v5684
      %v6583 = vunpack.c.l.b16 %v5685
      %v6584 = vunpack.c.l.b16 %v5686
      %v6585 = vunpack.c.l.b16 %v5687
      %v6586 = vunpack.c.l.b16 %v5688
      %v6587 = vunpack.c.l.b16 %v5689
      %v6588 = vunpack.c.l.b16 %v5690
      %v6589 = vunpack.c.l.b16 %v5691
      %v6590 = vpack.c.b16 %v6207, %v6574
      %v6591 = vpack.c.b16 %v6209, %v6575
      %v6592 = vpack.c.b16 %v6211, %v6576
      %v6593 = vpack.c.b16 %v6213, %v6577
      %v6594 = vpack.c.b16 %v6215, %v6578
      %v6595 = vpack.c.b16 %v6217, %v6579
      %v6596 = vpack.c.b16 %v6219, %v6580
      %v6597 = vpack.c.b16 %v6221, %v6581
      %v6598 = vpack.c.b16 %v6223, %v6582
      %v6599 = vpack.c.b16 %v6225, %v6583
      %v6600 = vpack.c.b16 %v6227, %v6584
      %v6601 = vpack.c.b16 %v6229, %v6585
      %v6602 = vpack.c.b16 %v6231, %v6586
      %v6603 = vpack.c.b16 %v6233, %v6587
      %v6604 = vpack.c.b16 %v6235, %v6588
      %v6605 = vpack.c.b16 %v6237, %v6589
      %v6606 = vrot.slane %v6590, 1
      %v6607 = vrot.slane %v6318, 1
      %v6608 = vsel %vm6093, %v6606, %v6607
      %v6609 = vrot.slane %v6591, 1
      %v6610 = vrot.slane %v6319, 1
      %v6611 = vsel %vm6093, %v6609, %v6610
      %v6612 = vrot.slane %v6592, 1
      %v6613 = vrot.slane %v6320, 1
      %v6614 = vsel %vm6093, %v6612, %v6613
      %v6615 = vrot.slane %v6593, 1
      %v6616 = vrot.slane %v6321, 1
      %v6617 = vsel %vm6093, %v6615, %v6616
      %v6618 = vrot.slane %v6594, 1
      %v6619 = vrot.slane %v6322, 1
      %v6620 = vsel %vm6093, %v6618, %v6619
      %v6621 = vrot.slane %v6595, 1
      %v6622 = vrot.slane %v6323, 1
      %v6623 = vsel %vm6093, %v6621, %v6622
      %v6624 = vrot.slane %v6596, 1
      %v6625 = vrot.slane %v6324, 1
      %v6626 = vsel %vm6093, %v6624, %v6625
      %v6627 = vrot.slane %v6597, 1
      %v6628 = vrot.slane %v6325, 1
      %v6629 = vsel %vm6093, %v6627, %v6628
      %v6630 = vrot.slane %v6598, 1
      %v6631 = vrot.slane %v6326, 1
      %v6632 = vsel %vm6093, %v6630, %v6631
      %v6633 = vrot.slane %v6599, 1
      %v6634 = vrot.slane %v6327, 1
      %v6635 = vsel %vm6093, %v6633, %v6634
      %v6636 = vrot.slane %v6600, 1
      %v6637 = vrot.slane %v6328, 1
      %v6638 = vsel %vm6093, %v6636, %v6637
      %v6639 = vrot.slane %v6601, 1
      %v6640 = vrot.slane %v6329, 1
      %v6641 = vsel %vm6093, %v6639, %v6640
      %v6642 = vrot.slane %v6602, 1
      %v6643 = vrot.slane %v6330, 1
      %v6644 = vsel %vm6093, %v6642, %v6643
      %v6645 = vrot.slane %v6603, 1
      %v6646 = vrot.slane %v6331, 1
      %v6647 = vsel %vm6093, %v6645, %v6646
      %v6648 = vrot.slane %v6604, 1
      %v6649 = vrot.slane %v6332, 1
      %v6650 = vsel %vm6093, %v6648, %v6649
      %v6651 = vrot.slane %v6605, 1
      %v6652 = vrot.slane %v6333, 1
      %v6653 = vsel %vm6093, %v6651, %v6652
      %6654 = vrot.lane.b32.xlu0 %v6608, 20
      %v6655 = vpop.permute.xlu0 %6654
      %6656 = vrot.lane.b32.xlu0 %v6611, 20
      %v6657 = vpop.permute.xlu0 %6656
      %6658 = vrot.lane.b32.xlu0 %v6614, 20
      %v6659 = vpop.permute.xlu0 %6658
      %6660 = vrot.lane.b32.xlu0 %v6617, 20
      %v6661 = vpop.permute.xlu0 %6660
      %6662 = vrot.lane.b32.xlu0 %v6620, 20
      %v6663 = vpop.permute.xlu0 %6662
      %6664 = vrot.lane.b32.xlu0 %v6623, 20
      %v6665 = vpop.permute.xlu0 %6664
      %6666 = vrot.lane.b32.xlu0 %v6626, 20
      %v6667 = vpop.permute.xlu0 %6666
      %6668 = vrot.lane.b32.xlu0 %v6629, 20
      %v6669 = vpop.permute.xlu0 %6668
      %6670 = vrot.lane.b32.xlu0 %v6632, 20
      %v6671 = vpop.permute.xlu0 %6670
      %6672 = vrot.lane.b32.xlu0 %v6635, 20
      %v6673 = vpop.permute.xlu0 %6672
      %6674 = vrot.lane.b32.xlu0 %v6638, 20
      %v6675 = vpop.permute.xlu0 %6674
      %6676 = vrot.lane.b32.xlu0 %v6641, 20
      %v6677 = vpop.permute.xlu0 %6676
      %6678 = vrot.lane.b32.xlu0 %v6644, 20
      %v6679 = vpop.permute.xlu0 %6678
      %6680 = vrot.lane.b32.xlu0 %v6647, 20
      %v6681 = vpop.permute.xlu0 %6680
      %6682 = vrot.lane.b32.xlu0 %v6650, 20
      %v6683 = vpop.permute.xlu0 %6682
      %6684 = vrot.lane.b32.xlu0 %v6653, 20
      %v6685 = vpop.permute.xlu0 %6684
      %v6687 = vsel %vm720, %v5756, %v6014
      %v6689 = vsel %vm720, %v5757, %v6016
      %v6691 = vsel %vm720, %v5758, %v6018
      %v6693 = vsel %vm720, %v5759, %v6020
      %v6695 = vsel %vm720, %v5760, %v6022
      %v6697 = vsel %vm720, %v5761, %v6024
      %v6699 = vsel %vm720, %v5762, %v6026
      %v6701 = vsel %vm720, %v5763, %v6028
      %v6703 = vsel %vm720, %v5764, %v6030
      %v6705 = vsel %vm720, %v5765, %v6032
      %v6707 = vsel %vm720, %v5766, %v6034
      %v6709 = vsel %vm720, %v5767, %v6036
      %v6711 = vsel %vm720, %v5768, %v6038
      %v6713 = vsel %vm720, %v5769, %v6040
      %v6715 = vsel %vm720, %v5770, %v6042
      %v6717 = vsel %vm720, %v5771, %v6044
      %vm6718 = vcmask 64512
      %v6720 = vsel %vm6718, %v6687, %v6143
      %v6722 = vsel %vm6718, %v6689, %v6145
      %v6724 = vsel %vm6718, %v6691, %v6147
      %v6726 = vsel %vm6718, %v6693, %v6149
      %v6728 = vsel %vm6718, %v6695, %v6151
      %v6730 = vsel %vm6718, %v6697, %v6153
      %v6732 = vsel %vm6718, %v6699, %v6155
      %v6734 = vsel %vm6718, %v6701, %v6157
      %v6736 = vsel %vm6718, %v6703, %v6159
      %v6738 = vsel %vm6718, %v6705, %v6161
      %v6740 = vsel %vm6718, %v6707, %v6163
      %v6742 = vsel %vm6718, %v6709, %v6165
      %v6744 = vsel %vm6718, %v6711, %v6167
      %v6746 = vsel %vm6718, %v6713, %v6169
      %v6748 = vsel %vm6718, %v6715, %v6171
      %v6750 = vsel %vm6718, %v6717, %v6173
      %vm6751 = vcmask 97280
      %v6753 = vsel %vm6751, %v6720, %v6255
      %v6755 = vsel %vm6751, %v6722, %v6257
      %v6757 = vsel %vm6751, %v6724, %v6259
      %v6759 = vsel %vm6751, %v6726, %v6261
      %v6761 = vsel %vm6751, %v6728, %v6263
      %v6763 = vsel %vm6751, %v6730, %v6265
      %v6765 = vsel %vm6751, %v6732, %v6267
      %v6767 = vsel %vm6751, %v6734, %v6269
      %v6769 = vsel %vm6751, %v6736, %v6271
      %v6771 = vsel %vm6751, %v6738, %v6273
      %v6773 = vsel %vm6751, %v6740, %v6275
      %v6775 = vsel %vm6751, %v6742, %v6277
      %v6777 = vsel %vm6751, %v6744, %v6279
      %v6779 = vsel %vm6751, %v6746, %v6281
      %v6781 = vsel %vm6751, %v6748, %v6283
      %v6783 = vsel %vm6751, %v6750, %v6285
      %vm6784 = vcmask 130048
      %v6786 = vsel %vm6784, %v6753, %v6527
      %v6788 = vsel %vm6784, %v6755, %v6529
      %v6790 = vsel %vm6784, %v6757, %v6531
      %v6792 = vsel %vm6784, %v6759, %v6533
      %v6794 = vsel %vm6784, %v6761, %v6535
      %v6796 = vsel %vm6784, %v6763, %v6537
      %v6798 = vsel %vm6784, %v6765, %v6539
      %v6800 = vsel %vm6784, %v6767, %v6541
      %v6802 = vsel %vm6784, %v6769, %v6543
      %v6804 = vsel %vm6784, %v6771, %v6545
      %v6806 = vsel %vm6784, %v6773, %v6547
      %v6808 = vsel %vm6784, %v6775, %v6549
      %v6810 = vsel %vm6784, %v6777, %v6551
      %v6812 = vsel %vm6784, %v6779, %v6553
      %v6814 = vsel %vm6784, %v6781, %v6555
      %v6816 = vsel %vm6784, %v6783, %v6557
      %vm6817 = vcmask 162816
      %v6819 = vsel %vm6817, %v6786, %v6655
      %v6821 = vsel %vm6817, %v6788, %v6657
      %v6823 = vsel %vm6817, %v6790, %v6659
      %v6825 = vsel %vm6817, %v6792, %v6661
      %v6827 = vsel %vm6817, %v6794, %v6663
      %v6829 = vsel %vm6817, %v6796, %v6665
      %v6831 = vsel %vm6817, %v6798, %v6667
      %v6833 = vsel %vm6817, %v6800, %v6669
      %v6835 = vsel %vm6817, %v6802, %v6671
      %v6837 = vsel %vm6817, %v6804, %v6673
      %v6839 = vsel %vm6817, %v6806, %v6675
      %v6841 = vsel %vm6817, %v6808, %v6677
      %v6843 = vsel %vm6817, %v6810, %v6679
      %v6845 = vsel %vm6817, %v6812, %v6681
      %v6847 = vsel %vm6817, %v6814, %v6683
      %v6849 = vsel %vm6817, %v6816, %v6685
      %v6850 = vld [vmem:[%s4] sm:$0xf]
      %v6851 = vld [vmem:[%s4 + $0x4] sm:$0xf]
      %v6852 = vld [vmem:[%s4 + $0x8] sm:$0xf]
      %v6853 = vld [vmem:[%s4120] sm:$0xf]
      %v6854 = vld [vmem:[%s4120 + $0x4] sm:$0xf]
      %v6855 = vld [vmem:[%s4120 + $0xc] sm:$0xf]
      %v6856 = vld [vmem:[%s4120 + $0x10] sm:$0xf]
      %v6857 = vld [vmem:[%s4120 + $0x18] sm:$0xf]
      %v6858 = vld [vmem:[%s4120 + $0x1c] sm:$0xf]
      %v6859 = vld [vmem:[%s4120 + $0x24] sm:$0xf]
      %v6860 = vld [vmem:[%s4120 + $0x28] sm:$0xf]
      %v6861 = vld [vmem:[%s4120 + $0x30] sm:$0xf]
      %v6862 = vld [vmem:[%s4120 + $0x34] sm:$0xf]
      %v6863 = vld [vmem:[%s4120 + $0x3c] sm:$0xf]
      %v6864 = vld [vmem:[%s4120 + $0x40] sm:$0xf]
      %v6865 = vld [vmem:[%s4120 + $0x48] sm:$0xf]
      %v6866 = vld [vmem:[%s4120 + $0x4c] sm:$0xf]
      %v6867 = vld [vmem:[%s4120 + $0x54] sm:$0xf]
      %v6868 = vld [vmem:[%s4120 + $0x58] sm:$0xf]
      %v6869 = vld [vmem:[%s4120 + $0x60] sm:$0xf]
      %v6870 = vld [vmem:[%s4120 + $0x64] sm:$0xf]
      %v6871 = vld [vmem:[%s4120 + $0x6c] sm:$0xf]
      %v6872 = vld [vmem:[%s4120 + $0x70] sm:$0xf]
      %v6873 = vld [vmem:[%s4120 + $0x78] sm:$0xf]
      %v6874 = vld [vmem:[%s4120 + $0x7c] sm:$0xf]
      %v6875 = vld [vmem:[%s4120 + $0x84] sm:$0xf]
      %v6876 = vld [vmem:[%s4120 + $0x88] sm:$0xf]
      %v6877 = vld [vmem:[%s4120 + $0x90] sm:$0xf]
      %v6878 = vld [vmem:[%s4120 + $0x94] sm:$0xf]
      %v6879 = vld [vmem:[%s4120 + $0x9c] sm:$0xf]
      %v6880 = vld [vmem:[%s4120 + $0xa0] sm:$0xf]
      %v6881 = vld [vmem:[%s4120 + $0xa8] sm:$0xf]
      %v6882 = vld [vmem:[%s4120 + $0xac] sm:$0xf]
      %v6883 = vld [vmem:[%s4120 + $0xb4] sm:$0xf]
      %v6884 = vld [vmem:[%s4120 + $0xb8] sm:$0xf]
      %v6885 = vld [vmem:[%s4120 + $0x8] sm:$0x1]
      %v6886 = vld [vmem:[%s4120 + $0x14] sm:$0x1]
      %v6887 = vld [vmem:[%s4120 + $0x20] sm:$0x1]
      %v6888 = vld [vmem:[%s4120 + $0x2c] sm:$0x1]
      %v6889 = vld [vmem:[%s4120 + $0x38] sm:$0x1]
      %v6890 = vld [vmem:[%s4120 + $0x44] sm:$0x1]
      %v6891 = vld [vmem:[%s4120 + $0x50] sm:$0x1]
      %v6892 = vld [vmem:[%s4120 + $0x5c] sm:$0x1]
      %v6893 = vld [vmem:[%s4120 + $0x68] sm:$0x1]
      %v6894 = vld [vmem:[%s4120 + $0x74] sm:$0x1]
      %v6895 = vld [vmem:[%s4120 + $0x80] sm:$0x1]
      %v6896 = vld [vmem:[%s4120 + $0x8c] sm:$0x1]
      %v6897 = vld [vmem:[%s4120 + $0x98] sm:$0x1]
      %v6898 = vld [vmem:[%s4120 + $0xa4] sm:$0x1]
      %v6899 = vld [vmem:[%s4120 + $0xb0] sm:$0x1]
      %v6900 = vld [vmem:[%s4120 + $0xbc] sm:$0x1]
      %v6901 = vld [vmem:[%s4120] sm:$0xe]
      %v6902 = vld [vmem:[%s4120 + $0xc] sm:$0xe]
      %v6903 = vld [vmem:[%s4120 + $0x18] sm:$0xe]
      %v6904 = vld [vmem:[%s4120 + $0x24] sm:$0xe]
      %v6905 = vld [vmem:[%s4120 + $0x30] sm:$0xe]
      %v6906 = vld [vmem:[%s4120 + $0x3c] sm:$0xe]
      %v6907 = vld [vmem:[%s4120 + $0x48] sm:$0xe]
      %v6908 = vld [vmem:[%s4120 + $0x54] sm:$0xe]
      %v6909 = vld [vmem:[%s4120 + $0x60] sm:$0xe]
      %v6910 = vld [vmem:[%s4120 + $0x6c] sm:$0xe]
      %v6911 = vld [vmem:[%s4120 + $0x78] sm:$0xe]
      %v6912 = vld [vmem:[%s4120 + $0x84] sm:$0xe]
      %v6913 = vld [vmem:[%s4120 + $0x90] sm:$0xe]
      %v6914 = vld [vmem:[%s4120 + $0x9c] sm:$0xe]
      %v6915 = vld [vmem:[%s4120 + $0xa8] sm:$0xe]
      %v6916 = vld [vmem:[%s4120 + $0xb4] sm:$0xe]
      %v6917 = vld [vmem:[%s5451] sm:$0xf]
      %v6918 = vld [vmem:[%s5451 + $0x4] sm:$0xf]
      %v6919 = vld [vmem:[%s5451 + $0xc] sm:$0xf]
      %v6920 = vld [vmem:[%s5451 + $0x10] sm:$0xf]
      %v6921 = vld [vmem:[%s5451 + $0x18] sm:$0xf]
      %v6922 = vld [vmem:[%s5451 + $0x1c] sm:$0xf]
      %v6923 = vld [vmem:[%s5451 + $0x24] sm:$0xf]
      %v6924 = vld [vmem:[%s5451 + $0x28] sm:$0xf]
      %v6925 = vld [vmem:[%s5451 + $0x30] sm:$0xf]
      %v6926 = vld [vmem:[%s5451 + $0x34] sm:$0xf]
      %v6927 = vld [vmem:[%s5451 + $0x3c] sm:$0xf]
      %v6928 = vld [vmem:[%s5451 + $0x40] sm:$0xf]
      %v6929 = vld [vmem:[%s5451 + $0x48] sm:$0xf]
      %v6930 = vld [vmem:[%s5451 + $0x4c] sm:$0xf]
      %v6931 = vld [vmem:[%s5451 + $0x54] sm:$0xf]
      %v6932 = vld [vmem:[%s5451 + $0x58] sm:$0xf]
      %v6933 = vld [vmem:[%s5451 + $0x60] sm:$0xf]
      %v6934 = vld [vmem:[%s5451 + $0x64] sm:$0xf]
      %v6935 = vld [vmem:[%s5451 + $0x6c] sm:$0xf]
      %v6936 = vld [vmem:[%s5451 + $0x70] sm:$0xf]
      %v6937 = vld [vmem:[%s5451 + $0x78] sm:$0xf]
      %v6938 = vld [vmem:[%s5451 + $0x7c] sm:$0xf]
      %v6939 = vld [vmem:[%s5451 + $0x84] sm:$0xf]
      %v6940 = vld [vmem:[%s5451 + $0x88] sm:$0xf]
      %v6941 = vld [vmem:[%s5451 + $0x90] sm:$0xf]
      %v6942 = vld [vmem:[%s5451 + $0x94] sm:$0xf]
      %v6943 = vld [vmem:[%s5451 + $0x9c] sm:$0xf]
      %v6944 = vld [vmem:[%s5451 + $0xa0] sm:$0xf]
      %v6945 = vld [vmem:[%s5451 + $0xa8] sm:$0xf]
      %v6946 = vld [vmem:[%s5451 + $0xac] sm:$0xf]
      %v6947 = vld [vmem:[%s5451 + $0xb4] sm:$0xf]
      %v6948 = vld [vmem:[%s5451 + $0xb8] sm:$0xf]
      %v6949 = vld [vmem:[%s5451 + $0x8] sm:$0x1]
      %v6950 = vld [vmem:[%s5451 + $0x14] sm:$0x1]
      %v6951 = vld [vmem:[%s5451 + $0x20] sm:$0x1]
      %v6952 = vld [vmem:[%s5451 + $0x2c] sm:$0x1]
      %v6953 = vld [vmem:[%s5451 + $0x38] sm:$0x1]
      %v6954 = vld [vmem:[%s5451 + $0x44] sm:$0x1]
      %v6955 = vld [vmem:[%s5451 + $0x50] sm:$0x1]
      %v6956 = vld [vmem:[%s5451 + $0x5c] sm:$0x1]
      %v6957 = vld [vmem:[%s5451 + $0x68] sm:$0x1]
      %v6958 = vld [vmem:[%s5451 + $0x74] sm:$0x1]
      %v6959 = vld [vmem:[%s5451 + $0x80] sm:$0x1]
      %v6960 = vld [vmem:[%s5451 + $0x8c] sm:$0x1]
      %v6961 = vld [vmem:[%s5451 + $0x98] sm:$0x1]
      %v6962 = vld [vmem:[%s5451 + $0xa4] sm:$0x1]
      %v6963 = vld [vmem:[%s5451 + $0xb0] sm:$0x1]
      %v6964 = vld [vmem:[%s5451 + $0xbc] sm:$0x1]
      %v6965 = vld [vmem:[%s5451] sm:$0xe]
      %v6966 = vld [vmem:[%s5451 + $0xc] sm:$0xe]
      %v6967 = vld [vmem:[%s5451 + $0x18] sm:$0xe]
      %v6968 = vld [vmem:[%s5451 + $0x24] sm:$0xe]
      %v6969 = vld [vmem:[%s5451 + $0x30] sm:$0xe]
      %v6970 = vld [vmem:[%s5451 + $0x3c] sm:$0xe]
      %v6971 = vld [vmem:[%s5451 + $0x48] sm:$0xe]
      %v6972 = vld [vmem:[%s5451 + $0x54] sm:$0xe]
      %v6973 = vld [vmem:[%s5451 + $0x60] sm:$0xe]
      %v6974 = vld [vmem:[%s5451 + $0x6c] sm:$0xe]
      %v6975 = vld [vmem:[%s5451 + $0x78] sm:$0xe]
      %v6976 = vld [vmem:[%s5451 + $0x84] sm:$0xe]
      %v6977 = vld [vmem:[%s5451 + $0x90] sm:$0xe]
      %v6978 = vld [vmem:[%s5451 + $0x9c] sm:$0xe]
      %v6979 = vld [vmem:[%s5451 + $0xa8] sm:$0xe]
      %v6980 = vld [vmem:[%s5451 + $0xb4] sm:$0xe]
      %v7013 = vunpack.c.l.b16 %v6853
      %v7014 = vunpack.c.l.b16 %v6854
      %v7015 = vunpack.c.l.b16 %v6855
      %v7016 = vunpack.c.l.b16 %v6856
      %v7017 = vunpack.c.l.b16 %v6857
      %v7018 = vunpack.c.l.b16 %v6858
      %v7019 = vunpack.c.l.b16 %v6859
      %v7020 = vunpack.c.l.b16 %v6860
      %v7021 = vunpack.c.l.b16 %v6861
      %v7022 = vunpack.c.l.b16 %v6862
      %v7023 = vunpack.c.l.b16 %v6863
      %v7024 = vunpack.c.l.b16 %v6864
      %v7025 = vunpack.c.l.b16 %v6865
      %v7026 = vunpack.c.l.b16 %v6866
      %v7027 = vunpack.c.l.b16 %v6867
      %v7028 = vunpack.c.l.b16 %v6868
      %v7029 = vunpack.c.l.b16 %v6869
      %v7030 = vunpack.c.l.b16 %v6870
      %v7031 = vunpack.c.l.b16 %v6871
      %v7032 = vunpack.c.l.b16 %v6872
      %v7033 = vunpack.c.l.b16 %v6873
      %v7034 = vunpack.c.l.b16 %v6874
      %v7035 = vunpack.c.l.b16 %v6875
      %v7036 = vunpack.c.l.b16 %v6876
      %v7037 = vunpack.c.l.b16 %v6877
      %v7038 = vunpack.c.l.b16 %v6878
      %v7039 = vunpack.c.l.b16 %v6879
      %v7040 = vunpack.c.l.b16 %v6880
      %v7041 = vunpack.c.l.b16 %v6881
      %v7042 = vunpack.c.l.b16 %v6882
      %v7043 = vunpack.c.l.b16 %v6883
      %v7044 = vunpack.c.l.b16 %v6884
      %v7045 = vpack.c.b16 %v7014, %v7013
      %v7046 = vpack.c.b16 %v7016, %v7015
      %v7047 = vpack.c.b16 %v7018, %v7017
      %v7048 = vpack.c.b16 %v7020, %v7019
      %v7049 = vpack.c.b16 %v7022, %v7021
      %v7050 = vpack.c.b16 %v7024, %v7023
      %v7051 = vpack.c.b16 %v7026, %v7025
      %v7052 = vpack.c.b16 %v7028, %v7027
      %v7053 = vpack.c.b16 %v7030, %v7029
      %v7054 = vpack.c.b16 %v7032, %v7031
      %v7055 = vpack.c.b16 %v7034, %v7033
      %v7056 = vpack.c.b16 %v7036, %v7035
      %v7057 = vpack.c.b16 %v7038, %v7037
      %v7058 = vpack.c.b16 %v7040, %v7039
      %v7059 = vpack.c.b16 %v7042, %v7041
      %v7060 = vpack.c.b16 %v7044, %v7043
      %v7077 = vunpack.c.l.b16 %v6885
      %v7078 = vunpack.c.l.b16 %v6886
      %v7079 = vunpack.c.l.b16 %v6887
      %v7080 = vunpack.c.l.b16 %v6888
      %v7081 = vunpack.c.l.b16 %v6889
      %v7082 = vunpack.c.l.b16 %v6890
      %v7083 = vunpack.c.l.b16 %v6891
      %v7084 = vunpack.c.l.b16 %v6892
      %v7085 = vunpack.c.l.b16 %v6893
      %v7086 = vunpack.c.l.b16 %v6894
      %v7087 = vunpack.c.l.b16 %v6895
      %v7088 = vunpack.c.l.b16 %v6896
      %v7089 = vunpack.c.l.b16 %v6897
      %v7090 = vunpack.c.l.b16 %v6898
      %v7091 = vunpack.c.l.b16 %v6899
      %v7092 = vunpack.c.l.b16 %v6900
      %v7093 = vpack.c.b16 %v7077, %v7077
      %v7094 = vpack.c.b16 %v7078, %v7078
      %v7095 = vpack.c.b16 %v7079, %v7079
      %v7096 = vpack.c.b16 %v7080, %v7080
      %v7097 = vpack.c.b16 %v7081, %v7081
      %v7098 = vpack.c.b16 %v7082, %v7082
      %v7099 = vpack.c.b16 %v7083, %v7083
      %v7100 = vpack.c.b16 %v7084, %v7084
      %v7101 = vpack.c.b16 %v7085, %v7085
      %v7102 = vpack.c.b16 %v7086, %v7086
      %v7103 = vpack.c.b16 %v7087, %v7087
      %v7104 = vpack.c.b16 %v7088, %v7088
      %v7105 = vpack.c.b16 %v7089, %v7089
      %v7106 = vpack.c.b16 %v7090, %v7090
      %v7107 = vpack.c.b16 %v7091, %v7091
      %v7108 = vpack.c.b16 %v7092, %v7092
      %v7110 = vshrl.u32 %v7045, 16
      %v7112 = vshll.u32 %v7045, 16
      %v7114 = vrot.slane %v7112, 1
      %v7115 = vor.u32 %v7110, %v7114
      %v7117 = vshll.u32 %v7093, 16
      %v7119 = vrot.slane %v7117, 1
      %v7120 = vsel %vm5820, %v7115, %v7119
      %v7122 = vshrl.u32 %v7046, 16
      %v7124 = vshll.u32 %v7046, 16
      %v7126 = vrot.slane %v7124, 1
      %v7127 = vor.u32 %v7122, %v7126
      %v7129 = vshll.u32 %v7094, 16
      %v7131 = vrot.slane %v7129, 1
      %v7132 = vsel %vm5820, %v7127, %v7131
      %v7134 = vshrl.u32 %v7047, 16
      %v7136 = vshll.u32 %v7047, 16
      %v7138 = vrot.slane %v7136, 1
      %v7139 = vor.u32 %v7134, %v7138
      %v7141 = vshll.u32 %v7095, 16
      %v7143 = vrot.slane %v7141, 1
      %v7144 = vsel %vm5820, %v7139, %v7143
      %v7146 = vshrl.u32 %v7048, 16
      %v7148 = vshll.u32 %v7048, 16
      %v7150 = vrot.slane %v7148, 1
      %v7151 = vor.u32 %v7146, %v7150
      %v7153 = vshll.u32 %v7096, 16
      %v7155 = vrot.slane %v7153, 1
      %v7156 = vsel %vm5820, %v7151, %v7155
      %v7158 = vshrl.u32 %v7049, 16
      %v7160 = vshll.u32 %v7049, 16
      %v7162 = vrot.slane %v7160, 1
      %v7163 = vor.u32 %v7158, %v7162
      %v7165 = vshll.u32 %v7097, 16
      %v7167 = vrot.slane %v7165, 1
      %v7168 = vsel %vm5820, %v7163, %v7167
      %v7170 = vshrl.u32 %v7050, 16
      %v7172 = vshll.u32 %v7050, 16
      %v7174 = vrot.slane %v7172, 1
      %v7175 = vor.u32 %v7170, %v7174
      %v7177 = vshll.u32 %v7098, 16
      %v7179 = vrot.slane %v7177, 1
      %v7180 = vsel %vm5820, %v7175, %v7179
      %v7182 = vshrl.u32 %v7051, 16
      %v7184 = vshll.u32 %v7051, 16
      %v7186 = vrot.slane %v7184, 1
      %v7187 = vor.u32 %v7182, %v7186
      %v7189 = vshll.u32 %v7099, 16
      %v7191 = vrot.slane %v7189, 1
      %v7192 = vsel %vm5820, %v7187, %v7191
      %v7194 = vshrl.u32 %v7052, 16
      %v7196 = vshll.u32 %v7052, 16
      %v7198 = vrot.slane %v7196, 1
      %v7199 = vor.u32 %v7194, %v7198
      %v7201 = vshll.u32 %v7100, 16
      %v7203 = vrot.slane %v7201, 1
      %v7204 = vsel %vm5820, %v7199, %v7203
      %v7206 = vshrl.u32 %v7053, 16
      %v7208 = vshll.u32 %v7053, 16
      %v7210 = vrot.slane %v7208, 1
      %v7211 = vor.u32 %v7206, %v7210
      %v7213 = vshll.u32 %v7101, 16
      %v7215 = vrot.slane %v7213, 1
      %v7216 = vsel %vm5820, %v7211, %v7215
      %v7218 = vshrl.u32 %v7054, 16
      %v7220 = vshll.u32 %v7054, 16
      %v7222 = vrot.slane %v7220, 1
      %v7223 = vor.u32 %v7218, %v7222
      %v7225 = vshll.u32 %v7102, 16
      %v7227 = vrot.slane %v7225, 1
      %v7228 = vsel %vm5820, %v7223, %v7227
      %v7230 = vshrl.u32 %v7055, 16
      %v7232 = vshll.u32 %v7055, 16
      %v7234 = vrot.slane %v7232, 1
      %v7235 = vor.u32 %v7230, %v7234
      %v7237 = vshll.u32 %v7103, 16
      %v7239 = vrot.slane %v7237, 1
      %v7240 = vsel %vm5820, %v7235, %v7239
      %v7242 = vshrl.u32 %v7056, 16
      %v7244 = vshll.u32 %v7056, 16
      %v7246 = vrot.slane %v7244, 1
      %v7247 = vor.u32 %v7242, %v7246
      %v7249 = vshll.u32 %v7104, 16
      %v7251 = vrot.slane %v7249, 1
      %v7252 = vsel %vm5820, %v7247, %v7251
      %v7254 = vshrl.u32 %v7057, 16
      %v7256 = vshll.u32 %v7057, 16
      %v7258 = vrot.slane %v7256, 1
      %v7259 = vor.u32 %v7254, %v7258
      %v7261 = vshll.u32 %v7105, 16
      %v7263 = vrot.slane %v7261, 1
      %v7264 = vsel %vm5820, %v7259, %v7263
      %v7266 = vshrl.u32 %v7058, 16
      %v7268 = vshll.u32 %v7058, 16
      %v7270 = vrot.slane %v7268, 1
      %v7271 = vor.u32 %v7266, %v7270
      %v7273 = vshll.u32 %v7106, 16
      %v7275 = vrot.slane %v7273, 1
      %v7276 = vsel %vm5820, %v7271, %v7275
      %v7278 = vshrl.u32 %v7059, 16
      %v7280 = vshll.u32 %v7059, 16
      %v7282 = vrot.slane %v7280, 1
      %v7283 = vor.u32 %v7278, %v7282
      %v7285 = vshll.u32 %v7107, 16
      %v7287 = vrot.slane %v7285, 1
      %v7288 = vsel %vm5820, %v7283, %v7287
      %v7290 = vshrl.u32 %v7060, 16
      %v7292 = vshll.u32 %v7060, 16
      %v7294 = vrot.slane %v7292, 1
      %v7295 = vor.u32 %v7290, %v7294
      %v7297 = vshll.u32 %v7108, 16
      %v7299 = vrot.slane %v7297, 1
      %v7300 = vsel %vm5820, %v7295, %v7299
      %7301 = vrot.lane.b32.xlu0 %v7120, 4
      %v7302 = vpop.permute.xlu0 %7301
      %7303 = vrot.lane.b32.xlu0 %v7132, 4
      %v7304 = vpop.permute.xlu0 %7303
      %7305 = vrot.lane.b32.xlu0 %v7144, 4
      %v7306 = vpop.permute.xlu0 %7305
      %7307 = vrot.lane.b32.xlu0 %v7156, 4
      %v7308 = vpop.permute.xlu0 %7307
      %7309 = vrot.lane.b32.xlu0 %v7168, 4
      %v7310 = vpop.permute.xlu0 %7309
      %7311 = vrot.lane.b32.xlu0 %v7180, 4
      %v7312 = vpop.permute.xlu0 %7311
      %7313 = vrot.lane.b32.xlu0 %v7192, 4
      %v7314 = vpop.permute.xlu0 %7313
      %7315 = vrot.lane.b32.xlu0 %v7204, 4
      %v7316 = vpop.permute.xlu0 %7315
      %7317 = vrot.lane.b32.xlu0 %v7216, 4
      %v7318 = vpop.permute.xlu0 %7317
      %7319 = vrot.lane.b32.xlu0 %v7228, 4
      %v7320 = vpop.permute.xlu0 %7319
      %7321 = vrot.lane.b32.xlu0 %v7240, 4
      %v7322 = vpop.permute.xlu0 %7321
      %7323 = vrot.lane.b32.xlu0 %v7252, 4
      %v7324 = vpop.permute.xlu0 %7323
      %7325 = vrot.lane.b32.xlu0 %v7264, 4
      %v7326 = vpop.permute.xlu0 %7325
      %7327 = vrot.lane.b32.xlu0 %v7276, 4
      %v7328 = vpop.permute.xlu0 %7327
      %7329 = vrot.lane.b32.xlu0 %v7288, 4
      %v7330 = vpop.permute.xlu0 %7329
      %7331 = vrot.lane.b32.xlu0 %v7300, 4
      %v7332 = vpop.permute.xlu0 %7331
      %v7349 = vunpack.c.l.b16 %v6901
      %v7350 = vunpack.c.l.b16 %v6902
      %v7351 = vunpack.c.l.b16 %v6903
      %v7352 = vunpack.c.l.b16 %v6904
      %v7353 = vunpack.c.l.b16 %v6905
      %v7354 = vunpack.c.l.b16 %v6906
      %v7355 = vunpack.c.l.b16 %v6907
      %v7356 = vunpack.c.l.b16 %v6908
      %v7357 = vunpack.c.l.b16 %v6909
      %v7358 = vunpack.c.l.b16 %v6910
      %v7359 = vunpack.c.l.b16 %v6911
      %v7360 = vunpack.c.l.b16 %v6912
      %v7361 = vunpack.c.l.b16 %v6913
      %v7362 = vunpack.c.l.b16 %v6914
      %v7363 = vunpack.c.l.b16 %v6915
      %v7364 = vunpack.c.l.b16 %v6916
      %v7365 = vpack.c.b16 %v7014, %v7349
      %v7366 = vpack.c.b16 %v7016, %v7350
      %v7367 = vpack.c.b16 %v7018, %v7351
      %v7368 = vpack.c.b16 %v7020, %v7352
      %v7369 = vpack.c.b16 %v7022, %v7353
      %v7370 = vpack.c.b16 %v7024, %v7354
      %v7371 = vpack.c.b16 %v7026, %v7355
      %v7372 = vpack.c.b16 %v7028, %v7356
      %v7373 = vpack.c.b16 %v7030, %v7357
      %v7374 = vpack.c.b16 %v7032, %v7358
      %v7375 = vpack.c.b16 %v7034, %v7359
      %v7376 = vpack.c.b16 %v7036, %v7360
      %v7377 = vpack.c.b16 %v7038, %v7361
      %v7378 = vpack.c.b16 %v7040, %v7362
      %v7379 = vpack.c.b16 %v7042, %v7363
      %v7380 = vpack.c.b16 %v7044, %v7364
      %v7381 = vrot.slane %v7365, 1
      %v7382 = vrot.slane %v7093, 1
      %v7383 = vsel %vm6093, %v7381, %v7382
      %v7384 = vrot.slane %v7366, 1
      %v7385 = vrot.slane %v7094, 1
      %v7386 = vsel %vm6093, %v7384, %v7385
      %v7387 = vrot.slane %v7367, 1
      %v7388 = vrot.slane %v7095, 1
      %v7389 = vsel %vm6093, %v7387, %v7388
      %v7390 = vrot.slane %v7368, 1
      %v7391 = vrot.slane %v7096, 1
      %v7392 = vsel %vm6093, %v7390, %v7391
      %v7393 = vrot.slane %v7369, 1
      %v7394 = vrot.slane %v7097, 1
      %v7395 = vsel %vm6093, %v7393, %v7394
      %v7396 = vrot.slane %v7370, 1
      %v7397 = vrot.slane %v7098, 1
      %v7398 = vsel %vm6093, %v7396, %v7397
      %v7399 = vrot.slane %v7371, 1
      %v7400 = vrot.slane %v7099, 1
      %v7401 = vsel %vm6093, %v7399, %v7400
      %v7402 = vrot.slane %v7372, 1
      %v7403 = vrot.slane %v7100, 1
      %v7404 = vsel %vm6093, %v7402, %v7403
      %v7405 = vrot.slane %v7373, 1
      %v7406 = vrot.slane %v7101, 1
      %v7407 = vsel %vm6093, %v7405, %v7406
      %v7408 = vrot.slane %v7374, 1
      %v7409 = vrot.slane %v7102, 1
      %v7410 = vsel %vm6093, %v7408, %v7409
      %v7411 = vrot.slane %v7375, 1
      %v7412 = vrot.slane %v7103, 1
      %v7413 = vsel %vm6093, %v7411, %v7412
      %v7414 = vrot.slane %v7376, 1
      %v7415 = vrot.slane %v7104, 1
      %v7416 = vsel %vm6093, %v7414, %v7415
      %v7417 = vrot.slane %v7377, 1
      %v7418 = vrot.slane %v7105, 1
      %v7419 = vsel %vm6093, %v7417, %v7418
      %v7420 = vrot.slane %v7378, 1
      %v7421 = vrot.slane %v7106, 1
      %v7422 = vsel %vm6093, %v7420, %v7421
      %v7423 = vrot.slane %v7379, 1
      %v7424 = vrot.slane %v7107, 1
      %v7425 = vsel %vm6093, %v7423, %v7424
      %v7426 = vrot.slane %v7380, 1
      %v7427 = vrot.slane %v7108, 1
      %v7428 = vsel %vm6093, %v7426, %v7427
      %7429 = vrot.lane.b32.xlu0 %v7383, 8
      %v7430 = vpop.permute.xlu0 %7429
      %7431 = vrot.lane.b32.xlu0 %v7386, 8
      %v7432 = vpop.permute.xlu0 %7431
      %7433 = vrot.lane.b32.xlu0 %v7389, 8
      %v7434 = vpop.permute.xlu0 %7433
      %7435 = vrot.lane.b32.xlu0 %v7392, 8
      %v7436 = vpop.permute.xlu0 %7435
      %7437 = vrot.lane.b32.xlu0 %v7395, 8
      %v7438 = vpop.permute.xlu0 %7437
      %7439 = vrot.lane.b32.xlu0 %v7398, 8
      %v7440 = vpop.permute.xlu0 %7439
      %7441 = vrot.lane.b32.xlu0 %v7401, 8
      %v7442 = vpop.permute.xlu0 %7441
      %7443 = vrot.lane.b32.xlu0 %v7404, 8
      %v7444 = vpop.permute.xlu0 %7443
      %7445 = vrot.lane.b32.xlu0 %v7407, 8
      %v7446 = vpop.permute.xlu0 %7445
      %7447 = vrot.lane.b32.xlu0 %v7410, 8
      %v7448 = vpop.permute.xlu0 %7447
      %7449 = vrot.lane.b32.xlu0 %v7413, 8
      %v7450 = vpop.permute.xlu0 %7449
      %7451 = vrot.lane.b32.xlu0 %v7416, 8
      %v7452 = vpop.permute.xlu0 %7451
      %7453 = vrot.lane.b32.xlu0 %v7419, 8
      %v7454 = vpop.permute.xlu0 %7453
      %7455 = vrot.lane.b32.xlu0 %v7422, 8
      %v7456 = vpop.permute.xlu0 %7455
      %7457 = vrot.lane.b32.xlu0 %v7425, 8
      %v7458 = vpop.permute.xlu0 %7457
      %7459 = vrot.lane.b32.xlu0 %v7428, 8
      %v7460 = vpop.permute.xlu0 %7459
      %v7493 = vunpack.c.l.b16 %v6917
      %v7494 = vunpack.c.l.b16 %v6918
      %v7495 = vunpack.c.l.b16 %v6919
      %v7496 = vunpack.c.l.b16 %v6920
      %v7497 = vunpack.c.l.b16 %v6921
      %v7498 = vunpack.c.l.b16 %v6922
      %v7499 = vunpack.c.l.b16 %v6923
      %v7500 = vunpack.c.l.b16 %v6924
      %v7501 = vunpack.c.l.b16 %v6925
      %v7502 = vunpack.c.l.b16 %v6926
      %v7503 = vunpack.c.l.b16 %v6927
      %v7504 = vunpack.c.l.b16 %v6928
      %v7505 = vunpack.c.l.b16 %v6929
      %v7506 = vunpack.c.l.b16 %v6930
      %v7507 = vunpack.c.l.b16 %v6931
      %v7508 = vunpack.c.l.b16 %v6932
      %v7509 = vunpack.c.l.b16 %v6933
      %v7510 = vunpack.c.l.b16 %v6934
      %v7511 = vunpack.c.l.b16 %v6935
      %v7512 = vunpack.c.l.b16 %v6936
      %v7513 = vunpack.c.l.b16 %v6937
      %v7514 = vunpack.c.l.b16 %v6938
      %v7515 = vunpack.c.l.b16 %v6939
      %v7516 = vunpack.c.l.b16 %v6940
      %v7517 = vunpack.c.l.b16 %v6941
      %v7518 = vunpack.c.l.b16 %v6942
      %v7519 = vunpack.c.l.b16 %v6943
      %v7520 = vunpack.c.l.b16 %v6944
      %v7521 = vunpack.c.l.b16 %v6945
      %v7522 = vunpack.c.l.b16 %v6946
      %v7523 = vunpack.c.l.b16 %v6947
      %v7524 = vunpack.c.l.b16 %v6948
      %v7525 = vpack.c.b16 %v7494, %v7493
      %v7526 = vpack.c.b16 %v7496, %v7495
      %v7527 = vpack.c.b16 %v7498, %v7497
      %v7528 = vpack.c.b16 %v7500, %v7499
      %v7529 = vpack.c.b16 %v7502, %v7501
      %v7530 = vpack.c.b16 %v7504, %v7503
      %v7531 = vpack.c.b16 %v7506, %v7505
      %v7532 = vpack.c.b16 %v7508, %v7507
      %v7533 = vpack.c.b16 %v7510, %v7509
      %v7534 = vpack.c.b16 %v7512, %v7511
      %v7535 = vpack.c.b16 %v7514, %v7513
      %v7536 = vpack.c.b16 %v7516, %v7515
      %v7537 = vpack.c.b16 %v7518, %v7517
      %v7538 = vpack.c.b16 %v7520, %v7519
      %v7539 = vpack.c.b16 %v7522, %v7521
      %v7540 = vpack.c.b16 %v7524, %v7523
      %7541 = vrot.lane.b32.xlu0 %v7525, 12
      %v7542 = vpop.permute.xlu0 %7541
      %7543 = vrot.lane.b32.xlu0 %v7526, 12
      %v7544 = vpop.permute.xlu0 %7543
      %7545 = vrot.lane.b32.xlu0 %v7527, 12
      %v7546 = vpop.permute.xlu0 %7545
      %7547 = vrot.lane.b32.xlu0 %v7528, 12
      %v7548 = vpop.permute.xlu0 %7547
      %7549 = vrot.lane.b32.xlu0 %v7529, 12
      %v7550 = vpop.permute.xlu0 %7549
      %7551 = vrot.lane.b32.xlu0 %v7530, 12
      %v7552 = vpop.permute.xlu0 %7551
      %7553 = vrot.lane.b32.xlu0 %v7531, 12
      %v7554 = vpop.permute.xlu0 %7553
      %7555 = vrot.lane.b32.xlu0 %v7532, 12
      %v7556 = vpop.permute.xlu0 %7555
      %7557 = vrot.lane.b32.xlu0 %v7533, 12
      %v7558 = vpop.permute.xlu0 %7557
      %7559 = vrot.lane.b32.xlu0 %v7534, 12
      %v7560 = vpop.permute.xlu0 %7559
      %7561 = vrot.lane.b32.xlu0 %v7535, 12
      %v7562 = vpop.permute.xlu0 %7561
      %7563 = vrot.lane.b32.xlu0 %v7536, 12
      %v7564 = vpop.permute.xlu0 %7563
      %7565 = vrot.lane.b32.xlu0 %v7537, 12
      %v7566 = vpop.permute.xlu0 %7565
      %7567 = vrot.lane.b32.xlu0 %v7538, 12
      %v7568 = vpop.permute.xlu0 %7567
      %7569 = vrot.lane.b32.xlu0 %v7539, 12
      %v7570 = vpop.permute.xlu0 %7569
      %7571 = vrot.lane.b32.xlu0 %v7540, 12
      %v7572 = vpop.permute.xlu0 %7571
      %v7589 = vunpack.c.l.b16 %v6949
      %v7590 = vunpack.c.l.b16 %v6950
      %v7591 = vunpack.c.l.b16 %v6951
      %v7592 = vunpack.c.l.b16 %v6952
      %v7593 = vunpack.c.l.b16 %v6953
      %v7594 = vunpack.c.l.b16 %v6954
      %v7595 = vunpack.c.l.b16 %v6955
      %v7596 = vunpack.c.l.b16 %v6956
      %v7597 = vunpack.c.l.b16 %v6957
      %v7598 = vunpack.c.l.b16 %v6958
      %v7599 = vunpack.c.l.b16 %v6959
      %v7600 = vunpack.c.l.b16 %v6960
      %v7601 = vunpack.c.l.b16 %v6961
      %v7602 = vunpack.c.l.b16 %v6962
      %v7603 = vunpack.c.l.b16 %v6963
      %v7604 = vunpack.c.l.b16 %v6964
      %v7605 = vpack.c.b16 %v7589, %v7589
      %v7606 = vpack.c.b16 %v7590, %v7590
      %v7607 = vpack.c.b16 %v7591, %v7591
      %v7608 = vpack.c.b16 %v7592, %v7592
      %v7609 = vpack.c.b16 %v7593, %v7593
      %v7610 = vpack.c.b16 %v7594, %v7594
      %v7611 = vpack.c.b16 %v7595, %v7595
      %v7612 = vpack.c.b16 %v7596, %v7596
      %v7613 = vpack.c.b16 %v7597, %v7597
      %v7614 = vpack.c.b16 %v7598, %v7598
      %v7615 = vpack.c.b16 %v7599, %v7599
      %v7616 = vpack.c.b16 %v7600, %v7600
      %v7617 = vpack.c.b16 %v7601, %v7601
      %v7618 = vpack.c.b16 %v7602, %v7602
      %v7619 = vpack.c.b16 %v7603, %v7603
      %v7620 = vpack.c.b16 %v7604, %v7604
      %v7622 = vshrl.u32 %v7525, 16
      %v7624 = vshll.u32 %v7525, 16
      %v7626 = vrot.slane %v7624, 1
      %v7627 = vor.u32 %v7622, %v7626
      %v7629 = vshll.u32 %v7605, 16
      %v7631 = vrot.slane %v7629, 1
      %v7632 = vsel %vm5820, %v7627, %v7631
      %v7634 = vshrl.u32 %v7526, 16
      %v7636 = vshll.u32 %v7526, 16
      %v7638 = vrot.slane %v7636, 1
      %v7639 = vor.u32 %v7634, %v7638
      %v7641 = vshll.u32 %v7606, 16
      %v7643 = vrot.slane %v7641, 1
      %v7644 = vsel %vm5820, %v7639, %v7643
      %v7646 = vshrl.u32 %v7527, 16
      %v7648 = vshll.u32 %v7527, 16
      %v7650 = vrot.slane %v7648, 1
      %v7651 = vor.u32 %v7646, %v7650
      %v7653 = vshll.u32 %v7607, 16
      %v7655 = vrot.slane %v7653, 1
      %v7656 = vsel %vm5820, %v7651, %v7655
      %v7658 = vshrl.u32 %v7528, 16
      %v7660 = vshll.u32 %v7528, 16
      %v7662 = vrot.slane %v7660, 1
      %v7663 = vor.u32 %v7658, %v7662
      %v7665 = vshll.u32 %v7608, 16
      %v7667 = vrot.slane %v7665, 1
      %v7668 = vsel %vm5820, %v7663, %v7667
      %v7670 = vshrl.u32 %v7529, 16
      %v7672 = vshll.u32 %v7529, 16
      %v7674 = vrot.slane %v7672, 1
      %v7675 = vor.u32 %v7670, %v7674
      %v7677 = vshll.u32 %v7609, 16
      %v7679 = vrot.slane %v7677, 1
      %v7680 = vsel %vm5820, %v7675, %v7679
      %v7682 = vshrl.u32 %v7530, 16
      %v7684 = vshll.u32 %v7530, 16
      %v7686 = vrot.slane %v7684, 1
      %v7687 = vor.u32 %v7682, %v7686
      %v7689 = vshll.u32 %v7610, 16
      %v7691 = vrot.slane %v7689, 1
      %v7692 = vsel %vm5820, %v7687, %v7691
      %v7694 = vshrl.u32 %v7531, 16
      %v7696 = vshll.u32 %v7531, 16
      %v7698 = vrot.slane %v7696, 1
      %v7699 = vor.u32 %v7694, %v7698
      %v7701 = vshll.u32 %v7611, 16
      %v7703 = vrot.slane %v7701, 1
      %v7704 = vsel %vm5820, %v7699, %v7703
      %v7706 = vshrl.u32 %v7532, 16
      %v7708 = vshll.u32 %v7532, 16
      %v7710 = vrot.slane %v7708, 1
      %v7711 = vor.u32 %v7706, %v7710
      %v7713 = vshll.u32 %v7612, 16
      %v7715 = vrot.slane %v7713, 1
      %v7716 = vsel %vm5820, %v7711, %v7715
      %v7718 = vshrl.u32 %v7533, 16
      %v7720 = vshll.u32 %v7533, 16
      %v7722 = vrot.slane %v7720, 1
      %v7723 = vor.u32 %v7718, %v7722
      %v7725 = vshll.u32 %v7613, 16
      %v7727 = vrot.slane %v7725, 1
      %v7728 = vsel %vm5820, %v7723, %v7727
      %v7730 = vshrl.u32 %v7534, 16
      %v7732 = vshll.u32 %v7534, 16
      %v7734 = vrot.slane %v7732, 1
      %v7735 = vor.u32 %v7730, %v7734
      %v7737 = vshll.u32 %v7614, 16
      %v7739 = vrot.slane %v7737, 1
      %v7740 = vsel %vm5820, %v7735, %v7739
      %v7742 = vshrl.u32 %v7535, 16
      %v7744 = vshll.u32 %v7535, 16
      %v7746 = vrot.slane %v7744, 1
      %v7747 = vor.u32 %v7742, %v7746
      %v7749 = vshll.u32 %v7615, 16
      %v7751 = vrot.slane %v7749, 1
      %v7752 = vsel %vm5820, %v7747, %v7751
      %v7754 = vshrl.u32 %v7536, 16
      %v7756 = vshll.u32 %v7536, 16
      %v7758 = vrot.slane %v7756, 1
      %v7759 = vor.u32 %v7754, %v7758
      %v7761 = vshll.u32 %v7616, 16
      %v7763 = vrot.slane %v7761, 1
      %v7764 = vsel %vm5820, %v7759, %v7763
      %v7766 = vshrl.u32 %v7537, 16
      %v7768 = vshll.u32 %v7537, 16
      %v7770 = vrot.slane %v7768, 1
      %v7771 = vor.u32 %v7766, %v7770
      %v7773 = vshll.u32 %v7617, 16
      %v7775 = vrot.slane %v7773, 1
      %v7776 = vsel %vm5820, %v7771, %v7775
      %v7778 = vshrl.u32 %v7538, 16
      %v7780 = vshll.u32 %v7538, 16
      %v7782 = vrot.slane %v7780, 1
      %v7783 = vor.u32 %v7778, %v7782
      %v7785 = vshll.u32 %v7618, 16
      %v7787 = vrot.slane %v7785, 1
      %v7788 = vsel %vm5820, %v7783, %v7787
      %v7790 = vshrl.u32 %v7539, 16
      %v7792 = vshll.u32 %v7539, 16
      %v7794 = vrot.slane %v7792, 1
      %v7795 = vor.u32 %v7790, %v7794
      %v7797 = vshll.u32 %v7619, 16
      %v7799 = vrot.slane %v7797, 1
      %v7800 = vsel %vm5820, %v7795, %v7799
      %v7802 = vshrl.u32 %v7540, 16
      %v7804 = vshll.u32 %v7540, 16
      %v7806 = vrot.slane %v7804, 1
      %v7807 = vor.u32 %v7802, %v7806
      %v7809 = vshll.u32 %v7620, 16
      %v7811 = vrot.slane %v7809, 1
      %v7812 = vsel %vm5820, %v7807, %v7811
      %7813 = vrot.lane.b32.xlu0 %v7632, 16
      %v7814 = vpop.permute.xlu0 %7813
      %7815 = vrot.lane.b32.xlu0 %v7644, 16
      %v7816 = vpop.permute.xlu0 %7815
      %7817 = vrot.lane.b32.xlu0 %v7656, 16
      %v7818 = vpop.permute.xlu0 %7817
      %7819 = vrot.lane.b32.xlu0 %v7668, 16
      %v7820 = vpop.permute.xlu0 %7819
      %7821 = vrot.lane.b32.xlu0 %v7680, 16
      %v7822 = vpop.permute.xlu0 %7821
      %7823 = vrot.lane.b32.xlu0 %v7692, 16
      %v7824 = vpop.permute.xlu0 %7823
      %7825 = vrot.lane.b32.xlu0 %v7704, 16
      %v7826 = vpop.permute.xlu0 %7825
      %7827 = vrot.lane.b32.xlu0 %v7716, 16
      %v7828 = vpop.permute.xlu0 %7827
      %7829 = vrot.lane.b32.xlu0 %v7728, 16
      %v7830 = vpop.permute.xlu0 %7829
      %7831 = vrot.lane.b32.xlu0 %v7740, 16
      %v7832 = vpop.permute.xlu0 %7831
      %7833 = vrot.lane.b32.xlu0 %v7752, 16
      %v7834 = vpop.permute.xlu0 %7833
      %7835 = vrot.lane.b32.xlu0 %v7764, 16
      %v7836 = vpop.permute.xlu0 %7835
      %7837 = vrot.lane.b32.xlu0 %v7776, 16
      %v7838 = vpop.permute.xlu0 %7837
      %7839 = vrot.lane.b32.xlu0 %v7788, 16
      %v7840 = vpop.permute.xlu0 %7839
      %7841 = vrot.lane.b32.xlu0 %v7800, 16
      %v7842 = vpop.permute.xlu0 %7841
      %7843 = vrot.lane.b32.xlu0 %v7812, 16
      %v7844 = vpop.permute.xlu0 %7843
      %v7861 = vunpack.c.l.b16 %v6965
      %v7862 = vunpack.c.l.b16 %v6966
      %v7863 = vunpack.c.l.b16 %v6967
      %v7864 = vunpack.c.l.b16 %v6968
      %v7865 = vunpack.c.l.b16 %v6969
      %v7866 = vunpack.c.l.b16 %v6970
      %v7867 = vunpack.c.l.b16 %v6971
      %v7868 = vunpack.c.l.b16 %v6972
      %v7869 = vunpack.c.l.b16 %v6973
      %v7870 = vunpack.c.l.b16 %v6974
      %v7871 = vunpack.c.l.b16 %v6975
      %v7872 = vunpack.c.l.b16 %v6976
      %v7873 = vunpack.c.l.b16 %v6977
      %v7874 = vunpack.c.l.b16 %v6978
      %v7875 = vunpack.c.l.b16 %v6979
      %v7876 = vunpack.c.l.b16 %v6980
      %v7877 = vpack.c.b16 %v7494, %v7861
      %v7878 = vpack.c.b16 %v7496, %v7862
      %v7879 = vpack.c.b16 %v7498, %v7863
      %v7880 = vpack.c.b16 %v7500, %v7864
      %v7881 = vpack.c.b16 %v7502, %v7865
      %v7882 = vpack.c.b16 %v7504, %v7866
      %v7883 = vpack.c.b16 %v7506, %v7867
      %v7884 = vpack.c.b16 %v7508, %v7868
      %v7885 = vpack.c.b16 %v7510, %v7869
      %v7886 = vpack.c.b16 %v7512, %v7870
      %v7887 = vpack.c.b16 %v7514, %v7871
      %v7888 = vpack.c.b16 %v7516, %v7872
      %v7889 = vpack.c.b16 %v7518, %v7873
      %v7890 = vpack.c.b16 %v7520, %v7874
      %v7891 = vpack.c.b16 %v7522, %v7875
      %v7892 = vpack.c.b16 %v7524, %v7876
      %v7893 = vrot.slane %v7877, 1
      %v7894 = vrot.slane %v7605, 1
      %v7895 = vsel %vm6093, %v7893, %v7894
      %v7896 = vrot.slane %v7878, 1
      %v7897 = vrot.slane %v7606, 1
      %v7898 = vsel %vm6093, %v7896, %v7897
      %v7899 = vrot.slane %v7879, 1
      %v7900 = vrot.slane %v7607, 1
      %v7901 = vsel %vm6093, %v7899, %v7900
      %v7902 = vrot.slane %v7880, 1
      %v7903 = vrot.slane %v7608, 1
      %v7904 = vsel %vm6093, %v7902, %v7903
      %v7905 = vrot.slane %v7881, 1
      %v7906 = vrot.slane %v7609, 1
      %v7907 = vsel %vm6093, %v7905, %v7906
      %v7908 = vrot.slane %v7882, 1
      %v7909 = vrot.slane %v7610, 1
      %v7910 = vsel %vm6093, %v7908, %v7909
      %v7911 = vrot.slane %v7883, 1
      %v7912 = vrot.slane %v7611, 1
      %v7913 = vsel %vm6093, %v7911, %v7912
      %v7914 = vrot.slane %v7884, 1
      %v7915 = vrot.slane %v7612, 1
      %v7916 = vsel %vm6093, %v7914, %v7915
      %v7917 = vrot.slane %v7885, 1
      %v7918 = vrot.slane %v7613, 1
      %v7919 = vsel %vm6093, %v7917, %v7918
      %v7920 = vrot.slane %v7886, 1
      %v7921 = vrot.slane %v7614, 1
      %v7922 = vsel %vm6093, %v7920, %v7921
      %v7923 = vrot.slane %v7887, 1
      %v7924 = vrot.slane %v7615, 1
      %v7925 = vsel %vm6093, %v7923, %v7924
      %v7926 = vrot.slane %v7888, 1
      %v7927 = vrot.slane %v7616, 1
      %v7928 = vsel %vm6093, %v7926, %v7927
      %v7929 = vrot.slane %v7889, 1
      %v7930 = vrot.slane %v7617, 1
      %v7931 = vsel %vm6093, %v7929, %v7930
      %v7932 = vrot.slane %v7890, 1
      %v7933 = vrot.slane %v7618, 1
      %v7934 = vsel %vm6093, %v7932, %v7933
      %v7935 = vrot.slane %v7891, 1
      %v7936 = vrot.slane %v7619, 1
      %v7937 = vsel %vm6093, %v7935, %v7936
      %v7938 = vrot.slane %v7892, 1
      %v7939 = vrot.slane %v7620, 1
      %v7940 = vsel %vm6093, %v7938, %v7939
      %7941 = vrot.lane.b32.xlu0 %v7895, 20
      %v7942 = vpop.permute.xlu0 %7941
      %7943 = vrot.lane.b32.xlu0 %v7898, 20
      %v7944 = vpop.permute.xlu0 %7943
      %7945 = vrot.lane.b32.xlu0 %v7901, 20
      %v7946 = vpop.permute.xlu0 %7945
      %7947 = vrot.lane.b32.xlu0 %v7904, 20
      %v7948 = vpop.permute.xlu0 %7947
      %7949 = vrot.lane.b32.xlu0 %v7907, 20
      %v7950 = vpop.permute.xlu0 %7949
      %7951 = vrot.lane.b32.xlu0 %v7910, 20
      %v7952 = vpop.permute.xlu0 %7951
      %7953 = vrot.lane.b32.xlu0 %v7913, 20
      %v7954 = vpop.permute.xlu0 %7953
      %7955 = vrot.lane.b32.xlu0 %v7916, 20
      %v7956 = vpop.permute.xlu0 %7955
      %7957 = vrot.lane.b32.xlu0 %v7919, 20
      %v7958 = vpop.permute.xlu0 %7957
      %7959 = vrot.lane.b32.xlu0 %v7922, 20
      %v7960 = vpop.permute.xlu0 %7959
      %7961 = vrot.lane.b32.xlu0 %v7925, 20
      %v7962 = vpop.permute.xlu0 %7961
      %7963 = vrot.lane.b32.xlu0 %v7928, 20
      %v7964 = vpop.permute.xlu0 %7963
      %7965 = vrot.lane.b32.xlu0 %v7931, 20
      %v7966 = vpop.permute.xlu0 %7965
      %7967 = vrot.lane.b32.xlu0 %v7934, 20
      %v7968 = vpop.permute.xlu0 %7967
      %7969 = vrot.lane.b32.xlu0 %v7937, 20
      %v7970 = vpop.permute.xlu0 %7969
      %7971 = vrot.lane.b32.xlu0 %v7940, 20
      %v7972 = vpop.permute.xlu0 %7971
      %v7974 = vsel %vm720, %v7045, %v7302
      %v7976 = vsel %vm720, %v7046, %v7304
      %v7978 = vsel %vm720, %v7047, %v7306
      %v7980 = vsel %vm720, %v7048, %v7308
      %v7982 = vsel %vm720, %v7049, %v7310
      %v7984 = vsel %vm720, %v7050, %v7312
      %v7986 = vsel %vm720, %v7051, %v7314
      %v7988 = vsel %vm720, %v7052, %v7316
      %v7990 = vsel %vm720, %v7053, %v7318
      %v7992 = vsel %vm720, %v7054, %v7320
      %v7994 = vsel %vm720, %v7055, %v7322
      %v7996 = vsel %vm720, %v7056, %v7324
      %v7998 = vsel %vm720, %v7057, %v7326
      %v8000 = vsel %vm720, %v7058, %v7328
      %v8002 = vsel %vm720, %v7059, %v7330
      %v8004 = vsel %vm720, %v7060, %v7332
      %v8006 = vsel %vm6718, %v7974, %v7430
      %v8008 = vsel %vm6718, %v7976, %v7432
      %v8010 = vsel %vm6718, %v7978, %v7434
      %v8012 = vsel %vm6718, %v7980, %v7436
      %v8014 = vsel %vm6718, %v7982, %v7438
      %v8016 = vsel %vm6718, %v7984, %v7440
      %v8018 = vsel %vm6718, %v7986, %v7442
      %v8020 = vsel %vm6718, %v7988, %v7444
      %v8022 = vsel %vm6718, %v7990, %v7446
      %v8024 = vsel %vm6718, %v7992, %v7448
      %v8026 = vsel %vm6718, %v7994, %v7450
      %v8028 = vsel %vm6718, %v7996, %v7452
      %v8030 = vsel %vm6718, %v7998, %v7454
      %v8032 = vsel %vm6718, %v8000, %v7456
      %v8034 = vsel %vm6718, %v8002, %v7458
      %v8036 = vsel %vm6718, %v8004, %v7460
      %v8038 = vsel %vm6751, %v8006, %v7542
      %v8040 = vsel %vm6751, %v8008, %v7544
      %v8042 = vsel %vm6751, %v8010, %v7546
      %v8044 = vsel %vm6751, %v8012, %v7548
      %v8046 = vsel %vm6751, %v8014, %v7550
      %v8048 = vsel %vm6751, %v8016, %v7552
      %v8050 = vsel %vm6751, %v8018, %v7554
      %v8052 = vsel %vm6751, %v8020, %v7556
      %v8054 = vsel %vm6751, %v8022, %v7558
      %v8056 = vsel %vm6751, %v8024, %v7560
      %v8058 = vsel %vm6751, %v8026, %v7562
      %v8060 = vsel %vm6751, %v8028, %v7564
      %v8062 = vsel %vm6751, %v8030, %v7566
      %v8064 = vsel %vm6751, %v8032, %v7568
      %v8066 = vsel %vm6751, %v8034, %v7570
      %v8068 = vsel %vm6751, %v8036, %v7572
      %v8070 = vsel %vm6784, %v8038, %v7814
      %v8072 = vsel %vm6784, %v8040, %v7816
      %v8074 = vsel %vm6784, %v8042, %v7818
      %v8076 = vsel %vm6784, %v8044, %v7820
      %v8078 = vsel %vm6784, %v8046, %v7822
      %v8080 = vsel %vm6784, %v8048, %v7824
      %v8082 = vsel %vm6784, %v8050, %v7826
      %v8084 = vsel %vm6784, %v8052, %v7828
      %v8086 = vsel %vm6784, %v8054, %v7830
      %v8088 = vsel %vm6784, %v8056, %v7832
      %v8090 = vsel %vm6784, %v8058, %v7834
      %v8092 = vsel %vm6784, %v8060, %v7836
      %v8094 = vsel %vm6784, %v8062, %v7838
      %v8096 = vsel %vm6784, %v8064, %v7840
      %v8098 = vsel %vm6784, %v8066, %v7842
      %v8100 = vsel %vm6784, %v8068, %v7844
      %v8102 = vsel %vm6817, %v8070, %v7942
      %v8104 = vsel %vm6817, %v8072, %v7944
      %v8106 = vsel %vm6817, %v8074, %v7946
      %v8108 = vsel %vm6817, %v8076, %v7948
      %v8110 = vsel %vm6817, %v8078, %v7950
      %v8112 = vsel %vm6817, %v8080, %v7952
      %v8114 = vsel %vm6817, %v8082, %v7954
      %v8116 = vsel %vm6817, %v8084, %v7956
      %v8118 = vsel %vm6817, %v8086, %v7958
      %v8120 = vsel %vm6817, %v8088, %v7960
      %v8122 = vsel %vm6817, %v8090, %v7962
      %v8124 = vsel %vm6817, %v8092, %v7964
      %v8126 = vsel %vm6817, %v8094, %v7966
      %v8128 = vsel %vm6817, %v8096, %v7968
      %v8130 = vsel %vm6817, %v8098, %v7970
      %v8132 = vsel %vm6817, %v8100, %v7972
      %s8133 = scalar_lea.vmem %s4, 12
      %v8134 = vld [vmem:[%s8133] sm:$0xf]
      %v8135 = vld [vmem:[%s8133 + $0x4] sm:$0xf]
      %v8136 = vld [vmem:[%s8133 + $0x8] sm:$0xf]
      %v8140 = vunpack.c.l.b16 %v8134
      %v8141 = vunpack.c.l.b16 %v8135
      %v8142 = vunpack.c.l.b16 %v8136
      %v8143 = vpack.c.b16 %v8141, %v8140
      %v8144 = vpack.c.b16 %v8142, %v8142
      %vm8146 = vcmask 195584
      %v8147 = vsel %vm8146, %v8102, 0
      %v8149 = vsel %vm8146, %v8104, 0
      %v8151 = vsel %vm8146, %v8106, 0
      %v8153 = vsel %vm8146, %v8108, 0
      %v8155 = vsel %vm8146, %v8110, 0
      %v8157 = vsel %vm8146, %v8112, 0
      %v8159 = vsel %vm8146, %v8114, 0
      %v8161 = vsel %vm8146, %v8116, 0
      %v8163 = vsel %vm8146, %v8118, 0
      %v8165 = vsel %vm8146, %v8120, 0
      %v8167 = vsel %vm8146, %v8122, 0
      %v8169 = vsel %vm8146, %v8124, 0
      %v8171 = vsel %vm8146, %v8126, 0
      %v8173 = vsel %vm8146, %v8128, 0
      %v8175 = vsel %vm8146, %v8130, 0
      %v8177 = vsel %vm8146, %v8132, 0
      %vm8179 = vcmask 1043456
      %v8181 = vsel %vm8179, %v8144, 0
      %8183 = vmatprep.subr.bf16.mxu0 0
      %8184 = vmatpush1.bf16.msra.mxu0 %v8143
      %8185 = vmatprep.subr.bf16.mxu0 0
      %8186 = vmatpush1.bf16.msra.mxu0 %v8181
      %8187 = vmatprep.subr.bf16.mxu0 0
      %8188 = vmatpush1.bf16.msra.mxu0 0
      %8189 = vmatprep.subr.bf16.mxu0 0
      %8190 = vmatpush1.bf16.msra.mxu0 0
      %8191 = vmatprep.subr.bf16.mxu0 0
      %8192 = vmatpush1.bf16.msra.mxu0 0
      %8193 = vmatprep.subr.bf16.mxu0 0
      %8194 = vmatpush1.bf16.msra.mxu0 0
      %8195 = vmatprep.subr.bf16.mxu0 0
      %8196 = vmatpush1.bf16.msra.mxu0 0
      %8197 = vmatprep.subr.bf16.mxu0 0
      %8198 = vmatpush1.bf16.msra.mxu0 0
      %8199 = vmatprep.subr.bf16.mxu0 0
      %8200 = vmatpush1.bf16.msra.mxu0 0
      %8201 = vmatprep.subr.bf16.mxu0 0
      %8202 = vmatpush1.bf16.msra.mxu0 0
      %8203 = vmatprep.subr.bf16.mxu0 0
      %8204 = vmatpush1.bf16.msra.mxu0 0
      %8205 = vmatprep.subr.bf16.mxu0 0
      %8206 = vmatpush1.bf16.msra.mxu0 0
      %8207 = vmatprep.subr.bf16.mxu0 0
      %8208 = vmatpush1.bf16.msra.mxu0 0
      %8209 = vmatprep.subr.bf16.mxu0 0
      %8210 = vmatpush1.bf16.msra.mxu0 0
      %8211 = vmatprep.subr.bf16.mxu0 0
      %8212 = vmatpush1.bf16.msra.mxu0 0
      %8213 = vmatprep.subr.bf16.mxu0 0
      %8214 = vmatpush1.bf16.msra.mxu0 0
      %8215 = vmatprep.mubr.bf16.mxu0 0
      %8216 = vmatmul.mubr.bf16.gmra.mrb[0].mxu0 %v8147
      %v8217 = vpop.f32.mrb[0].mxu0
      %v8218 = vadd.f32 0.0, %v8217
      %v8219 = vpop.f32.mrb[0].mxu0
      %v8220 = vpop.f32.mrb[0].mxu0
      %v8221 = vadd.f32 0.0, %v8220
      %v8222 = vpop.f32.mrb[0].mxu0
      %8223 = vmatprep.mubr.bf16.mxu0 0
      %8224 = vmatmul.mubr.bf16.gmra.mrb[0].mxu0 %v8149
      %v8225 = vpop.f32.mrb[0].mxu0
      %v8226 = vadd.f32 0.0, %v8225
      %v8227 = vpop.f32.mrb[0].mxu0
      %v8228 = vpop.f32.mrb[0].mxu0
      %v8229 = vadd.f32 0.0, %v8228
      %v8230 = vpop.f32.mrb[0].mxu0
      %8231 = vmatprep.mubr.bf16.mxu0 0
      %8232 = vmatmul.mubr.bf16.gmra.mrb[0].mxu0 %v8151
      %v8233 = vpop.f32.mrb[0].mxu0
      %v8234 = vadd.f32 0.0, %v8233
      %v8235 = vpop.f32.mrb[0].mxu0
      %v8236 = vpop.f32.mrb[0].mxu0
      %v8237 = vadd.f32 0.0, %v8236
      %v8238 = vpop.f32.mrb[0].mxu0
      %8239 = vmatprep.mubr.bf16.mxu0 0
      %8240 = vmatmul.mubr.bf16.gmra.mrb[0].mxu0 %v8153
      %v8241 = vpop.f32.mrb[0].mxu0
      %v8242 = vadd.f32 0.0, %v8241
      %v8243 = vpop.f32.mrb[0].mxu0
      %v8244 = vpop.f32.mrb[0].mxu0
      %v8245 = vadd.f32 0.0, %v8244
      %v8246 = vpop.f32.mrb[0].mxu0
      %8247 = vmatprep.mubr.bf16.mxu0 0
      %8248 = vmatmul.mubr.bf16.gmra.mrb[0].mxu0 %v8155
      %v8249 = vpop.f32.mrb[0].mxu0
      %v8250 = vadd.f32 0.0, %v8249
      %v8251 = vpop.f32.mrb[0].mxu0
      %v8252 = vpop.f32.mrb[0].mxu0
      %v8253 = vadd.f32 0.0, %v8252
      %v8254 = vpop.f32.mrb[0].mxu0
      %8255 = vmatprep.mubr.bf16.mxu0 0
      %8256 = vmatmul.mubr.bf16.gmra.mrb[0].mxu0 %v8157
      %v8257 = vpop.f32.mrb[0].mxu0
      %v8258 = vadd.f32 0.0, %v8257
      %v8259 = vpop.f32.mrb[0].mxu0
      %v8260 = vpop.f32.mrb[0].mxu0
      %v8261 = vadd.f32 0.0, %v8260
      %v8262 = vpop.f32.mrb[0].mxu0
      %8263 = vmatprep.mubr.bf16.mxu0 0
      %8264 = vmatmul.mubr.bf16.gmra.mrb[0].mxu0 %v8159
      %v8265 = vpop.f32.mrb[0].mxu0
      %v8266 = vadd.f32 0.0, %v8265
      %v8267 = vpop.f32.mrb[0].mxu0
      %v8268 = vpop.f32.mrb[0].mxu0
      %v8269 = vadd.f32 0.0, %v8268
      %v8270 = vpop.f32.mrb[0].mxu0
      %8271 = vmatprep.mubr.bf16.mxu0 0
      %8272 = vmatmul.mubr.bf16.gmra.mrb[0].mxu0 %v8161
      %v8273 = vpop.f32.mrb[0].mxu0
      %v8274 = vadd.f32 0.0, %v8273
      %v8275 = vpop.f32.mrb[0].mxu0
      %v8276 = vpop.f32.mrb[0].mxu0
      %v8277 = vadd.f32 0.0, %v8276
      %v8278 = vpop.f32.mrb[0].mxu0
      %8279 = vmatprep.mubr.bf16.mxu0 0
      %8280 = vmatmul.mubr.bf16.gmra.mrb[0].mxu0 %v8163
      %v8281 = vpop.f32.mrb[0].mxu0
      %v8282 = vadd.f32 0.0, %v8281
      %v8283 = vpop.f32.mrb[0].mxu0
      %v8284 = vpop.f32.mrb[0].mxu0
      %v8285 = vadd.f32 0.0, %v8284
      %v8286 = vpop.f32.mrb[0].mxu0
      %8287 = vmatprep.mubr.bf16.mxu0 0
      %8288 = vmatmul.mubr.bf16.gmra.mrb[0].mxu0 %v8165
      %v8289 = vpop.f32.mrb[0].mxu0
      %v8290 = vadd.f32 0.0, %v8289
      %v8291 = vpop.f32.mrb[0].mxu0
      %v8292 = vpop.f32.mrb[0].mxu0
      %v8293 = vadd.f32 0.0, %v8292
      %v8294 = vpop.f32.mrb[0].mxu0
      %8295 = vmatprep.mubr.bf16.mxu0 0
      %8296 = vmatmul.mubr.bf16.gmra.mrb[0].mxu0 %v8167
      %v8297 = vpop.f32.mrb[0].mxu0
      %v8298 = vadd.f32 0.0, %v8297
      %v8299 = vpop.f32.mrb[0].mxu0
      %v8300 = vpop.f32.mrb[0].mxu0
      %v8301 = vadd.f32 0.0, %v8300
      %v8302 = vpop.f32.mrb[0].mxu0
      %8303 = vmatprep.mubr.bf16.mxu0 0
      %8304 = vmatmul.mubr.bf16.gmra.mrb[0].mxu0 %v8169
      %v8305 = vpop.f32.mrb[0].mxu0
      %v8306 = vadd.f32 0.0, %v8305
      %v8307 = vpop.f32.mrb[0].mxu0
      %v8308 = vpop.f32.mrb[0].mxu0
      %v8309 = vadd.f32 0.0, %v8308
      %v8310 = vpop.f32.mrb[0].mxu0
      %8311 = vmatprep.mubr.bf16.mxu0 0
      %8312 = vmatmul.mubr.bf16.gmra.mrb[0].mxu0 %v8171
      %v8313 = vpop.f32.mrb[0].mxu0
      %v8314 = vadd.f32 0.0, %v8313
      %v8315 = vpop.f32.mrb[0].mxu0
      %v8316 = vpop.f32.mrb[0].mxu0
      %v8317 = vadd.f32 0.0, %v8316
      %v8318 = vpop.f32.mrb[0].mxu0
      %8319 = vmatprep.mubr.bf16.mxu0 0
      %8320 = vmatmul.mubr.bf16.gmra.mrb[0].mxu0 %v8173
      %v8321 = vpop.f32.mrb[0].mxu0
      %v8322 = vadd.f32 0.0, %v8321
      %v8323 = vpop.f32.mrb[0].mxu0
      %v8324 = vpop.f32.mrb[0].mxu0
      %v8325 = vadd.f32 0.0, %v8324
      %v8326 = vpop.f32.mrb[0].mxu0
      %8327 = vmatprep.mubr.bf16.mxu0 0
      %8328 = vmatmul.mubr.bf16.gmra.mrb[0].mxu0 %v8175
      %v8329 = vpop.f32.mrb[0].mxu0
      %v8330 = vadd.f32 0.0, %v8329
      %v8331 = vpop.f32.mrb[0].mxu0
      %v8332 = vpop.f32.mrb[0].mxu0
      %v8333 = vadd.f32 0.0, %v8332
      %v8334 = vpop.f32.mrb[0].mxu0
      %8335 = vmatprep.mubr.bf16.mxu0 0
      %8336 = vmatmul.mubr.bf16.gmra.mrb[0].mxu0 %v8177
      %v8337 = vpop.f32.mrb[0].mxu0
      %v8338 = vadd.f32 0.0, %v8337
      %v8339 = vpop.f32.mrb[0].mxu0
      %v8340 = vpop.f32.mrb[0].mxu0
      %v8341 = vadd.f32 0.0, %v8340
      %v8342 = vpop.f32.mrb[0].mxu0
      %8343 = vdwg.mxu0
      %v8347 = vunpack.c.l.b16 %v6850
      %v8348 = vunpack.c.l.b16 %v6851
      %v8349 = vunpack.c.l.b16 %v6852
      %v8350 = vpack.c.b16 %v8348, %v8347
      %v8351 = vpack.c.b16 %v8349, %v8349
      %v8353 = vsel %vm8146, %v6819, 0
      %v8355 = vsel %vm8146, %v6821, 0
      %v8357 = vsel %vm8146, %v6823, 0
      %v8359 = vsel %vm8146, %v6825, 0
      %v8361 = vsel %vm8146, %v6827, 0
      %v8363 = vsel %vm8146, %v6829, 0
      %v8365 = vsel %vm8146, %v6831, 0
      %v8367 = vsel %vm8146, %v6833, 0
      %v8369 = vsel %vm8146, %v6835, 0
      %v8371 = vsel %vm8146, %v6837, 0
      %v8373 = vsel %vm8146, %v6839, 0
      %v8375 = vsel %vm8146, %v6841, 0
      %v8377 = vsel %vm8146, %v6843, 0
      %v8379 = vsel %vm8146, %v6845, 0
      %v8381 = vsel %vm8146, %v6847, 0
      %v8383 = vsel %vm8146, %v6849, 0
      %v8386 = vsel %vm8179, %v8351, 0
      %8388 = vmatprep.subr.bf16.mxu0 0
      %8389 = vmatpush1.bf16.msra.mxu0 %v8350
      %8390 = vmatprep.subr.bf16.mxu0 0
      %8391 = vmatpush1.bf16.msra.mxu0 %v8386
      %8392 = vmatprep.subr.bf16.mxu0 0
      %8393 = vmatpush1.bf16.msra.mxu0 0
      %8394 = vmatprep.subr.bf16.mxu0 0
      %8395 = vmatpush1.bf16.msra.mxu0 0
      %8396 = vmatprep.subr.bf16.mxu0 0
      %8397 = vmatpush1.bf16.msra.mxu0 0
      %8398 = vmatprep.subr.bf16.mxu0 0
      %8399 = vmatpush1.bf16.msra.mxu0 0
      %8400 = vmatprep.subr.bf16.mxu0 0
      %8401 = vmatpush1.bf16.msra.mxu0 0
      %8402 = vmatprep.subr.bf16.mxu0 0
      %8403 = vmatpush1.bf16.msra.mxu0 0
      %8404 = vmatprep.subr.bf16.mxu0 0
      %8405 = vmatpush1.bf16.msra.mxu0 0
      %8406 = vmatprep.subr.bf16.mxu0 0
      %8407 = vmatpush1.bf16.msra.mxu0 0
      %8408 = vmatprep.subr.bf16.mxu0 0
      %8409 = vmatpush1.bf16.msra.mxu0 0
      %8410 = vmatprep.subr.bf16.mxu0 0
      %8411 = vmatpush1.bf16.msra.mxu0 0
      %8412 = vmatprep.subr.bf16.mxu0 0
      %8413 = vmatpush1.bf16.msra.mxu0 0
      %8414 = vmatprep.subr.bf16.mxu0 0
      %8415 = vmatpush1.bf16.msra.mxu0 0
      %8416 = vmatprep.subr.bf16.mxu0 0
      %8417 = vmatpush1.bf16.msra.mxu0 0
      %8418 = vmatprep.subr.bf16.mxu0 0
      %8419 = vmatpush1.bf16.msra.mxu0 0
      %8420 = vmatprep.mubr.bf16.mxu0 0
      %8421 = vmatmul.mubr.bf16.gmra.mrb[0].mxu0 %v8353
      %v8422 = vpop.f32.mrb[0].mxu0
      %v8423 = vadd.f32 %v8218, %v8422
      %v8424 = vpop.f32.mrb[0].mxu0
      %v8425 = vpop.f32.mrb[0].mxu0
      %v8426 = vadd.f32 %v8221, %v8425
      %v8427 = vpop.f32.mrb[0].mxu0
      %8428 = vmatprep.mubr.bf16.mxu0 0
      %8429 = vmatmul.mubr.bf16.gmra.mrb[0].mxu0 %v8355
      %v8430 = vpop.f32.mrb[0].mxu0
      %v8431 = vadd.f32 %v8226, %v8430
      %v8432 = vpop.f32.mrb[0].mxu0
      %v8433 = vpop.f32.mrb[0].mxu0
      %v8434 = vadd.f32 %v8229, %v8433
      %v8435 = vpop.f32.mrb[0].mxu0
      %8436 = vmatprep.mubr.bf16.mxu0 0
      %8437 = vmatmul.mubr.bf16.gmra.mrb[0].mxu0 %v8357
      %v8438 = vpop.f32.mrb[0].mxu0
      %v8439 = vadd.f32 %v8234, %v8438
      %v8440 = vpop.f32.mrb[0].mxu0
      %v8441 = vpop.f32.mrb[0].mxu0
      %v8442 = vadd.f32 %v8237, %v8441
      %v8443 = vpop.f32.mrb[0].mxu0
      %8444 = vmatprep.mubr.bf16.mxu0 0
      %8445 = vmatmul.mubr.bf16.gmra.mrb[0].mxu0 %v8359
      %v8446 = vpop.f32.mrb[0].mxu0
      %v8447 = vadd.f32 %v8242, %v8446
      %v8448 = vpop.f32.mrb[0].mxu0
      %v8449 = vpop.f32.mrb[0].mxu0
      %v8450 = vadd.f32 %v8245, %v8449
      %v8451 = vpop.f32.mrb[0].mxu0
      %8452 = vmatprep.mubr.bf16.mxu0 0
      %8453 = vmatmul.mubr.bf16.gmra.mrb[0].mxu0 %v8361
      %v8454 = vpop.f32.mrb[0].mxu0
      %v8455 = vadd.f32 %v8250, %v8454
      %v8456 = vpop.f32.mrb[0].mxu0
      %v8457 = vpop.f32.mrb[0].mxu0
      %v8458 = vadd.f32 %v8253, %v8457
      %v8459 = vpop.f32.mrb[0].mxu0
      %8460 = vmatprep.mubr.bf16.mxu0 0
      %8461 = vmatmul.mubr.bf16.gmra.mrb[0].mxu0 %v8363
      %v8462 = vpop.f32.mrb[0].mxu0
      %v8463 = vadd.f32 %v8258, %v8462
      %v8464 = vpop.f32.mrb[0].mxu0
      %v8465 = vpop.f32.mrb[0].mxu0
      %v8466 = vadd.f32 %v8261, %v8465
      %v8467 = vpop.f32.mrb[0].mxu0
      %8468 = vmatprep.mubr.bf16.mxu0 0
      %8469 = vmatmul.mubr.bf16.gmra.mrb[0].mxu0 %v8365
      %v8470 = vpop.f32.mrb[0].mxu0
      %v8471 = vadd.f32 %v8266, %v8470
      %v8472 = vpop.f32.mrb[0].mxu0
      %v8473 = vpop.f32.mrb[0].mxu0
      %v8474 = vadd.f32 %v8269, %v8473
      %v8475 = vpop.f32.mrb[0].mxu0
      %8476 = vmatprep.mubr.bf16.mxu0 0
      %8477 = vmatmul.mubr.bf16.gmra.mrb[0].mxu0 %v8367
      %v8478 = vpop.f32.mrb[0].mxu0
      %v8479 = vadd.f32 %v8274, %v8478
      %v8480 = vpop.f32.mrb[0].mxu0
      %v8481 = vpop.f32.mrb[0].mxu0
      %v8482 = vadd.f32 %v8277, %v8481
      %v8483 = vpop.f32.mrb[0].mxu0
      %8484 = vmatprep.mubr.bf16.mxu0 0
      %8485 = vmatmul.mubr.bf16.gmra.mrb[0].mxu0 %v8369
      %v8486 = vpop.f32.mrb[0].mxu0
      %v8487 = vadd.f32 %v8282, %v8486
      %v8488 = vpop.f32.mrb[0].mxu0
      %v8489 = vpop.f32.mrb[0].mxu0
      %v8490 = vadd.f32 %v8285, %v8489
      %v8491 = vpop.f32.mrb[0].mxu0
      %8492 = vmatprep.mubr.bf16.mxu0 0
      %8493 = vmatmul.mubr.bf16.gmra.mrb[0].mxu0 %v8371
      %v8494 = vpop.f32.mrb[0].mxu0
      %v8495 = vadd.f32 %v8290, %v8494
      %v8496 = vpop.f32.mrb[0].mxu0
      %v8497 = vpop.f32.mrb[0].mxu0
      %v8498 = vadd.f32 %v8293, %v8497
      %v8499 = vpop.f32.mrb[0].mxu0
      %8500 = vmatprep.mubr.bf16.mxu0 0
      %8501 = vmatmul.mubr.bf16.gmra.mrb[0].mxu0 %v8373
      %v8502 = vpop.f32.mrb[0].mxu0
      %v8503 = vadd.f32 %v8298, %v8502
      %v8504 = vpop.f32.mrb[0].mxu0
      %v8505 = vpop.f32.mrb[0].mxu0
      %v8506 = vadd.f32 %v8301, %v8505
      %v8507 = vpop.f32.mrb[0].mxu0
      %8508 = vmatprep.mubr.bf16.mxu0 0
      %8509 = vmatmul.mubr.bf16.gmra.mrb[0].mxu0 %v8375
      %v8510 = vpop.f32.mrb[0].mxu0
      %v8511 = vadd.f32 %v8306, %v8510
      %v8512 = vpop.f32.mrb[0].mxu0
      %v8513 = vpop.f32.mrb[0].mxu0
      %v8514 = vadd.f32 %v8309, %v8513
      %v8515 = vpop.f32.mrb[0].mxu0
      %8516 = vmatprep.mubr.bf16.mxu0 0
      %8517 = vmatmul.mubr.bf16.gmra.mrb[0].mxu0 %v8377
      %v8518 = vpop.f32.mrb[0].mxu0
      %v8519 = vadd.f32 %v8314, %v8518
      %v8520 = vpop.f32.mrb[0].mxu0
      %v8521 = vpop.f32.mrb[0].mxu0
      %v8522 = vadd.f32 %v8317, %v8521
      %v8523 = vpop.f32.mrb[0].mxu0
      %8524 = vmatprep.mubr.bf16.mxu0 0
      %8525 = vmatmul.mubr.bf16.gmra.mrb[0].mxu0 %v8379
      %v8526 = vpop.f32.mrb[0].mxu0
      %v8527 = vadd.f32 %v8322, %v8526
      %v8528 = vpop.f32.mrb[0].mxu0
      %v8529 = vpop.f32.mrb[0].mxu0
      %v8530 = vadd.f32 %v8325, %v8529
      %v8531 = vpop.f32.mrb[0].mxu0
      %8532 = vmatprep.mubr.bf16.mxu0 0
      %8533 = vmatmul.mubr.bf16.gmra.mrb[0].mxu0 %v8381
      %v8534 = vpop.f32.mrb[0].mxu0
      %v8535 = vadd.f32 %v8330, %v8534
      %v8536 = vpop.f32.mrb[0].mxu0
      %v8537 = vpop.f32.mrb[0].mxu0
      %v8538 = vadd.f32 %v8333, %v8537
      %v8539 = vpop.f32.mrb[0].mxu0
      %8540 = vmatprep.mubr.bf16.mxu0 0
      %8541 = vmatmul.mubr.bf16.gmra.mrb[0].mxu0 %v8383
      %v8542 = vpop.f32.mrb[0].mxu0
      %v8543 = vadd.f32 %v8338, %v8542
      %v8544 = vpop.f32.mrb[0].mxu0
      %v8545 = vpop.f32.mrb[0].mxu0
      %v8546 = vadd.f32 %v8341, %v8545
      %v8547 = vpop.f32.mrb[0].mxu0
      %8548 = vdwg.mxu0
      %s8549 = scalar_lea.vmem [#allocation2], 24
      %v8550 = vld [vmem:[%s8549] sm:$0xf]
      %v8551 = vld [vmem:[%s8549 + $0x4] sm:$0xf]
      %v8552 = vld [vmem:[%s8549 + $0xc] sm:$0xf]
      %v8553 = vld [vmem:[%s8549 + $0x10] sm:$0xf]
      %v8554 = vld [vmem:[%s8549 + $0x18] sm:$0xf]
      %v8555 = vld [vmem:[%s8549 + $0x1c] sm:$0xf]
      %v8556 = vld [vmem:[%s8549 + $0x24] sm:$0xf]
      %v8557 = vld [vmem:[%s8549 + $0x28] sm:$0xf]
      %v8558 = vld [vmem:[%s8549 + $0x30] sm:$0xf]
      %v8559 = vld [vmem:[%s8549 + $0x34] sm:$0xf]
      %v8560 = vld [vmem:[%s8549 + $0x3c] sm:$0xf]
      %v8561 = vld [vmem:[%s8549 + $0x40] sm:$0xf]
      %v8562 = vld [vmem:[%s8549 + $0x48] sm:$0xf]
      %v8563 = vld [vmem:[%s8549 + $0x4c] sm:$0xf]
      %v8564 = vld [vmem:[%s8549 + $0x54] sm:$0xf]
      %v8565 = vld [vmem:[%s8549 + $0x58] sm:$0xf]
      %v8566 = vld [vmem:[%s8549 + $0x60] sm:$0xf]
      %v8567 = vld [vmem:[%s8549 + $0x64] sm:$0xf]
      %v8568 = vld [vmem:[%s8549 + $0x6c] sm:$0xf]
      %v8569 = vld [vmem:[%s8549 + $0x70] sm:$0xf]
      %v8570 = vld [vmem:[%s8549 + $0x78] sm:$0xf]
      %v8571 = vld [vmem:[%s8549 + $0x7c] sm:$0xf]
      %v8572 = vld [vmem:[%s8549 + $0x84] sm:$0xf]
      %v8573 = vld [vmem:[%s8549 + $0x88] sm:$0xf]
      %v8574 = vld [vmem:[%s8549 + $0x90] sm:$0xf]
      %v8575 = vld [vmem:[%s8549 + $0x94] sm:$0xf]
      %v8576 = vld [vmem:[%s8549 + $0x9c] sm:$0xf]
      %v8577 = vld [vmem:[%s8549 + $0xa0] sm:$0xf]
      %v8578 = vld [vmem:[%s8549 + $0xa8] sm:$0xf]
      %v8579 = vld [vmem:[%s8549 + $0xac] sm:$0xf]
      %v8580 = vld [vmem:[%s8549 + $0xb4] sm:$0xf]
      %v8581 = vld [vmem:[%s8549 + $0xb8] sm:$0xf]
      %v8582 = vld [vmem:[%s8549 + $0x8] sm:$0x1]
      %v8583 = vld [vmem:[%s8549 + $0x14] sm:$0x1]
      %v8584 = vld [vmem:[%s8549 + $0x20] sm:$0x1]
      %v8585 = vld [vmem:[%s8549 + $0x2c] sm:$0x1]
      %v8586 = vld [vmem:[%s8549 + $0x38] sm:$0x1]
      %v8587 = vld [vmem:[%s8549 + $0x44] sm:$0x1]
      %v8588 = vld [vmem:[%s8549 + $0x50] sm:$0x1]
      %v8589 = vld [vmem:[%s8549 + $0x5c] sm:$0x1]
      %v8590 = vld [vmem:[%s8549 + $0x68] sm:$0x1]
      %v8591 = vld [vmem:[%s8549 + $0x74] sm:$0x1]
      %v8592 = vld [vmem:[%s8549 + $0x80] sm:$0x1]
      %v8593 = vld [vmem:[%s8549 + $0x8c] sm:$0x1]
      %v8594 = vld [vmem:[%s8549 + $0x98] sm:$0x1]
      %v8595 = vld [vmem:[%s8549 + $0xa4] sm:$0x1]
      %v8596 = vld [vmem:[%s8549 + $0xb0] sm:$0x1]
      %v8597 = vld [vmem:[%s8549 + $0xbc] sm:$0x1]
      %v8598 = vld [vmem:[%s8549] sm:$0xe]
      %v8599 = vld [vmem:[%s8549 + $0xc] sm:$0xe]
      %v8600 = vld [vmem:[%s8549 + $0x18] sm:$0xe]
      %v8601 = vld [vmem:[%s8549 + $0x24] sm:$0xe]
      %v8602 = vld [vmem:[%s8549 + $0x30] sm:$0xe]
      %v8603 = vld [vmem:[%s8549 + $0x3c] sm:$0xe]
      %v8604 = vld [vmem:[%s8549 + $0x48] sm:$0xe]
      %v8605 = vld [vmem:[%s8549 + $0x54] sm:$0xe]
      %v8606 = vld [vmem:[%s8549 + $0x60] sm:$0xe]
      %v8607 = vld [vmem:[%s8549 + $0x6c] sm:$0xe]
      %v8608 = vld [vmem:[%s8549 + $0x78] sm:$0xe]
      %v8609 = vld [vmem:[%s8549 + $0x84] sm:$0xe]
      %v8610 = vld [vmem:[%s8549 + $0x90] sm:$0xe]
      %v8611 = vld [vmem:[%s8549 + $0x9c] sm:$0xe]
      %v8612 = vld [vmem:[%s8549 + $0xa8] sm:$0xe]
      %v8613 = vld [vmem:[%s8549 + $0xb4] sm:$0xe]
      %s8614 = scalar_lea.vmem [#allocation3], 24
      %v8615 = vld [vmem:[%s8614] sm:$0xf]
      %v8616 = vld [vmem:[%s8614 + $0x4] sm:$0xf]
      %v8617 = vld [vmem:[%s8614 + $0xc] sm:$0xf]
      %v8618 = vld [vmem:[%s8614 + $0x10] sm:$0xf]
      %v8619 = vld [vmem:[%s8614 + $0x18] sm:$0xf]
      %v8620 = vld [vmem:[%s8614 + $0x1c] sm:$0xf]
      %v8621 = vld [vmem:[%s8614 + $0x24] sm:$0xf]
      %v8622 = vld [vmem:[%s8614 + $0x28] sm:$0xf]
      %v8623 = vld [vmem:[%s8614 + $0x30] sm:$0xf]
      %v8624 = vld [vmem:[%s8614 + $0x34] sm:$0xf]
      %v8625 = vld [vmem:[%s8614 + $0x3c] sm:$0xf]
      %v8626 = vld [vmem:[%s8614 + $0x40] sm:$0xf]
      %v8627 = vld [vmem:[%s8614 + $0x48] sm:$0xf]
      %v8628 = vld [vmem:[%s8614 + $0x4c] sm:$0xf]
      %v8629 = vld [vmem:[%s8614 + $0x54] sm:$0xf]
      %v8630 = vld [vmem:[%s8614 + $0x58] sm:$0xf]
      %v8631 = vld [vmem:[%s8614 + $0x60] sm:$0xf]
      %v8632 = vld [vmem:[%s8614 + $0x64] sm:$0xf]
      %v8633 = vld [vmem:[%s8614 + $0x6c] sm:$0xf]
      %v8634 = vld [vmem:[%s8614 + $0x70] sm:$0xf]
      %v8635 = vld [vmem:[%s8614 + $0x78] sm:$0xf]
      %v8636 = vld [vmem:[%s8614 + $0x7c] sm:$0xf]
      %v8637 = vld [vmem:[%s8614 + $0x84] sm:$0xf]
      %v8638 = vld [vmem:[%s8614 + $0x88] sm:$0xf]
      %v8639 = vld [vmem:[%s8614 + $0x90] sm:$0xf]
      %v8640 = vld [vmem:[%s8614 + $0x94] sm:$0xf]
      %v8641 = vld [vmem:[%s8614 + $0x9c] sm:$0xf]
      %v8642 = vld [vmem:[%s8614 + $0xa0] sm:$0xf]
      %v8643 = vld [vmem:[%s8614 + $0xa8] sm:$0xf]
      %v8644 = vld [vmem:[%s8614 + $0xac] sm:$0xf]
      %v8645 = vld [vmem:[%s8614 + $0xb4] sm:$0xf]
      %v8646 = vld [vmem:[%s8614 + $0xb8] sm:$0xf]
      %v8647 = vld [vmem:[%s8614 + $0x8] sm:$0x1]
      %v8648 = vld [vmem:[%s8614 + $0x14] sm:$0x1]
      %v8649 = vld [vmem:[%s8614 + $0x20] sm:$0x1]
      %v8650 = vld [vmem:[%s8614 + $0x2c] sm:$0x1]
      %v8651 = vld [vmem:[%s8614 + $0x38] sm:$0x1]
      %v8652 = vld [vmem:[%s8614 + $0x44] sm:$0x1]
      %v8653 = vld [vmem:[%s8614 + $0x50] sm:$0x1]
      %v8654 = vld [vmem:[%s8614 + $0x5c] sm:$0x1]
      %v8655 = vld [vmem:[%s8614 + $0x68] sm:$0x1]
      %v8656 = vld [vmem:[%s8614 + $0x74] sm:$0x1]
      %v8657 = vld [vmem:[%s8614 + $0x80] sm:$0x1]
      %v8658 = vld [vmem:[%s8614 + $0x8c] sm:$0x1]
      %v8659 = vld [vmem:[%s8614 + $0x98] sm:$0x1]
      %v8660 = vld [vmem:[%s8614 + $0xa4] sm:$0x1]
      %v8661 = vld [vmem:[%s8614 + $0xb0] sm:$0x1]
      %v8662 = vld [vmem:[%s8614 + $0xbc] sm:$0x1]
      %v8663 = vld [vmem:[%s8614] sm:$0xe]
      %v8664 = vld [vmem:[%s8614 + $0xc] sm:$0xe]
      %v8665 = vld [vmem:[%s8614 + $0x18] sm:$0xe]
      %v8666 = vld [vmem:[%s8614 + $0x24] sm:$0xe]
      %v8667 = vld [vmem:[%s8614 + $0x30] sm:$0xe]
      %v8668 = vld [vmem:[%s8614 + $0x3c] sm:$0xe]
      %v8669 = vld [vmem:[%s8614 + $0x48] sm:$0xe]
      %v8670 = vld [vmem:[%s8614 + $0x54] sm:$0xe]
      %v8671 = vld [vmem:[%s8614 + $0x60] sm:$0xe]
      %v8672 = vld [vmem:[%s8614 + $0x6c] sm:$0xe]
      %v8673 = vld [vmem:[%s8614 + $0x78] sm:$0xe]
      %v8674 = vld [vmem:[%s8614 + $0x84] sm:$0xe]
      %v8675 = vld [vmem:[%s8614 + $0x90] sm:$0xe]
      %v8676 = vld [vmem:[%s8614 + $0x9c] sm:$0xe]
      %v8677 = vld [vmem:[%s8614 + $0xa8] sm:$0xe]
      %v8678 = vld [vmem:[%s8614 + $0xb4] sm:$0xe]
      %v8711 = vunpack.c.l.b16 %v8550
      %v8712 = vunpack.c.l.b16 %v8551
      %v8713 = vunpack.c.l.b16 %v8552
      %v8714 = vunpack.c.l.b16 %v8553
      %v8715 = vunpack.c.l.b16 %v8554
      %v8716 = vunpack.c.l.b16 %v8555
      %v8717 = vunpack.c.l.b16 %v8556
      %v8718 = vunpack.c.l.b16 %v8557
      %v8719 = vunpack.c.l.b16 %v8558
      %v8720 = vunpack.c.l.b16 %v8559
      %v8721 = vunpack.c.l.b16 %v8560
      %v8722 = vunpack.c.l.b16 %v8561
      %v8723 = vunpack.c.l.b16 %v8562
      %v8724 = vunpack.c.l.b16 %v8563
      %v8725 = vunpack.c.l.b16 %v8564
      %v8726 = vunpack.c.l.b16 %v8565
      %v8727 = vunpack.c.l.b16 %v8566
      %v8728 = vunpack.c.l.b16 %v8567
      %v8729 = vunpack.c.l.b16 %v8568
      %v8730 = vunpack.c.l.b16 %v8569
      %v8731 = vunpack.c.l.b16 %v8570
      %v8732 = vunpack.c.l.b16 %v8571
      %v8733 = vunpack.c.l.b16 %v8572
      %v8734 = vunpack.c.l.b16 %v8573
      %v8735 = vunpack.c.l.b16 %v8574
      %v8736 = vunpack.c.l.b16 %v8575
      %v8737 = vunpack.c.l.b16 %v8576
      %v8738 = vunpack.c.l.b16 %v8577
      %v8739 = vunpack.c.l.b16 %v8578
      %v8740 = vunpack.c.l.b16 %v8579
      %v8741 = vunpack.c.l.b16 %v8580
      %v8742 = vunpack.c.l.b16 %v8581
      %v8743 = vpack.c.b16 %v8712, %v8711
      %v8744 = vpack.c.b16 %v8714, %v8713
      %v8745 = vpack.c.b16 %v8716, %v8715
      %v8746 = vpack.c.b16 %v8718, %v8717
      %v8747 = vpack.c.b16 %v8720, %v8719
      %v8748 = vpack.c.b16 %v8722, %v8721
      %v8749 = vpack.c.b16 %v8724, %v8723
      %v8750 = vpack.c.b16 %v8726, %v8725
      %v8751 = vpack.c.b16 %v8728, %v8727
      %v8752 = vpack.c.b16 %v8730, %v8729
      %v8753 = vpack.c.b16 %v8732, %v8731
      %v8754 = vpack.c.b16 %v8734, %v8733
      %v8755 = vpack.c.b16 %v8736, %v8735
      %v8756 = vpack.c.b16 %v8738, %v8737
      %v8757 = vpack.c.b16 %v8740, %v8739
      %v8758 = vpack.c.b16 %v8742, %v8741
      %v8775 = vunpack.c.l.b16 %v8582
      %v8776 = vunpack.c.l.b16 %v8583
      %v8777 = vunpack.c.l.b16 %v8584
      %v8778 = vunpack.c.l.b16 %v8585
      %v8779 = vunpack.c.l.b16 %v8586
      %v8780 = vunpack.c.l.b16 %v8587
      %v8781 = vunpack.c.l.b16 %v8588
      %v8782 = vunpack.c.l.b16 %v8589
      %v8783 = vunpack.c.l.b16 %v8590
      %v8784 = vunpack.c.l.b16 %v8591
      %v8785 = vunpack.c.l.b16 %v8592
      %v8786 = vunpack.c.l.b16 %v8593
      %v8787 = vunpack.c.l.b16 %v8594
      %v8788 = vunpack.c.l.b16 %v8595
      %v8789 = vunpack.c.l.b16 %v8596
      %v8790 = vunpack.c.l.b16 %v8597
      %v8791 = vpack.c.b16 %v8775, %v8775
      %v8792 = vpack.c.b16 %v8776, %v8776
      %v8793 = vpack.c.b16 %v8777, %v8777
      %v8794 = vpack.c.b16 %v8778, %v8778
      %v8795 = vpack.c.b16 %v8779, %v8779
      %v8796 = vpack.c.b16 %v8780, %v8780
      %v8797 = vpack.c.b16 %v8781, %v8781
      %v8798 = vpack.c.b16 %v8782, %v8782
      %v8799 = vpack.c.b16 %v8783, %v8783
      %v8800 = vpack.c.b16 %v8784, %v8784
      %v8801 = vpack.c.b16 %v8785, %v8785
      %v8802 = vpack.c.b16 %v8786, %v8786
      %v8803 = vpack.c.b16 %v8787, %v8787
      %v8804 = vpack.c.b16 %v8788, %v8788
      %v8805 = vpack.c.b16 %v8789, %v8789
      %v8806 = vpack.c.b16 %v8790, %v8790
      %v8808 = vshrl.u32 %v8743, 16
      %v8810 = vshll.u32 %v8743, 16
      %v8812 = vrot.slane %v8810, 1
      %v8813 = vor.u32 %v8808, %v8812
      %v8815 = vshll.u32 %v8791, 16
      %v8817 = vrot.slane %v8815, 1
      %v8818 = vsel %vm5820, %v8813, %v8817
      %v8820 = vshrl.u32 %v8744, 16
      %v8822 = vshll.u32 %v8744, 16
      %v8824 = vrot.slane %v8822, 1
      %v8825 = vor.u32 %v8820, %v8824
      %v8827 = vshll.u32 %v8792, 16
      %v8829 = vrot.slane %v8827, 1
      %v8830 = vsel %vm5820, %v8825, %v8829
      %v8832 = vshrl.u32 %v8745, 16
      %v8834 = vshll.u32 %v8745, 16
      %v8836 = vrot.slane %v8834, 1
      %v8837 = vor.u32 %v8832, %v8836
      %v8839 = vshll.u32 %v8793, 16
      %v8841 = vrot.slane %v8839, 1
      %v8842 = vsel %vm5820, %v8837, %v8841
      %v8844 = vshrl.u32 %v8746, 16
      %v8846 = vshll.u32 %v8746, 16
      %v8848 = vrot.slane %v8846, 1
      %v8849 = vor.u32 %v8844, %v8848
      %v8851 = vshll.u32 %v8794, 16
      %v8853 = vrot.slane %v8851, 1
      %v8854 = vsel %vm5820, %v8849, %v8853
      %v8856 = vshrl.u32 %v8747, 16
      %v8858 = vshll.u32 %v8747, 16
      %v8860 = vrot.slane %v8858, 1
      %v8861 = vor.u32 %v8856, %v8860
      %v8863 = vshll.u32 %v8795, 16
      %v8865 = vrot.slane %v8863, 1
      %v8866 = vsel %vm5820, %v8861, %v8865
      %v8868 = vshrl.u32 %v8748, 16
      %v8870 = vshll.u32 %v8748, 16
      %v8872 = vrot.slane %v8870, 1
      %v8873 = vor.u32 %v8868, %v8872
      %v8875 = vshll.u32 %v8796, 16
      %v8877 = vrot.slane %v8875, 1
      %v8878 = vsel %vm5820, %v8873, %v8877
      %v8880 = vshrl.u32 %v8749, 16
      %v8882 = vshll.u32 %v8749, 16
      %v8884 = vrot.slane %v8882, 1
      %v8885 = vor.u32 %v8880, %v8884
      %v8887 = vshll.u32 %v8797, 16
      %v8889 = vrot.slane %v8887, 1
      %v8890 = vsel %vm5820, %v8885, %v8889
      %v8892 = vshrl.u32 %v8750, 16
      %v8894 = vshll.u32 %v8750, 16
      %v8896 = vrot.slane %v8894, 1
      %v8897 = vor.u32 %v8892, %v8896
      %v8899 = vshll.u32 %v8798, 16
      %v8901 = vrot.slane %v8899, 1
      %v8902 = vsel %vm5820, %v8897, %v8901
      %v8904 = vshrl.u32 %v8751, 16
      %v8906 = vshll.u32 %v8751, 16
      %v8908 = vrot.slane %v8906, 1
      %v8909 = vor.u32 %v8904, %v8908
      %v8911 = vshll.u32 %v8799, 16
      %v8913 = vrot.slane %v8911, 1
      %v8914 = vsel %vm5820, %v8909, %v8913
      %v8916 = vshrl.u32 %v8752, 16
      %v8918 = vshll.u32 %v8752, 16
      %v8920 = vrot.slane %v8918, 1
      %v8921 = vor.u32 %v8916, %v8920
      %v8923 = vshll.u32 %v8800, 16
      %v8925 = vrot.slane %v8923, 1
      %v8926 = vsel %vm5820, %v8921, %v8925
      %v8928 = vshrl.u32 %v8753, 16
      %v8930 = vshll.u32 %v8753, 16
      %v8932 = vrot.slane %v8930, 1
      %v8933 = vor.u32 %v8928, %v8932
      %v8935 = vshll.u32 %v8801, 16
      %v8937 = vrot.slane %v8935, 1
      %v8938 = vsel %vm5820, %v8933, %v8937
      %v8940 = vshrl.u32 %v8754, 16
      %v8942 = vshll.u32 %v8754, 16
      %v8944 = vrot.slane %v8942, 1
      %v8945 = vor.u32 %v8940, %v8944
      %v8947 = vshll.u32 %v8802, 16
      %v8949 = vrot.slane %v8947, 1
      %v8950 = vsel %vm5820, %v8945, %v8949
      %v8952 = vshrl.u32 %v8755, 16
      %v8954 = vshll.u32 %v8755, 16
      %v8956 = vrot.slane %v8954, 1
      %v8957 = vor.u32 %v8952, %v8956
      %v8959 = vshll.u32 %v8803, 16
      %v8961 = vrot.slane %v8959, 1
      %v8962 = vsel %vm5820, %v8957, %v8961
      %v8964 = vshrl.u32 %v8756, 16
      %v8966 = vshll.u32 %v8756, 16
      %v8968 = vrot.slane %v8966, 1
      %v8969 = vor.u32 %v8964, %v8968
      %v8971 = vshll.u32 %v8804, 16
      %v8973 = vrot.slane %v8971, 1
      %v8974 = vsel %vm5820, %v8969, %v8973
      %v8976 = vshrl.u32 %v8757, 16
      %v8978 = vshll.u32 %v8757, 16
      %v8980 = vrot.slane %v8978, 1
      %v8981 = vor.u32 %v8976, %v8980
      %v8983 = vshll.u32 %v8805, 16
      %v8985 = vrot.slane %v8983, 1
      %v8986 = vsel %vm5820, %v8981, %v8985
      %v8988 = vshrl.u32 %v8758, 16
      %v8990 = vshll.u32 %v8758, 16
      %v8992 = vrot.slane %v8990, 1
      %v8993 = vor.u32 %v8988, %v8992
      %v8995 = vshll.u32 %v8806, 16
      %v8997 = vrot.slane %v8995, 1
      %v8998 = vsel %vm5820, %v8993, %v8997
      %8999 = vrot.lane.b32.xlu0 %v8818, 4
      %v9000 = vpop.permute.xlu0 %8999
      %9001 = vrot.lane.b32.xlu0 %v8830, 4
      %v9002 = vpop.permute.xlu0 %9001
      %9003 = vrot.lane.b32.xlu0 %v8842, 4
      %v9004 = vpop.permute.xlu0 %9003
      %9005 = vrot.lane.b32.xlu0 %v8854, 4
      %v9006 = vpop.permute.xlu0 %9005
      %9007 = vrot.lane.b32.xlu0 %v8866, 4
      %v9008 = vpop.permute.xlu0 %9007
      %9009 = vrot.lane.b32.xlu0 %v8878, 4
      %v9010 = vpop.permute.xlu0 %9009
      %9011 = vrot.lane.b32.xlu0 %v8890, 4
      %v9012 = vpop.permute.xlu0 %9011
      %9013 = vrot.lane.b32.xlu0 %v8902, 4
      %v9014 = vpop.permute.xlu0 %9013
      %9015 = vrot.lane.b32.xlu0 %v8914, 4
      %v9016 = vpop.permute.xlu0 %9015
      %9017 = vrot.lane.b32.xlu0 %v8926, 4
      %v9018 = vpop.permute.xlu0 %9017
      %9019 = vrot.lane.b32.xlu0 %v8938, 4
      %v9020 = vpop.permute.xlu0 %9019
      %9021 = vrot.lane.b32.xlu0 %v8950, 4
      %v9022 = vpop.permute.xlu0 %9021
      %9023 = vrot.lane.b32.xlu0 %v8962, 4
      %v9024 = vpop.permute.xlu0 %9023
      %9025 = vrot.lane.b32.xlu0 %v8974, 4
      %v9026 = vpop.permute.xlu0 %9025
      %9027 = vrot.lane.b32.xlu0 %v8986, 4
      %v9028 = vpop.permute.xlu0 %9027
      %9029 = vrot.lane.b32.xlu0 %v8998, 4
      %v9030 = vpop.permute.xlu0 %9029
      %v9047 = vunpack.c.l.b16 %v8598
      %v9048 = vunpack.c.l.b16 %v8599
      %v9049 = vunpack.c.l.b16 %v8600
      %v9050 = vunpack.c.l.b16 %v8601
      %v9051 = vunpack.c.l.b16 %v8602
      %v9052 = vunpack.c.l.b16 %v8603
      %v9053 = vunpack.c.l.b16 %v8604
      %v9054 = vunpack.c.l.b16 %v8605
      %v9055 = vunpack.c.l.b16 %v8606
      %v9056 = vunpack.c.l.b16 %v8607
      %v9057 = vunpack.c.l.b16 %v8608
      %v9058 = vunpack.c.l.b16 %v8609
      %v9059 = vunpack.c.l.b16 %v8610
      %v9060 = vunpack.c.l.b16 %v8611
      %v9061 = vunpack.c.l.b16 %v8612
      %v9062 = vunpack.c.l.b16 %v8613
      %v9063 = vpack.c.b16 %v8712, %v9047
      %v9064 = vpack.c.b16 %v8714, %v9048
      %v9065 = vpack.c.b16 %v8716, %v9049
      %v9066 = vpack.c.b16 %v8718, %v9050
      %v9067 = vpack.c.b16 %v8720, %v9051
      %v9068 = vpack.c.b16 %v8722, %v9052
      %v9069 = vpack.c.b16 %v8724, %v9053
      %v9070 = vpack.c.b16 %v8726, %v9054
      %v9071 = vpack.c.b16 %v8728, %v9055
      %v9072 = vpack.c.b16 %v8730, %v9056
      %v9073 = vpack.c.b16 %v8732, %v9057
      %v9074 = vpack.c.b16 %v8734, %v9058
      %v9075 = vpack.c.b16 %v8736, %v9059
      %v9076 = vpack.c.b16 %v8738, %v9060
      %v9077 = vpack.c.b16 %v8740, %v9061
      %v9078 = vpack.c.b16 %v8742, %v9062
      %v9079 = vrot.slane %v9063, 1
      %v9080 = vrot.slane %v8791, 1
      %v9081 = vsel %vm6093, %v9079, %v9080
      %v9082 = vrot.slane %v9064, 1
      %v9083 = vrot.slane %v8792, 1
      %v9084 = vsel %vm6093, %v9082, %v9083
      %v9085 = vrot.slane %v9065, 1
      %v9086 = vrot.slane %v8793, 1
      %v9087 = vsel %vm6093, %v9085, %v9086
      %v9088 = vrot.slane %v9066, 1
      %v9089 = vrot.slane %v8794, 1
      %v9090 = vsel %vm6093, %v9088, %v9089
      %v9091 = vrot.slane %v9067, 1
      %v9092 = vrot.slane %v8795, 1
      %v9093 = vsel %vm6093, %v9091, %v9092
      %v9094 = vrot.slane %v9068, 1
      %v9095 = vrot.slane %v8796, 1
      %v9096 = vsel %vm6093, %v9094, %v9095
      %v9097 = vrot.slane %v9069, 1
      %v9098 = vrot.slane %v8797, 1
      %v9099 = vsel %vm6093, %v9097, %v9098
      %v9100 = vrot.slane %v9070, 1
      %v9101 = vrot.slane %v8798, 1
      %v9102 = vsel %vm6093, %v9100, %v9101
      %v9103 = vrot.slane %v9071, 1
      %v9104 = vrot.slane %v8799, 1
      %v9105 = vsel %vm6093, %v9103, %v9104
      %v9106 = vrot.slane %v9072, 1
      %v9107 = vrot.slane %v8800, 1
      %v9108 = vsel %vm6093, %v9106, %v9107
      %v9109 = vrot.slane %v9073, 1
      %v9110 = vrot.slane %v8801, 1
      %v9111 = vsel %vm6093, %v9109, %v9110
      %v9112 = vrot.slane %v9074, 1
      %v9113 = vrot.slane %v8802, 1
      %v9114 = vsel %vm6093, %v9112, %v9113
      %v9115 = vrot.slane %v9075, 1
      %v9116 = vrot.slane %v8803, 1
      %v9117 = vsel %vm6093, %v9115, %v9116
      %v9118 = vrot.slane %v9076, 1
      %v9119 = vrot.slane %v8804, 1
      %v9120 = vsel %vm6093, %v9118, %v9119
      %v9121 = vrot.slane %v9077, 1
      %v9122 = vrot.slane %v8805, 1
      %v9123 = vsel %vm6093, %v9121, %v9122
      %v9124 = vrot.slane %v9078, 1
      %v9125 = vrot.slane %v8806, 1
      %v9126 = vsel %vm6093, %v9124, %v9125
      %9127 = vrot.lane.b32.xlu0 %v9081, 8
      %v9128 = vpop.permute.xlu0 %9127
      %9129 = vrot.lane.b32.xlu0 %v9084, 8
      %v9130 = vpop.permute.xlu0 %9129
      %9131 = vrot.lane.b32.xlu0 %v9087, 8
      %v9132 = vpop.permute.xlu0 %9131
      %9133 = vrot.lane.b32.xlu0 %v9090, 8
      %v9134 = vpop.permute.xlu0 %9133
      %9135 = vrot.lane.b32.xlu0 %v9093, 8
      %v9136 = vpop.permute.xlu0 %9135
      %9137 = vrot.lane.b32.xlu0 %v9096, 8
      %v9138 = vpop.permute.xlu0 %9137
      %9139 = vrot.lane.b32.xlu0 %v9099, 8
      %v9140 = vpop.permute.xlu0 %9139
      %9141 = vrot.lane.b32.xlu0 %v9102, 8
      %v9142 = vpop.permute.xlu0 %9141
      %9143 = vrot.lane.b32.xlu0 %v9105, 8
      %v9144 = vpop.permute.xlu0 %9143
      %9145 = vrot.lane.b32.xlu0 %v9108, 8
      %v9146 = vpop.permute.xlu0 %9145
      %9147 = vrot.lane.b32.xlu0 %v9111, 8
      %v9148 = vpop.permute.xlu0 %9147
      %9149 = vrot.lane.b32.xlu0 %v9114, 8
      %v9150 = vpop.permute.xlu0 %9149
      %9151 = vrot.lane.b32.xlu0 %v9117, 8
      %v9152 = vpop.permute.xlu0 %9151
      %9153 = vrot.lane.b32.xlu0 %v9120, 8
      %v9154 = vpop.permute.xlu0 %9153
      %9155 = vrot.lane.b32.xlu0 %v9123, 8
      %v9156 = vpop.permute.xlu0 %9155
      %9157 = vrot.lane.b32.xlu0 %v9126, 8
      %v9158 = vpop.permute.xlu0 %9157
      %v9191 = vunpack.c.l.b16 %v8615
      %v9192 = vunpack.c.l.b16 %v8616
      %v9193 = vunpack.c.l.b16 %v8617
      %v9194 = vunpack.c.l.b16 %v8618
      %v9195 = vunpack.c.l.b16 %v8619
      %v9196 = vunpack.c.l.b16 %v8620
      %v9197 = vunpack.c.l.b16 %v8621
      %v9198 = vunpack.c.l.b16 %v8622
      %v9199 = vunpack.c.l.b16 %v8623
      %v9200 = vunpack.c.l.b16 %v8624
      %v9201 = vunpack.c.l.b16 %v8625
      %v9202 = vunpack.c.l.b16 %v8626
      %v9203 = vunpack.c.l.b16 %v8627
      %v9204 = vunpack.c.l.b16 %v8628
      %v9205 = vunpack.c.l.b16 %v8629
      %v9206 = vunpack.c.l.b16 %v8630
      %v9207 = vunpack.c.l.b16 %v8631
      %v9208 = vunpack.c.l.b16 %v8632
      %v9209 = vunpack.c.l.b16 %v8633
      %v9210 = vunpack.c.l.b16 %v8634
      %v9211 = vunpack.c.l.b16 %v8635
      %v9212 = vunpack.c.l.b16 %v8636
      %v9213 = vunpack.c.l.b16 %v8637
      %v9214 = vunpack.c.l.b16 %v8638
      %v9215 = vunpack.c.l.b16 %v8639
      %v9216 = vunpack.c.l.b16 %v8640
      %v9217 = vunpack.c.l.b16 %v8641
      %v9218 = vunpack.c.l.b16 %v8642
      %v9219 = vunpack.c.l.b16 %v8643
      %v9220 = vunpack.c.l.b16 %v8644
      %v9221 = vunpack.c.l.b16 %v8645
      %v9222 = vunpack.c.l.b16 %v8646
      %v9223 = vpack.c.b16 %v9192, %v9191
      %v9224 = vpack.c.b16 %v9194, %v9193
      %v9225 = vpack.c.b16 %v9196, %v9195
      %v9226 = vpack.c.b16 %v9198, %v9197
      %v9227 = vpack.c.b16 %v9200, %v9199
      %v9228 = vpack.c.b16 %v9202, %v9201
      %v9229 = vpack.c.b16 %v9204, %v9203
      %v9230 = vpack.c.b16 %v9206, %v9205
      %v9231 = vpack.c.b16 %v9208, %v9207
      %v9232 = vpack.c.b16 %v9210, %v9209
      %v9233 = vpack.c.b16 %v9212, %v9211
      %v9234 = vpack.c.b16 %v9214, %v9213
      %v9235 = vpack.c.b16 %v9216, %v9215
      %v9236 = vpack.c.b16 %v9218, %v9217
      %v9237 = vpack.c.b16 %v9220, %v9219
      %v9238 = vpack.c.b16 %v9222, %v9221
      %9239 = vrot.lane.b32.xlu0 %v9223, 12
      %v9240 = vpop.permute.xlu0 %9239
      %9241 = vrot.lane.b32.xlu0 %v9224, 12
      %v9242 = vpop.permute.xlu0 %9241
      %9243 = vrot.lane.b32.xlu0 %v9225, 12
      %v9244 = vpop.permute.xlu0 %9243
      %9245 = vrot.lane.b32.xlu0 %v9226, 12
      %v9246 = vpop.permute.xlu0 %9245
      %9247 = vrot.lane.b32.xlu0 %v9227, 12
      %v9248 = vpop.permute.xlu0 %9247
      %9249 = vrot.lane.b32.xlu0 %v9228, 12
      %v9250 = vpop.permute.xlu0 %9249
      %9251 = vrot.lane.b32.xlu0 %v9229, 12
      %v9252 = vpop.permute.xlu0 %9251
      %9253 = vrot.lane.b32.xlu0 %v9230, 12
      %v9254 = vpop.permute.xlu0 %9253
      %9255 = vrot.lane.b32.xlu0 %v9231, 12
      %v9256 = vpop.permute.xlu0 %9255
      %9257 = vrot.lane.b32.xlu0 %v9232, 12
      %v9258 = vpop.permute.xlu0 %9257
      %9259 = vrot.lane.b32.xlu0 %v9233, 12
      %v9260 = vpop.permute.xlu0 %9259
      %9261 = vrot.lane.b32.xlu0 %v9234, 12
      %v9262 = vpop.permute.xlu0 %9261
      %9263 = vrot.lane.b32.xlu0 %v9235, 12
      %v9264 = vpop.permute.xlu0 %9263
      %9265 = vrot.lane.b32.xlu0 %v9236, 12
      %v9266 = vpop.permute.xlu0 %9265
      %9267 = vrot.lane.b32.xlu0 %v9237, 12
      %v9268 = vpop.permute.xlu0 %9267
      %9269 = vrot.lane.b32.xlu0 %v9238, 12
      %v9270 = vpop.permute.xlu0 %9269
      %v9287 = vunpack.c.l.b16 %v8647
      %v9288 = vunpack.c.l.b16 %v8648
      %v9289 = vunpack.c.l.b16 %v8649
      %v9290 = vunpack.c.l.b16 %v8650
      %v9291 = vunpack.c.l.b16 %v8651
      %v9292 = vunpack.c.l.b16 %v8652
      %v9293 = vunpack.c.l.b16 %v8653
      %v9294 = vunpack.c.l.b16 %v8654
      %v9295 = vunpack.c.l.b16 %v8655
      %v9296 = vunpack.c.l.b16 %v8656
      %v9297 = vunpack.c.l.b16 %v8657
      %v9298 = vunpack.c.l.b16 %v8658
      %v9299 = vunpack.c.l.b16 %v8659
      %v9300 = vunpack.c.l.b16 %v8660
      %v9301 = vunpack.c.l.b16 %v8661
      %v9302 = vunpack.c.l.b16 %v8662
      %v9303 = vpack.c.b16 %v9287, %v9287
      %v9304 = vpack.c.b16 %v9288, %v9288
      %v9305 = vpack.c.b16 %v9289, %v9289
      %v9306 = vpack.c.b16 %v9290, %v9290
      %v9307 = vpack.c.b16 %v9291, %v9291
      %v9308 = vpack.c.b16 %v9292, %v9292
      %v9309 = vpack.c.b16 %v9293, %v9293
      %v9310 = vpack.c.b16 %v9294, %v9294
      %v9311 = vpack.c.b16 %v9295, %v9295
      %v9312 = vpack.c.b16 %v9296, %v9296
      %v9313 = vpack.c.b16 %v9297, %v9297
      %v9314 = vpack.c.b16 %v9298, %v9298
      %v9315 = vpack.c.b16 %v9299, %v9299
      %v9316 = vpack.c.b16 %v9300, %v9300
      %v9317 = vpack.c.b16 %v9301, %v9301
      %v9318 = vpack.c.b16 %v9302, %v9302
      %v9320 = vshrl.u32 %v9223, 16
      %v9322 = vshll.u32 %v9223, 16
      %v9324 = vrot.slane %v9322, 1
      %v9325 = vor.u32 %v9320, %v9324
      %v9327 = vshll.u32 %v9303, 16
      %v9329 = vrot.slane %v9327, 1
      %v9330 = vsel %vm5820, %v9325, %v9329
      %v9332 = vshrl.u32 %v9224, 16
      %v9334 = vshll.u32 %v9224, 16
      %v9336 = vrot.slane %v9334, 1
      %v9337 = vor.u32 %v9332, %v9336
      %v9339 = vshll.u32 %v9304, 16
      %v9341 = vrot.slane %v9339, 1
      %v9342 = vsel %vm5820, %v9337, %v9341
      %v9344 = vshrl.u32 %v9225, 16
      %v9346 = vshll.u32 %v9225, 16
      %v9348 = vrot.slane %v9346, 1
      %v9349 = vor.u32 %v9344, %v9348
      %v9351 = vshll.u32 %v9305, 16
      %v9353 = vrot.slane %v9351, 1
      %v9354 = vsel %vm5820, %v9349, %v9353
      %v9356 = vshrl.u32 %v9226, 16
      %v9358 = vshll.u32 %v9226, 16
      %v9360 = vrot.slane %v9358, 1
      %v9361 = vor.u32 %v9356, %v9360
      %v9363 = vshll.u32 %v9306, 16
      %v9365 = vrot.slane %v9363, 1
      %v9366 = vsel %vm5820, %v9361, %v9365
      %v9368 = vshrl.u32 %v9227, 16
      %v9370 = vshll.u32 %v9227, 16
      %v9372 = vrot.slane %v9370, 1
      %v9373 = vor.u32 %v9368, %v9372
      %v9375 = vshll.u32 %v9307, 16
      %v9377 = vrot.slane %v9375, 1
      %v9378 = vsel %vm5820, %v9373, %v9377
      %v9380 = vshrl.u32 %v9228, 16
      %v9382 = vshll.u32 %v9228, 16
      %v9384 = vrot.slane %v9382, 1
      %v9385 = vor.u32 %v9380, %v9384
      %v9387 = vshll.u32 %v9308, 16
      %v9389 = vrot.slane %v9387, 1
      %v9390 = vsel %vm5820, %v9385, %v9389
      %v9392 = vshrl.u32 %v9229, 16
      %v9394 = vshll.u32 %v9229, 16
      %v9396 = vrot.slane %v9394, 1
      %v9397 = vor.u32 %v9392, %v9396
      %v9399 = vshll.u32 %v9309, 16
      %v9401 = vrot.slane %v9399, 1
      %v9402 = vsel %vm5820, %v9397, %v9401
      %v9404 = vshrl.u32 %v9230, 16
      %v9406 = vshll.u32 %v9230, 16
      %v9408 = vrot.slane %v9406, 1
      %v9409 = vor.u32 %v9404, %v9408
      %v9411 = vshll.u32 %v9310, 16
      %v9413 = vrot.slane %v9411, 1
      %v9414 = vsel %vm5820, %v9409, %v9413
      %v9416 = vshrl.u32 %v9231, 16
      %v9418 = vshll.u32 %v9231, 16
      %v9420 = vrot.slane %v9418, 1
      %v9421 = vor.u32 %v9416, %v9420
      %v9423 = vshll.u32 %v9311, 16
      %v9425 = vrot.slane %v9423, 1
      %v9426 = vsel %vm5820, %v9421, %v9425
      %v9428 = vshrl.u32 %v9232, 16
      %v9430 = vshll.u32 %v9232, 16
      %v9432 = vrot.slane %v9430, 1
      %v9433 = vor.u32 %v9428, %v9432
      %v9435 = vshll.u32 %v9312, 16
      %v9437 = vrot.slane %v9435, 1
      %v9438 = vsel %vm5820, %v9433, %v9437
      %v9440 = vshrl.u32 %v9233, 16
      %v9442 = vshll.u32 %v9233, 16
      %v9444 = vrot.slane %v9442, 1
      %v9445 = vor.u32 %v9440, %v9444
      %v9447 = vshll.u32 %v9313, 16
      %v9449 = vrot.slane %v9447, 1
      %v9450 = vsel %vm5820, %v9445, %v9449
      %v9452 = vshrl.u32 %v9234, 16
      %v9454 = vshll.u32 %v9234, 16
      %v9456 = vrot.slane %v9454, 1
      %v9457 = vor.u32 %v9452, %v9456
      %v9459 = vshll.u32 %v9314, 16
      %v9461 = vrot.slane %v9459, 1
      %v9462 = vsel %vm5820, %v9457, %v9461
      %v9464 = vshrl.u32 %v9235, 16
      %v9466 = vshll.u32 %v9235, 16
      %v9468 = vrot.slane %v9466, 1
      %v9469 = vor.u32 %v9464, %v9468
      %v9471 = vshll.u32 %v9315, 16
      %v9473 = vrot.slane %v9471, 1
      %v9474 = vsel %vm5820, %v9469, %v9473
      %v9476 = vshrl.u32 %v9236, 16
      %v9478 = vshll.u32 %v9236, 16
      %v9480 = vrot.slane %v9478, 1
      %v9481 = vor.u32 %v9476, %v9480
      %v9483 = vshll.u32 %v9316, 16
      %v9485 = vrot.slane %v9483, 1
      %v9486 = vsel %vm5820, %v9481, %v9485
      %v9488 = vshrl.u32 %v9237, 16
      %v9490 = vshll.u32 %v9237, 16
      %v9492 = vrot.slane %v9490, 1
      %v9493 = vor.u32 %v9488, %v9492
      %v9495 = vshll.u32 %v9317, 16
      %v9497 = vrot.slane %v9495, 1
      %v9498 = vsel %vm5820, %v9493, %v9497
      %v9500 = vshrl.u32 %v9238, 16
      %v9502 = vshll.u32 %v9238, 16
      %v9504 = vrot.slane %v9502, 1
      %v9505 = vor.u32 %v9500, %v9504
      %v9507 = vshll.u32 %v9318, 16
      %v9509 = vrot.slane %v9507, 1
      %v9510 = vsel %vm5820, %v9505, %v9509
      %9511 = vrot.lane.b32.xlu0 %v9330, 16
      %v9512 = vpop.permute.xlu0 %9511
      %9513 = vrot.lane.b32.xlu0 %v9342, 16
      %v9514 = vpop.permute.xlu0 %9513
      %9515 = vrot.lane.b32.xlu0 %v9354, 16
      %v9516 = vpop.permute.xlu0 %9515
      %9517 = vrot.lane.b32.xlu0 %v9366, 16
      %v9518 = vpop.permute.xlu0 %9517
      %9519 = vrot.lane.b32.xlu0 %v9378, 16
      %v9520 = vpop.permute.xlu0 %9519
      %9521 = vrot.lane.b32.xlu0 %v9390, 16
      %v9522 = vpop.permute.xlu0 %9521
      %9523 = vrot.lane.b32.xlu0 %v9402, 16
      %v9524 = vpop.permute.xlu0 %9523
      %9525 = vrot.lane.b32.xlu0 %v9414, 16
      %v9526 = vpop.permute.xlu0 %9525
      %9527 = vrot.lane.b32.xlu0 %v9426, 16
      %v9528 = vpop.permute.xlu0 %9527
      %9529 = vrot.lane.b32.xlu0 %v9438, 16
      %v9530 = vpop.permute.xlu0 %9529
      %9531 = vrot.lane.b32.xlu0 %v9450, 16
      %v9532 = vpop.permute.xlu0 %9531
      %9533 = vrot.lane.b32.xlu0 %v9462, 16
      %v9534 = vpop.permute.xlu0 %9533
      %9535 = vrot.lane.b32.xlu0 %v9474, 16
      %v9536 = vpop.permute.xlu0 %9535
      %9537 = vrot.lane.b32.xlu0 %v9486, 16
      %v9538 = vpop.permute.xlu0 %9537
      %9539 = vrot.lane.b32.xlu0 %v9498, 16
      %v9540 = vpop.permute.xlu0 %9539
      %9541 = vrot.lane.b32.xlu0 %v9510, 16
      %v9542 = vpop.permute.xlu0 %9541
      %v9559 = vunpack.c.l.b16 %v8663
      %v9560 = vunpack.c.l.b16 %v8664
      %v9561 = vunpack.c.l.b16 %v8665
      %v9562 = vunpack.c.l.b16 %v8666
      %v9563 = vunpack.c.l.b16 %v8667
      %v9564 = vunpack.c.l.b16 %v8668
      %v9565 = vunpack.c.l.b16 %v8669
      %v9566 = vunpack.c.l.b16 %v8670
      %v9567 = vunpack.c.l.b16 %v8671
      %v9568 = vunpack.c.l.b16 %v8672
      %v9569 = vunpack.c.l.b16 %v8673
      %v9570 = vunpack.c.l.b16 %v8674
      %v9571 = vunpack.c.l.b16 %v8675
      %v9572 = vunpack.c.l.b16 %v8676
      %v9573 = vunpack.c.l.b16 %v8677
      %v9574 = vunpack.c.l.b16 %v8678
      %v9575 = vpack.c.b16 %v9192, %v9559
      %v9576 = vpack.c.b16 %v9194, %v9560
      %v9577 = vpack.c.b16 %v9196, %v9561
      %v9578 = vpack.c.b16 %v9198, %v9562
      %v9579 = vpack.c.b16 %v9200, %v9563
      %v9580 = vpack.c.b16 %v9202, %v9564
      %v9581 = vpack.c.b16 %v9204, %v9565
      %v9582 = vpack.c.b16 %v9206, %v9566
      %v9583 = vpack.c.b16 %v9208, %v9567
      %v9584 = vpack.c.b16 %v9210, %v9568
      %v9585 = vpack.c.b16 %v9212, %v9569
      %v9586 = vpack.c.b16 %v9214, %v9570
      %v9587 = vpack.c.b16 %v9216, %v9571
      %v9588 = vpack.c.b16 %v9218, %v9572
      %v9589 = vpack.c.b16 %v9220, %v9573
      %v9590 = vpack.c.b16 %v9222, %v9574
      %v9591 = vrot.slane %v9575, 1
      %v9592 = vrot.slane %v9303, 1
      %v9593 = vsel %vm6093, %v9591, %v9592
      %v9594 = vrot.slane %v9576, 1
      %v9595 = vrot.slane %v9304, 1
      %v9596 = vsel %vm6093, %v9594, %v9595
      %v9597 = vrot.slane %v9577, 1
      %v9598 = vrot.slane %v9305, 1
      %v9599 = vsel %vm6093, %v9597, %v9598
      %v9600 = vrot.slane %v9578, 1
      %v9601 = vrot.slane %v9306, 1
      %v9602 = vsel %vm6093, %v9600, %v9601
      %v9603 = vrot.slane %v9579, 1
      %v9604 = vrot.slane %v9307, 1
      %v9605 = vsel %vm6093, %v9603, %v9604
      %v9606 = vrot.slane %v9580, 1
      %v9607 = vrot.slane %v9308, 1
      %v9608 = vsel %vm6093, %v9606, %v9607
      %v9609 = vrot.slane %v9581, 1
      %v9610 = vrot.slane %v9309, 1
      %v9611 = vsel %vm6093, %v9609, %v9610
      %v9612 = vrot.slane %v9582, 1
      %v9613 = vrot.slane %v9310, 1
      %v9614 = vsel %vm6093, %v9612, %v9613
      %v9615 = vrot.slane %v9583, 1
      %v9616 = vrot.slane %v9311, 1
      %v9617 = vsel %vm6093, %v9615, %v9616
      %v9618 = vrot.slane %v9584, 1
      %v9619 = vrot.slane %v9312, 1
      %v9620 = vsel %vm6093, %v9618, %v9619
      %v9621 = vrot.slane %v9585, 1
      %v9622 = vrot.slane %v9313, 1
      %v9623 = vsel %vm6093, %v9621, %v9622
      %v9624 = vrot.slane %v9586, 1
      %v9625 = vrot.slane %v9314, 1
      %v9626 = vsel %vm6093, %v9624, %v9625
      %v9627 = vrot.slane %v9587, 1
      %v9628 = vrot.slane %v9315, 1
      %v9629 = vsel %vm6093, %v9627, %v9628
      %v9630 = vrot.slane %v9588, 1
      %v9631 = vrot.slane %v9316, 1
      %v9632 = vsel %vm6093, %v9630, %v9631
      %v9633 = vrot.slane %v9589, 1
      %v9634 = vrot.slane %v9317, 1
      %v9635 = vsel %vm6093, %v9633, %v9634
      %v9636 = vrot.slane %v9590, 1
      %v9637 = vrot.slane %v9318, 1
      %v9638 = vsel %vm6093, %v9636, %v9637
      %9639 = vrot.lane.b32.xlu0 %v9593, 20
      %v9640 = vpop.permute.xlu0 %9639
      %9641 = vrot.lane.b32.xlu0 %v9596, 20
      %v9642 = vpop.permute.xlu0 %9641
      %9643 = vrot.lane.b32.xlu0 %v9599, 20
      %v9644 = vpop.permute.xlu0 %9643
      %9645 = vrot.lane.b32.xlu0 %v9602, 20
      %v9646 = vpop.permute.xlu0 %9645
      %9647 = vrot.lane.b32.xlu0 %v9605, 20
      %v9648 = vpop.permute.xlu0 %9647
      %9649 = vrot.lane.b32.xlu0 %v9608, 20
      %v9650 = vpop.permute.xlu0 %9649
      %9651 = vrot.lane.b32.xlu0 %v9611, 20
      %v9652 = vpop.permute.xlu0 %9651
      %9653 = vrot.lane.b32.xlu0 %v9614, 20
      %v9654 = vpop.permute.xlu0 %9653
      %9655 = vrot.lane.b32.xlu0 %v9617, 20
      %v9656 = vpop.permute.xlu0 %9655
      %9657 = vrot.lane.b32.xlu0 %v9620, 20
      %v9658 = vpop.permute.xlu0 %9657
      %9659 = vrot.lane.b32.xlu0 %v9623, 20
      %v9660 = vpop.permute.xlu0 %9659
      %9661 = vrot.lane.b32.xlu0 %v9626, 20
      %v9662 = vpop.permute.xlu0 %9661
      %9663 = vrot.lane.b32.xlu0 %v9629, 20
      %v9664 = vpop.permute.xlu0 %9663
      %9665 = vrot.lane.b32.xlu0 %v9632, 20
      %v9666 = vpop.permute.xlu0 %9665
      %9667 = vrot.lane.b32.xlu0 %v9635, 20
      %v9668 = vpop.permute.xlu0 %9667
      %9669 = vrot.lane.b32.xlu0 %v9638, 20
      %v9670 = vpop.permute.xlu0 %9669
      %v9672 = vsel %vm720, %v8743, %v9000
      %v9674 = vsel %vm720, %v8744, %v9002
      %v9676 = vsel %vm720, %v8745, %v9004
      %v9678 = vsel %vm720, %v8746, %v9006
      %v9680 = vsel %vm720, %v8747, %v9008
      %v9682 = vsel %vm720, %v8748, %v9010
      %v9684 = vsel %vm720, %v8749, %v9012
      %v9686 = vsel %vm720, %v8750, %v9014
      %v9688 = vsel %vm720, %v8751, %v9016
      %v9690 = vsel %vm720, %v8752, %v9018
      %v9692 = vsel %vm720, %v8753, %v9020
      %v9694 = vsel %vm720, %v8754, %v9022
      %v9696 = vsel %vm720, %v8755, %v9024
      %v9698 = vsel %vm720, %v8756, %v9026
      %v9700 = vsel %vm720, %v8757, %v9028
      %v9702 = vsel %vm720, %v8758, %v9030
      %v9704 = vsel %vm6718, %v9672, %v9128
      %v9706 = vsel %vm6718, %v9674, %v9130
      %v9708 = vsel %vm6718, %v9676, %v9132
      %v9710 = vsel %vm6718, %v9678, %v9134
      %v9712 = vsel %vm6718, %v9680, %v9136
      %v9714 = vsel %vm6718, %v9682, %v9138
      %v9716 = vsel %vm6718, %v9684, %v9140
      %v9718 = vsel %vm6718, %v9686, %v9142
      %v9720 = vsel %vm6718, %v9688, %v9144
      %v9722 = vsel %vm6718, %v9690, %v9146
      %v9724 = vsel %vm6718, %v9692, %v9148
      %v9726 = vsel %vm6718, %v9694, %v9150
      %v9728 = vsel %vm6718, %v9696, %v9152
      %v9730 = vsel %vm6718, %v9698, %v9154
      %v9732 = vsel %vm6718, %v9700, %v9156
      %v9734 = vsel %vm6718, %v9702, %v9158
      %v9736 = vsel %vm6751, %v9704, %v9240
      %v9738 = vsel %vm6751, %v9706, %v9242
      %v9740 = vsel %vm6751, %v9708, %v9244
      %v9742 = vsel %vm6751, %v9710, %v9246
      %v9744 = vsel %vm6751, %v9712, %v9248
      %v9746 = vsel %vm6751, %v9714, %v9250
      %v9748 = vsel %vm6751, %v9716, %v9252
      %v9750 = vsel %vm6751, %v9718, %v9254
      %v9752 = vsel %vm6751, %v9720, %v9256
      %v9754 = vsel %vm6751, %v9722, %v9258
      %v9756 = vsel %vm6751, %v9724, %v9260
      %v9758 = vsel %vm6751, %v9726, %v9262
      %v9760 = vsel %vm6751, %v9728, %v9264
      %v9762 = vsel %vm6751, %v9730, %v9266
      %v9764 = vsel %vm6751, %v9732, %v9268
      %v9766 = vsel %vm6751, %v9734, %v9270
      %v9768 = vsel %vm6784, %v9736, %v9512
      %v9770 = vsel %vm6784, %v9738, %v9514
      %v9772 = vsel %vm6784, %v9740, %v9516
      %v9774 = vsel %vm6784, %v9742, %v9518
      %v9776 = vsel %vm6784, %v9744, %v9520
      %v9778 = vsel %vm6784, %v9746, %v9522
      %v9780 = vsel %vm6784, %v9748, %v9524
      %v9782 = vsel %vm6784, %v9750, %v9526
      %v9784 = vsel %vm6784, %v9752, %v9528
      %v9786 = vsel %vm6784, %v9754, %v9530
      %v9788 = vsel %vm6784, %v9756, %v9532
      %v9790 = vsel %vm6784, %v9758, %v9534
      %v9792 = vsel %vm6784, %v9760, %v9536
      %v9794 = vsel %vm6784, %v9762, %v9538
      %v9796 = vsel %vm6784, %v9764, %v9540
      %v9798 = vsel %vm6784, %v9766, %v9542
      %v9800 = vsel %vm6817, %v9768, %v9640
      %v9802 = vsel %vm6817, %v9770, %v9642
      %v9804 = vsel %vm6817, %v9772, %v9644
      %v9806 = vsel %vm6817, %v9774, %v9646
      %v9808 = vsel %vm6817, %v9776, %v9648
      %v9810 = vsel %vm6817, %v9778, %v9650
      %v9812 = vsel %vm6817, %v9780, %v9652
      %v9814 = vsel %vm6817, %v9782, %v9654
      %v9816 = vsel %vm6817, %v9784, %v9656
      %v9818 = vsel %vm6817, %v9786, %v9658
      %v9820 = vsel %vm6817, %v9788, %v9660
      %v9822 = vsel %vm6817, %v9790, %v9662
      %v9824 = vsel %vm6817, %v9792, %v9664
      %v9826 = vsel %vm6817, %v9794, %v9666
      %v9828 = vsel %vm6817, %v9796, %v9668
      %v9830 = vsel %vm6817, %v9798, %v9670
      %s9831 = scalar_lea.vmem %s4, 24
      %v9832 = vld [vmem:[%s9831] sm:$0xf]
      %v9833 = vld [vmem:[%s9831 + $0x4] sm:$0xf]
      %v9834 = vld [vmem:[%s9831 + $0x8] sm:$0xf]
      %v9838 = vunpack.c.l.b16 %v9832
      %v9839 = vunpack.c.l.b16 %v9833
      %v9840 = vunpack.c.l.b16 %v9834
      %v9841 = vpack.c.b16 %v9839, %v9838
      %v9842 = vpack.c.b16 %v9840, %v9840
      %v9844 = vsel %vm8146, %v9800, 0
      %v9846 = vsel %vm8146, %v9802, 0
      %v9848 = vsel %vm8146, %v9804, 0
      %v9850 = vsel %vm8146, %v9806, 0
      %v9852 = vsel %vm8146, %v9808, 0
      %v9854 = vsel %vm8146, %v9810, 0
      %v9856 = vsel %vm8146, %v9812, 0
      %v9858 = vsel %vm8146, %v9814, 0
      %v9860 = vsel %vm8146, %v9816, 0
      %v9862 = vsel %vm8146, %v9818, 0
      %v9864 = vsel %vm8146, %v9820, 0
      %v9866 = vsel %vm8146, %v9822, 0
      %v9868 = vsel %vm8146, %v9824, 0
      %v9870 = vsel %vm8146, %v9826, 0
      %v9872 = vsel %vm8146, %v9828, 0
      %v9874 = vsel %vm8146, %v9830, 0
      %v9877 = vsel %vm8179, %v9842, 0
      %9879 = vmatprep.subr.bf16.mxu0 0
      %9880 = vmatpush1.bf16.msra.mxu0 %v9841
      %9881 = vmatprep.subr.bf16.mxu0 0
      %9882 = vmatpush1.bf16.msra.mxu0 %v9877
      %9883 = vmatprep.subr.bf16.mxu0 0
      %9884 = vmatpush1.bf16.msra.mxu0 0
      %9885 = vmatprep.subr.bf16.mxu0 0
      %9886 = vmatpush1.bf16.msra.mxu0 0
      %9887 = vmatprep.subr.bf16.mxu0 0
      %9888 = vmatpush1.bf16.msra.mxu0 0
      %9889 = vmatprep.subr.bf16.mxu0 0
      %9890 = vmatpush1.bf16.msra.mxu0 0
      %9891 = vmatprep.subr.bf16.mxu0 0
      %9892 = vmatpush1.bf16.msra.mxu0 0
      %9893 = vmatprep.subr.bf16.mxu0 0
      %9894 = vmatpush1.bf16.msra.mxu0 0
      %9895 = vmatprep.subr.bf16.mxu0 0
      %9896 = vmatpush1.bf16.msra.mxu0 0
      %9897 = vmatprep.subr.bf16.mxu0 0
      %9898 = vmatpush1.bf16.msra.mxu0 0
      %9899 = vmatprep.subr.bf16.mxu0 0
      %9900 = vmatpush1.bf16.msra.mxu0 0
      %9901 = vmatprep.subr.bf16.mxu0 0
      %9902 = vmatpush1.bf16.msra.mxu0 0
      %9903 = vmatprep.subr.bf16.mxu0 0
      %9904 = vmatpush1.bf16.msra.mxu0 0
      %9905 = vmatprep.subr.bf16.mxu0 0
      %9906 = vmatpush1.bf16.msra.mxu0 0
      %9907 = vmatprep.subr.bf16.mxu0 0
      %9908 = vmatpush1.bf16.msra.mxu0 0
      %9909 = vmatprep.subr.bf16.mxu0 0
      %9910 = vmatpush1.bf16.msra.mxu0 0
      %9911 = vmatprep.mubr.bf16.mxu0 0
      %9912 = vmatmul.mubr.bf16.gmra.mrb[0].mxu0 %v9844
      %v9913 = vpop.f32.mrb[0].mxu0
      %v9914 = vadd.f32 0.0, %v9913
      %v9915 = vpop.f32.mrb[0].mxu0
      %v9916 = vpop.f32.mrb[0].mxu0
      %v9917 = vadd.f32 0.0, %v9916
      %v9918 = vpop.f32.mrb[0].mxu0
      %9919 = vmatprep.mubr.bf16.mxu0 0
      %9920 = vmatmul.mubr.bf16.gmra.mrb[0].mxu0 %v9846
      %v9921 = vpop.f32.mrb[0].mxu0
      %v9922 = vadd.f32 0.0, %v9921
      %v9923 = vpop.f32.mrb[0].mxu0
      %v9924 = vpop.f32.mrb[0].mxu0
      %v9925 = vadd.f32 0.0, %v9924
      %v9926 = vpop.f32.mrb[0].mxu0
      %9927 = vmatprep.mubr.bf16.mxu0 0
      %9928 = vmatmul.mubr.bf16.gmra.mrb[0].mxu0 %v9848
      %v9929 = vpop.f32.mrb[0].mxu0
      %v9930 = vadd.f32 0.0, %v9929
      %v9931 = vpop.f32.mrb[0].mxu0
      %v9932 = vpop.f32.mrb[0].mxu0
      %v9933 = vadd.f32 0.0, %v9932
      %v9934 = vpop.f32.mrb[0].mxu0
      %9935 = vmatprep.mubr.bf16.mxu0 0
      %9936 = vmatmul.mubr.bf16.gmra.mrb[0].mxu0 %v9850
      %v9937 = vpop.f32.mrb[0].mxu0
      %v9938 = vadd.f32 0.0, %v9937
      %v9939 = vpop.f32.mrb[0].mxu0
      %v9940 = vpop.f32.mrb[0].mxu0
      %v9941 = vadd.f32 0.0, %v9940
      %v9942 = vpop.f32.mrb[0].mxu0
      %9943 = vmatprep.mubr.bf16.mxu0 0
      %9944 = vmatmul.mubr.bf16.gmra.mrb[0].mxu0 %v9852
      %v9945 = vpop.f32.mrb[0].mxu0
      %v9946 = vadd.f32 0.0, %v9945
      %v9947 = vpop.f32.mrb[0].mxu0
      %v9948 = vpop.f32.mrb[0].mxu0
      %v9949 = vadd.f32 0.0, %v9948
      %v9950 = vpop.f32.mrb[0].mxu0
      %9951 = vmatprep.mubr.bf16.mxu0 0
      %9952 = vmatmul.mubr.bf16.gmra.mrb[0].mxu0 %v9854
      %v9953 = vpop.f32.mrb[0].mxu0
      %v9954 = vadd.f32 0.0, %v9953
      %v9955 = vpop.f32.mrb[0].mxu0
      %v9956 = vpop.f32.mrb[0].mxu0
      %v9957 = vadd.f32 0.0, %v9956
      %v9958 = vpop.f32.mrb[0].mxu0
      %9959 = vmatprep.mubr.bf16.mxu0 0
      %9960 = vmatmul.mubr.bf16.gmra.mrb[0].mxu0 %v9856
      %v9961 = vpop.f32.mrb[0].mxu0
      %v9962 = vadd.f32 0.0, %v9961
      %v9963 = vpop.f32.mrb[0].mxu0
      %v9964 = vpop.f32.mrb[0].mxu0
      %v9965 = vadd.f32 0.0, %v9964
      %v9966 = vpop.f32.mrb[0].mxu0
      %9967 = vmatprep.mubr.bf16.mxu0 0
      %9968 = vmatmul.mubr.bf16.gmra.mrb[0].mxu0 %v9858
      %v9969 = vpop.f32.mrb[0].mxu0
      %v9970 = vadd.f32 0.0, %v9969
      %v9971 = vpop.f32.mrb[0].mxu0
      %v9972 = vpop.f32.mrb[0].mxu0
      %v9973 = vadd.f32 0.0, %v9972
      %v9974 = vpop.f32.mrb[0].mxu0
      %9975 = vmatprep.mubr.bf16.mxu0 0
      %9976 = vmatmul.mubr.bf16.gmra.mrb[0].mxu0 %v9860
      %v9977 = vpop.f32.mrb[0].mxu0
      %v9978 = vadd.f32 0.0, %v9977
      %v9979 = vpop.f32.mrb[0].mxu0
      %v9980 = vpop.f32.mrb[0].mxu0
      %v9981 = vadd.f32 0.0, %v9980
      %v9982 = vpop.f32.mrb[0].mxu0
      %9983 = vmatprep.mubr.bf16.mxu0 0
      %9984 = vmatmul.mubr.bf16.gmra.mrb[0].mxu0 %v9862
      %v9985 = vpop.f32.mrb[0].mxu0
      %v9986 = vadd.f32 0.0, %v9985
      %v9987 = vpop.f32.mrb[0].mxu0
      %v9988 = vpop.f32.mrb[0].mxu0
      %v9989 = vadd.f32 0.0, %v9988
      %v9990 = vpop.f32.mrb[0].mxu0
      %9991 = vmatprep.mubr.bf16.mxu0 0
      %9992 = vmatmul.mubr.bf16.gmra.mrb[0].mxu0 %v9864
      %v9993 = vpop.f32.mrb[0].mxu0
      %v9994 = vadd.f32 0.0, %v9993
      %v9995 = vpop.f32.mrb[0].mxu0
      %v9996 = vpop.f32.mrb[0].mxu0
      %v9997 = vadd.f32 0.0, %v9996
      %v9998 = vpop.f32.mrb[0].mxu0
      %9999 = vmatprep.mubr.bf16.mxu0 0
      %10000 = vmatmul.mubr.bf16.gmra.mrb[0].mxu0 %v9866
      %v10001 = vpop.f32.mrb[0].mxu0
      %v10002 = vadd.f32 0.0, %v10001
      %v10003 = vpop.f32.mrb[0].mxu0
      %v10004 = vpop.f32.mrb[0].mxu0
      %v10005 = vadd.f32 0.0, %v10004
      %v10006 = vpop.f32.mrb[0].mxu0
      %10007 = vmatprep.mubr.bf16.mxu0 0
      %10008 = vmatmul.mubr.bf16.gmra.mrb[0].mxu0 %v9868
      %v10009 = vpop.f32.mrb[0].mxu0
      %v10010 = vadd.f32 0.0, %v10009
      %v10011 = vpop.f32.mrb[0].mxu0
      %v10012 = vpop.f32.mrb[0].mxu0
      %v10013 = vadd.f32 0.0, %v10012
      %v10014 = vpop.f32.mrb[0].mxu0
      %10015 = vmatprep.mubr.bf16.mxu0 0
      %10016 = vmatmul.mubr.bf16.gmra.mrb[0].mxu0 %v9870
      %v10017 = vpop.f32.mrb[0].mxu0
      %v10018 = vadd.f32 0.0, %v10017
      %v10019 = vpop.f32.mrb[0].mxu0
      %v10020 = vpop.f32.mrb[0].mxu0
      %v10021 = vadd.f32 0.0, %v10020
      %v10022 = vpop.f32.mrb[0].mxu0
      %10023 = vmatprep.mubr.bf16.mxu0 0
      %10024 = vmatmul.mubr.bf16.gmra.mrb[0].mxu0 %v9872
      %v10025 = vpop.f32.mrb[0].mxu0
      %v10026 = vadd.f32 0.0, %v10025
      %v10027 = vpop.f32.mrb[0].mxu0
      %v10028 = vpop.f32.mrb[0].mxu0
      %v10029 = vadd.f32 0.0, %v10028
      %v10030 = vpop.f32.mrb[0].mxu0
      %10031 = vmatprep.mubr.bf16.mxu0 0
      %10032 = vmatmul.mubr.bf16.gmra.mrb[0].mxu0 %v9874
      %v10033 = vpop.f32.mrb[0].mxu0
      %v10034 = vadd.f32 0.0, %v10033
      %v10035 = vpop.f32.mrb[0].mxu0
      %v10036 = vpop.f32.mrb[0].mxu0
      %v10037 = vadd.f32 0.0, %v10036
      %v10038 = vpop.f32.mrb[0].mxu0
      %10039 = vdwg.mxu0
      %v10040 = vadd.f32 %v8423, %v9914
      %v10041 = vadd.f32 %v8426, %v9917
      %v10042 = vadd.f32 %v8431, %v9922
      %v10043 = vadd.f32 %v8434, %v9925
      %v10044 = vadd.f32 %v8439, %v9930
      %v10045 = vadd.f32 %v8442, %v9933
      %v10046 = vadd.f32 %v8447, %v9938
      %v10047 = vadd.f32 %v8450, %v9941
      %v10048 = vadd.f32 %v8455, %v9946
      %v10049 = vadd.f32 %v8458, %v9949
      %v10050 = vadd.f32 %v8463, %v9954
      %v10051 = vadd.f32 %v8466, %v9957
      %v10052 = vadd.f32 %v8471, %v9962
      %v10053 = vadd.f32 %v8474, %v9965
      %v10054 = vadd.f32 %v8479, %v9970
      %v10055 = vadd.f32 %v8482, %v9973
      %v10056 = vadd.f32 %v8487, %v9978
      %v10057 = vadd.f32 %v8490, %v9981
      %v10058 = vadd.f32 %v8495, %v9986
      %v10059 = vadd.f32 %v8498, %v9989
      %v10060 = vadd.f32 %v8503, %v9994
      %v10061 = vadd.f32 %v8506, %v9997
      %v10062 = vadd.f32 %v8511, %v10002
      %v10063 = vadd.f32 %v8514, %v10005
      %v10064 = vadd.f32 %v8519, %v10010
      %v10065 = vadd.f32 %v8522, %v10013
      %v10066 = vadd.f32 %v8527, %v10018
      %v10067 = vadd.f32 %v8530, %v10021
      %v10068 = vadd.f32 %v8535, %v10026
      %v10069 = vadd.f32 %v8538, %v10029
      %v10070 = vadd.f32 %v8543, %v10034
      %v10071 = vadd.f32 %v8546, %v10037
      %v10072 = vld [vmem:[%s5] sm:$0x1]
      %v10073 = vlaneseq
      %v10074 = vshrl.u32 %v10073, 7
      %v10075 = vsub.s32 0, %v10074
      %v10076 = vrot.slane %v10072, %v10075
      %v10077 = vmul.f32 %v10040, %v10076
      %v10078 = vmul.f32 %v10041, %v10076
      %v10079 = vmul.f32 %v10042, %v10076
      %v10080 = vmul.f32 %v10043, %v10076
      %v10081 = vmul.f32 %v10044, %v10076
      %v10082 = vmul.f32 %v10045, %v10076
      %v10083 = vmul.f32 %v10046, %v10076
      %v10084 = vmul.f32 %v10047, %v10076
      %v10085 = vmul.f32 %v10048, %v10076
      %v10086 = vmul.f32 %v10049, %v10076
      %v10087 = vmul.f32 %v10050, %v10076
      %v10088 = vmul.f32 %v10051, %v10076
      %v10089 = vmul.f32 %v10052, %v10076
      %v10090 = vmul.f32 %v10053, %v10076
      %v10091 = vmul.f32 %v10054, %v10076
      %v10092 = vmul.f32 %v10055, %v10076
      %v10093 = vmul.f32 %v10056, %v10076
      %v10094 = vmul.f32 %v10057, %v10076
      %v10095 = vmul.f32 %v10058, %v10076
      %v10096 = vmul.f32 %v10059, %v10076
      %v10097 = vmul.f32 %v10060, %v10076
      %v10098 = vmul.f32 %v10061, %v10076
      %v10099 = vmul.f32 %v10062, %v10076
      %v10100 = vmul.f32 %v10063, %v10076
      %v10101 = vmul.f32 %v10064, %v10076
      %v10102 = vmul.f32 %v10065, %v10076
      %v10103 = vmul.f32 %v10066, %v10076
      %v10104 = vmul.f32 %v10067, %v10076
      %v10105 = vmul.f32 %v10068, %v10076
      %v10106 = vmul.f32 %v10069, %v10076
      %v10107 = vmul.f32 %v10070, %v10076
      %v10108 = vmul.f32 %v10071, %v10076
      %v10109 = vld [vmem:[%s5 + $0x1] sm:$0x1]
      %v10110 = vlaneseq
      %v10111 = vshrl.u32 %v10110, 7
      %v10112 = vsub.s32 0, %v10111
      %v10113 = vrot.slane %v10109, %v10112
      %v10114 = vadd.f32 %v10077, %v10113
      %v10115 = vadd.f32 %v10078, %v10113
      %v10116 = vadd.f32 %v10079, %v10113
      %v10117 = vadd.f32 %v10080, %v10113
      %v10118 = vadd.f32 %v10081, %v10113
      %v10119 = vadd.f32 %v10082, %v10113
      %v10120 = vadd.f32 %v10083, %v10113
      %v10121 = vadd.f32 %v10084, %v10113
      %v10122 = vadd.f32 %v10085, %v10113
      %v10123 = vadd.f32 %v10086, %v10113
      %v10124 = vadd.f32 %v10087, %v10113
      %v10125 = vadd.f32 %v10088, %v10113
      %v10126 = vadd.f32 %v10089, %v10113
      %v10127 = vadd.f32 %v10090, %v10113
      %v10128 = vadd.f32 %v10091, %v10113
      %v10129 = vadd.f32 %v10092, %v10113
      %v10130 = vadd.f32 %v10093, %v10113
      %v10131 = vadd.f32 %v10094, %v10113
      %v10132 = vadd.f32 %v10095, %v10113
      %v10133 = vadd.f32 %v10096, %v10113
      %v10134 = vadd.f32 %v10097, %v10113
      %v10135 = vadd.f32 %v10098, %v10113
      %v10136 = vadd.f32 %v10099, %v10113
      %v10137 = vadd.f32 %v10100, %v10113
      %v10138 = vadd.f32 %v10101, %v10113
      %v10139 = vadd.f32 %v10102, %v10113
      %v10140 = vadd.f32 %v10103, %v10113
      %v10141 = vadd.f32 %v10104, %v10113
      %v10142 = vadd.f32 %v10105, %v10113
      %v10143 = vadd.f32 %v10106, %v10113
      %v10144 = vadd.f32 %v10107, %v10113
      %v10145 = vadd.f32 %v10108, %v10113
      %v10146 = vmax.f32 %v10114, 0.0
      %v10147 = vmax.f32 %v10115, 0.0
      %v10148 = vmax.f32 %v10116, 0.0
      %v10149 = vmax.f32 %v10117, 0.0
      %v10150 = vmax.f32 %v10118, 0.0
      %v10151 = vmax.f32 %v10119, 0.0
      %v10152 = vmax.f32 %v10120, 0.0
      %v10153 = vmax.f32 %v10121, 0.0
      %v10154 = vmax.f32 %v10122, 0.0
      %v10155 = vmax.f32 %v10123, 0.0
      %v10156 = vmax.f32 %v10124, 0.0
      %v10157 = vmax.f32 %v10125, 0.0
      %v10158 = vmax.f32 %v10126, 0.0
      %v10159 = vmax.f32 %v10127, 0.0
      %v10160 = vmax.f32 %v10128, 0.0
      %v10161 = vmax.f32 %v10129, 0.0
      %v10162 = vmax.f32 %v10130, 0.0
      %v10163 = vmax.f32 %v10131, 0.0
      %v10164 = vmax.f32 %v10132, 0.0
      %v10165 = vmax.f32 %v10133, 0.0
      %v10166 = vmax.f32 %v10134, 0.0
      %v10167 = vmax.f32 %v10135, 0.0
      %v10168 = vmax.f32 %v10136, 0.0
      %v10169 = vmax.f32 %v10137, 0.0
      %v10170 = vmax.f32 %v10138, 0.0
      %v10171 = vmax.f32 %v10139, 0.0
      %v10172 = vmax.f32 %v10140, 0.0
      %v10173 = vmax.f32 %v10141, 0.0
      %v10174 = vmax.f32 %v10142, 0.0
      %v10175 = vmax.f32 %v10143, 0.0
      %v10176 = vmax.f32 %v10144, 0.0
      %v10177 = vmax.f32 %v10145, 0.0
      %v10178 = vpack.c.bf16 %v10147, %v10146
      %v10179 = vpack.c.bf16 %v10149, %v10148
      %v10180 = vpack.c.bf16 %v10151, %v10150
      %v10181 = vpack.c.bf16 %v10153, %v10152
      %v10182 = vpack.c.bf16 %v10155, %v10154
      %v10183 = vpack.c.bf16 %v10157, %v10156
      %v10184 = vpack.c.bf16 %v10159, %v10158
      %v10185 = vpack.c.bf16 %v10161, %v10160
      %v10186 = vpack.c.bf16 %v10163, %v10162
      %v10187 = vpack.c.bf16 %v10165, %v10164
      %v10188 = vpack.c.bf16 %v10167, %v10166
      %v10189 = vpack.c.bf16 %v10169, %v10168
      %v10190 = vpack.c.bf16 %v10171, %v10170
      %v10191 = vpack.c.bf16 %v10173, %v10172
      %v10192 = vpack.c.bf16 %v10175, %v10174
      %v10193 = vpack.c.bf16 %v10177, %v10176
      %v10210 = vunpack.c.l.b16 %v10178
      %v10211 = vunpack.c.h.b16 %v10178
      %v10212 = vunpack.c.l.b16 %v10179
      %v10213 = vunpack.c.h.b16 %v10179
      %v10214 = vunpack.c.l.b16 %v10180
      %v10215 = vunpack.c.h.b16 %v10180
      %v10216 = vunpack.c.l.b16 %v10181
      %v10217 = vunpack.c.h.b16 %v10181
      %v10218 = vunpack.c.l.b16 %v10182
      %v10219 = vunpack.c.h.b16 %v10182
      %v10220 = vunpack.c.l.b16 %v10183
      %v10221 = vunpack.c.h.b16 %v10183
      %v10222 = vunpack.c.l.b16 %v10184
      %v10223 = vunpack.c.h.b16 %v10184
      %v10224 = vunpack.c.l.b16 %v10185
      %v10225 = vunpack.c.h.b16 %v10185
      %v10226 = vunpack.c.l.b16 %v10186
      %v10227 = vunpack.c.h.b16 %v10186
      %v10228 = vunpack.c.l.b16 %v10187
      %v10229 = vunpack.c.h.b16 %v10187
      %v10230 = vunpack.c.l.b16 %v10188
      %v10231 = vunpack.c.h.b16 %v10188
      %v10232 = vunpack.c.l.b16 %v10189
      %v10233 = vunpack.c.h.b16 %v10189
      %v10234 = vunpack.c.l.b16 %v10190
      %v10235 = vunpack.c.h.b16 %v10190
      %v10236 = vunpack.c.l.b16 %v10191
      %v10237 = vunpack.c.h.b16 %v10191
      %v10238 = vunpack.c.l.b16 %v10192
      %v10239 = vunpack.c.h.b16 %v10192
      %v10240 = vunpack.c.l.b16 %v10193
      %v10241 = vunpack.c.h.b16 %v10193
      %v10242 = vpack.c.b16 %v10210, %v10210
      %v10243 = vpack.c.b16 %v10211, %v10211
      %v10244 = vpack.c.b16 %v10212, %v10212
      %v10245 = vpack.c.b16 %v10213, %v10213
      %v10246 = vpack.c.b16 %v10214, %v10214
      %v10247 = vpack.c.b16 %v10215, %v10215
      %v10248 = vpack.c.b16 %v10216, %v10216
      %v10249 = vpack.c.b16 %v10217, %v10217
      %v10250 = vpack.c.b16 %v10218, %v10218
      %v10251 = vpack.c.b16 %v10219, %v10219
      %v10252 = vpack.c.b16 %v10220, %v10220
      %v10253 = vpack.c.b16 %v10221, %v10221
      %v10254 = vpack.c.b16 %v10222, %v10222
      %v10255 = vpack.c.b16 %v10223, %v10223
      %v10256 = vpack.c.b16 %v10224, %v10224
      %v10257 = vpack.c.b16 %v10225, %v10225
      %v10258 = vpack.c.b16 %v10226, %v10226
      %v10259 = vpack.c.b16 %v10227, %v10227
      %v10260 = vpack.c.b16 %v10228, %v10228
      %v10261 = vpack.c.b16 %v10229, %v10229
      %v10262 = vpack.c.b16 %v10230, %v10230
      %v10263 = vpack.c.b16 %v10231, %v10231
      %v10264 = vpack.c.b16 %v10232, %v10232
      %v10265 = vpack.c.b16 %v10233, %v10233
      %v10266 = vpack.c.b16 %v10234, %v10234
      %v10267 = vpack.c.b16 %v10235, %v10235
      %v10268 = vpack.c.b16 %v10236, %v10236
      %v10269 = vpack.c.b16 %v10237, %v10237
      %v10270 = vpack.c.b16 %v10238, %v10238
      %v10271 = vpack.c.b16 %v10239, %v10239
      %v10272 = vpack.c.b16 %v10240, %v10240
      %v10273 = vpack.c.b16 %v10241, %v10241
      %v10275 = vshrl.u32 %v10242, 16
      %v10277 = vrot.slane %v10275, 7
      %v10278 = vshll.u32 %v10242, 16
      %v10280 = vor.u32 %v10277, %v10278
      %v10281 = vrot.slane %v10277, 4
      %v10283 = vshrl.u32 %v10243, 16
      %v10285 = vrot.slane %v10283, 7
      %v10286 = vshll.u32 %v10243, 16
      %v10288 = vor.u32 %v10285, %v10286
      %v10289 = vsel %vm3799, %v10281, %v10288
      %v10290 = vrot.slane %v10285, 4
      %v10292 = vshrl.u32 %v10244, 16
      %v10294 = vrot.slane %v10292, 7
      %v10295 = vshll.u32 %v10244, 16
      %v10297 = vor.u32 %v10294, %v10295
      %v10298 = vrot.slane %v10294, 4
      %v10300 = vshrl.u32 %v10245, 16
      %v10302 = vrot.slane %v10300, 7
      %v10303 = vshll.u32 %v10245, 16
      %v10305 = vor.u32 %v10302, %v10303
      %v10306 = vsel %vm3799, %v10298, %v10305
      %v10307 = vrot.slane %v10302, 4
      %v10309 = vshrl.u32 %v10246, 16
      %v10311 = vrot.slane %v10309, 7
      %v10312 = vshll.u32 %v10246, 16
      %v10314 = vor.u32 %v10311, %v10312
      %v10315 = vrot.slane %v10311, 4
      %v10317 = vshrl.u32 %v10247, 16
      %v10319 = vrot.slane %v10317, 7
      %v10320 = vshll.u32 %v10247, 16
      %v10322 = vor.u32 %v10319, %v10320
      %v10323 = vsel %vm3799, %v10315, %v10322
      %v10324 = vrot.slane %v10319, 4
      %v10326 = vshrl.u32 %v10248, 16
      %v10328 = vrot.slane %v10326, 7
      %v10329 = vshll.u32 %v10248, 16
      %v10331 = vor.u32 %v10328, %v10329
      %v10332 = vrot.slane %v10328, 4
      %v10334 = vshrl.u32 %v10249, 16
      %v10336 = vrot.slane %v10334, 7
      %v10337 = vshll.u32 %v10249, 16
      %v10339 = vor.u32 %v10336, %v10337
      %v10340 = vsel %vm3799, %v10332, %v10339
      %v10341 = vrot.slane %v10336, 4
      %v10343 = vshrl.u32 %v10250, 16
      %v10345 = vrot.slane %v10343, 7
      %v10346 = vshll.u32 %v10250, 16
      %v10348 = vor.u32 %v10345, %v10346
      %v10349 = vrot.slane %v10345, 4
      %v10351 = vshrl.u32 %v10251, 16
      %v10353 = vrot.slane %v10351, 7
      %v10354 = vshll.u32 %v10251, 16
      %v10356 = vor.u32 %v10353, %v10354
      %v10357 = vsel %vm3799, %v10349, %v10356
      %v10358 = vrot.slane %v10353, 4
      %v10360 = vshrl.u32 %v10252, 16
      %v10362 = vrot.slane %v10360, 7
      %v10363 = vshll.u32 %v10252, 16
      %v10365 = vor.u32 %v10362, %v10363
      %v10366 = vrot.slane %v10362, 4
      %v10368 = vshrl.u32 %v10253, 16
      %v10370 = vrot.slane %v10368, 7
      %v10371 = vshll.u32 %v10253, 16
      %v10373 = vor.u32 %v10370, %v10371
      %v10374 = vsel %vm3799, %v10366, %v10373
      %v10375 = vrot.slane %v10370, 4
      %v10377 = vshrl.u32 %v10254, 16
      %v10379 = vrot.slane %v10377, 7
      %v10380 = vshll.u32 %v10254, 16
      %v10382 = vor.u32 %v10379, %v10380
      %v10383 = vrot.slane %v10379, 4
      %v10385 = vshrl.u32 %v10255, 16
      %v10387 = vrot.slane %v10385, 7
      %v10388 = vshll.u32 %v10255, 16
      %v10390 = vor.u32 %v10387, %v10388
      %v10391 = vsel %vm3799, %v10383, %v10390
      %v10392 = vrot.slane %v10387, 4
      %v10394 = vshrl.u32 %v10256, 16
      %v10396 = vrot.slane %v10394, 7
      %v10397 = vshll.u32 %v10256, 16
      %v10399 = vor.u32 %v10396, %v10397
      %v10400 = vrot.slane %v10396, 4
      %v10402 = vshrl.u32 %v10257, 16
      %v10404 = vrot.slane %v10402, 7
      %v10405 = vshll.u32 %v10257, 16
      %v10407 = vor.u32 %v10404, %v10405
      %v10408 = vsel %vm3799, %v10400, %v10407
      %v10409 = vrot.slane %v10404, 4
      %v10411 = vshrl.u32 %v10258, 16
      %v10413 = vrot.slane %v10411, 7
      %v10414 = vshll.u32 %v10258, 16
      %v10416 = vor.u32 %v10413, %v10414
      %v10417 = vrot.slane %v10413, 4
      %v10419 = vshrl.u32 %v10259, 16
      %v10421 = vrot.slane %v10419, 7
      %v10422 = vshll.u32 %v10259, 16
      %v10424 = vor.u32 %v10421, %v10422
      %v10425 = vsel %vm3799, %v10417, %v10424
      %v10426 = vrot.slane %v10421, 4
      %v10428 = vshrl.u32 %v10260, 16
      %v10430 = vrot.slane %v10428, 7
      %v10431 = vshll.u32 %v10260, 16
      %v10433 = vor.u32 %v10430, %v10431
      %v10434 = vrot.slane %v10430, 4
      %v10436 = vshrl.u32 %v10261, 16
      %v10438 = vrot.slane %v10436, 7
      %v10439 = vshll.u32 %v10261, 16
      %v10441 = vor.u32 %v10438, %v10439
      %v10442 = vsel %vm3799, %v10434, %v10441
      %v10443 = vrot.slane %v10438, 4
      %v10445 = vshrl.u32 %v10262, 16
      %v10447 = vrot.slane %v10445, 7
      %v10448 = vshll.u32 %v10262, 16
      %v10450 = vor.u32 %v10447, %v10448
      %v10451 = vrot.slane %v10447, 4
      %v10453 = vshrl.u32 %v10263, 16
      %v10455 = vrot.slane %v10453, 7
      %v10456 = vshll.u32 %v10263, 16
      %v10458 = vor.u32 %v10455, %v10456
      %v10459 = vsel %vm3799, %v10451, %v10458
      %v10460 = vrot.slane %v10455, 4
      %v10462 = vshrl.u32 %v10264, 16
      %v10464 = vrot.slane %v10462, 7
      %v10465 = vshll.u32 %v10264, 16
      %v10467 = vor.u32 %v10464, %v10465
      %v10468 = vrot.slane %v10464, 4
      %v10470 = vshrl.u32 %v10265, 16
      %v10472 = vrot.slane %v10470, 7
      %v10473 = vshll.u32 %v10265, 16
      %v10475 = vor.u32 %v10472, %v10473
      %v10476 = vsel %vm3799, %v10468, %v10475
      %v10477 = vrot.slane %v10472, 4
      %v10479 = vshrl.u32 %v10266, 16
      %v10481 = vrot.slane %v10479, 7
      %v10482 = vshll.u32 %v10266, 16
      %v10484 = vor.u32 %v10481, %v10482
      %v10485 = vrot.slane %v10481, 4
      %v10487 = vshrl.u32 %v10267, 16
      %v10489 = vrot.slane %v10487, 7
      %v10490 = vshll.u32 %v10267, 16
      %v10492 = vor.u32 %v10489, %v10490
      %v10493 = vsel %vm3799, %v10485, %v10492
      %v10494 = vrot.slane %v10489, 4
      %v10496 = vshrl.u32 %v10268, 16
      %v10498 = vrot.slane %v10496, 7
      %v10499 = vshll.u32 %v10268, 16
      %v10501 = vor.u32 %v10498, %v10499
      %v10502 = vrot.slane %v10498, 4
      %v10504 = vshrl.u32 %v10269, 16
      %v10506 = vrot.slane %v10504, 7
      %v10507 = vshll.u32 %v10269, 16
      %v10509 = vor.u32 %v10506, %v10507
      %v10510 = vsel %vm3799, %v10502, %v10509
      %v10511 = vrot.slane %v10506, 4
      %v10513 = vshrl.u32 %v10270, 16
      %v10515 = vrot.slane %v10513, 7
      %v10516 = vshll.u32 %v10270, 16
      %v10518 = vor.u32 %v10515, %v10516
      %v10519 = vrot.slane %v10515, 4
      %v10521 = vshrl.u32 %v10271, 16
      %v10523 = vrot.slane %v10521, 7
      %v10524 = vshll.u32 %v10271, 16
      %v10526 = vor.u32 %v10523, %v10524
      %v10527 = vsel %vm3799, %v10519, %v10526
      %v10528 = vrot.slane %v10523, 4
      %v10530 = vshrl.u32 %v10272, 16
      %v10532 = vrot.slane %v10530, 7
      %v10533 = vshll.u32 %v10272, 16
      %v10535 = vor.u32 %v10532, %v10533
      %v10536 = vrot.slane %v10532, 4
      %v10538 = vshrl.u32 %v10273, 16
      %v10540 = vrot.slane %v10538, 7
      %v10541 = vshll.u32 %v10273, 16
      %v10543 = vor.u32 %v10540, %v10541
      %v10544 = vsel %vm3799, %v10536, %v10543
      %v10545 = vrot.slane %v10540, 4
      %s10594 = scalar_lea.vmem [#allocation4], 12
      %vm10595 = vcmask 60416
      %vm10596 = vmand %vm10595, %vm393
      %v10597 = vld [vmem:[%s10594] sm:$0xf]
      %v10598 = vsel %vm10596, %v10280, %v10597
      %10599 = vst [vmem:[%s10594] sm:$0xf] %v10598
      %10600 = vst.msk [vmem:[%s10594 + $0x4] sm:$0xf] %vm564, %v10289
      %v10601 = vld [vmem:[%s10594 + $0x8] sm:$0x1]
      %v10602 = vsel %vm574, %v10290, %v10601
      %10603 = vst [vmem:[%s10594 + $0x8] sm:$0x1] %v10602
      %v10604 = vld [vmem:[%s10594 + $0xc] sm:$0xf]
      %v10605 = vsel %vm10596, %v10297, %v10604
      %10606 = vst [vmem:[%s10594 + $0xc] sm:$0xf] %v10605
      %10607 = vst.msk [vmem:[%s10594 + $0x10] sm:$0xf] %vm564, %v10306
      %v10608 = vld [vmem:[%s10594 + $0x14] sm:$0x1]
      %v10609 = vsel %vm574, %v10307, %v10608
      %10610 = vst [vmem:[%s10594 + $0x14] sm:$0x1] %v10609
      %v10611 = vld [vmem:[%s10594 + $0x18] sm:$0xf]
      %v10612 = vsel %vm10596, %v10314, %v10611
      %10613 = vst [vmem:[%s10594 + $0x18] sm:$0xf] %v10612
      %10614 = vst.msk [vmem:[%s10594 + $0x1c] sm:$0xf] %vm564, %v10323
      %v10615 = vld [vmem:[%s10594 + $0x20] sm:$0x1]
      %v10616 = vsel %vm574, %v10324, %v10615
      %10617 = vst [vmem:[%s10594 + $0x20] sm:$0x1] %v10616
      %v10618 = vld [vmem:[%s10594 + $0x24] sm:$0xf]
      %v10619 = vsel %vm10596, %v10331, %v10618
      %10620 = vst [vmem:[%s10594 + $0x24] sm:$0xf] %v10619
      %10621 = vst.msk [vmem:[%s10594 + $0x28] sm:$0xf] %vm564, %v10340
      %v10622 = vld [vmem:[%s10594 + $0x2c] sm:$0x1]
      %v10623 = vsel %vm574, %v10341, %v10622
      %10624 = vst [vmem:[%s10594 + $0x2c] sm:$0x1] %v10623
      %v10625 = vld [vmem:[%s10594 + $0x30] sm:$0xf]
      %v10626 = vsel %vm10596, %v10348, %v10625
      %10627 = vst [vmem:[%s10594 + $0x30] sm:$0xf] %v10626
      %10628 = vst.msk [vmem:[%s10594 + $0x34] sm:$0xf] %vm564, %v10357
      %v10629 = vld [vmem:[%s10594 + $0x38] sm:$0x1]
      %v10630 = vsel %vm574, %v10358, %v10629
      %10631 = vst [vmem:[%s10594 + $0x38] sm:$0x1] %v10630
      %v10632 = vld [vmem:[%s10594 + $0x3c] sm:$0xf]
      %v10633 = vsel %vm10596, %v10365, %v10632
      %10634 = vst [vmem:[%s10594 + $0x3c] sm:$0xf] %v10633
      %10635 = vst.msk [vmem:[%s10594 + $0x40] sm:$0xf] %vm564, %v10374
      %v10636 = vld [vmem:[%s10594 + $0x44] sm:$0x1]
      %v10637 = vsel %vm574, %v10375, %v10636
      %10638 = vst [vmem:[%s10594 + $0x44] sm:$0x1] %v10637
      %v10639 = vld [vmem:[%s10594 + $0x48] sm:$0xf]
      %v10640 = vsel %vm10596, %v10382, %v10639
      %10641 = vst [vmem:[%s10594 + $0x48] sm:$0xf] %v10640
      %10642 = vst.msk [vmem:[%s10594 + $0x4c] sm:$0xf] %vm564, %v10391
      %v10643 = vld [vmem:[%s10594 + $0x50] sm:$0x1]
      %v10644 = vsel %vm574, %v10392, %v10643
      %10645 = vst [vmem:[%s10594 + $0x50] sm:$0x1] %v10644
      %v10646 = vld [vmem:[%s10594 + $0x54] sm:$0xf]
      %v10647 = vsel %vm10596, %v10399, %v10646
      %10648 = vst [vmem:[%s10594 + $0x54] sm:$0xf] %v10647
      %10649 = vst.msk [vmem:[%s10594 + $0x58] sm:$0xf] %vm564, %v10408
      %v10650 = vld [vmem:[%s10594 + $0x5c] sm:$0x1]
      %v10651 = vsel %vm574, %v10409, %v10650
      %10652 = vst [vmem:[%s10594 + $0x5c] sm:$0x1] %v10651
      %v10653 = vld [vmem:[%s10594 + $0x60] sm:$0xf]
      %v10654 = vsel %vm10596, %v10416, %v10653
      %10655 = vst [vmem:[%s10594 + $0x60] sm:$0xf] %v10654
      %10656 = vst.msk [vmem:[%s10594 + $0x64] sm:$0xf] %vm564, %v10425
      %v10657 = vld [vmem:[%s10594 + $0x68] sm:$0x1]
      %v10658 = vsel %vm574, %v10426, %v10657
      %10659 = vst [vmem:[%s10594 + $0x68] sm:$0x1] %v10658
      %v10660 = vld [vmem:[%s10594 + $0x6c] sm:$0xf]
      %v10661 = vsel %vm10596, %v10433, %v10660
      %10662 = vst [vmem:[%s10594 + $0x6c] sm:$0xf] %v10661
      %10663 = vst.msk [vmem:[%s10594 + $0x70] sm:$0xf] %vm564, %v10442
      %v10664 = vld [vmem:[%s10594 + $0x74] sm:$0x1]
      %v10665 = vsel %vm574, %v10443, %v10664
      %10666 = vst [vmem:[%s10594 + $0x74] sm:$0x1] %v10665
      %v10667 = vld [vmem:[%s10594 + $0x78] sm:$0xf]
      %v10668 = vsel %vm10596, %v10450, %v10667
      %10669 = vst [vmem:[%s10594 + $0x78] sm:$0xf] %v10668
      %10670 = vst.msk [vmem:[%s10594 + $0x7c] sm:$0xf] %vm564, %v10459
      %v10671 = vld [vmem:[%s10594 + $0x80] sm:$0x1]
      %v10672 = vsel %vm574, %v10460, %v10671
      %10673 = vst [vmem:[%s10594 + $0x80] sm:$0x1] %v10672
      %v10674 = vld [vmem:[%s10594 + $0x84] sm:$0xf]
      %v10675 = vsel %vm10596, %v10467, %v10674
      %10676 = vst [vmem:[%s10594 + $0x84] sm:$0xf] %v10675
      %10677 = vst.msk [vmem:[%s10594 + $0x88] sm:$0xf] %vm564, %v10476
      %v10678 = vld [vmem:[%s10594 + $0x8c] sm:$0x1]
      %v10679 = vsel %vm574, %v10477, %v10678
      %10680 = vst [vmem:[%s10594 + $0x8c] sm:$0x1] %v10679
      %v10681 = vld [vmem:[%s10594 + $0x90] sm:$0xf]
      %v10682 = vsel %vm10596, %v10484, %v10681
      %10683 = vst [vmem:[%s10594 + $0x90] sm:$0xf] %v10682
      %10684 = vst.msk [vmem:[%s10594 + $0x94] sm:$0xf] %vm564, %v10493
      %v10685 = vld [vmem:[%s10594 + $0x98] sm:$0x1]
      %v10686 = vsel %vm574, %v10494, %v10685
      %10687 = vst [vmem:[%s10594 + $0x98] sm:$0x1] %v10686
      %v10688 = vld [vmem:[%s10594 + $0x9c] sm:$0xf]
      %v10689 = vsel %vm10596, %v10501, %v10688
      %10690 = vst [vmem:[%s10594 + $0x9c] sm:$0xf] %v10689
      %10691 = vst.msk [vmem:[%s10594 + $0xa0] sm:$0xf] %vm564, %v10510
      %v10692 = vld [vmem:[%s10594 + $0xa4] sm:$0x1]
      %v10693 = vsel %vm574, %v10511, %v10692
      %10694 = vst [vmem:[%s10594 + $0xa4] sm:$0x1] %v10693
      %v10695 = vld [vmem:[%s10594 + $0xa8] sm:$0xf]
      %v10696 = vsel %vm10596, %v10518, %v10695
      %10697 = vst [vmem:[%s10594 + $0xa8] sm:$0xf] %v10696
      %10698 = vst.msk [vmem:[%s10594 + $0xac] sm:$0xf] %vm564, %v10527
      %v10699 = vld [vmem:[%s10594 + $0xb0] sm:$0x1]
      %v10700 = vsel %vm574, %v10528, %v10699
      %10701 = vst [vmem:[%s10594 + $0xb0] sm:$0x1] %v10700
      %v10702 = vld [vmem:[%s10594 + $0xb4] sm:$0xf]
      %v10703 = vsel %vm10596, %v10535, %v10702
      %10704 = vst [vmem:[%s10594 + $0xb4] sm:$0xf] %v10703
      %10705 = vst.msk [vmem:[%s10594 + $0xb8] sm:$0xf] %vm564, %v10544
      %v10706 = vld [vmem:[%s10594 + $0xbc] sm:$0x1]
      %v10707 = vsel %vm574, %v10545, %v10706
      %10708 = vst [vmem:[%s10594 + $0xbc] sm:$0x1] %v10707
      %v10709 = vld [vmem:[#allocation4] sm:$0xf]
      %v10710 = vld [vmem:[#allocation4 + $0x4] sm:$0xf]
      %v10711 = vld [vmem:[#allocation4 + $0xc] sm:$0xf]
      %v10712 = vld [vmem:[#allocation4 + $0x10] sm:$0xf]
      %v10713 = vld [vmem:[#allocation4 + $0x18] sm:$0xf]
      %v10714 = vld [vmem:[#allocation4 + $0x1c] sm:$0xf]
      %v10715 = vld [vmem:[#allocation4 + $0x24] sm:$0xf]
      %v10716 = vld [vmem:[#allocation4 + $0x28] sm:$0xf]
      %v10717 = vld [vmem:[#allocation4 + $0x30] sm:$0xf]
      %v10718 = vld [vmem:[#allocation4 + $0x34] sm:$0xf]
      %v10719 = vld [vmem:[#allocation4 + $0x3c] sm:$0xf]
      %v10720 = vld [vmem:[#allocation4 + $0x40] sm:$0xf]
      %v10721 = vld [vmem:[#allocation4 + $0x48] sm:$0xf]
      %v10722 = vld [vmem:[#allocation4 + $0x4c] sm:$0xf]
      %v10723 = vld [vmem:[#allocation4 + $0x54] sm:$0xf]
      %v10724 = vld [vmem:[#allocation4 + $0x58] sm:$0xf]
      %v10725 = vld [vmem:[#allocation4 + $0x60] sm:$0xf]
      %v10726 = vld [vmem:[#allocation4 + $0x64] sm:$0xf]
      %v10727 = vld [vmem:[#allocation4 + $0x6c] sm:$0xf]
      %v10728 = vld [vmem:[#allocation4 + $0x70] sm:$0xf]
      %v10729 = vld [vmem:[#allocation4 + $0x78] sm:$0xf]
      %v10730 = vld [vmem:[#allocation4 + $0x7c] sm:$0xf]
      %v10731 = vld [vmem:[#allocation4 + $0x84] sm:$0xf]
      %v10732 = vld [vmem:[#allocation4 + $0x88] sm:$0xf]
      %v10733 = vld [vmem:[#allocation4 + $0x90] sm:$0xf]
      %v10734 = vld [vmem:[#allocation4 + $0x94] sm:$0xf]
      %v10735 = vld [vmem:[#allocation4 + $0x9c] sm:$0xf]
      %v10736 = vld [vmem:[#allocation4 + $0xa0] sm:$0xf]
      %v10737 = vld [vmem:[#allocation4 + $0xa8] sm:$0xf]
      %v10738 = vld [vmem:[#allocation4 + $0xac] sm:$0xf]
      %v10739 = vld [vmem:[#allocation4 + $0xb4] sm:$0xf]
      %v10740 = vld [vmem:[#allocation4 + $0xb8] sm:$0xf]
      %v10741 = vld [vmem:[#allocation4 + $0x8] sm:$0x1]
      %v10742 = vld [vmem:[#allocation4 + $0x14] sm:$0x1]
      %v10743 = vld [vmem:[#allocation4 + $0x20] sm:$0x1]
      %v10744 = vld [vmem:[#allocation4 + $0x2c] sm:$0x1]
      %v10745 = vld [vmem:[#allocation4 + $0x38] sm:$0x1]
      %v10746 = vld [vmem:[#allocation4 + $0x44] sm:$0x1]
      %v10747 = vld [vmem:[#allocation4 + $0x50] sm:$0x1]
      %v10748 = vld [vmem:[#allocation4 + $0x5c] sm:$0x1]
      %v10749 = vld [vmem:[#allocation4 + $0x68] sm:$0x1]
      %v10750 = vld [vmem:[#allocation4 + $0x74] sm:$0x1]
      %v10751 = vld [vmem:[#allocation4 + $0x80] sm:$0x1]
      %v10752 = vld [vmem:[#allocation4 + $0x8c] sm:$0x1]
      %v10753 = vld [vmem:[#allocation4 + $0x98] sm:$0x1]
      %v10754 = vld [vmem:[#allocation4 + $0xa4] sm:$0x1]
      %v10755 = vld [vmem:[#allocation4 + $0xb0] sm:$0x1]
      %v10756 = vld [vmem:[#allocation4 + $0xbc] sm:$0x1]
      %v10757 = vld [vmem:[#allocation4] sm:$0xe]
      %v10758 = vld [vmem:[#allocation4 + $0xc] sm:$0xe]
      %v10759 = vld [vmem:[#allocation4 + $0x18] sm:$0xe]
      %v10760 = vld [vmem:[#allocation4 + $0x24] sm:$0xe]
      %v10761 = vld [vmem:[#allocation4 + $0x30] sm:$0xe]
      %v10762 = vld [vmem:[#allocation4 + $0x3c] sm:$0xe]
      %v10763 = vld [vmem:[#allocation4 + $0x48] sm:$0xe]
      %v10764 = vld [vmem:[#allocation4 + $0x54] sm:$0xe]
      %v10765 = vld [vmem:[#allocation4 + $0x60] sm:$0xe]
      %v10766 = vld [vmem:[#allocation4 + $0x6c] sm:$0xe]
      %v10767 = vld [vmem:[#allocation4 + $0x78] sm:$0xe]
      %v10768 = vld [vmem:[#allocation4 + $0x84] sm:$0xe]
      %v10769 = vld [vmem:[#allocation4 + $0x90] sm:$0xe]
      %v10770 = vld [vmem:[#allocation4 + $0x9c] sm:$0xe]
      %v10771 = vld [vmem:[#allocation4 + $0xa8] sm:$0xe]
      %v10772 = vld [vmem:[#allocation4 + $0xb4] sm:$0xe]
      %v10805 = vunpack.c.l.b16 %v10709
      %v10806 = vunpack.c.l.b16 %v10710
      %v10807 = vunpack.c.l.b16 %v10711
      %v10808 = vunpack.c.l.b16 %v10712
      %v10809 = vunpack.c.l.b16 %v10713
      %v10810 = vunpack.c.l.b16 %v10714
      %v10811 = vunpack.c.l.b16 %v10715
      %v10812 = vunpack.c.l.b16 %v10716
      %v10813 = vunpack.c.l.b16 %v10717
      %v10814 = vunpack.c.l.b16 %v10718
      %v10815 = vunpack.c.l.b16 %v10719
      %v10816 = vunpack.c.l.b16 %v10720
      %v10817 = vunpack.c.l.b16 %v10721
      %v10818 = vunpack.c.l.b16 %v10722
      %v10819 = vunpack.c.l.b16 %v10723
      %v10820 = vunpack.c.l.b16 %v10724
      %v10821 = vunpack.c.l.b16 %v10725
      %v10822 = vunpack.c.l.b16 %v10726
      %v10823 = vunpack.c.l.b16 %v10727
      %v10824 = vunpack.c.l.b16 %v10728
      %v10825 = vunpack.c.l.b16 %v10729
      %v10826 = vunpack.c.l.b16 %v10730
      %v10827 = vunpack.c.l.b16 %v10731
      %v10828 = vunpack.c.l.b16 %v10732
      %v10829 = vunpack.c.l.b16 %v10733
      %v10830 = vunpack.c.l.b16 %v10734
      %v10831 = vunpack.c.l.b16 %v10735
      %v10832 = vunpack.c.l.b16 %v10736
      %v10833 = vunpack.c.l.b16 %v10737
      %v10834 = vunpack.c.l.b16 %v10738
      %v10835 = vunpack.c.l.b16 %v10739
      %v10836 = vunpack.c.l.b16 %v10740
      %v10837 = vpack.c.b16 %v10806, %v10805
      %v10838 = vpack.c.b16 %v10808, %v10807
      %v10839 = vpack.c.b16 %v10810, %v10809
      %v10840 = vpack.c.b16 %v10812, %v10811
      %v10841 = vpack.c.b16 %v10814, %v10813
      %v10842 = vpack.c.b16 %v10816, %v10815
      %v10843 = vpack.c.b16 %v10818, %v10817
      %v10844 = vpack.c.b16 %v10820, %v10819
      %v10845 = vpack.c.b16 %v10822, %v10821
      %v10846 = vpack.c.b16 %v10824, %v10823
      %v10847 = vpack.c.b16 %v10826, %v10825
      %v10848 = vpack.c.b16 %v10828, %v10827
      %v10849 = vpack.c.b16 %v10830, %v10829
      %v10850 = vpack.c.b16 %v10832, %v10831
      %v10851 = vpack.c.b16 %v10834, %v10833
      %v10852 = vpack.c.b16 %v10836, %v10835
      %v10869 = vunpack.c.l.b16 %v10741
      %v10870 = vunpack.c.l.b16 %v10742
      %v10871 = vunpack.c.l.b16 %v10743
      %v10872 = vunpack.c.l.b16 %v10744
      %v10873 = vunpack.c.l.b16 %v10745
      %v10874 = vunpack.c.l.b16 %v10746
      %v10875 = vunpack.c.l.b16 %v10747
      %v10876 = vunpack.c.l.b16 %v10748
      %v10877 = vunpack.c.l.b16 %v10749
      %v10878 = vunpack.c.l.b16 %v10750
      %v10879 = vunpack.c.l.b16 %v10751
      %v10880 = vunpack.c.l.b16 %v10752
      %v10881 = vunpack.c.l.b16 %v10753
      %v10882 = vunpack.c.l.b16 %v10754
      %v10883 = vunpack.c.l.b16 %v10755
      %v10884 = vunpack.c.l.b16 %v10756
      %v10885 = vpack.c.b16 %v10869, %v10869
      %v10886 = vpack.c.b16 %v10870, %v10870
      %v10887 = vpack.c.b16 %v10871, %v10871
      %v10888 = vpack.c.b16 %v10872, %v10872
      %v10889 = vpack.c.b16 %v10873, %v10873
      %v10890 = vpack.c.b16 %v10874, %v10874
      %v10891 = vpack.c.b16 %v10875, %v10875
      %v10892 = vpack.c.b16 %v10876, %v10876
      %v10893 = vpack.c.b16 %v10877, %v10877
      %v10894 = vpack.c.b16 %v10878, %v10878
      %v10895 = vpack.c.b16 %v10879, %v10879
      %v10896 = vpack.c.b16 %v10880, %v10880
      %v10897 = vpack.c.b16 %v10881, %v10881
      %v10898 = vpack.c.b16 %v10882, %v10882
      %v10899 = vpack.c.b16 %v10883, %v10883
      %v10900 = vpack.c.b16 %v10884, %v10884
      %v10902 = vshrl.u32 %v10837, 16
      %v10904 = vshll.u32 %v10837, 16
      %v10906 = vrot.slane %v10904, 1
      %v10907 = vor.u32 %v10902, %v10906
      %v10909 = vshll.u32 %v10885, 16
      %v10911 = vrot.slane %v10909, 1
      %v10912 = vsel %vm5820, %v10907, %v10911
      %v10914 = vshrl.u32 %v10838, 16
      %v10916 = vshll.u32 %v10838, 16
      %v10918 = vrot.slane %v10916, 1
      %v10919 = vor.u32 %v10914, %v10918
      %v10921 = vshll.u32 %v10886, 16
      %v10923 = vrot.slane %v10921, 1
      %v10924 = vsel %vm5820, %v10919, %v10923
      %v10926 = vshrl.u32 %v10839, 16
      %v10928 = vshll.u32 %v10839, 16
      %v10930 = vrot.slane %v10928, 1
      %v10931 = vor.u32 %v10926, %v10930
      %v10933 = vshll.u32 %v10887, 16
      %v10935 = vrot.slane %v10933, 1
      %v10936 = vsel %vm5820, %v10931, %v10935
      %v10938 = vshrl.u32 %v10840, 16
      %v10940 = vshll.u32 %v10840, 16
      %v10942 = vrot.slane %v10940, 1
      %v10943 = vor.u32 %v10938, %v10942
      %v10945 = vshll.u32 %v10888, 16
      %v10947 = vrot.slane %v10945, 1
      %v10948 = vsel %vm5820, %v10943, %v10947
      %v10950 = vshrl.u32 %v10841, 16
      %v10952 = vshll.u32 %v10841, 16
      %v10954 = vrot.slane %v10952, 1
      %v10955 = vor.u32 %v10950, %v10954
      %v10957 = vshll.u32 %v10889, 16
      %v10959 = vrot.slane %v10957, 1
      %v10960 = vsel %vm5820, %v10955, %v10959
      %v10962 = vshrl.u32 %v10842, 16
      %v10964 = vshll.u32 %v10842, 16
      %v10966 = vrot.slane %v10964, 1
      %v10967 = vor.u32 %v10962, %v10966
      %v10969 = vshll.u32 %v10890, 16
      %v10971 = vrot.slane %v10969, 1
      %v10972 = vsel %vm5820, %v10967, %v10971
      %v10974 = vshrl.u32 %v10843, 16
      %v10976 = vshll.u32 %v10843, 16
      %v10978 = vrot.slane %v10976, 1
      %v10979 = vor.u32 %v10974, %v10978
      %v10981 = vshll.u32 %v10891, 16
      %v10983 = vrot.slane %v10981, 1
      %v10984 = vsel %vm5820, %v10979, %v10983
      %v10986 = vshrl.u32 %v10844, 16
      %v10988 = vshll.u32 %v10844, 16
      %v10990 = vrot.slane %v10988, 1
      %v10991 = vor.u32 %v10986, %v10990
      %v10993 = vshll.u32 %v10892, 16
      %v10995 = vrot.slane %v10993, 1
      %v10996 = vsel %vm5820, %v10991, %v10995
      %v10998 = vshrl.u32 %v10845, 16
      %v11000 = vshll.u32 %v10845, 16
      %v11002 = vrot.slane %v11000, 1
      %v11003 = vor.u32 %v10998, %v11002
      %v11005 = vshll.u32 %v10893, 16
      %v11007 = vrot.slane %v11005, 1
      %v11008 = vsel %vm5820, %v11003, %v11007
      %v11010 = vshrl.u32 %v10846, 16
      %v11012 = vshll.u32 %v10846, 16
      %v11014 = vrot.slane %v11012, 1
      %v11015 = vor.u32 %v11010, %v11014
      %v11017 = vshll.u32 %v10894, 16
      %v11019 = vrot.slane %v11017, 1
      %v11020 = vsel %vm5820, %v11015, %v11019
      %v11022 = vshrl.u32 %v10847, 16
      %v11024 = vshll.u32 %v10847, 16
      %v11026 = vrot.slane %v11024, 1
      %v11027 = vor.u32 %v11022, %v11026
      %v11029 = vshll.u32 %v10895, 16
      %v11031 = vrot.slane %v11029, 1
      %v11032 = vsel %vm5820, %v11027, %v11031
      %v11034 = vshrl.u32 %v10848, 16
      %v11036 = vshll.u32 %v10848, 16
      %v11038 = vrot.slane %v11036, 1
      %v11039 = vor.u32 %v11034, %v11038
      %v11041 = vshll.u32 %v10896, 16
      %v11043 = vrot.slane %v11041, 1
      %v11044 = vsel %vm5820, %v11039, %v11043
      %v11046 = vshrl.u32 %v10849, 16
      %v11048 = vshll.u32 %v10849, 16
      %v11050 = vrot.slane %v11048, 1
      %v11051 = vor.u32 %v11046, %v11050
      %v11053 = vshll.u32 %v10897, 16
      %v11055 = vrot.slane %v11053, 1
      %v11056 = vsel %vm5820, %v11051, %v11055
      %v11058 = vshrl.u32 %v10850, 16
      %v11060 = vshll.u32 %v10850, 16
      %v11062 = vrot.slane %v11060, 1
      %v11063 = vor.u32 %v11058, %v11062
      %v11065 = vshll.u32 %v10898, 16
      %v11067 = vrot.slane %v11065, 1
      %v11068 = vsel %vm5820, %v11063, %v11067
      %v11070 = vshrl.u32 %v10851, 16
      %v11072 = vshll.u32 %v10851, 16
      %v11074 = vrot.slane %v11072, 1
      %v11075 = vor.u32 %v11070, %v11074
      %v11077 = vshll.u32 %v10899, 16
      %v11079 = vrot.slane %v11077, 1
      %v11080 = vsel %vm5820, %v11075, %v11079
      %v11082 = vshrl.u32 %v10852, 16
      %v11084 = vshll.u32 %v10852, 16
      %v11086 = vrot.slane %v11084, 1
      %v11087 = vor.u32 %v11082, %v11086
      %v11089 = vshll.u32 %v10900, 16
      %v11091 = vrot.slane %v11089, 1
      %v11092 = vsel %vm5820, %v11087, %v11091
      %11093 = vrot.lane.b32.xlu0 %v10912, 8
      %v11094 = vpop.permute.xlu0 %11093
      %11095 = vrot.lane.b32.xlu0 %v10924, 8
      %v11096 = vpop.permute.xlu0 %11095
      %11097 = vrot.lane.b32.xlu0 %v10936, 8
      %v11098 = vpop.permute.xlu0 %11097
      %11099 = vrot.lane.b32.xlu0 %v10948, 8
      %v11100 = vpop.permute.xlu0 %11099
      %11101 = vrot.lane.b32.xlu0 %v10960, 8
      %v11102 = vpop.permute.xlu0 %11101
      %11103 = vrot.lane.b32.xlu0 %v10972, 8
      %v11104 = vpop.permute.xlu0 %11103
      %11105 = vrot.lane.b32.xlu0 %v10984, 8
      %v11106 = vpop.permute.xlu0 %11105
      %11107 = vrot.lane.b32.xlu0 %v10996, 8
      %v11108 = vpop.permute.xlu0 %11107
      %11109 = vrot.lane.b32.xlu0 %v11008, 8
      %v11110 = vpop.permute.xlu0 %11109
      %11111 = vrot.lane.b32.xlu0 %v11020, 8
      %v11112 = vpop.permute.xlu0 %11111
      %11113 = vrot.lane.b32.xlu0 %v11032, 8
      %v11114 = vpop.permute.xlu0 %11113
      %11115 = vrot.lane.b32.xlu0 %v11044, 8
      %v11116 = vpop.permute.xlu0 %11115
      %11117 = vrot.lane.b32.xlu0 %v11056, 8
      %v11118 = vpop.permute.xlu0 %11117
      %11119 = vrot.lane.b32.xlu0 %v11068, 8
      %v11120 = vpop.permute.xlu0 %11119
      %11121 = vrot.lane.b32.xlu0 %v11080, 8
      %v11122 = vpop.permute.xlu0 %11121
      %11123 = vrot.lane.b32.xlu0 %v11092, 8
      %v11124 = vpop.permute.xlu0 %11123
      %v11141 = vunpack.c.l.b16 %v10757
      %v11142 = vunpack.c.l.b16 %v10758
      %v11143 = vunpack.c.l.b16 %v10759
      %v11144 = vunpack.c.l.b16 %v10760
      %v11145 = vunpack.c.l.b16 %v10761
      %v11146 = vunpack.c.l.b16 %v10762
      %v11147 = vunpack.c.l.b16 %v10763
      %v11148 = vunpack.c.l.b16 %v10764
      %v11149 = vunpack.c.l.b16 %v10765
      %v11150 = vunpack.c.l.b16 %v10766
      %v11151 = vunpack.c.l.b16 %v10767
      %v11152 = vunpack.c.l.b16 %v10768
      %v11153 = vunpack.c.l.b16 %v10769
      %v11154 = vunpack.c.l.b16 %v10770
      %v11155 = vunpack.c.l.b16 %v10771
      %v11156 = vunpack.c.l.b16 %v10772
      %v11157 = vpack.c.b16 %v10806, %v11141
      %v11158 = vpack.c.b16 %v10808, %v11142
      %v11159 = vpack.c.b16 %v10810, %v11143
      %v11160 = vpack.c.b16 %v10812, %v11144
      %v11161 = vpack.c.b16 %v10814, %v11145
      %v11162 = vpack.c.b16 %v10816, %v11146
      %v11163 = vpack.c.b16 %v10818, %v11147
      %v11164 = vpack.c.b16 %v10820, %v11148
      %v11165 = vpack.c.b16 %v10822, %v11149
      %v11166 = vpack.c.b16 %v10824, %v11150
      %v11167 = vpack.c.b16 %v10826, %v11151
      %v11168 = vpack.c.b16 %v10828, %v11152
      %v11169 = vpack.c.b16 %v10830, %v11153
      %v11170 = vpack.c.b16 %v10832, %v11154
      %v11171 = vpack.c.b16 %v10834, %v11155
      %v11172 = vpack.c.b16 %v10836, %v11156
      %v11173 = vrot.slane %v11157, 1
      %v11174 = vrot.slane %v10885, 1
      %v11175 = vsel %vm6093, %v11173, %v11174
      %v11176 = vrot.slane %v11158, 1
      %v11177 = vrot.slane %v10886, 1
      %v11178 = vsel %vm6093, %v11176, %v11177
      %v11179 = vrot.slane %v11159, 1
      %v11180 = vrot.slane %v10887, 1
      %v11181 = vsel %vm6093, %v11179, %v11180
      %v11182 = vrot.slane %v11160, 1
      %v11183 = vrot.slane %v10888, 1
      %v11184 = vsel %vm6093, %v11182, %v11183
      %v11185 = vrot.slane %v11161, 1
      %v11186 = vrot.slane %v10889, 1
      %v11187 = vsel %vm6093, %v11185, %v11186
      %v11188 = vrot.slane %v11162, 1
      %v11189 = vrot.slane %v10890, 1
      %v11190 = vsel %vm6093, %v11188, %v11189
      %v11191 = vrot.slane %v11163, 1
      %v11192 = vrot.slane %v10891, 1
      %v11193 = vsel %vm6093, %v11191, %v11192
      %v11194 = vrot.slane %v11164, 1
      %v11195 = vrot.slane %v10892, 1
      %v11196 = vsel %vm6093, %v11194, %v11195
      %v11197 = vrot.slane %v11165, 1
      %v11198 = vrot.slane %v10893, 1
      %v11199 = vsel %vm6093, %v11197, %v11198
      %v11200 = vrot.slane %v11166, 1
      %v11201 = vrot.slane %v10894, 1
      %v11202 = vsel %vm6093, %v11200, %v11201
      %v11203 = vrot.slane %v11167, 1
      %v11204 = vrot.slane %v10895, 1
      %v11205 = vsel %vm6093, %v11203, %v11204
      %v11206 = vrot.slane %v11168, 1
      %v11207 = vrot.slane %v10896, 1
      %v11208 = vsel %vm6093, %v11206, %v11207
      %v11209 = vrot.slane %v11169, 1
      %v11210 = vrot.slane %v10897, 1
      %v11211 = vsel %vm6093, %v11209, %v11210
      %v11212 = vrot.slane %v11170, 1
      %v11213 = vrot.slane %v10898, 1
      %v11214 = vsel %vm6093, %v11212, %v11213
      %v11215 = vrot.slane %v11171, 1
      %v11216 = vrot.slane %v10899, 1
      %v11217 = vsel %vm6093, %v11215, %v11216
      %v11218 = vrot.slane %v11172, 1
      %v11219 = vrot.slane %v10900, 1
      %v11220 = vsel %vm6093, %v11218, %v11219
      %11221 = vrot.lane.b32.xlu0 %v11175, 16
      %v11222 = vpop.permute.xlu0 %11221
      %11223 = vrot.lane.b32.xlu0 %v11178, 16
      %v11224 = vpop.permute.xlu0 %11223
      %11225 = vrot.lane.b32.xlu0 %v11181, 16
      %v11226 = vpop.permute.xlu0 %11225
      %11227 = vrot.lane.b32.xlu0 %v11184, 16
      %v11228 = vpop.permute.xlu0 %11227
      %11229 = vrot.lane.b32.xlu0 %v11187, 16
      %v11230 = vpop.permute.xlu0 %11229
      %11231 = vrot.lane.b32.xlu0 %v11190, 16
      %v11232 = vpop.permute.xlu0 %11231
      %11233 = vrot.lane.b32.xlu0 %v11193, 16
      %v11234 = vpop.permute.xlu0 %11233
      %11235 = vrot.lane.b32.xlu0 %v11196, 16
      %v11236 = vpop.permute.xlu0 %11235
      %11237 = vrot.lane.b32.xlu0 %v11199, 16
      %v11238 = vpop.permute.xlu0 %11237
      %11239 = vrot.lane.b32.xlu0 %v11202, 16
      %v11240 = vpop.permute.xlu0 %11239
      %11241 = vrot.lane.b32.xlu0 %v11205, 16
      %v11242 = vpop.permute.xlu0 %11241
      %11243 = vrot.lane.b32.xlu0 %v11208, 16
      %v11244 = vpop.permute.xlu0 %11243
      %11245 = vrot.lane.b32.xlu0 %v11211, 16
      %v11246 = vpop.permute.xlu0 %11245
      %11247 = vrot.lane.b32.xlu0 %v11214, 16
      %v11248 = vpop.permute.xlu0 %11247
      %11249 = vrot.lane.b32.xlu0 %v11217, 16
      %v11250 = vpop.permute.xlu0 %11249
      %11251 = vrot.lane.b32.xlu0 %v11220, 16
      %v11252 = vpop.permute.xlu0 %11251
      %v11254 = vsel %vm6718, %v10837, %v11094
      %v11256 = vsel %vm6718, %v10838, %v11096
      %v11258 = vsel %vm6718, %v10839, %v11098
      %v11260 = vsel %vm6718, %v10840, %v11100
      %v11262 = vsel %vm6718, %v10841, %v11102
      %v11264 = vsel %vm6718, %v10842, %v11104
      %v11266 = vsel %vm6718, %v10843, %v11106
      %v11268 = vsel %vm6718, %v10844, %v11108
      %v11270 = vsel %vm6718, %v10845, %v11110
      %v11272 = vsel %vm6718, %v10846, %v11112
      %v11274 = vsel %vm6718, %v10847, %v11114
      %v11276 = vsel %vm6718, %v10848, %v11116
      %v11278 = vsel %vm6718, %v10849, %v11118
      %v11280 = vsel %vm6718, %v10850, %v11120
      %v11282 = vsel %vm6718, %v10851, %v11122
      %v11284 = vsel %vm6718, %v10852, %v11124
      %v11286 = vsel %vm6784, %v11254, %v11222
      %v11288 = vsel %vm6784, %v11256, %v11224
      %v11290 = vsel %vm6784, %v11258, %v11226
      %v11292 = vsel %vm6784, %v11260, %v11228
      %v11294 = vsel %vm6784, %v11262, %v11230
      %v11296 = vsel %vm6784, %v11264, %v11232
      %v11298 = vsel %vm6784, %v11266, %v11234
      %v11300 = vsel %vm6784, %v11268, %v11236
      %v11302 = vsel %vm6784, %v11270, %v11238
      %v11304 = vsel %vm6784, %v11272, %v11240
      %v11306 = vsel %vm6784, %v11274, %v11242
      %v11308 = vsel %vm6784, %v11276, %v11244
      %v11310 = vsel %vm6784, %v11278, %v11246
      %v11312 = vsel %vm6784, %v11280, %v11248
      %v11314 = vsel %vm6784, %v11282, %v11250
      %v11316 = vsel %vm6784, %v11284, %v11252
      %v11317 = vld [vmem:[%s6] sm:$0xf]
      %v11318 = vld [vmem:[%s6 + $0x4] sm:$0xf]
      %v11319 = vld [vmem:[%s6 + $0x8] sm:$0xf]
      %v11320 = vld [vmem:[%s10594] sm:$0xf]
      %v11321 = vld [vmem:[%s10594 + $0x4] sm:$0xf]
      %v11322 = vld [vmem:[%s10594 + $0xc] sm:$0xf]
      %v11323 = vld [vmem:[%s10594 + $0x10] sm:$0xf]
      %v11324 = vld [vmem:[%s10594 + $0x18] sm:$0xf]
      %v11325 = vld [vmem:[%s10594 + $0x1c] sm:$0xf]
      %v11326 = vld [vmem:[%s10594 + $0x24] sm:$0xf]
      %v11327 = vld [vmem:[%s10594 + $0x28] sm:$0xf]
      %v11328 = vld [vmem:[%s10594 + $0x30] sm:$0xf]
      %v11329 = vld [vmem:[%s10594 + $0x34] sm:$0xf]
      %v11330 = vld [vmem:[%s10594 + $0x3c] sm:$0xf]
      %v11331 = vld [vmem:[%s10594 + $0x40] sm:$0xf]
      %v11332 = vld [vmem:[%s10594 + $0x48] sm:$0xf]
      %v11333 = vld [vmem:[%s10594 + $0x4c] sm:$0xf]
      %v11334 = vld [vmem:[%s10594 + $0x54] sm:$0xf]
      %v11335 = vld [vmem:[%s10594 + $0x58] sm:$0xf]
      %v11336 = vld [vmem:[%s10594 + $0x60] sm:$0xf]
      %v11337 = vld [vmem:[%s10594 + $0x64] sm:$0xf]
      %v11338 = vld [vmem:[%s10594 + $0x6c] sm:$0xf]
      %v11339 = vld [vmem:[%s10594 + $0x70] sm:$0xf]
      %v11340 = vld [vmem:[%s10594 + $0x78] sm:$0xf]
      %v11341 = vld [vmem:[%s10594 + $0x7c] sm:$0xf]
      %v11342 = vld [vmem:[%s10594 + $0x84] sm:$0xf]
      %v11343 = vld [vmem:[%s10594 + $0x88] sm:$0xf]
      %v11344 = vld [vmem:[%s10594 + $0x90] sm:$0xf]
      %v11345 = vld [vmem:[%s10594 + $0x94] sm:$0xf]
      %v11346 = vld [vmem:[%s10594 + $0x9c] sm:$0xf]
      %v11347 = vld [vmem:[%s10594 + $0xa0] sm:$0xf]
      %v11348 = vld [vmem:[%s10594 + $0xa8] sm:$0xf]
      %v11349 = vld [vmem:[%s10594 + $0xac] sm:$0xf]
      %v11350 = vld [vmem:[%s10594 + $0xb4] sm:$0xf]
      %v11351 = vld [vmem:[%s10594 + $0xb8] sm:$0xf]
      %v11352 = vld [vmem:[%s10594 + $0x8] sm:$0x1]
      %v11353 = vld [vmem:[%s10594 + $0x14] sm:$0x1]
      %v11354 = vld [vmem:[%s10594 + $0x20] sm:$0x1]
      %v11355 = vld [vmem:[%s10594 + $0x2c] sm:$0x1]
      %v11356 = vld [vmem:[%s10594 + $0x38] sm:$0x1]
      %v11357 = vld [vmem:[%s10594 + $0x44] sm:$0x1]
      %v11358 = vld [vmem:[%s10594 + $0x50] sm:$0x1]
      %v11359 = vld [vmem:[%s10594 + $0x5c] sm:$0x1]
      %v11360 = vld [vmem:[%s10594 + $0x68] sm:$0x1]
      %v11361 = vld [vmem:[%s10594 + $0x74] sm:$0x1]
      %v11362 = vld [vmem:[%s10594 + $0x80] sm:$0x1]
      %v11363 = vld [vmem:[%s10594 + $0x8c] sm:$0x1]
      %v11364 = vld [vmem:[%s10594 + $0x98] sm:$0x1]
      %v11365 = vld [vmem:[%s10594 + $0xa4] sm:$0x1]
      %v11366 = vld [vmem:[%s10594 + $0xb0] sm:$0x1]
      %v11367 = vld [vmem:[%s10594 + $0xbc] sm:$0x1]
      %v11368 = vld [vmem:[%s10594] sm:$0xe]
      %v11369 = vld [vmem:[%s10594 + $0xc] sm:$0xe]
      %v11370 = vld [vmem:[%s10594 + $0x18] sm:$0xe]
      %v11371 = vld [vmem:[%s10594 + $0x24] sm:$0xe]
      %v11372 = vld [vmem:[%s10594 + $0x30] sm:$0xe]
      %v11373 = vld [vmem:[%s10594 + $0x3c] sm:$0xe]
      %v11374 = vld [vmem:[%s10594 + $0x48] sm:$0xe]
      %v11375 = vld [vmem:[%s10594 + $0x54] sm:$0xe]
      %v11376 = vld [vmem:[%s10594 + $0x60] sm:$0xe]
      %v11377 = vld [vmem:[%s10594 + $0x6c] sm:$0xe]
      %v11378 = vld [vmem:[%s10594 + $0x78] sm:$0xe]
      %v11379 = vld [vmem:[%s10594 + $0x84] sm:$0xe]
      %v11380 = vld [vmem:[%s10594 + $0x90] sm:$0xe]
      %v11381 = vld [vmem:[%s10594 + $0x9c] sm:$0xe]
      %v11382 = vld [vmem:[%s10594 + $0xa8] sm:$0xe]
      %v11383 = vld [vmem:[%s10594 + $0xb4] sm:$0xe]
      %v11416 = vunpack.c.l.b16 %v11320
      %v11417 = vunpack.c.l.b16 %v11321
      %v11418 = vunpack.c.l.b16 %v11322
      %v11419 = vunpack.c.l.b16 %v11323
      %v11420 = vunpack.c.l.b16 %v11324
      %v11421 = vunpack.c.l.b16 %v11325
      %v11422 = vunpack.c.l.b16 %v11326
      %v11423 = vunpack.c.l.b16 %v11327
      %v11424 = vunpack.c.l.b16 %v11328
      %v11425 = vunpack.c.l.b16 %v11329
      %v11426 = vunpack.c.l.b16 %v11330
      %v11427 = vunpack.c.l.b16 %v11331
      %v11428 = vunpack.c.l.b16 %v11332
      %v11429 = vunpack.c.l.b16 %v11333
      %v11430 = vunpack.c.l.b16 %v11334
      %v11431 = vunpack.c.l.b16 %v11335
      %v11432 = vunpack.c.l.b16 %v11336
      %v11433 = vunpack.c.l.b16 %v11337
      %v11434 = vunpack.c.l.b16 %v11338
      %v11435 = vunpack.c.l.b16 %v11339
      %v11436 = vunpack.c.l.b16 %v11340
      %v11437 = vunpack.c.l.b16 %v11341
      %v11438 = vunpack.c.l.b16 %v11342
      %v11439 = vunpack.c.l.b16 %v11343
      %v11440 = vunpack.c.l.b16 %v11344
      %v11441 = vunpack.c.l.b16 %v11345
      %v11442 = vunpack.c.l.b16 %v11346
      %v11443 = vunpack.c.l.b16 %v11347
      %v11444 = vunpack.c.l.b16 %v11348
      %v11445 = vunpack.c.l.b16 %v11349
      %v11446 = vunpack.c.l.b16 %v11350
      %v11447 = vunpack.c.l.b16 %v11351
      %v11448 = vpack.c.b16 %v11417, %v11416
      %v11449 = vpack.c.b16 %v11419, %v11418
      %v11450 = vpack.c.b16 %v11421, %v11420
      %v11451 = vpack.c.b16 %v11423, %v11422
      %v11452 = vpack.c.b16 %v11425, %v11424
      %v11453 = vpack.c.b16 %v11427, %v11426
      %v11454 = vpack.c.b16 %v11429, %v11428
      %v11455 = vpack.c.b16 %v11431, %v11430
      %v11456 = vpack.c.b16 %v11433, %v11432
      %v11457 = vpack.c.b16 %v11435, %v11434
      %v11458 = vpack.c.b16 %v11437, %v11436
      %v11459 = vpack.c.b16 %v11439, %v11438
      %v11460 = vpack.c.b16 %v11441, %v11440
      %v11461 = vpack.c.b16 %v11443, %v11442
      %v11462 = vpack.c.b16 %v11445, %v11444
      %v11463 = vpack.c.b16 %v11447, %v11446
      %v11480 = vunpack.c.l.b16 %v11352
      %v11481 = vunpack.c.l.b16 %v11353
      %v11482 = vunpack.c.l.b16 %v11354
      %v11483 = vunpack.c.l.b16 %v11355
      %v11484 = vunpack.c.l.b16 %v11356
      %v11485 = vunpack.c.l.b16 %v11357
      %v11486 = vunpack.c.l.b16 %v11358
      %v11487 = vunpack.c.l.b16 %v11359
      %v11488 = vunpack.c.l.b16 %v11360
      %v11489 = vunpack.c.l.b16 %v11361
      %v11490 = vunpack.c.l.b16 %v11362
      %v11491 = vunpack.c.l.b16 %v11363
      %v11492 = vunpack.c.l.b16 %v11364
      %v11493 = vunpack.c.l.b16 %v11365
      %v11494 = vunpack.c.l.b16 %v11366
      %v11495 = vunpack.c.l.b16 %v11367
      %v11496 = vpack.c.b16 %v11480, %v11480
      %v11497 = vpack.c.b16 %v11481, %v11481
      %v11498 = vpack.c.b16 %v11482, %v11482
      %v11499 = vpack.c.b16 %v11483, %v11483
      %v11500 = vpack.c.b16 %v11484, %v11484
      %v11501 = vpack.c.b16 %v11485, %v11485
      %v11502 = vpack.c.b16 %v11486, %v11486
      %v11503 = vpack.c.b16 %v11487, %v11487
      %v11504 = vpack.c.b16 %v11488, %v11488
      %v11505 = vpack.c.b16 %v11489, %v11489
      %v11506 = vpack.c.b16 %v11490, %v11490
      %v11507 = vpack.c.b16 %v11491, %v11491
      %v11508 = vpack.c.b16 %v11492, %v11492
      %v11509 = vpack.c.b16 %v11493, %v11493
      %v11510 = vpack.c.b16 %v11494, %v11494
      %v11511 = vpack.c.b16 %v11495, %v11495
      %v11513 = vshrl.u32 %v11448, 16
      %v11515 = vshll.u32 %v11448, 16
      %v11517 = vrot.slane %v11515, 1
      %v11518 = vor.u32 %v11513, %v11517
      %v11520 = vshll.u32 %v11496, 16
      %v11522 = vrot.slane %v11520, 1
      %v11523 = vsel %vm5820, %v11518, %v11522
      %v11525 = vshrl.u32 %v11449, 16
      %v11527 = vshll.u32 %v11449, 16
      %v11529 = vrot.slane %v11527, 1
      %v11530 = vor.u32 %v11525, %v11529
      %v11532 = vshll.u32 %v11497, 16
      %v11534 = vrot.slane %v11532, 1
      %v11535 = vsel %vm5820, %v11530, %v11534
      %v11537 = vshrl.u32 %v11450, 16
      %v11539 = vshll.u32 %v11450, 16
      %v11541 = vrot.slane %v11539, 1
      %v11542 = vor.u32 %v11537, %v11541
      %v11544 = vshll.u32 %v11498, 16
      %v11546 = vrot.slane %v11544, 1
      %v11547 = vsel %vm5820, %v11542, %v11546
      %v11549 = vshrl.u32 %v11451, 16
      %v11551 = vshll.u32 %v11451, 16
      %v11553 = vrot.slane %v11551, 1
      %v11554 = vor.u32 %v11549, %v11553
      %v11556 = vshll.u32 %v11499, 16
      %v11558 = vrot.slane %v11556, 1
      %v11559 = vsel %vm5820, %v11554, %v11558
      %v11561 = vshrl.u32 %v11452, 16
      %v11563 = vshll.u32 %v11452, 16
      %v11565 = vrot.slane %v11563, 1
      %v11566 = vor.u32 %v11561, %v11565
      %v11568 = vshll.u32 %v11500, 16
      %v11570 = vrot.slane %v11568, 1
      %v11571 = vsel %vm5820, %v11566, %v11570
      %v11573 = vshrl.u32 %v11453, 16
      %v11575 = vshll.u32 %v11453, 16
      %v11577 = vrot.slane %v11575, 1
      %v11578 = vor.u32 %v11573, %v11577
      %v11580 = vshll.u32 %v11501, 16
      %v11582 = vrot.slane %v11580, 1
      %v11583 = vsel %vm5820, %v11578, %v11582
      %v11585 = vshrl.u32 %v11454, 16
      %v11587 = vshll.u32 %v11454, 16
      %v11589 = vrot.slane %v11587, 1
      %v11590 = vor.u32 %v11585, %v11589
      %v11592 = vshll.u32 %v11502, 16
      %v11594 = vrot.slane %v11592, 1
      %v11595 = vsel %vm5820, %v11590, %v11594
      %v11597 = vshrl.u32 %v11455, 16
      %v11599 = vshll.u32 %v11455, 16
      %v11601 = vrot.slane %v11599, 1
      %v11602 = vor.u32 %v11597, %v11601
      %v11604 = vshll.u32 %v11503, 16
      %v11606 = vrot.slane %v11604, 1
      %v11607 = vsel %vm5820, %v11602, %v11606
      %v11609 = vshrl.u32 %v11456, 16
      %v11611 = vshll.u32 %v11456, 16
      %v11613 = vrot.slane %v11611, 1
      %v11614 = vor.u32 %v11609, %v11613
      %v11616 = vshll.u32 %v11504, 16
      %v11618 = vrot.slane %v11616, 1
      %v11619 = vsel %vm5820, %v11614, %v11618
      %v11621 = vshrl.u32 %v11457, 16
      %v11623 = vshll.u32 %v11457, 16
      %v11625 = vrot.slane %v11623, 1
      %v11626 = vor.u32 %v11621, %v11625
      %v11628 = vshll.u32 %v11505, 16
      %v11630 = vrot.slane %v11628, 1
      %v11631 = vsel %vm5820, %v11626, %v11630
      %v11633 = vshrl.u32 %v11458, 16
      %v11635 = vshll.u32 %v11458, 16
      %v11637 = vrot.slane %v11635, 1
      %v11638 = vor.u32 %v11633, %v11637
      %v11640 = vshll.u32 %v11506, 16
      %v11642 = vrot.slane %v11640, 1
      %v11643 = vsel %vm5820, %v11638, %v11642
      %v11645 = vshrl.u32 %v11459, 16
      %v11647 = vshll.u32 %v11459, 16
      %v11649 = vrot.slane %v11647, 1
      %v11650 = vor.u32 %v11645, %v11649
      %v11652 = vshll.u32 %v11507, 16
      %v11654 = vrot.slane %v11652, 1
      %v11655 = vsel %vm5820, %v11650, %v11654
      %v11657 = vshrl.u32 %v11460, 16
      %v11659 = vshll.u32 %v11460, 16
      %v11661 = vrot.slane %v11659, 1
      %v11662 = vor.u32 %v11657, %v11661
      %v11664 = vshll.u32 %v11508, 16
      %v11666 = vrot.slane %v11664, 1
      %v11667 = vsel %vm5820, %v11662, %v11666
      %v11669 = vshrl.u32 %v11461, 16
      %v11671 = vshll.u32 %v11461, 16
      %v11673 = vrot.slane %v11671, 1
      %v11674 = vor.u32 %v11669, %v11673
      %v11676 = vshll.u32 %v11509, 16
      %v11678 = vrot.slane %v11676, 1
      %v11679 = vsel %vm5820, %v11674, %v11678
      %v11681 = vshrl.u32 %v11462, 16
      %v11683 = vshll.u32 %v11462, 16
      %v11685 = vrot.slane %v11683, 1
      %v11686 = vor.u32 %v11681, %v11685
      %v11688 = vshll.u32 %v11510, 16
      %v11690 = vrot.slane %v11688, 1
      %v11691 = vsel %vm5820, %v11686, %v11690
      %v11693 = vshrl.u32 %v11463, 16
      %v11695 = vshll.u32 %v11463, 16
      %v11697 = vrot.slane %v11695, 1
      %v11698 = vor.u32 %v11693, %v11697
      %v11700 = vshll.u32 %v11511, 16
      %v11702 = vrot.slane %v11700, 1
      %v11703 = vsel %vm5820, %v11698, %v11702
      %11704 = vrot.lane.b32.xlu0 %v11523, 8
      %v11705 = vpop.permute.xlu0 %11704
      %11706 = vrot.lane.b32.xlu0 %v11535, 8
      %v11707 = vpop.permute.xlu0 %11706
      %11708 = vrot.lane.b32.xlu0 %v11547, 8
      %v11709 = vpop.permute.xlu0 %11708
      %11710 = vrot.lane.b32.xlu0 %v11559, 8
      %v11711 = vpop.permute.xlu0 %11710
      %11712 = vrot.lane.b32.xlu0 %v11571, 8
      %v11713 = vpop.permute.xlu0 %11712
      %11714 = vrot.lane.b32.xlu0 %v11583, 8
      %v11715 = vpop.permute.xlu0 %11714
      %11716 = vrot.lane.b32.xlu0 %v11595, 8
      %v11717 = vpop.permute.xlu0 %11716
      %11718 = vrot.lane.b32.xlu0 %v11607, 8
      %v11719 = vpop.permute.xlu0 %11718
      %11720 = vrot.lane.b32.xlu0 %v11619, 8
      %v11721 = vpop.permute.xlu0 %11720
      %11722 = vrot.lane.b32.xlu0 %v11631, 8
      %v11723 = vpop.permute.xlu0 %11722
      %11724 = vrot.lane.b32.xlu0 %v11643, 8
      %v11725 = vpop.permute.xlu0 %11724
      %11726 = vrot.lane.b32.xlu0 %v11655, 8
      %v11727 = vpop.permute.xlu0 %11726
      %11728 = vrot.lane.b32.xlu0 %v11667, 8
      %v11729 = vpop.permute.xlu0 %11728
      %11730 = vrot.lane.b32.xlu0 %v11679, 8
      %v11731 = vpop.permute.xlu0 %11730
      %11732 = vrot.lane.b32.xlu0 %v11691, 8
      %v11733 = vpop.permute.xlu0 %11732
      %11734 = vrot.lane.b32.xlu0 %v11703, 8
      %v11735 = vpop.permute.xlu0 %11734
      %v11752 = vunpack.c.l.b16 %v11368
      %v11753 = vunpack.c.l.b16 %v11369
      %v11754 = vunpack.c.l.b16 %v11370
      %v11755 = vunpack.c.l.b16 %v11371
      %v11756 = vunpack.c.l.b16 %v11372
      %v11757 = vunpack.c.l.b16 %v11373
      %v11758 = vunpack.c.l.b16 %v11374
      %v11759 = vunpack.c.l.b16 %v11375
      %v11760 = vunpack.c.l.b16 %v11376
      %v11761 = vunpack.c.l.b16 %v11377
      %v11762 = vunpack.c.l.b16 %v11378
      %v11763 = vunpack.c.l.b16 %v11379
      %v11764 = vunpack.c.l.b16 %v11380
      %v11765 = vunpack.c.l.b16 %v11381
      %v11766 = vunpack.c.l.b16 %v11382
      %v11767 = vunpack.c.l.b16 %v11383
      %v11768 = vpack.c.b16 %v11417, %v11752
      %v11769 = vpack.c.b16 %v11419, %v11753
      %v11770 = vpack.c.b16 %v11421, %v11754
      %v11771 = vpack.c.b16 %v11423, %v11755
      %v11772 = vpack.c.b16 %v11425, %v11756
      %v11773 = vpack.c.b16 %v11427, %v11757
      %v11774 = vpack.c.b16 %v11429, %v11758
      %v11775 = vpack.c.b16 %v11431, %v11759
      %v11776 = vpack.c.b16 %v11433, %v11760
      %v11777 = vpack.c.b16 %v11435, %v11761
      %v11778 = vpack.c.b16 %v11437, %v11762
      %v11779 = vpack.c.b16 %v11439, %v11763
      %v11780 = vpack.c.b16 %v11441, %v11764
      %v11781 = vpack.c.b16 %v11443, %v11765
      %v11782 = vpack.c.b16 %v11445, %v11766
      %v11783 = vpack.c.b16 %v11447, %v11767
      %v11784 = vrot.slane %v11768, 1
      %v11785 = vrot.slane %v11496, 1
      %v11786 = vsel %vm6093, %v11784, %v11785
      %v11787 = vrot.slane %v11769, 1
      %v11788 = vrot.slane %v11497, 1
      %v11789 = vsel %vm6093, %v11787, %v11788
      %v11790 = vrot.slane %v11770, 1
      %v11791 = vrot.slane %v11498, 1
      %v11792 = vsel %vm6093, %v11790, %v11791
      %v11793 = vrot.slane %v11771, 1
      %v11794 = vrot.slane %v11499, 1
      %v11795 = vsel %vm6093, %v11793, %v11794
      %v11796 = vrot.slane %v11772, 1
      %v11797 = vrot.slane %v11500, 1
      %v11798 = vsel %vm6093, %v11796, %v11797
      %v11799 = vrot.slane %v11773, 1
      %v11800 = vrot.slane %v11501, 1
      %v11801 = vsel %vm6093, %v11799, %v11800
      %v11802 = vrot.slane %v11774, 1
      %v11803 = vrot.slane %v11502, 1
      %v11804 = vsel %vm6093, %v11802, %v11803
      %v11805 = vrot.slane %v11775, 1
      %v11806 = vrot.slane %v11503, 1
      %v11807 = vsel %vm6093, %v11805, %v11806
      %v11808 = vrot.slane %v11776, 1
      %v11809 = vrot.slane %v11504, 1
      %v11810 = vsel %vm6093, %v11808, %v11809
      %v11811 = vrot.slane %v11777, 1
      %v11812 = vrot.slane %v11505, 1
      %v11813 = vsel %vm6093, %v11811, %v11812
      %v11814 = vrot.slane %v11778, 1
      %v11815 = vrot.slane %v11506, 1
      %v11816 = vsel %vm6093, %v11814, %v11815
      %v11817 = vrot.slane %v11779, 1
      %v11818 = vrot.slane %v11507, 1
      %v11819 = vsel %vm6093, %v11817, %v11818
      %v11820 = vrot.slane %v11780, 1
      %v11821 = vrot.slane %v11508, 1
      %v11822 = vsel %vm6093, %v11820, %v11821
      %v11823 = vrot.slane %v11781, 1
      %v11824 = vrot.slane %v11509, 1
      %v11825 = vsel %vm6093, %v11823, %v11824
      %v11826 = vrot.slane %v11782, 1
      %v11827 = vrot.slane %v11510, 1
      %v11828 = vsel %vm6093, %v11826, %v11827
      %v11829 = vrot.slane %v11783, 1
      %v11830 = vrot.slane %v11511, 1
      %v11831 = vsel %vm6093, %v11829, %v11830
      %11832 = vrot.lane.b32.xlu0 %v11786, 16
      %v11833 = vpop.permute.xlu0 %11832
      %11834 = vrot.lane.b32.xlu0 %v11789, 16
      %v11835 = vpop.permute.xlu0 %11834
      %11836 = vrot.lane.b32.xlu0 %v11792, 16
      %v11837 = vpop.permute.xlu0 %11836
      %11838 = vrot.lane.b32.xlu0 %v11795, 16
      %v11839 = vpop.permute.xlu0 %11838
      %11840 = vrot.lane.b32.xlu0 %v11798, 16
      %v11841 = vpop.permute.xlu0 %11840
      %11842 = vrot.lane.b32.xlu0 %v11801, 16
      %v11843 = vpop.permute.xlu0 %11842
      %11844 = vrot.lane.b32.xlu0 %v11804, 16
      %v11845 = vpop.permute.xlu0 %11844
      %11846 = vrot.lane.b32.xlu0 %v11807, 16
      %v11847 = vpop.permute.xlu0 %11846
      %11848 = vrot.lane.b32.xlu0 %v11810, 16
      %v11849 = vpop.permute.xlu0 %11848
      %11850 = vrot.lane.b32.xlu0 %v11813, 16
      %v11851 = vpop.permute.xlu0 %11850
      %11852 = vrot.lane.b32.xlu0 %v11816, 16
      %v11853 = vpop.permute.xlu0 %11852
      %11854 = vrot.lane.b32.xlu0 %v11819, 16
      %v11855 = vpop.permute.xlu0 %11854
      %11856 = vrot.lane.b32.xlu0 %v11822, 16
      %v11857 = vpop.permute.xlu0 %11856
      %11858 = vrot.lane.b32.xlu0 %v11825, 16
      %v11859 = vpop.permute.xlu0 %11858
      %11860 = vrot.lane.b32.xlu0 %v11828, 16
      %v11861 = vpop.permute.xlu0 %11860
      %11862 = vrot.lane.b32.xlu0 %v11831, 16
      %v11863 = vpop.permute.xlu0 %11862
      %v11865 = vsel %vm6718, %v11448, %v11705
      %v11867 = vsel %vm6718, %v11449, %v11707
      %v11869 = vsel %vm6718, %v11450, %v11709
      %v11871 = vsel %vm6718, %v11451, %v11711
      %v11873 = vsel %vm6718, %v11452, %v11713
      %v11875 = vsel %vm6718, %v11453, %v11715
      %v11877 = vsel %vm6718, %v11454, %v11717
      %v11879 = vsel %vm6718, %v11455, %v11719
      %v11881 = vsel %vm6718, %v11456, %v11721
      %v11883 = vsel %vm6718, %v11457, %v11723
      %v11885 = vsel %vm6718, %v11458, %v11725
      %v11887 = vsel %vm6718, %v11459, %v11727
      %v11889 = vsel %vm6718, %v11460, %v11729
      %v11891 = vsel %vm6718, %v11461, %v11731
      %v11893 = vsel %vm6718, %v11462, %v11733
      %v11895 = vsel %vm6718, %v11463, %v11735
      %v11897 = vsel %vm6784, %v11865, %v11833
      %v11899 = vsel %vm6784, %v11867, %v11835
      %v11901 = vsel %vm6784, %v11869, %v11837
      %v11903 = vsel %vm6784, %v11871, %v11839
      %v11905 = vsel %vm6784, %v11873, %v11841
      %v11907 = vsel %vm6784, %v11875, %v11843
      %v11909 = vsel %vm6784, %v11877, %v11845
      %v11911 = vsel %vm6784, %v11879, %v11847
      %v11913 = vsel %vm6784, %v11881, %v11849
      %v11915 = vsel %vm6784, %v11883, %v11851
      %v11917 = vsel %vm6784, %v11885, %v11853
      %v11919 = vsel %vm6784, %v11887, %v11855
      %v11921 = vsel %vm6784, %v11889, %v11857
      %v11923 = vsel %vm6784, %v11891, %v11859
      %v11925 = vsel %vm6784, %v11893, %v11861
      %v11927 = vsel %vm6784, %v11895, %v11863
      %s11928 = scalar_lea.vmem %s6, 12
      %v11929 = vld [vmem:[%s11928] sm:$0xf]
      %v11930 = vld [vmem:[%s11928 + $0x4] sm:$0xf]
      %v11931 = vld [vmem:[%s11928 + $0x8] sm:$0xf]
      %v11935 = vunpack.c.l.b16 %v11929
      %v11936 = vunpack.c.l.b16 %v11930
      %v11937 = vunpack.c.l.b16 %v11931
      %v11938 = vpack.c.b16 %v11936, %v11935
      %v11939 = vpack.c.b16 %v11937, %v11937
      %v11941 = vsel %vm8146, %v11897, 0
      %v11943 = vsel %vm8146, %v11899, 0
      %v11945 = vsel %vm8146, %v11901, 0
      %v11947 = vsel %vm8146, %v11903, 0
      %v11949 = vsel %vm8146, %v11905, 0
      %v11951 = vsel %vm8146, %v11907, 0
      %v11953 = vsel %vm8146, %v11909, 0
      %v11955 = vsel %vm8146, %v11911, 0
      %v11957 = vsel %vm8146, %v11913, 0
      %v11959 = vsel %vm8146, %v11915, 0
      %v11961 = vsel %vm8146, %v11917, 0
      %v11963 = vsel %vm8146, %v11919, 0
      %v11965 = vsel %vm8146, %v11921, 0
      %v11967 = vsel %vm8146, %v11923, 0
      %v11969 = vsel %vm8146, %v11925, 0
      %v11971 = vsel %vm8146, %v11927, 0
      %v11974 = vsel %vm8179, %v11939, 0
      %11976 = vmatprep.subr.bf16.mxu0 0
      %11977 = vmatpush1.bf16.msra.mxu0 %v11938
      %11978 = vmatprep.subr.bf16.mxu0 0
      %11979 = vmatpush1.bf16.msra.mxu0 %v11974
      %11980 = vmatprep.subr.bf16.mxu0 0
      %11981 = vmatpush1.bf16.msra.mxu0 0
      %11982 = vmatprep.subr.bf16.mxu0 0
      %11983 = vmatpush1.bf16.msra.mxu0 0
      %11984 = vmatprep.subr.bf16.mxu0 0
      %11985 = vmatpush1.bf16.msra.mxu0 0
      %11986 = vmatprep.subr.bf16.mxu0 0
      %11987 = vmatpush1.bf16.msra.mxu0 0
      %11988 = vmatprep.subr.bf16.mxu0 0
      %11989 = vmatpush1.bf16.msra.mxu0 0
      %11990 = vmatprep.subr.bf16.mxu0 0
      %11991 = vmatpush1.bf16.msra.mxu0 0
      %11992 = vmatprep.subr.bf16.mxu0 0
      %11993 = vmatpush1.bf16.msra.mxu0 0
      %11994 = vmatprep.subr.bf16.mxu0 0
      %11995 = vmatpush1.bf16.msra.mxu0 0
      %11996 = vmatprep.subr.bf16.mxu0 0
      %11997 = vmatpush1.bf16.msra.mxu0 0
      %11998 = vmatprep.subr.bf16.mxu0 0
      %11999 = vmatpush1.bf16.msra.mxu0 0
      %12000 = vmatprep.subr.bf16.mxu0 0
      %12001 = vmatpush1.bf16.msra.mxu0 0
      %12002 = vmatprep.subr.bf16.mxu0 0
      %12003 = vmatpush1.bf16.msra.mxu0 0
      %12004 = vmatprep.subr.bf16.mxu0 0
      %12005 = vmatpush1.bf16.msra.mxu0 0
      %12006 = vmatprep.subr.bf16.mxu0 0
      %12007 = vmatpush1.bf16.msra.mxu0 0
      %12008 = vmatprep.mubr.bf16.mxu0 0
      %12009 = vmatmul.mubr.bf16.gmra.mrb[0].mxu0 %v11941
      %v12010 = vpop.f32.mrb[0].mxu0
      %v12011 = vadd.f32 0.0, %v12010
      %v12012 = vpop.f32.mrb[0].mxu0
      %v12013 = vpop.f32.mrb[0].mxu0
      %v12014 = vadd.f32 0.0, %v12013
      %v12015 = vpop.f32.mrb[0].mxu0
      %12016 = vmatprep.mubr.bf16.mxu0 0
      %12017 = vmatmul.mubr.bf16.gmra.mrb[0].mxu0 %v11943
      %v12018 = vpop.f32.mrb[0].mxu0
      %v12019 = vadd.f32 0.0, %v12018
      %v12020 = vpop.f32.mrb[0].mxu0
      %v12021 = vpop.f32.mrb[0].mxu0
      %v12022 = vadd.f32 0.0, %v12021
      %v12023 = vpop.f32.mrb[0].mxu0
      %12024 = vmatprep.mubr.bf16.mxu0 0
      %12025 = vmatmul.mubr.bf16.gmra.mrb[0].mxu0 %v11945
      %v12026 = vpop.f32.mrb[0].mxu0
      %v12027 = vadd.f32 0.0, %v12026
      %v12028 = vpop.f32.mrb[0].mxu0
      %v12029 = vpop.f32.mrb[0].mxu0
      %v12030 = vadd.f32 0.0, %v12029
      %v12031 = vpop.f32.mrb[0].mxu0
      %12032 = vmatprep.mubr.bf16.mxu0 0
      %12033 = vmatmul.mubr.bf16.gmra.mrb[0].mxu0 %v11947
      %v12034 = vpop.f32.mrb[0].mxu0
      %v12035 = vadd.f32 0.0, %v12034
      %v12036 = vpop.f32.mrb[0].mxu0
      %v12037 = vpop.f32.mrb[0].mxu0
      %v12038 = vadd.f32 0.0, %v12037
      %v12039 = vpop.f32.mrb[0].mxu0
      %12040 = vmatprep.mubr.bf16.mxu0 0
      %12041 = vmatmul.mubr.bf16.gmra.mrb[0].mxu0 %v11949
      %v12042 = vpop.f32.mrb[0].mxu0
      %v12043 = vadd.f32 0.0, %v12042
      %v12044 = vpop.f32.mrb[0].mxu0
      %v12045 = vpop.f32.mrb[0].mxu0
      %v12046 = vadd.f32 0.0, %v12045
      %v12047 = vpop.f32.mrb[0].mxu0
      %12048 = vmatprep.mubr.bf16.mxu0 0
      %12049 = vmatmul.mubr.bf16.gmra.mrb[0].mxu0 %v11951
      %v12050 = vpop.f32.mrb[0].mxu0
      %v12051 = vadd.f32 0.0, %v12050
      %v12052 = vpop.f32.mrb[0].mxu0
      %v12053 = vpop.f32.mrb[0].mxu0
      %v12054 = vadd.f32 0.0, %v12053
      %v12055 = vpop.f32.mrb[0].mxu0
      %12056 = vmatprep.mubr.bf16.mxu0 0
      %12057 = vmatmul.mubr.bf16.gmra.mrb[0].mxu0 %v11953
      %v12058 = vpop.f32.mrb[0].mxu0
      %v12059 = vadd.f32 0.0, %v12058
      %v12060 = vpop.f32.mrb[0].mxu0
      %v12061 = vpop.f32.mrb[0].mxu0
      %v12062 = vadd.f32 0.0, %v12061
      %v12063 = vpop.f32.mrb[0].mxu0
      %12064 = vmatprep.mubr.bf16.mxu0 0
      %12065 = vmatmul.mubr.bf16.gmra.mrb[0].mxu0 %v11955
      %v12066 = vpop.f32.mrb[0].mxu0
      %v12067 = vadd.f32 0.0, %v12066
      %v12068 = vpop.f32.mrb[0].mxu0
      %v12069 = vpop.f32.mrb[0].mxu0
      %v12070 = vadd.f32 0.0, %v12069
      %v12071 = vpop.f32.mrb[0].mxu0
      %12072 = vmatprep.mubr.bf16.mxu0 0
      %12073 = vmatmul.mubr.bf16.gmra.mrb[0].mxu0 %v11957
      %v12074 = vpop.f32.mrb[0].mxu0
      %v12075 = vadd.f32 0.0, %v12074
      %v12076 = vpop.f32.mrb[0].mxu0
      %v12077 = vpop.f32.mrb[0].mxu0
      %v12078 = vadd.f32 0.0, %v12077
      %v12079 = vpop.f32.mrb[0].mxu0
      %12080 = vmatprep.mubr.bf16.mxu0 0
      %12081 = vmatmul.mubr.bf16.gmra.mrb[0].mxu0 %v11959
      %v12082 = vpop.f32.mrb[0].mxu0
      %v12083 = vadd.f32 0.0, %v12082
      %v12084 = vpop.f32.mrb[0].mxu0
      %v12085 = vpop.f32.mrb[0].mxu0
      %v12086 = vadd.f32 0.0, %v12085
      %v12087 = vpop.f32.mrb[0].mxu0
      %12088 = vmatprep.mubr.bf16.mxu0 0
      %12089 = vmatmul.mubr.bf16.gmra.mrb[0].mxu0 %v11961
      %v12090 = vpop.f32.mrb[0].mxu0
      %v12091 = vadd.f32 0.0, %v12090
      %v12092 = vpop.f32.mrb[0].mxu0
      %v12093 = vpop.f32.mrb[0].mxu0
      %v12094 = vadd.f32 0.0, %v12093
      %v12095 = vpop.f32.mrb[0].mxu0
      %12096 = vmatprep.mubr.bf16.mxu0 0
      %12097 = vmatmul.mubr.bf16.gmra.mrb[0].mxu0 %v11963
      %v12098 = vpop.f32.mrb[0].mxu0
      %v12099 = vadd.f32 0.0, %v12098
      %v12100 = vpop.f32.mrb[0].mxu0
      %v12101 = vpop.f32.mrb[0].mxu0
      %v12102 = vadd.f32 0.0, %v12101
      %v12103 = vpop.f32.mrb[0].mxu0
      %12104 = vmatprep.mubr.bf16.mxu0 0
      %12105 = vmatmul.mubr.bf16.gmra.mrb[0].mxu0 %v11965
      %v12106 = vpop.f32.mrb[0].mxu0
      %v12107 = vadd.f32 0.0, %v12106
      %v12108 = vpop.f32.mrb[0].mxu0
      %v12109 = vpop.f32.mrb[0].mxu0
      %v12110 = vadd.f32 0.0, %v12109
      %v12111 = vpop.f32.mrb[0].mxu0
      %12112 = vmatprep.mubr.bf16.mxu0 0
      %12113 = vmatmul.mubr.bf16.gmra.mrb[0].mxu0 %v11967
      %v12114 = vpop.f32.mrb[0].mxu0
      %v12115 = vadd.f32 0.0, %v12114
      %v12116 = vpop.f32.mrb[0].mxu0
      %v12117 = vpop.f32.mrb[0].mxu0
      %v12118 = vadd.f32 0.0, %v12117
      %v12119 = vpop.f32.mrb[0].mxu0
      %12120 = vmatprep.mubr.bf16.mxu0 0
      %12121 = vmatmul.mubr.bf16.gmra.mrb[0].mxu0 %v11969
      %v12122 = vpop.f32.mrb[0].mxu0
      %v12123 = vadd.f32 0.0, %v12122
      %v12124 = vpop.f32.mrb[0].mxu0
      %v12125 = vpop.f32.mrb[0].mxu0
      %v12126 = vadd.f32 0.0, %v12125
      %v12127 = vpop.f32.mrb[0].mxu0
      %12128 = vmatprep.mubr.bf16.mxu0 0
      %12129 = vmatmul.mubr.bf16.gmra.mrb[0].mxu0 %v11971
      %v12130 = vpop.f32.mrb[0].mxu0
      %v12131 = vadd.f32 0.0, %v12130
      %v12132 = vpop.f32.mrb[0].mxu0
      %v12133 = vpop.f32.mrb[0].mxu0
      %v12134 = vadd.f32 0.0, %v12133
      %v12135 = vpop.f32.mrb[0].mxu0
      %12136 = vdwg.mxu0
      %v12140 = vunpack.c.l.b16 %v11317
      %v12141 = vunpack.c.l.b16 %v11318
      %v12142 = vunpack.c.l.b16 %v11319
      %v12143 = vpack.c.b16 %v12141, %v12140
      %v12144 = vpack.c.b16 %v12142, %v12142
      %v12146 = vsel %vm8146, %v11286, 0
      %v12148 = vsel %vm8146, %v11288, 0
      %v12150 = vsel %vm8146, %v11290, 0
      %v12152 = vsel %vm8146, %v11292, 0
      %v12154 = vsel %vm8146, %v11294, 0
      %v12156 = vsel %vm8146, %v11296, 0
      %v12158 = vsel %vm8146, %v11298, 0
      %v12160 = vsel %vm8146, %v11300, 0
      %v12162 = vsel %vm8146, %v11302, 0
      %v12164 = vsel %vm8146, %v11304, 0
      %v12166 = vsel %vm8146, %v11306, 0
      %v12168 = vsel %vm8146, %v11308, 0
      %v12170 = vsel %vm8146, %v11310, 0
      %v12172 = vsel %vm8146, %v11312, 0
      %v12174 = vsel %vm8146, %v11314, 0
      %v12176 = vsel %vm8146, %v11316, 0
      %v12179 = vsel %vm8179, %v12144, 0
      %12181 = vmatprep.subr.bf16.mxu0 0
      %12182 = vmatpush1.bf16.msra.mxu0 %v12143
      %12183 = vmatprep.subr.bf16.mxu0 0
      %12184 = vmatpush1.bf16.msra.mxu0 %v12179
      %12185 = vmatprep.subr.bf16.mxu0 0
      %12186 = vmatpush1.bf16.msra.mxu0 0
      %12187 = vmatprep.subr.bf16.mxu0 0
      %12188 = vmatpush1.bf16.msra.mxu0 0
      %12189 = vmatprep.subr.bf16.mxu0 0
      %12190 = vmatpush1.bf16.msra.mxu0 0
      %12191 = vmatprep.subr.bf16.mxu0 0
      %12192 = vmatpush1.bf16.msra.mxu0 0
      %12193 = vmatprep.subr.bf16.mxu0 0
      %12194 = vmatpush1.bf16.msra.mxu0 0
      %12195 = vmatprep.subr.bf16.mxu0 0
      %12196 = vmatpush1.bf16.msra.mxu0 0
      %12197 = vmatprep.subr.bf16.mxu0 0
      %12198 = vmatpush1.bf16.msra.mxu0 0
      %12199 = vmatprep.subr.bf16.mxu0 0
      %12200 = vmatpush1.bf16.msra.mxu0 0
      %12201 = vmatprep.subr.bf16.mxu0 0
      %12202 = vmatpush1.bf16.msra.mxu0 0
      %12203 = vmatprep.subr.bf16.mxu0 0
      %12204 = vmatpush1.bf16.msra.mxu0 0
      %12205 = vmatprep.subr.bf16.mxu0 0
      %12206 = vmatpush1.bf16.msra.mxu0 0
      %12207 = vmatprep.subr.bf16.mxu0 0
      %12208 = vmatpush1.bf16.msra.mxu0 0
      %12209 = vmatprep.subr.bf16.mxu0 0
      %12210 = vmatpush1.bf16.msra.mxu0 0
      %12211 = vmatprep.subr.bf16.mxu0 0
      %12212 = vmatpush1.bf16.msra.mxu0 0
      %12213 = vmatprep.mubr.bf16.mxu0 0
      %12214 = vmatmul.mubr.bf16.gmra.mrb[0].mxu0 %v12146
      %v12215 = vpop.f32.mrb[0].mxu0
      %v12216 = vadd.f32 %v12011, %v12215
      %v12217 = vpop.f32.mrb[0].mxu0
      %v12218 = vpop.f32.mrb[0].mxu0
      %v12219 = vadd.f32 %v12014, %v12218
      %v12220 = vpop.f32.mrb[0].mxu0
      %12221 = vmatprep.mubr.bf16.mxu0 0
      %12222 = vmatmul.mubr.bf16.gmra.mrb[0].mxu0 %v12148
      %v12223 = vpop.f32.mrb[0].mxu0
      %v12224 = vadd.f32 %v12019, %v12223
      %v12225 = vpop.f32.mrb[0].mxu0
      %v12226 = vpop.f32.mrb[0].mxu0
      %v12227 = vadd.f32 %v12022, %v12226
      %v12228 = vpop.f32.mrb[0].mxu0
      %12229 = vmatprep.mubr.bf16.mxu0 0
      %12230 = vmatmul.mubr.bf16.gmra.mrb[0].mxu0 %v12150
      %v12231 = vpop.f32.mrb[0].mxu0
      %v12232 = vadd.f32 %v12027, %v12231
      %v12233 = vpop.f32.mrb[0].mxu0
      %v12234 = vpop.f32.mrb[0].mxu0
      %v12235 = vadd.f32 %v12030, %v12234
      %v12236 = vpop.f32.mrb[0].mxu0
      %12237 = vmatprep.mubr.bf16.mxu0 0
      %12238 = vmatmul.mubr.bf16.gmra.mrb[0].mxu0 %v12152
      %v12239 = vpop.f32.mrb[0].mxu0
      %v12240 = vadd.f32 %v12035, %v12239
      %v12241 = vpop.f32.mrb[0].mxu0
      %v12242 = vpop.f32.mrb[0].mxu0
      %v12243 = vadd.f32 %v12038, %v12242
      %v12244 = vpop.f32.mrb[0].mxu0
      %12245 = vmatprep.mubr.bf16.mxu0 0
      %12246 = vmatmul.mubr.bf16.gmra.mrb[0].mxu0 %v12154
      %v12247 = vpop.f32.mrb[0].mxu0
      %v12248 = vadd.f32 %v12043, %v12247
      %v12249 = vpop.f32.mrb[0].mxu0
      %v12250 = vpop.f32.mrb[0].mxu0
      %v12251 = vadd.f32 %v12046, %v12250
      %v12252 = vpop.f32.mrb[0].mxu0
      %12253 = vmatprep.mubr.bf16.mxu0 0
      %12254 = vmatmul.mubr.bf16.gmra.mrb[0].mxu0 %v12156
      %v12255 = vpop.f32.mrb[0].mxu0
      %v12256 = vadd.f32 %v12051, %v12255
      %v12257 = vpop.f32.mrb[0].mxu0
      %v12258 = vpop.f32.mrb[0].mxu0
      %v12259 = vadd.f32 %v12054, %v12258
      %v12260 = vpop.f32.mrb[0].mxu0
      %12261 = vmatprep.mubr.bf16.mxu0 0
      %12262 = vmatmul.mubr.bf16.gmra.mrb[0].mxu0 %v12158
      %v12263 = vpop.f32.mrb[0].mxu0
      %v12264 = vadd.f32 %v12059, %v12263
      %v12265 = vpop.f32.mrb[0].mxu0
      %v12266 = vpop.f32.mrb[0].mxu0
      %v12267 = vadd.f32 %v12062, %v12266
      %v12268 = vpop.f32.mrb[0].mxu0
      %12269 = vmatprep.mubr.bf16.mxu0 0
      %12270 = vmatmul.mubr.bf16.gmra.mrb[0].mxu0 %v12160
      %v12271 = vpop.f32.mrb[0].mxu0
      %v12272 = vadd.f32 %v12067, %v12271
      %v12273 = vpop.f32.mrb[0].mxu0
      %v12274 = vpop.f32.mrb[0].mxu0
      %v12275 = vadd.f32 %v12070, %v12274
      %v12276 = vpop.f32.mrb[0].mxu0
      %12277 = vmatprep.mubr.bf16.mxu0 0
      %12278 = vmatmul.mubr.bf16.gmra.mrb[0].mxu0 %v12162
      %v12279 = vpop.f32.mrb[0].mxu0
      %v12280 = vadd.f32 %v12075, %v12279
      %v12281 = vpop.f32.mrb[0].mxu0
      %v12282 = vpop.f32.mrb[0].mxu0
      %v12283 = vadd.f32 %v12078, %v12282
      %v12284 = vpop.f32.mrb[0].mxu0
      %12285 = vmatprep.mubr.bf16.mxu0 0
      %12286 = vmatmul.mubr.bf16.gmra.mrb[0].mxu0 %v12164
      %v12287 = vpop.f32.mrb[0].mxu0
      %v12288 = vadd.f32 %v12083, %v12287
      %v12289 = vpop.f32.mrb[0].mxu0
      %v12290 = vpop.f32.mrb[0].mxu0
      %v12291 = vadd.f32 %v12086, %v12290
      %v12292 = vpop.f32.mrb[0].mxu0
      %12293 = vmatprep.mubr.bf16.mxu0 0
      %12294 = vmatmul.mubr.bf16.gmra.mrb[0].mxu0 %v12166
      %v12295 = vpop.f32.mrb[0].mxu0
      %v12296 = vadd.f32 %v12091, %v12295
      %v12297 = vpop.f32.mrb[0].mxu0
      %v12298 = vpop.f32.mrb[0].mxu0
      %v12299 = vadd.f32 %v12094, %v12298
      %v12300 = vpop.f32.mrb[0].mxu0
      %12301 = vmatprep.mubr.bf16.mxu0 0
      %12302 = vmatmul.mubr.bf16.gmra.mrb[0].mxu0 %v12168
      %v12303 = vpop.f32.mrb[0].mxu0
      %v12304 = vadd.f32 %v12099, %v12303
      %v12305 = vpop.f32.mrb[0].mxu0
      %v12306 = vpop.f32.mrb[0].mxu0
      %v12307 = vadd.f32 %v12102, %v12306
      %v12308 = vpop.f32.mrb[0].mxu0
      %12309 = vmatprep.mubr.bf16.mxu0 0
      %12310 = vmatmul.mubr.bf16.gmra.mrb[0].mxu0 %v12170
      %v12311 = vpop.f32.mrb[0].mxu0
      %v12312 = vadd.f32 %v12107, %v12311
      %v12313 = vpop.f32.mrb[0].mxu0
      %v12314 = vpop.f32.mrb[0].mxu0
      %v12315 = vadd.f32 %v12110, %v12314
      %v12316 = vpop.f32.mrb[0].mxu0
      %12317 = vmatprep.mubr.bf16.mxu0 0
      %12318 = vmatmul.mubr.bf16.gmra.mrb[0].mxu0 %v12172
      %v12319 = vpop.f32.mrb[0].mxu0
      %v12320 = vadd.f32 %v12115, %v12319
      %v12321 = vpop.f32.mrb[0].mxu0
      %v12322 = vpop.f32.mrb[0].mxu0
      %v12323 = vadd.f32 %v12118, %v12322
      %v12324 = vpop.f32.mrb[0].mxu0
      %12325 = vmatprep.mubr.bf16.mxu0 0
      %12326 = vmatmul.mubr.bf16.gmra.mrb[0].mxu0 %v12174
      %v12327 = vpop.f32.mrb[0].mxu0
      %v12328 = vadd.f32 %v12123, %v12327
      %v12329 = vpop.f32.mrb[0].mxu0
      %v12330 = vpop.f32.mrb[0].mxu0
      %v12331 = vadd.f32 %v12126, %v12330
      %v12332 = vpop.f32.mrb[0].mxu0
      %12333 = vmatprep.mubr.bf16.mxu0 0
      %12334 = vmatmul.mubr.bf16.gmra.mrb[0].mxu0 %v12176
      %v12335 = vpop.f32.mrb[0].mxu0
      %v12336 = vadd.f32 %v12131, %v12335
      %v12337 = vpop.f32.mrb[0].mxu0
      %v12338 = vpop.f32.mrb[0].mxu0
      %v12339 = vadd.f32 %v12134, %v12338
      %v12340 = vpop.f32.mrb[0].mxu0
      %12341 = vdwg.mxu0
      %s12342 = scalar_lea.vmem [#allocation4], 24
      %v12343 = vld [vmem:[%s12342] sm:$0xf]
      %v12344 = vld [vmem:[%s12342 + $0x4] sm:$0xf]
      %v12345 = vld [vmem:[%s12342 + $0xc] sm:$0xf]
      %v12346 = vld [vmem:[%s12342 + $0x10] sm:$0xf]
      %v12347 = vld [vmem:[%s12342 + $0x18] sm:$0xf]
      %v12348 = vld [vmem:[%s12342 + $0x1c] sm:$0xf]
      %v12349 = vld [vmem:[%s12342 + $0x24] sm:$0xf]
      %v12350 = vld [vmem:[%s12342 + $0x28] sm:$0xf]
      %v12351 = vld [vmem:[%s12342 + $0x30] sm:$0xf]
      %v12352 = vld [vmem:[%s12342 + $0x34] sm:$0xf]
      %v12353 = vld [vmem:[%s12342 + $0x3c] sm:$0xf]
      %v12354 = vld [vmem:[%s12342 + $0x40] sm:$0xf]
      %v12355 = vld [vmem:[%s12342 + $0x48] sm:$0xf]
      %v12356 = vld [vmem:[%s12342 + $0x4c] sm:$0xf]
      %v12357 = vld [vmem:[%s12342 + $0x54] sm:$0xf]
      %v12358 = vld [vmem:[%s12342 + $0x58] sm:$0xf]
      %v12359 = vld [vmem:[%s12342 + $0x60] sm:$0xf]
      %v12360 = vld [vmem:[%s12342 + $0x64] sm:$0xf]
      %v12361 = vld [vmem:[%s12342 + $0x6c] sm:$0xf]
      %v12362 = vld [vmem:[%s12342 + $0x70] sm:$0xf]
      %v12363 = vld [vmem:[%s12342 + $0x78] sm:$0xf]
      %v12364 = vld [vmem:[%s12342 + $0x7c] sm:$0xf]
      %v12365 = vld [vmem:[%s12342 + $0x84] sm:$0xf]
      %v12366 = vld [vmem:[%s12342 + $0x88] sm:$0xf]
      %v12367 = vld [vmem:[%s12342 + $0x90] sm:$0xf]
      %v12368 = vld [vmem:[%s12342 + $0x94] sm:$0xf]
      %v12369 = vld [vmem:[%s12342 + $0x9c] sm:$0xf]
      %v12370 = vld [vmem:[%s12342 + $0xa0] sm:$0xf]
      %v12371 = vld [vmem:[%s12342 + $0xa8] sm:$0xf]
      %v12372 = vld [vmem:[%s12342 + $0xac] sm:$0xf]
      %v12373 = vld [vmem:[%s12342 + $0xb4] sm:$0xf]
      %v12374 = vld [vmem:[%s12342 + $0xb8] sm:$0xf]
      %v12375 = vld [vmem:[%s12342 + $0x8] sm:$0x1]
      %v12376 = vld [vmem:[%s12342 + $0x14] sm:$0x1]
      %v12377 = vld [vmem:[%s12342 + $0x20] sm:$0x1]
      %v12378 = vld [vmem:[%s12342 + $0x2c] sm:$0x1]
      %v12379 = vld [vmem:[%s12342 + $0x38] sm:$0x1]
      %v12380 = vld [vmem:[%s12342 + $0x44] sm:$0x1]
      %v12381 = vld [vmem:[%s12342 + $0x50] sm:$0x1]
      %v12382 = vld [vmem:[%s12342 + $0x5c] sm:$0x1]
      %v12383 = vld [vmem:[%s12342 + $0x68] sm:$0x1]
      %v12384 = vld [vmem:[%s12342 + $0x74] sm:$0x1]
      %v12385 = vld [vmem:[%s12342 + $0x80] sm:$0x1]
      %v12386 = vld [vmem:[%s12342 + $0x8c] sm:$0x1]
      %v12387 = vld [vmem:[%s12342 + $0x98] sm:$0x1]
      %v12388 = vld [vmem:[%s12342 + $0xa4] sm:$0x1]
      %v12389 = vld [vmem:[%s12342 + $0xb0] sm:$0x1]
      %v12390 = vld [vmem:[%s12342 + $0xbc] sm:$0x1]
      %v12391 = vld [vmem:[%s12342] sm:$0xe]
      %v12392 = vld [vmem:[%s12342 + $0xc] sm:$0xe]
      %v12393 = vld [vmem:[%s12342 + $0x18] sm:$0xe]
      %v12394 = vld [vmem:[%s12342 + $0x24] sm:$0xe]
      %v12395 = vld [vmem:[%s12342 + $0x30] sm:$0xe]
      %v12396 = vld [vmem:[%s12342 + $0x3c] sm:$0xe]
      %v12397 = vld [vmem:[%s12342 + $0x48] sm:$0xe]
      %v12398 = vld [vmem:[%s12342 + $0x54] sm:$0xe]
      %v12399 = vld [vmem:[%s12342 + $0x60] sm:$0xe]
      %v12400 = vld [vmem:[%s12342 + $0x6c] sm:$0xe]
      %v12401 = vld [vmem:[%s12342 + $0x78] sm:$0xe]
      %v12402 = vld [vmem:[%s12342 + $0x84] sm:$0xe]
      %v12403 = vld [vmem:[%s12342 + $0x90] sm:$0xe]
      %v12404 = vld [vmem:[%s12342 + $0x9c] sm:$0xe]
      %v12405 = vld [vmem:[%s12342 + $0xa8] sm:$0xe]
      %v12406 = vld [vmem:[%s12342 + $0xb4] sm:$0xe]
      %v12439 = vunpack.c.l.b16 %v12343
      %v12440 = vunpack.c.l.b16 %v12344
      %v12441 = vunpack.c.l.b16 %v12345
      %v12442 = vunpack.c.l.b16 %v12346
      %v12443 = vunpack.c.l.b16 %v12347
      %v12444 = vunpack.c.l.b16 %v12348
      %v12445 = vunpack.c.l.b16 %v12349
      %v12446 = vunpack.c.l.b16 %v12350
      %v12447 = vunpack.c.l.b16 %v12351
      %v12448 = vunpack.c.l.b16 %v12352
      %v12449 = vunpack.c.l.b16 %v12353
      %v12450 = vunpack.c.l.b16 %v12354
      %v12451 = vunpack.c.l.b16 %v12355
      %v12452 = vunpack.c.l.b16 %v12356
      %v12453 = vunpack.c.l.b16 %v12357
      %v12454 = vunpack.c.l.b16 %v12358
      %v12455 = vunpack.c.l.b16 %v12359
      %v12456 = vunpack.c.l.b16 %v12360
      %v12457 = vunpack.c.l.b16 %v12361
      %v12458 = vunpack.c.l.b16 %v12362
      %v12459 = vunpack.c.l.b16 %v12363
      %v12460 = vunpack.c.l.b16 %v12364
      %v12461 = vunpack.c.l.b16 %v12365
      %v12462 = vunpack.c.l.b16 %v12366
      %v12463 = vunpack.c.l.b16 %v12367
      %v12464 = vunpack.c.l.b16 %v12368
      %v12465 = vunpack.c.l.b16 %v12369
      %v12466 = vunpack.c.l.b16 %v12370
      %v12467 = vunpack.c.l.b16 %v12371
      %v12468 = vunpack.c.l.b16 %v12372
      %v12469 = vunpack.c.l.b16 %v12373
      %v12470 = vunpack.c.l.b16 %v12374
      %v12471 = vpack.c.b16 %v12440, %v12439
      %v12472 = vpack.c.b16 %v12442, %v12441
      %v12473 = vpack.c.b16 %v12444, %v12443
      %v12474 = vpack.c.b16 %v12446, %v12445
      %v12475 = vpack.c.b16 %v12448, %v12447
      %v12476 = vpack.c.b16 %v12450, %v12449
      %v12477 = vpack.c.b16 %v12452, %v12451
      %v12478 = vpack.c.b16 %v12454, %v12453
      %v12479 = vpack.c.b16 %v12456, %v12455
      %v12480 = vpack.c.b16 %v12458, %v12457
      %v12481 = vpack.c.b16 %v12460, %v12459
      %v12482 = vpack.c.b16 %v12462, %v12461
      %v12483 = vpack.c.b16 %v12464, %v12463
      %v12484 = vpack.c.b16 %v12466, %v12465
      %v12485 = vpack.c.b16 %v12468, %v12467
      %v12486 = vpack.c.b16 %v12470, %v12469
      %v12503 = vunpack.c.l.b16 %v12375
      %v12504 = vunpack.c.l.b16 %v12376
      %v12505 = vunpack.c.l.b16 %v12377
      %v12506 = vunpack.c.l.b16 %v12378
      %v12507 = vunpack.c.l.b16 %v12379
      %v12508 = vunpack.c.l.b16 %v12380
      %v12509 = vunpack.c.l.b16 %v12381
      %v12510 = vunpack.c.l.b16 %v12382
      %v12511 = vunpack.c.l.b16 %v12383
      %v12512 = vunpack.c.l.b16 %v12384
      %v12513 = vunpack.c.l.b16 %v12385
      %v12514 = vunpack.c.l.b16 %v12386
      %v12515 = vunpack.c.l.b16 %v12387
      %v12516 = vunpack.c.l.b16 %v12388
      %v12517 = vunpack.c.l.b16 %v12389
      %v12518 = vunpack.c.l.b16 %v12390
      %v12519 = vpack.c.b16 %v12503, %v12503
      %v12520 = vpack.c.b16 %v12504, %v12504
      %v12521 = vpack.c.b16 %v12505, %v12505
      %v12522 = vpack.c.b16 %v12506, %v12506
      %v12523 = vpack.c.b16 %v12507, %v12507
      %v12524 = vpack.c.b16 %v12508, %v12508
      %v12525 = vpack.c.b16 %v12509, %v12509
      %v12526 = vpack.c.b16 %v12510, %v12510
      %v12527 = vpack.c.b16 %v12511, %v12511
      %v12528 = vpack.c.b16 %v12512, %v12512
      %v12529 = vpack.c.b16 %v12513, %v12513
      %v12530 = vpack.c.b16 %v12514, %v12514
      %v12531 = vpack.c.b16 %v12515, %v12515
      %v12532 = vpack.c.b16 %v12516, %v12516
      %v12533 = vpack.c.b16 %v12517, %v12517
      %v12534 = vpack.c.b16 %v12518, %v12518
      %v12536 = vshrl.u32 %v12471, 16
      %v12538 = vshll.u32 %v12471, 16
      %v12540 = vrot.slane %v12538, 1
      %v12541 = vor.u32 %v12536, %v12540
      %v12543 = vshll.u32 %v12519, 16
      %v12545 = vrot.slane %v12543, 1
      %v12546 = vsel %vm5820, %v12541, %v12545
      %v12548 = vshrl.u32 %v12472, 16
      %v12550 = vshll.u32 %v12472, 16
      %v12552 = vrot.slane %v12550, 1
      %v12553 = vor.u32 %v12548, %v12552
      %v12555 = vshll.u32 %v12520, 16
      %v12557 = vrot.slane %v12555, 1
      %v12558 = vsel %vm5820, %v12553, %v12557
      %v12560 = vshrl.u32 %v12473, 16
      %v12562 = vshll.u32 %v12473, 16
      %v12564 = vrot.slane %v12562, 1
      %v12565 = vor.u32 %v12560, %v12564
      %v12567 = vshll.u32 %v12521, 16
      %v12569 = vrot.slane %v12567, 1
      %v12570 = vsel %vm5820, %v12565, %v12569
      %v12572 = vshrl.u32 %v12474, 16
      %v12574 = vshll.u32 %v12474, 16
      %v12576 = vrot.slane %v12574, 1
      %v12577 = vor.u32 %v12572, %v12576
      %v12579 = vshll.u32 %v12522, 16
      %v12581 = vrot.slane %v12579, 1
      %v12582 = vsel %vm5820, %v12577, %v12581
      %v12584 = vshrl.u32 %v12475, 16
      %v12586 = vshll.u32 %v12475, 16
      %v12588 = vrot.slane %v12586, 1
      %v12589 = vor.u32 %v12584, %v12588
      %v12591 = vshll.u32 %v12523, 16
      %v12593 = vrot.slane %v12591, 1
      %v12594 = vsel %vm5820, %v12589, %v12593
      %v12596 = vshrl.u32 %v12476, 16
      %v12598 = vshll.u32 %v12476, 16
      %v12600 = vrot.slane %v12598, 1
      %v12601 = vor.u32 %v12596, %v12600
      %v12603 = vshll.u32 %v12524, 16
      %v12605 = vrot.slane %v12603, 1
      %v12606 = vsel %vm5820, %v12601, %v12605
      %v12608 = vshrl.u32 %v12477, 16
      %v12610 = vshll.u32 %v12477, 16
      %v12612 = vrot.slane %v12610, 1
      %v12613 = vor.u32 %v12608, %v12612
      %v12615 = vshll.u32 %v12525, 16
      %v12617 = vrot.slane %v12615, 1
      %v12618 = vsel %vm5820, %v12613, %v12617
      %v12620 = vshrl.u32 %v12478, 16
      %v12622 = vshll.u32 %v12478, 16
      %v12624 = vrot.slane %v12622, 1
      %v12625 = vor.u32 %v12620, %v12624
      %v12627 = vshll.u32 %v12526, 16
      %v12629 = vrot.slane %v12627, 1
      %v12630 = vsel %vm5820, %v12625, %v12629
      %v12632 = vshrl.u32 %v12479, 16
      %v12634 = vshll.u32 %v12479, 16
      %v12636 = vrot.slane %v12634, 1
      %v12637 = vor.u32 %v12632, %v12636
      %v12639 = vshll.u32 %v12527, 16
      %v12641 = vrot.slane %v12639, 1
      %v12642 = vsel %vm5820, %v12637, %v12641
      %v12644 = vshrl.u32 %v12480, 16
      %v12646 = vshll.u32 %v12480, 16
      %v12648 = vrot.slane %v12646, 1
      %v12649 = vor.u32 %v12644, %v12648
      %v12651 = vshll.u32 %v12528, 16
      %v12653 = vrot.slane %v12651, 1
      %v12654 = vsel %vm5820, %v12649, %v12653
      %v12656 = vshrl.u32 %v12481, 16
      %v12658 = vshll.u32 %v12481, 16
      %v12660 = vrot.slane %v12658, 1
      %v12661 = vor.u32 %v12656, %v12660
      %v12663 = vshll.u32 %v12529, 16
      %v12665 = vrot.slane %v12663, 1
      %v12666 = vsel %vm5820, %v12661, %v12665
      %v12668 = vshrl.u32 %v12482, 16
      %v12670 = vshll.u32 %v12482, 16
      %v12672 = vrot.slane %v12670, 1
      %v12673 = vor.u32 %v12668, %v12672
      %v12675 = vshll.u32 %v12530, 16
      %v12677 = vrot.slane %v12675, 1
      %v12678 = vsel %vm5820, %v12673, %v12677
      %v12680 = vshrl.u32 %v12483, 16
      %v12682 = vshll.u32 %v12483, 16
      %v12684 = vrot.slane %v12682, 1
      %v12685 = vor.u32 %v12680, %v12684
      %v12687 = vshll.u32 %v12531, 16
      %v12689 = vrot.slane %v12687, 1
      %v12690 = vsel %vm5820, %v12685, %v12689
      %v12692 = vshrl.u32 %v12484, 16
      %v12694 = vshll.u32 %v12484, 16
      %v12696 = vrot.slane %v12694, 1
      %v12697 = vor.u32 %v12692, %v12696
      %v12699 = vshll.u32 %v12532, 16
      %v12701 = vrot.slane %v12699, 1
      %v12702 = vsel %vm5820, %v12697, %v12701
      %v12704 = vshrl.u32 %v12485, 16
      %v12706 = vshll.u32 %v12485, 16
      %v12708 = vrot.slane %v12706, 1
      %v12709 = vor.u32 %v12704, %v12708
      %v12711 = vshll.u32 %v12533, 16
      %v12713 = vrot.slane %v12711, 1
      %v12714 = vsel %vm5820, %v12709, %v12713
      %v12716 = vshrl.u32 %v12486, 16
      %v12718 = vshll.u32 %v12486, 16
      %v12720 = vrot.slane %v12718, 1
      %v12721 = vor.u32 %v12716, %v12720
      %v12723 = vshll.u32 %v12534, 16
      %v12725 = vrot.slane %v12723, 1
      %v12726 = vsel %vm5820, %v12721, %v12725
      %12727 = vrot.lane.b32.xlu0 %v12546, 8
      %v12728 = vpop.permute.xlu0 %12727
      %12729 = vrot.lane.b32.xlu0 %v12558, 8
      %v12730 = vpop.permute.xlu0 %12729
      %12731 = vrot.lane.b32.xlu0 %v12570, 8
      %v12732 = vpop.permute.xlu0 %12731
      %12733 = vrot.lane.b32.xlu0 %v12582, 8
      %v12734 = vpop.permute.xlu0 %12733
      %12735 = vrot.lane.b32.xlu0 %v12594, 8
      %v12736 = vpop.permute.xlu0 %12735
      %12737 = vrot.lane.b32.xlu0 %v12606, 8
      %v12738 = vpop.permute.xlu0 %12737
      %12739 = vrot.lane.b32.xlu0 %v12618, 8
      %v12740 = vpop.permute.xlu0 %12739
      %12741 = vrot.lane.b32.xlu0 %v12630, 8
      %v12742 = vpop.permute.xlu0 %12741
      %12743 = vrot.lane.b32.xlu0 %v12642, 8
      %v12744 = vpop.permute.xlu0 %12743
      %12745 = vrot.lane.b32.xlu0 %v12654, 8
      %v12746 = vpop.permute.xlu0 %12745
      %12747 = vrot.lane.b32.xlu0 %v12666, 8
      %v12748 = vpop.permute.xlu0 %12747
      %12749 = vrot.lane.b32.xlu0 %v12678, 8
      %v12750 = vpop.permute.xlu0 %12749
      %12751 = vrot.lane.b32.xlu0 %v12690, 8
      %v12752 = vpop.permute.xlu0 %12751
      %12753 = vrot.lane.b32.xlu0 %v12702, 8
      %v12754 = vpop.permute.xlu0 %12753
      %12755 = vrot.lane.b32.xlu0 %v12714, 8
      %v12756 = vpop.permute.xlu0 %12755
      %12757 = vrot.lane.b32.xlu0 %v12726, 8
      %v12758 = vpop.permute.xlu0 %12757
      %v12775 = vunpack.c.l.b16 %v12391
      %v12776 = vunpack.c.l.b16 %v12392
      %v12777 = vunpack.c.l.b16 %v12393
      %v12778 = vunpack.c.l.b16 %v12394
      %v12779 = vunpack.c.l.b16 %v12395
      %v12780 = vunpack.c.l.b16 %v12396
      %v12781 = vunpack.c.l.b16 %v12397
      %v12782 = vunpack.c.l.b16 %v12398
      %v12783 = vunpack.c.l.b16 %v12399
      %v12784 = vunpack.c.l.b16 %v12400
      %v12785 = vunpack.c.l.b16 %v12401
      %v12786 = vunpack.c.l.b16 %v12402
      %v12787 = vunpack.c.l.b16 %v12403
      %v12788 = vunpack.c.l.b16 %v12404
      %v12789 = vunpack.c.l.b16 %v12405
      %v12790 = vunpack.c.l.b16 %v12406
      %v12791 = vpack.c.b16 %v12440, %v12775
      %v12792 = vpack.c.b16 %v12442, %v12776
      %v12793 = vpack.c.b16 %v12444, %v12777
      %v12794 = vpack.c.b16 %v12446, %v12778
      %v12795 = vpack.c.b16 %v12448, %v12779
      %v12796 = vpack.c.b16 %v12450, %v12780
      %v12797 = vpack.c.b16 %v12452, %v12781
      %v12798 = vpack.c.b16 %v12454, %v12782
      %v12799 = vpack.c.b16 %v12456, %v12783
      %v12800 = vpack.c.b16 %v12458, %v12784
      %v12801 = vpack.c.b16 %v12460, %v12785
      %v12802 = vpack.c.b16 %v12462, %v12786
      %v12803 = vpack.c.b16 %v12464, %v12787
      %v12804 = vpack.c.b16 %v12466, %v12788
      %v12805 = vpack.c.b16 %v12468, %v12789
      %v12806 = vpack.c.b16 %v12470, %v12790
      %v12807 = vrot.slane %v12791, 1
      %v12808 = vrot.slane %v12519, 1
      %v12809 = vsel %vm6093, %v12807, %v12808
      %v12810 = vrot.slane %v12792, 1
      %v12811 = vrot.slane %v12520, 1
      %v12812 = vsel %vm6093, %v12810, %v12811
      %v12813 = vrot.slane %v12793, 1
      %v12814 = vrot.slane %v12521, 1
      %v12815 = vsel %vm6093, %v12813, %v12814
      %v12816 = vrot.slane %v12794, 1
      %v12817 = vrot.slane %v12522, 1
      %v12818 = vsel %vm6093, %v12816, %v12817
      %v12819 = vrot.slane %v12795, 1
      %v12820 = vrot.slane %v12523, 1
      %v12821 = vsel %vm6093, %v12819, %v12820
      %v12822 = vrot.slane %v12796, 1
      %v12823 = vrot.slane %v12524, 1
      %v12824 = vsel %vm6093, %v12822, %v12823
      %v12825 = vrot.slane %v12797, 1
      %v12826 = vrot.slane %v12525, 1
      %v12827 = vsel %vm6093, %v12825, %v12826
      %v12828 = vrot.slane %v12798, 1
      %v12829 = vrot.slane %v12526, 1
      %v12830 = vsel %vm6093, %v12828, %v12829
      %v12831 = vrot.slane %v12799, 1
      %v12832 = vrot.slane %v12527, 1
      %v12833 = vsel %vm6093, %v12831, %v12832
      %v12834 = vrot.slane %v12800, 1
      %v12835 = vrot.slane %v12528, 1
      %v12836 = vsel %vm6093, %v12834, %v12835
      %v12837 = vrot.slane %v12801, 1
      %v12838 = vrot.slane %v12529, 1
      %v12839 = vsel %vm6093, %v12837, %v12838
      %v12840 = vrot.slane %v12802, 1
      %v12841 = vrot.slane %v12530, 1
      %v12842 = vsel %vm6093, %v12840, %v12841
      %v12843 = vrot.slane %v12803, 1
      %v12844 = vrot.slane %v12531, 1
      %v12845 = vsel %vm6093, %v12843, %v12844
      %v12846 = vrot.slane %v12804, 1
      %v12847 = vrot.slane %v12532, 1
      %v12848 = vsel %vm6093, %v12846, %v12847
      %v12849 = vrot.slane %v12805, 1
      %v12850 = vrot.slane %v12533, 1
      %v12851 = vsel %vm6093, %v12849, %v12850
      %v12852 = vrot.slane %v12806, 1
      %v12853 = vrot.slane %v12534, 1
      %v12854 = vsel %vm6093, %v12852, %v12853
      %12855 = vrot.lane.b32.xlu0 %v12809, 16
      %v12856 = vpop.permute.xlu0 %12855
      %12857 = vrot.lane.b32.xlu0 %v12812, 16
      %v12858 = vpop.permute.xlu0 %12857
      %12859 = vrot.lane.b32.xlu0 %v12815, 16
      %v12860 = vpop.permute.xlu0 %12859
      %12861 = vrot.lane.b32.xlu0 %v12818, 16
      %v12862 = vpop.permute.xlu0 %12861
      %12863 = vrot.lane.b32.xlu0 %v12821, 16
      %v12864 = vpop.permute.xlu0 %12863
      %12865 = vrot.lane.b32.xlu0 %v12824, 16
      %v12866 = vpop.permute.xlu0 %12865
      %12867 = vrot.lane.b32.xlu0 %v12827, 16
      %v12868 = vpop.permute.xlu0 %12867
      %12869 = vrot.lane.b32.xlu0 %v12830, 16
      %v12870 = vpop.permute.xlu0 %12869
      %12871 = vrot.lane.b32.xlu0 %v12833, 16
      %v12872 = vpop.permute.xlu0 %12871
      %12873 = vrot.lane.b32.xlu0 %v12836, 16
      %v12874 = vpop.permute.xlu0 %12873
      %12875 = vrot.lane.b32.xlu0 %v12839, 16
      %v12876 = vpop.permute.xlu0 %12875
      %12877 = vrot.lane.b32.xlu0 %v12842, 16
      %v12878 = vpop.permute.xlu0 %12877
      %12879 = vrot.lane.b32.xlu0 %v12845, 16
      %v12880 = vpop.permute.xlu0 %12879
      %12881 = vrot.lane.b32.xlu0 %v12848, 16
      %v12882 = vpop.permute.xlu0 %12881
      %12883 = vrot.lane.b32.xlu0 %v12851, 16
      %v12884 = vpop.permute.xlu0 %12883
      %12885 = vrot.lane.b32.xlu0 %v12854, 16
      %v12886 = vpop.permute.xlu0 %12885
      %v12888 = vsel %vm6718, %v12471, %v12728
      %v12890 = vsel %vm6718, %v12472, %v12730
      %v12892 = vsel %vm6718, %v12473, %v12732
      %v12894 = vsel %vm6718, %v12474, %v12734
      %v12896 = vsel %vm6718, %v12475, %v12736
      %v12898 = vsel %vm6718, %v12476, %v12738
      %v12900 = vsel %vm6718, %v12477, %v12740
      %v12902 = vsel %vm6718, %v12478, %v12742
      %v12904 = vsel %vm6718, %v12479, %v12744
      %v12906 = vsel %vm6718, %v12480, %v12746
      %v12908 = vsel %vm6718, %v12481, %v12748
      %v12910 = vsel %vm6718, %v12482, %v12750
      %v12912 = vsel %vm6718, %v12483, %v12752
      %v12914 = vsel %vm6718, %v12484, %v12754
      %v12916 = vsel %vm6718, %v12485, %v12756
      %v12918 = vsel %vm6718, %v12486, %v12758
      %v12920 = vsel %vm6784, %v12888, %v12856
      %v12922 = vsel %vm6784, %v12890, %v12858
      %v12924 = vsel %vm6784, %v12892, %v12860
      %v12926 = vsel %vm6784, %v12894, %v12862
      %v12928 = vsel %vm6784, %v12896, %v12864
      %v12930 = vsel %vm6784, %v12898, %v12866
      %v12932 = vsel %vm6784, %v12900, %v12868
      %v12934 = vsel %vm6784, %v12902, %v12870
      %v12936 = vsel %vm6784, %v12904, %v12872
      %v12938 = vsel %vm6784, %v12906, %v12874
      %v12940 = vsel %vm6784, %v12908, %v12876
      %v12942 = vsel %vm6784, %v12910, %v12878
      %v12944 = vsel %vm6784, %v12912, %v12880
      %v12946 = vsel %vm6784, %v12914, %v12882
      %v12948 = vsel %vm6784, %v12916, %v12884
      %v12950 = vsel %vm6784, %v12918, %v12886
      %s12951 = scalar_lea.vmem %s6, 24
      %v12952 = vld [vmem:[%s12951] sm:$0xf]
      %v12953 = vld [vmem:[%s12951 + $0x4] sm:$0xf]
      %v12954 = vld [vmem:[%s12951 + $0x8] sm:$0xf]
      %v12958 = vunpack.c.l.b16 %v12952
      %v12959 = vunpack.c.l.b16 %v12953
      %v12960 = vunpack.c.l.b16 %v12954
      %v12961 = vpack.c.b16 %v12959, %v12958
      %v12962 = vpack.c.b16 %v12960, %v12960
      %v12964 = vsel %vm8146, %v12920, 0
      %v12966 = vsel %vm8146, %v12922, 0
      %v12968 = vsel %vm8146, %v12924, 0
      %v12970 = vsel %vm8146, %v12926, 0
      %v12972 = vsel %vm8146, %v12928, 0
      %v12974 = vsel %vm8146, %v12930, 0
      %v12976 = vsel %vm8146, %v12932, 0
      %v12978 = vsel %vm8146, %v12934, 0
      %v12980 = vsel %vm8146, %v12936, 0
      %v12982 = vsel %vm8146, %v12938, 0
      %v12984 = vsel %vm8146, %v12940, 0
      %v12986 = vsel %vm8146, %v12942, 0
      %v12988 = vsel %vm8146, %v12944, 0
      %v12990 = vsel %vm8146, %v12946, 0
      %v12992 = vsel %vm8146, %v12948, 0
      %v12994 = vsel %vm8146, %v12950, 0
      %v12997 = vsel %vm8179, %v12962, 0
      %12999 = vmatprep.subr.bf16.mxu0 0
      %13000 = vmatpush1.bf16.msra.mxu0 %v12961
      %13001 = vmatprep.subr.bf16.mxu0 0
      %13002 = vmatpush1.bf16.msra.mxu0 %v12997
      %13003 = vmatprep.subr.bf16.mxu0 0
      %13004 = vmatpush1.bf16.msra.mxu0 0
      %13005 = vmatprep.subr.bf16.mxu0 0
      %13006 = vmatpush1.bf16.msra.mxu0 0
      %13007 = vmatprep.subr.bf16.mxu0 0
      %13008 = vmatpush1.bf16.msra.mxu0 0
      %13009 = vmatprep.subr.bf16.mxu0 0
      %13010 = vmatpush1.bf16.msra.mxu0 0
      %13011 = vmatprep.subr.bf16.mxu0 0
      %13012 = vmatpush1.bf16.msra.mxu0 0
      %13013 = vmatprep.subr.bf16.mxu0 0
      %13014 = vmatpush1.bf16.msra.mxu0 0
      %13015 = vmatprep.subr.bf16.mxu0 0
      %13016 = vmatpush1.bf16.msra.mxu0 0
      %13017 = vmatprep.subr.bf16.mxu0 0
      %13018 = vmatpush1.bf16.msra.mxu0 0
      %13019 = vmatprep.subr.bf16.mxu0 0
      %13020 = vmatpush1.bf16.msra.mxu0 0
      %13021 = vmatprep.subr.bf16.mxu0 0
      %13022 = vmatpush1.bf16.msra.mxu0 0
      %13023 = vmatprep.subr.bf16.mxu0 0
      %13024 = vmatpush1.bf16.msra.mxu0 0
      %13025 = vmatprep.subr.bf16.mxu0 0
      %13026 = vmatpush1.bf16.msra.mxu0 0
      %13027 = vmatprep.subr.bf16.mxu0 0
      %13028 = vmatpush1.bf16.msra.mxu0 0
      %13029 = vmatprep.subr.bf16.mxu0 0
      %13030 = vmatpush1.bf16.msra.mxu0 0
      %13031 = vmatprep.mubr.bf16.mxu0 0
      %13032 = vmatmul.mubr.bf16.gmra.mrb[0].mxu0 %v12964
      %v13033 = vpop.f32.mrb[0].mxu0
      %v13034 = vadd.f32 0.0, %v13033
      %v13035 = vpop.f32.mrb[0].mxu0
      %v13036 = vpop.f32.mrb[0].mxu0
      %v13037 = vadd.f32 0.0, %v13036
      %v13038 = vpop.f32.mrb[0].mxu0
      %13039 = vmatprep.mubr.bf16.mxu0 0
      %13040 = vmatmul.mubr.bf16.gmra.mrb[0].mxu0 %v12966
      %v13041 = vpop.f32.mrb[0].mxu0
      %v13042 = vadd.f32 0.0, %v13041
      %v13043 = vpop.f32.mrb[0].mxu0
      %v13044 = vpop.f32.mrb[0].mxu0
      %v13045 = vadd.f32 0.0, %v13044
      %v13046 = vpop.f32.mrb[0].mxu0
      %13047 = vmatprep.mubr.bf16.mxu0 0
      %13048 = vmatmul.mubr.bf16.gmra.mrb[0].mxu0 %v12968
      %v13049 = vpop.f32.mrb[0].mxu0
      %v13050 = vadd.f32 0.0, %v13049
      %v13051 = vpop.f32.mrb[0].mxu0
      %v13052 = vpop.f32.mrb[0].mxu0
      %v13053 = vadd.f32 0.0, %v13052
      %v13054 = vpop.f32.mrb[0].mxu0
      %13055 = vmatprep.mubr.bf16.mxu0 0
      %13056 = vmatmul.mubr.bf16.gmra.mrb[0].mxu0 %v12970
      %v13057 = vpop.f32.mrb[0].mxu0
      %v13058 = vadd.f32 0.0, %v13057
      %v13059 = vpop.f32.mrb[0].mxu0
      %v13060 = vpop.f32.mrb[0].mxu0
      %v13061 = vadd.f32 0.0, %v13060
      %v13062 = vpop.f32.mrb[0].mxu0
      %13063 = vmatprep.mubr.bf16.mxu0 0
      %13064 = vmatmul.mubr.bf16.gmra.mrb[0].mxu0 %v12972
      %v13065 = vpop.f32.mrb[0].mxu0
      %v13066 = vadd.f32 0.0, %v13065
      %v13067 = vpop.f32.mrb[0].mxu0
      %v13068 = vpop.f32.mrb[0].mxu0
      %v13069 = vadd.f32 0.0, %v13068
      %v13070 = vpop.f32.mrb[0].mxu0
      %13071 = vmatprep.mubr.bf16.mxu0 0
      %13072 = vmatmul.mubr.bf16.gmra.mrb[0].mxu0 %v12974
      %v13073 = vpop.f32.mrb[0].mxu0
      %v13074 = vadd.f32 0.0, %v13073
      %v13075 = vpop.f32.mrb[0].mxu0
      %v13076 = vpop.f32.mrb[0].mxu0
      %v13077 = vadd.f32 0.0, %v13076
      %v13078 = vpop.f32.mrb[0].mxu0
      %13079 = vmatprep.mubr.bf16.mxu0 0
      %13080 = vmatmul.mubr.bf16.gmra.mrb[0].mxu0 %v12976
      %v13081 = vpop.f32.mrb[0].mxu0
      %v13082 = vadd.f32 0.0, %v13081
      %v13083 = vpop.f32.mrb[0].mxu0
      %v13084 = vpop.f32.mrb[0].mxu0
      %v13085 = vadd.f32 0.0, %v13084
      %v13086 = vpop.f32.mrb[0].mxu0
      %13087 = vmatprep.mubr.bf16.mxu0 0
      %13088 = vmatmul.mubr.bf16.gmra.mrb[0].mxu0 %v12978
      %v13089 = vpop.f32.mrb[0].mxu0
      %v13090 = vadd.f32 0.0, %v13089
      %v13091 = vpop.f32.mrb[0].mxu0
      %v13092 = vpop.f32.mrb[0].mxu0
      %v13093 = vadd.f32 0.0, %v13092
      %v13094 = vpop.f32.mrb[0].mxu0
      %13095 = vmatprep.mubr.bf16.mxu0 0
      %13096 = vmatmul.mubr.bf16.gmra.mrb[0].mxu0 %v12980
      %v13097 = vpop.f32.mrb[0].mxu0
      %v13098 = vadd.f32 0.0, %v13097
      %v13099 = vpop.f32.mrb[0].mxu0
      %v13100 = vpop.f32.mrb[0].mxu0
      %v13101 = vadd.f32 0.0, %v13100
      %v13102 = vpop.f32.mrb[0].mxu0
      %13103 = vmatprep.mubr.bf16.mxu0 0
      %13104 = vmatmul.mubr.bf16.gmra.mrb[0].mxu0 %v12982
      %v13105 = vpop.f32.mrb[0].mxu0
      %v13106 = vadd.f32 0.0, %v13105
      %v13107 = vpop.f32.mrb[0].mxu0
      %v13108 = vpop.f32.mrb[0].mxu0
      %v13109 = vadd.f32 0.0, %v13108
      %v13110 = vpop.f32.mrb[0].mxu0
      %13111 = vmatprep.mubr.bf16.mxu0 0
      %13112 = vmatmul.mubr.bf16.gmra.mrb[0].mxu0 %v12984
      %v13113 = vpop.f32.mrb[0].mxu0
      %v13114 = vadd.f32 0.0, %v13113
      %v13115 = vpop.f32.mrb[0].mxu0
      %v13116 = vpop.f32.mrb[0].mxu0
      %v13117 = vadd.f32 0.0, %v13116
      %v13118 = vpop.f32.mrb[0].mxu0
      %13119 = vmatprep.mubr.bf16.mxu0 0
      %13120 = vmatmul.mubr.bf16.gmra.mrb[0].mxu0 %v12986
      %v13121 = vpop.f32.mrb[0].mxu0
      %v13122 = vadd.f32 0.0, %v13121
      %v13123 = vpop.f32.mrb[0].mxu0
      %v13124 = vpop.f32.mrb[0].mxu0
      %v13125 = vadd.f32 0.0, %v13124
      %v13126 = vpop.f32.mrb[0].mxu0
      %13127 = vmatprep.mubr.bf16.mxu0 0
      %13128 = vmatmul.mubr.bf16.gmra.mrb[0].mxu0 %v12988
      %v13129 = vpop.f32.mrb[0].mxu0
      %v13130 = vadd.f32 0.0, %v13129
      %v13131 = vpop.f32.mrb[0].mxu0
      %v13132 = vpop.f32.mrb[0].mxu0
      %v13133 = vadd.f32 0.0, %v13132
      %v13134 = vpop.f32.mrb[0].mxu0
      %13135 = vmatprep.mubr.bf16.mxu0 0
      %13136 = vmatmul.mubr.bf16.gmra.mrb[0].mxu0 %v12990
      %v13137 = vpop.f32.mrb[0].mxu0
      %v13138 = vadd.f32 0.0, %v13137
      %v13139 = vpop.f32.mrb[0].mxu0
      %v13140 = vpop.f32.mrb[0].mxu0
      %v13141 = vadd.f32 0.0, %v13140
      %v13142 = vpop.f32.mrb[0].mxu0
      %13143 = vmatprep.mubr.bf16.mxu0 0
      %13144 = vmatmul.mubr.bf16.gmra.mrb[0].mxu0 %v12992
      %v13145 = vpop.f32.mrb[0].mxu0
      %v13146 = vadd.f32 0.0, %v13145
      %v13147 = vpop.f32.mrb[0].mxu0
      %v13148 = vpop.f32.mrb[0].mxu0
      %v13149 = vadd.f32 0.0, %v13148
      %v13150 = vpop.f32.mrb[0].mxu0
      %13151 = vmatprep.mubr.bf16.mxu0 0
      %13152 = vmatmul.mubr.bf16.gmra.mrb[0].mxu0 %v12994
      %v13153 = vpop.f32.mrb[0].mxu0
      %v13154 = vadd.f32 0.0, %v13153
      %v13155 = vpop.f32.mrb[0].mxu0
      %v13156 = vpop.f32.mrb[0].mxu0
      %v13157 = vadd.f32 0.0, %v13156
      %v13158 = vpop.f32.mrb[0].mxu0
      %13159 = vdwg.mxu0
      %v13160 = vadd.f32 %v12216, %v13034
      %v13161 = vadd.f32 %v12219, %v13037
      %v13162 = vadd.f32 %v12224, %v13042
      %v13163 = vadd.f32 %v12227, %v13045
      %v13164 = vadd.f32 %v12232, %v13050
      %v13165 = vadd.f32 %v12235, %v13053
      %v13166 = vadd.f32 %v12240, %v13058
      %v13167 = vadd.f32 %v12243, %v13061
      %v13168 = vadd.f32 %v12248, %v13066
      %v13169 = vadd.f32 %v12251, %v13069
      %v13170 = vadd.f32 %v12256, %v13074
      %v13171 = vadd.f32 %v12259, %v13077
      %v13172 = vadd.f32 %v12264, %v13082
      %v13173 = vadd.f32 %v12267, %v13085
      %v13174 = vadd.f32 %v12272, %v13090
      %v13175 = vadd.f32 %v12275, %v13093
      %v13176 = vadd.f32 %v12280, %v13098
      %v13177 = vadd.f32 %v12283, %v13101
      %v13178 = vadd.f32 %v12288, %v13106
      %v13179 = vadd.f32 %v12291, %v13109
      %v13180 = vadd.f32 %v12296, %v13114
      %v13181 = vadd.f32 %v12299, %v13117
      %v13182 = vadd.f32 %v12304, %v13122
      %v13183 = vadd.f32 %v12307, %v13125
      %v13184 = vadd.f32 %v12312, %v13130
      %v13185 = vadd.f32 %v12315, %v13133
      %v13186 = vadd.f32 %v12320, %v13138
      %v13187 = vadd.f32 %v12323, %v13141
      %v13188 = vadd.f32 %v12328, %v13146
      %v13189 = vadd.f32 %v12331, %v13149
      %v13190 = vadd.f32 %v12336, %v13154
      %v13191 = vadd.f32 %v12339, %v13157
      %v13192 = vld [vmem:[%s7] sm:$0x1]
      %v13193 = vlaneseq
      %v13194 = vshrl.u32 %v13193, 7
      %v13195 = vsub.s32 0, %v13194
      %v13196 = vrot.slane %v13192, %v13195
      %v13197 = vmul.f32 %v13160, %v13196
      %v13198 = vmul.f32 %v13161, %v13196
      %v13199 = vmul.f32 %v13162, %v13196
      %v13200 = vmul.f32 %v13163, %v13196
      %v13201 = vmul.f32 %v13164, %v13196
      %v13202 = vmul.f32 %v13165, %v13196
      %v13203 = vmul.f32 %v13166, %v13196
      %v13204 = vmul.f32 %v13167, %v13196
      %v13205 = vmul.f32 %v13168, %v13196
      %v13206 = vmul.f32 %v13169, %v13196
      %v13207 = vmul.f32 %v13170, %v13196
      %v13208 = vmul.f32 %v13171, %v13196
      %v13209 = vmul.f32 %v13172, %v13196
      %v13210 = vmul.f32 %v13173, %v13196
      %v13211 = vmul.f32 %v13174, %v13196
      %v13212 = vmul.f32 %v13175, %v13196
      %v13213 = vmul.f32 %v13176, %v13196
      %v13214 = vmul.f32 %v13177, %v13196
      %v13215 = vmul.f32 %v13178, %v13196
      %v13216 = vmul.f32 %v13179, %v13196
      %v13217 = vmul.f32 %v13180, %v13196
      %v13218 = vmul.f32 %v13181, %v13196
      %v13219 = vmul.f32 %v13182, %v13196
      %v13220 = vmul.f32 %v13183, %v13196
      %v13221 = vmul.f32 %v13184, %v13196
      %v13222 = vmul.f32 %v13185, %v13196
      %v13223 = vmul.f32 %v13186, %v13196
      %v13224 = vmul.f32 %v13187, %v13196
      %v13225 = vmul.f32 %v13188, %v13196
      %v13226 = vmul.f32 %v13189, %v13196
      %v13227 = vmul.f32 %v13190, %v13196
      %v13228 = vmul.f32 %v13191, %v13196
      %v13229 = vld [vmem:[%s7 + $0x1] sm:$0x1]
      %v13230 = vlaneseq
      %v13231 = vshrl.u32 %v13230, 7
      %v13232 = vsub.s32 0, %v13231
      %v13233 = vrot.slane %v13229, %v13232
      %v13234 = vadd.f32 %v13197, %v13233
      %v13235 = vadd.f32 %v13198, %v13233
      %v13236 = vadd.f32 %v13199, %v13233
      %v13237 = vadd.f32 %v13200, %v13233
      %v13238 = vadd.f32 %v13201, %v13233
      %v13239 = vadd.f32 %v13202, %v13233
      %v13240 = vadd.f32 %v13203, %v13233
      %v13241 = vadd.f32 %v13204, %v13233
      %v13242 = vadd.f32 %v13205, %v13233
      %v13243 = vadd.f32 %v13206, %v13233
      %v13244 = vadd.f32 %v13207, %v13233
      %v13245 = vadd.f32 %v13208, %v13233
      %v13246 = vadd.f32 %v13209, %v13233
      %v13247 = vadd.f32 %v13210, %v13233
      %v13248 = vadd.f32 %v13211, %v13233
      %v13249 = vadd.f32 %v13212, %v13233
      %v13250 = vadd.f32 %v13213, %v13233
      %v13251 = vadd.f32 %v13214, %v13233
      %v13252 = vadd.f32 %v13215, %v13233
      %v13253 = vadd.f32 %v13216, %v13233
      %v13254 = vadd.f32 %v13217, %v13233
      %v13255 = vadd.f32 %v13218, %v13233
      %v13256 = vadd.f32 %v13219, %v13233
      %v13257 = vadd.f32 %v13220, %v13233
      %v13258 = vadd.f32 %v13221, %v13233
      %v13259 = vadd.f32 %v13222, %v13233
      %v13260 = vadd.f32 %v13223, %v13233
      %v13261 = vadd.f32 %v13224, %v13233
      %v13262 = vadd.f32 %v13225, %v13233
      %v13263 = vadd.f32 %v13226, %v13233
      %v13264 = vadd.f32 %v13227, %v13233
      %v13265 = vadd.f32 %v13228, %v13233
      %v13266 = vmax.f32 %v13234, 0.0
      %v13267 = vmax.f32 %v13235, 0.0
      %v13268 = vmax.f32 %v13236, 0.0
      %v13269 = vmax.f32 %v13237, 0.0
      %v13270 = vmax.f32 %v13238, 0.0
      %v13271 = vmax.f32 %v13239, 0.0
      %v13272 = vmax.f32 %v13240, 0.0
      %v13273 = vmax.f32 %v13241, 0.0
      %v13274 = vmax.f32 %v13242, 0.0
      %v13275 = vmax.f32 %v13243, 0.0
      %v13276 = vmax.f32 %v13244, 0.0
      %v13277 = vmax.f32 %v13245, 0.0
      %v13278 = vmax.f32 %v13246, 0.0
      %v13279 = vmax.f32 %v13247, 0.0
      %v13280 = vmax.f32 %v13248, 0.0
      %v13281 = vmax.f32 %v13249, 0.0
      %v13282 = vmax.f32 %v13250, 0.0
      %v13283 = vmax.f32 %v13251, 0.0
      %v13284 = vmax.f32 %v13252, 0.0
      %v13285 = vmax.f32 %v13253, 0.0
      %v13286 = vmax.f32 %v13254, 0.0
      %v13287 = vmax.f32 %v13255, 0.0
      %v13288 = vmax.f32 %v13256, 0.0
      %v13289 = vmax.f32 %v13257, 0.0
      %v13290 = vmax.f32 %v13258, 0.0
      %v13291 = vmax.f32 %v13259, 0.0
      %v13292 = vmax.f32 %v13260, 0.0
      %v13293 = vmax.f32 %v13261, 0.0
      %v13294 = vmax.f32 %v13262, 0.0
      %v13295 = vmax.f32 %v13263, 0.0
      %v13296 = vmax.f32 %v13264, 0.0
      %v13297 = vmax.f32 %v13265, 0.0
      %13298 = vst.msk [vmem:[%s325] sm:$0xff] %vm6718, %v13266
      %13299 = vst.msk [vmem:[%s325 + $0x8] sm:$0xff] %vm6718, %v13267
      %13300 = vst.msk [vmem:[%s325 + $0x10] sm:$0xff] %vm6718, %v13268
      %13301 = vst.msk [vmem:[%s325 + $0x18] sm:$0xff] %vm6718, %v13269
      %13302 = vst.msk [vmem:[%s325 + $0x20] sm:$0xff] %vm6718, %v13270
      %13303 = vst.msk [vmem:[%s325 + $0x28] sm:$0xff] %vm6718, %v13271
      %13304 = vst.msk [vmem:[%s325 + $0x30] sm:$0xff] %vm6718, %v13272
      %13305 = vst.msk [vmem:[%s325 + $0x38] sm:$0xff] %vm6718, %v13273
      %13306 = vst.msk [vmem:[%s325 + $0x40] sm:$0xff] %vm6718, %v13274
      %13307 = vst.msk [vmem:[%s325 + $0x48] sm:$0xff] %vm6718, %v13275
      %13308 = vst.msk [vmem:[%s325 + $0x50] sm:$0xff] %vm6718, %v13276
      %13309 = vst.msk [vmem:[%s325 + $0x58] sm:$0xff] %vm6718, %v13277
      %13310 = vst.msk [vmem:[%s325 + $0x60] sm:$0xff] %vm6718, %v13278
      %13311 = vst.msk [vmem:[%s325 + $0x68] sm:$0xff] %vm6718, %v13279
      %13312 = vst.msk [vmem:[%s325 + $0x70] sm:$0xff] %vm6718, %v13280
      %13313 = vst.msk [vmem:[%s325 + $0x78] sm:$0xff] %vm6718, %v13281
      %13314 = vst.msk [vmem:[%s325 + $0x80] sm:$0xff] %vm6718, %v13282
      %13315 = vst.msk [vmem:[%s325 + $0x88] sm:$0xff] %vm6718, %v13283
      %13316 = vst.msk [vmem:[%s325 + $0x90] sm:$0xff] %vm6718, %v13284
      %13317 = vst.msk [vmem:[%s325 + $0x98] sm:$0xff] %vm6718, %v13285
      %13318 = vst.msk [vmem:[%s325 + $0xa0] sm:$0xff] %vm6718, %v13286
      %13319 = vst.msk [vmem:[%s325 + $0xa8] sm:$0xff] %vm6718, %v13287
      %13320 = vst.msk [vmem:[%s325 + $0xb0] sm:$0xff] %vm6718, %v13288
      %13321 = vst.msk [vmem:[%s325 + $0xb8] sm:$0xff] %vm6718, %v13289
      %13322 = vst.msk [vmem:[%s325 + $0xc0] sm:$0xff] %vm6718, %v13290
      %13323 = vst.msk [vmem:[%s325 + $0xc8] sm:$0xff] %vm6718, %v13291
      %13324 = vst.msk [vmem:[%s325 + $0xd0] sm:$0xff] %vm6718, %v13292
      %13325 = vst.msk [vmem:[%s325 + $0xd8] sm:$0xff] %vm6718, %v13293
      %13326 = vst.msk [vmem:[%s325 + $0xe0] sm:$0xff] %vm6718, %v13294
      %13327 = vst.msk [vmem:[%s325 + $0xe8] sm:$0xff] %vm6718, %v13295
      %13328 = vst.msk [vmem:[%s325 + $0xf0] sm:$0xff] %vm6718, %v13296
      %13329 = vst.msk [vmem:[%s325 + $0xf8] sm:$0xff] %vm6718, %v13297
      %p13330 = scmp.lt.s32.totalorder %s19, 1
      %s13331 = scalar_select %p13330, %s19, 1
      %s13332 = smul.addr %s13331, 32
      %s13333 = smul.addr %s13332, 8
      %s13334 = scalar_lea.vmem %s8, %s13333
      // Predicated region
      $region53: #{upsampling_block_forward.1} parent=51 // pred_check
        %p13335 = pneg %p215
      $region54: #{upsampling_block_forward.1} parent=51 // pred_check_branch
        %13337 = sbr.rel (%p13335) target = $region56
      $region55: #{upsampling_block_forward.1} parent=51 // pred_region
        _
      $region56: #{upsampling_block_forward.1} parent=51 // pred_fallthru
        _
    $region52: #{upsampling_block_forward.1} parent=5 // pred_fallthru
      _
    %p13338 = scmp.le.s32.totalorder 2, %s14
    // Predicated region
    $region57: #{upsampling_block_forward.1} parent=5 // pred_check
      %p13339 = pneg %p13338
    $region58: #{upsampling_block_forward.1} parent=5 // pred_check_branch
      %13341 = sbr.rel (%p13339) target = $region60
    $region59: #{upsampling_block_forward.1} parent=5 // pred_region
      %s13342 = ssub.s32 %s14, 2
      // Predicated region
      $region61: #{upsampling_block_forward.1} parent=59 // pred_check
        %p13343 = pneg %p221
      $region62: #{upsampling_block_forward.1} parent=59 // pred_check_branch
        %13345 = sbr.rel (%p13343) target = $region64
      $region63: #{upsampling_block_forward.1} parent=59 // pred_region
        %p13346 = scmp.lt.s32.totalorder %s20, 1
        %s13347 = scalar_select %p13346, %s20, 1
        %s13348 = smul.addr %s13347, 32
        %s13349 = smul.addr %s13348, 8
        %s13350 = scalar_lea.vmem %s8, %s13349
      $region64: #{upsampling_block_forward.1} parent=59 // pred_fallthru
        _
    $region60: #{upsampling_block_forward.1} parent=5 // pred_fallthru
      _
  $region6: #{upsampling_block_forward.1} parent=0 // loop_footer
    %s18 = sadd.s32 1, %s14
  $region7: #{upsampling_block_forward.1} parent=0 // loop_footer_branch
    %13 = sbr.rel target = $region3
  $region8: #{upsampling_block_forward.1} parent=0 // loop_exit
    _

</llo_original>
